<compile_context>
chip_gen: v7x
topology: tpu7x:2x2x1
jax: 0.10.0
libtpu: 0.0.40
codegen_flags: <defaults>
</compile_context>

<pallas_src>
import jax
import jax.numpy as jnp
from jax import lax
from jax.experimental import pallas as pl
from jax.experimental.pallas import tpu as pltpu

_OUT_W = 128   # lane-dense output width; column 0 holds the score
_TB = 8        # batch tile (f32 sublane multiple); raise for large batches


# --------------------------------------------------------------------------
# Fused kernel: control linear + unrolled LSTM + masked max + NTN matching
# --------------------------------------------------------------------------
def _expan_match_kernel(maxlen_ref,                    # SMEM (1,) int32 (scalar prefetch)
                        p_ref,                         # (L, TB, in_dim) time-major path
                        lens_ref,                      # (TB, 1) int32
                        h0_ref, c0_ref,                # (TB, H)
                        hu_ref, qf_ref,                # (TB, in_dim)
                        wc_t_ref,                      # (in_dim, H)
                        wih_ref,                       # (4, in_dim, H)  gates i,f,g,o
                        whh_ref,                       # (4, H, H)
                        bias_ref,                      # (4, 1, H)       b_ih + b_hh
                        w2d_hu_ref,                    # (in_dim, k*r)   bilinear W (hu rows)
                        w2d_hp_ref,                    # (H, k*r)        bilinear W (hpu rows)
                        seg_ref,                       # (k*r, k)        block segment-sum
                        v_hu_ref, v_hp_ref, v_qf_ref,  # (in_dim,k),(H,k),(in_dim,k)
                        ntn_b_ref,                     # (1, k)
                        ntn_u_ref,                     # (k, 1)
                        out_ref):                      # (TB, 128) lane-dense
    f32 = jnp.float32
    L, TB, _ = p_ref.shape
    H = h0_ref.shape[1]
    k = ntn_b_ref.shape[1]

    # ---- path branch: control gate + unrolled LSTM + packed-seq masked max
    ctrl = jnp.maximum(
        jnp.dot(p_ref[0], wc_t_ref[...], preferred_element_type=f32), 0.0)   # (TB, H)

    lens = lens_ref[...]                   # (TB, 1)
    maxlen = maxlen_ref[0]                 # global max(lens) = padded output length

    # Hoisted per-gate weight blocks — no per-step 4H lane slicing.
    wih = [wih_ref[g] for g in range(4)]
    whh = [whh_ref[g] for g in range(4)]
    bia = [bias_ref[g] for g in range(4)]

    h = h0_ref[...]
    c = c0_ref[...]
    m = jnp.full((TB, H), -jnp.inf, dtype=f32)

    for t in range(L):                     # static unroll: L is small & fixed
        x_t = p_ref[t]                     # (TB, in_dim)
        pre = [jnp.dot(x_t, wih[g], preferred_element_type=f32)
               + jnp.dot(h, whh[g], preferred_element_type=f32) + bia[g]
               for g in range(4)]
        i_g = jax.nn.sigmoid(pre[0])
        f_g = jax.nn.sigmoid(pre[1])
        g_g = jnp.tanh(pre[2])
        o_g = jax.nn.sigmoid(pre[3])
        c = f_g * c + i_g * g_g
        h = o_g * jnp.tanh(c)
        # pad_packed_sequence semantics: zeros for len <= t < maxlen,
        # positions t >= maxlen do not exist (excluded from the max).
        pad_val = jnp.where(t < maxlen, 0.0, -jnp.inf)
        m = jnp.maximum(m, jnp.where(t < lens, ctrl * h, pad_val))

    hpu = m                                # (TB, H)
    hu = hu_ref[...]
    qf = qf_ref[...]

    # ---- NTN matching: one fat bilinear matmul + segment-sum matmul
    tmp = (jnp.dot(hu, w2d_hu_ref[...], preferred_element_type=f32)
           + jnp.dot(hpu, w2d_hp_ref[...], preferred_element_type=f32))      # (TB, k*r)
    qf_rep = jnp.concatenate([qf] * k, axis=-1)                              # (TB, k*r)
    bil = jnp.dot(tmp * qf_rep, seg_ref[...], preferred_element_type=f32)    # (TB, k)

    lin = (jnp.dot(hu, v_hu_ref[...], preferred_element_type=f32)
           + jnp.dot(hpu, v_hp_ref[...], preferred_element_type=f32)
           + jnp.dot(qf, v_qf_ref[...], preferred_element_type=f32))         # (TB, k)

    act = jnp.tanh(bil + lin + ntn_b_ref[...])
    score = jnp.dot(act, ntn_u_ref[...], preferred_element_type=f32)         # (TB, 1)
    out_ref[...] = jnp.broadcast_to(score, out_ref.shape)                    # lane-dense


def _fused_call(maxlen, p_seq, lens2, h0, c0, hu, qf, kp, *, tb):
    L, Bp, in_dim = p_seq.shape
    H = h0.shape[1]

    def tile2(shape):
        return pl.BlockSpec(shape, lambda i, ml: (i, 0))

    def full(arr):
        zeros = (0,) * arr.ndim
        return pl.BlockSpec(arr.shape, lambda i, ml: zeros)

    grid_spec = pltpu.PrefetchScalarGridSpec(
        num_scalar_prefetch=1,
        grid=(Bp // tb,),
        in_specs=[
            pl.BlockSpec((L, tb, in_dim), lambda i, ml: (0, i, 0)),   # p_seq
            tile2((tb, 1)),                                           # lens
            tile2((tb, H)),                                           # h0
            tile2((tb, H)),                                           # c0
            tile2((tb, in_dim)),                                      # hu
            tile2((tb, in_dim)),                                      # qf
            full(kp["wc_t"]), full(kp["wih_s"]), full(kp["whh_s"]),
            full(kp["bias_s"]), full(kp["w2d_hu"]), full(kp["w2d_hp"]),
            full(kp["seg"]), full(kp["v_hu"]), full(kp["v_hp"]),
            full(kp["v_qf"]), full(kp["ntn_b"]), full(kp["ntn_u"]),
        ],
        out_specs=pl.BlockSpec((tb, _OUT_W), lambda i, ml: (i, 0)),
    )
    return pl.pallas_call(
        _expan_match_kernel,
        out_shape=jax.ShapeDtypeStruct((Bp, _OUT_W), jnp.float32),
        grid_spec=grid_spec,
        compiler_params=pltpu.CompilerParams(
            dimension_semantics=("parallel",)),   # batch tiles → both TCs on v7x
    )(maxlen, p_seq, lens2, h0, c0, hu, qf,
      kp["wc_t"], kp["wih_s"], kp["whh_s"], kp["bias_s"],
      kp["w2d_hu"], kp["w2d_hp"], kp["seg"],
      kp["v_hu"], kp["v_hp"], kp["v_qf"], kp["ntn_b"], kp["ntn_u"])


# --------------------------------------------------------------------------
# Full forward (glue in plain JAX: embedding gathers, batch padding)
# --------------------------------------------------------------------------
def expan_match_forward(kparams, q, us, pu, lens, h0, c0, *, tb=_TB):
    emb = kparams["embedding"]                    # (V, in_dim)
    B = q.shape[0]
    Bp = ((B + tb - 1) // tb) * tb
    pad = Bp - B

    qf = emb[q]                                   # (B, in_dim)
    hu = emb[us]                                  # (B, in_dim)   'r' branch
    # TODO(synk): the embedding gather + (B,L,D)->(L,B,D) relayout could be
    # fused into the kernel via scalar-prefetched indices + DMA row gather;
    # at these sizes it is left to XLA.
    p_seq = jnp.transpose(emb[pu], (1, 0, 2))     # (L, B, in_dim) time-major

    lens_i = lens.astype(jnp.int32)               # note: lens >= 1 (as in torch pack)
    maxlen = jnp.max(lens_i).reshape(1)           # global packed-seq pad length

    def padb(x, axis):
        if pad == 0:
            return x
        cfg = [(0, 0)] * x.ndim
        cfg[axis] = (0, pad)
        return jnp.pad(x, cfg)

    out = _fused_call(
        maxlen,
        padb(p_seq, 1), padb(lens_i.reshape(-1, 1), 0),
        padb(h0, 0), padb(c0, 0), padb(hu, 0), padb(qf, 0),
        kparams, tb=tb)
    return out[:B, :1]                            # (B, 1)


# --------------------------------------------------------------------------
# Parameters: canonical (PyTorch layout) + kernel-layout preparation
# --------------------------------------------------------------------------
def make_canonical_params(key, vocab, in_dim, out_dim, k):
    H = out_dim
    l_dim = in_dim + out_dim                      # mode 'rp'
    r_dim = in_dim
    ks = jax.random.split(key, 10)
    s = 0.1
    return {
        "embedding": s * jax.random.normal(ks[0], (vocab, in_dim), jnp.float32),
        "w_c":   s * jax.random.normal(ks[1], (out_dim, in_dim), jnp.float32),
        "w_ih":  s * jax.random.normal(ks[2], (4 * H, in_dim), jnp.float32),
        "w_hh":  s * jax.random.normal(ks[3], (4 * H, H), jnp.float32),
        "b_ih":  s * jax.random.normal(ks[4], (4 * H,), jnp.float32),
        "b_hh":  s * jax.random.normal(ks[5], (4 * H,), jnp.float32),
        "ntn_W": s * jax.random.normal(ks[6], (k, l_dim, r_dim), jnp.float32),
        "ntn_V": s * jax.random.normal(ks[7], (k, l_dim + r_dim), jnp.float32),
        "ntn_b": s * jax.random.normal(ks[8], (k,), jnp.float32),
        "ntn_u": s * jax.random.normal(ks[9], (1, k), jnp.float32),
    }


def prepare_kernel_params(canon, in_dim, out_dim, k):
    H = out_dim
    r_dim = in_dim
    w_ih = canon["w_ih"].reshape(4, H, in_dim)             # gate blocks i,f,g,o
    w_hh = canon["w_hh"].reshape(4, H, H)
    bias = (canon["b_ih"] + canon["b_hh"]).reshape(4, 1, H)
    W = canon["ntn_W"]                                      # (k, l, r)
    W_hu = jnp.transpose(W[:, :in_dim, :], (1, 0, 2)).reshape(in_dim, k * r_dim)
    W_hp = jnp.transpose(W[:, in_dim:, :], (1, 0, 2)).reshape(H, k * r_dim)
    seg = jnp.repeat(jnp.eye(k, dtype=jnp.float32), r_dim, axis=0)  # (k*r, k)
    Vt = canon["ntn_V"].T                                   # (l + r, k) = [hu; hpu; qf]
    return {
        "embedding": canon["embedding"],
        "wc_t":   canon["w_c"].T,                           # (in, H)
        "wih_s":  jnp.transpose(w_ih, (0, 2, 1)),           # (4, in, H)
        "whh_s":  jnp.transpose(w_hh, (0, 2, 1)),           # (4, H, H)
        "bias_s": bias,                                     # (4, 1, H)
        "w2d_hu": W_hu,                                     # (in, k*r)
        "w2d_hp": W_hp,                                     # (H, k*r)
        "seg":    seg,                                      # (k*r, k)
        "v_hu":   Vt[:in_dim],                              # (in, k)
        "v_hp":   Vt[in_dim:in_dim + H],                    # (H, k)
        "v_qf":   Vt[in_dim + H:],                          # (in, k)
        "ntn_b":  canon["ntn_b"].reshape(1, k),
        "ntn_u":  canon["ntn_u"].T,                         # (k, 1)
    }


# --------------------------------------------------------------------------
# Pure-JAX reference (mirrors the PyTorch forward) for a correctness check
# --------------------------------------------------------------------------
def reference_forward(canon, q, us, pu, lens, h0, c0):
    emb = canon["embedding"]
    qf = emb[q]
    hu = emb[us]
    p = emb[pu]                                   # (B, L, in)
    B, L, _ = p.shape
    H = canon["w_hh"].shape[1]

    ctrl = jax.nn.relu(p[:, 0, :] @ canon["w_c"].T)
    w_ih_t = canon["w_ih"].T
    w_hh_t = canon["w_hh"].T
    b = canon["b_ih"] + canon["b_hh"]

    def cell(carry, x_t):
        h, c = carry
        gates = x_t @ w_ih_t + h @ w_hh_t + b
        i = jax.nn.sigmoid(gates[:, 0:H])
        f = jax.nn.sigmoid(gates[:, H:2 * H])
        g = jnp.tanh(gates[:, 2 * H:3 * H])
        o = jax.nn.sigmoid(gates[:, 3 * H:4 * H])
        c = f * c + i * g
        h = o * jnp.tanh(c)
        return (h, c), h

    (_, _), hs = lax.scan(cell, (h0, c0), jnp.transpose(p, (1, 0, 2)))
    hs = jnp.transpose(hs, (1, 0, 2))             # (B, L, H)
    t_idx = jnp.arange(L)
    maxlen = jnp.max(lens)
    X = jnp.where(t_idx[None, :, None] < lens[:, None, None], hs, 0.0)
    vals = jnp.where(t_idx[None, :, None] < maxlen, ctrl[:, None, :] * X, -jnp.inf)
    hpu = jnp.max(vals, axis=1)                   # (B, H)

    ur = jnp.concatenate([hu, hpu], axis=-1)
    bil = jnp.einsum('bl,klr,br->bk', ur, canon["ntn_W"], qf)
    lin = jnp.concatenate([ur, qf], axis=-1) @ canon["ntn_V"].T
    act = jnp.tanh(bil + lin + canon["ntn_b"][None, :])
    return act @ canon["ntn_u"].T                 # (B, 1)


if __name__ == "__main__":
    key = jax.random.PRNGKey(0)
    B, L = 4, 8
    vocab, in_dim, out_dim, k = 50, 32, 32, 4

    kpar, kq, ku, kpu_, kh, kc = jax.random.split(key, 6)
    canon = make_canonical_params(kpar, vocab, in_dim, out_dim, k)
    kparams = prepare_kernel_params(canon, in_dim, out_dim, k)

    q = jax.random.randint(kq, (B,), 0, vocab)                 # query ids
    us = jax.random.randint(ku, (B,), 0, vocab)                # anchor ids ('r')
    pu = jax.random.randint(kpu_, (B, L), 0, vocab)            # path ids   ('p')
    lens = jnp.array([8, 5, 3, 1], dtype=jnp.int32)            # valid path lengths
    h0 = jax.random.normal(kh, (B, out_dim), jnp.float32)      # init_hidden ~ randn
    c0 = jax.random.normal(kc, (B, out_dim), jnp.float32)

    fwd = jax.jit(expan_match_forward)
    scores = jax.block_until_ready(fwd(kparams, q, us, pu, lens, h0, c0))
    assert scores.shape == (B, 1) and scores.dtype == jnp.float32

    ref = reference_forward(canon, q, us, pu, lens, h0, c0)
    assert jnp.allclose(scores, ref, atol=5e-3, rtol=5e-3), (scores, ref)
    print("KERNEL_OK")
</pallas_src>

<mosaic_0001>
module attributes {stable_mosaic.version = 11 : i64} {
  func.func @_expan_match_kernel(%arg0: i32, %arg1: memref<1xi32, #tpu.memory_space<smem>>, %arg2: memref<8x8x32xf32, #tpu.memory_space<vmem>>, %arg3: memref<8x1xi32, #tpu.memory_space<vmem>>, %arg4: memref<8x32xf32, #tpu.memory_space<vmem>>, %arg5: memref<8x32xf32, #tpu.memory_space<vmem>>, %arg6: memref<8x32xf32, #tpu.memory_space<vmem>>, %arg7: memref<8x32xf32, #tpu.memory_space<vmem>>, %arg8: memref<32x32xf32, #tpu.memory_space<vmem>>, %arg9: memref<4x32x32xf32, #tpu.memory_space<vmem>>, %arg10: memref<4x32x32xf32, #tpu.memory_space<vmem>>, %arg11: memref<4x1x32xf32, #tpu.memory_space<vmem>>, %arg12: memref<32x128xf32, #tpu.memory_space<vmem>>, %arg13: memref<32x128xf32, #tpu.memory_space<vmem>>, %arg14: memref<128x4xf32, #tpu.memory_space<vmem>>, %arg15: memref<32x4xf32, #tpu.memory_space<vmem>>, %arg16: memref<32x4xf32, #tpu.memory_space<vmem>>, %arg17: memref<32x4xf32, #tpu.memory_space<vmem>>, %arg18: memref<1x4xf32, #tpu.memory_space<vmem>>, %arg19: memref<4x1xf32, #tpu.memory_space<vmem>>, %arg20: memref<8x128xf32, #tpu.memory_space<vmem>>) attributes {dimension_semantics = [#tpu.dimension_semantics<parallel>], iteration_bounds = array<i64: 1>, scalar_prefetch = 1 : i64, scratch_operands = 0 : i64, tpu.core_type = #tpu.core_type<tc>, window_params = [{transform_indices = @transform_0, window_bounds = array<i64: 8, 8, 32>}, {transform_indices = @transform_1, window_bounds = array<i64: 8, 1>}, {transform_indices = @transform_2, window_bounds = array<i64: 8, 32>}, {transform_indices = @transform_3, window_bounds = array<i64: 8, 32>}, {transform_indices = @transform_4, window_bounds = array<i64: 8, 32>}, {transform_indices = @transform_5, window_bounds = array<i64: 8, 32>}, {pipeline_mode = #tpu.pipeline_mode<synchronous>, transform_indices = @transform_6, window_bounds = array<i64: 32, 32>}, {pipeline_mode = #tpu.pipeline_mode<synchronous>, transform_indices = @transform_7, window_bounds = array<i64: 4, 32, 32>}, {pipeline_mode = #tpu.pipeline_mode<synchronous>, transform_indices = @transform_8, window_bounds = array<i64: 4, 32, 32>}, {pipeline_mode = #tpu.pipeline_mode<synchronous>, transform_indices = @transform_9, window_bounds = array<i64: 4, 1, 32>}, {pipeline_mode = #tpu.pipeline_mode<synchronous>, transform_indices = @transform_10, window_bounds = array<i64: 32, 128>}, {pipeline_mode = #tpu.pipeline_mode<synchronous>, transform_indices = @transform_11, window_bounds = array<i64: 32, 128>}, {pipeline_mode = #tpu.pipeline_mode<synchronous>, transform_indices = @transform_12, window_bounds = array<i64: 128, 4>}, {pipeline_mode = #tpu.pipeline_mode<synchronous>, transform_indices = @transform_13, window_bounds = array<i64: 32, 4>}, {pipeline_mode = #tpu.pipeline_mode<synchronous>, transform_indices = @transform_14, window_bounds = array<i64: 32, 4>}, {pipeline_mode = #tpu.pipeline_mode<synchronous>, transform_indices = @transform_15, window_bounds = array<i64: 32, 4>}, {pipeline_mode = #tpu.pipeline_mode<synchronous>, transform_indices = @transform_16, window_bounds = array<i64: 1, 4>}, {pipeline_mode = #tpu.pipeline_mode<synchronous>, transform_indices = @transform_17, window_bounds = array<i64: 4, 1>}, {transform_indices = @transform_18, window_bounds = array<i64: 8, 128>}]} {
    %c0 = arith.constant 0 : index
    %c0_0 = arith.constant 0 : index
    %c0_1 = arith.constant 0 : index
    %0 = vector.load %arg2[%c0, %c0_0, %c0_1] : memref<8x8x32xf32, #tpu.memory_space<vmem>>, vector<1x8x32xf32>
    %1 = vector.shape_cast %0 : vector<1x8x32xf32> to vector<8x32xf32>
    %c0_2 = arith.constant 0 : index
    %c0_3 = arith.constant 0 : index
    %2 = vector.load %arg8[%c0_2, %c0_3] : memref<32x32xf32, #tpu.memory_space<vmem>>, vector<32x32xf32>
    %cst = arith.constant dense<0.000000e+00> : vector<8x32xf32>
    %3 = tpu.matmul %1, %2, %cst {dimension_numbers = #tpu.dot_dimension_numbers<[1], [0], [0], [1], [0, 0, 1, 1], [], []>} : vector<8x32xf32>, vector<32x32xf32>, vector<8x32xf32> -> vector<8x32xf32>
    %cst_4 = arith.constant 0.000000e+00 : f32
    %4 = vector.broadcast %cst_4 : f32 to vector<8x32xf32>
    %5 = arith.maximumf %3, %4 : vector<8x32xf32>
    %c0_5 = arith.constant 0 : index
    %c0_6 = arith.constant 0 : index
    %6 = vector.load %arg3[%c0_5, %c0_6] : memref<8x1xi32, #tpu.memory_space<vmem>>, vector<8x1xi32>
    %c0_7 = arith.constant 0 : index
    %7 = memref.load %arg1[%c0_7] : memref<1xi32, #tpu.memory_space<smem>>
    %c0_8 = arith.constant 0 : index
    %c0_9 = arith.constant 0 : index
    %c0_10 = arith.constant 0 : index
    %8 = vector.load %arg9[%c0_8, %c0_9, %c0_10] : memref<4x32x32xf32, #tpu.memory_space<vmem>>, vector<1x32x32xf32>
    %9 = vector.shape_cast %8 : vector<1x32x32xf32> to vector<32x32xf32>
    %c1 = arith.constant 1 : index
    %c0_11 = arith.constant 0 : index
    %c0_12 = arith.constant 0 : index
    %10 = vector.load %arg9[%c1, %c0_11, %c0_12] : memref<4x32x32xf32, #tpu.memory_space<vmem>>, vector<1x32x32xf32>
    %11 = vector.shape_cast %10 : vector<1x32x32xf32> to vector<32x32xf32>
    %c2 = arith.constant 2 : index
    %c0_13 = arith.constant 0 : index
    %c0_14 = arith.constant 0 : index
    %12 = vector.load %arg9[%c2, %c0_13, %c0_14] : memref<4x32x32xf32, #tpu.memory_space<vmem>>, vector<1x32x32xf32>
    %13 = vector.shape_cast %12 : vector<1x32x32xf32> to vector<32x32xf32>
    %c3 = arith.constant 3 : index
    %c0_15 = arith.constant 0 : index
    %c0_16 = arith.constant 0 : index
    %14 = vector.load %arg9[%c3, %c0_15, %c0_16] : memref<4x32x32xf32, #tpu.memory_space<vmem>>, vector<1x32x32xf32>
    %15 = vector.shape_cast %14 : vector<1x32x32xf32> to vector<32x32xf32>
    %c0_17 = arith.constant 0 : index
    %c0_18 = arith.constant 0 : index
    %c0_19 = arith.constant 0 : index
    %16 = vector.load %arg10[%c0_17, %c0_18, %c0_19] : memref<4x32x32xf32, #tpu.memory_space<vmem>>, vector<1x32x32xf32>
    %17 = vector.shape_cast %16 : vector<1x32x32xf32> to vector<32x32xf32>
    %c1_20 = arith.constant 1 : index
    %c0_21 = arith.constant 0 : index
    %c0_22 = arith.constant 0 : index
    %18 = vector.load %arg10[%c1_20, %c0_21, %c0_22] : memref<4x32x32xf32, #tpu.memory_space<vmem>>, vector<1x32x32xf32>
    %19 = vector.shape_cast %18 : vector<1x32x32xf32> to vector<32x32xf32>
    %c2_23 = arith.constant 2 : index
    %c0_24 = arith.constant 0 : index
    %c0_25 = arith.constant 0 : index
    %20 = vector.load %arg10[%c2_23, %c0_24, %c0_25] : memref<4x32x32xf32, #tpu.memory_space<vmem>>, vector<1x32x32xf32>
    %21 = vector.shape_cast %20 : vector<1x32x32xf32> to vector<32x32xf32>
    %c3_26 = arith.constant 3 : index
    %c0_27 = arith.constant 0 : index
    %c0_28 = arith.constant 0 : index
    %22 = vector.load %arg10[%c3_26, %c0_27, %c0_28] : memref<4x32x32xf32, #tpu.memory_space<vmem>>, vector<1x32x32xf32>
    %23 = vector.shape_cast %22 : vector<1x32x32xf32> to vector<32x32xf32>
    %c0_29 = arith.constant 0 : index
    %c0_30 = arith.constant 0 : index
    %c0_31 = arith.constant 0 : index
    %24 = vector.load %arg11[%c0_29, %c0_30, %c0_31] : memref<4x1x32xf32, #tpu.memory_space<vmem>>, vector<1x1x32xf32>
    %25 = vector.shape_cast %24 : vector<1x1x32xf32> to vector<1x32xf32>
    %c1_32 = arith.constant 1 : index
    %c0_33 = arith.constant 0 : index
    %c0_34 = arith.constant 0 : index
    %26 = vector.load %arg11[%c1_32, %c0_33, %c0_34] : memref<4x1x32xf32, #tpu.memory_space<vmem>>, vector<1x1x32xf32>
    %27 = vector.shape_cast %26 : vector<1x1x32xf32> to vector<1x32xf32>
    %c2_35 = arith.constant 2 : index
    %c0_36 = arith.constant 0 : index
    %c0_37 = arith.constant 0 : index
    %28 = vector.load %arg11[%c2_35, %c0_36, %c0_37] : memref<4x1x32xf32, #tpu.memory_space<vmem>>, vector<1x1x32xf32>
    %29 = vector.shape_cast %28 : vector<1x1x32xf32> to vector<1x32xf32>
    %c3_38 = arith.constant 3 : index
    %c0_39 = arith.constant 0 : index
    %c0_40 = arith.constant 0 : index
    %30 = vector.load %arg11[%c3_38, %c0_39, %c0_40] : memref<4x1x32xf32, #tpu.memory_space<vmem>>, vector<1x1x32xf32>
    %31 = vector.shape_cast %30 : vector<1x1x32xf32> to vector<1x32xf32>
    %c0_41 = arith.constant 0 : index
    %c0_42 = arith.constant 0 : index
    %32 = vector.load %arg4[%c0_41, %c0_42] : memref<8x32xf32, #tpu.memory_space<vmem>>, vector<8x32xf32>
    %c0_43 = arith.constant 0 : index
    %c0_44 = arith.constant 0 : index
    %33 = vector.load %arg5[%c0_43, %c0_44] : memref<8x32xf32, #tpu.memory_space<vmem>>, vector<8x32xf32>
    %cst_45 = arith.constant 0xFF800000 : f32
    %34 = vector.broadcast %cst_45 : f32 to vector<8x32xf32>
    %c0_46 = arith.constant 0 : index
    %c0_47 = arith.constant 0 : index
    %c0_48 = arith.constant 0 : index
    %35 = vector.load %arg2[%c0_46, %c0_47, %c0_48] : memref<8x8x32xf32, #tpu.memory_space<vmem>>, vector<1x8x32xf32>
    %36 = vector.shape_cast %35 : vector<1x8x32xf32> to vector<8x32xf32>
    %cst_49 = arith.constant dense<0.000000e+00> : vector<8x32xf32>
    %37 = tpu.matmul %36, %9, %cst_49 {dimension_numbers = #tpu.dot_dimension_numbers<[1], [0], [0], [1], [0, 0, 1, 1], [], []>} : vector<8x32xf32>, vector<32x32xf32>, vector<8x32xf32> -> vector<8x32xf32>
    %cst_50 = arith.constant dense<0.000000e+00> : vector<8x32xf32>
    %38 = tpu.matmul %32, %17, %cst_50 {dimension_numbers = #tpu.dot_dimension_numbers<[1], [0], [0], [1], [0, 0, 1, 1], [], []>} : vector<8x32xf32>, vector<32x32xf32>, vector<8x32xf32> -> vector<8x32xf32>
    %39 = arith.addf %37, %38 : vector<8x32xf32>
    %40 = vector.broadcast %25 : vector<1x32xf32> to vector<8x32xf32>
    %41 = arith.addf %39, %40 : vector<8x32xf32>
    %cst_51 = arith.constant dense<0.000000e+00> : vector<8x32xf32>
    %42 = tpu.matmul %36, %11, %cst_51 {dimension_numbers = #tpu.dot_dimension_numbers<[1], [0], [0], [1], [0, 0, 1, 1], [], []>} : vector<8x32xf32>, vector<32x32xf32>, vector<8x32xf32> -> vector<8x32xf32>
    %cst_52 = arith.constant dense<0.000000e+00> : vector<8x32xf32>
    %43 = tpu.matmul %32, %19, %cst_52 {dimension_numbers = #tpu.dot_dimension_numbers<[1], [0], [0], [1], [0, 0, 1, 1], [], []>} : vector<8x32xf32>, vector<32x32xf32>, vector<8x32xf32> -> vector<8x32xf32>
    %44 = arith.addf %42, %43 : vector<8x32xf32>
    %45 = vector.broadcast %27 : vector<1x32xf32> to vector<8x32xf32>
    %46 = arith.addf %44, %45 : vector<8x32xf32>
    %cst_53 = arith.constant dense<0.000000e+00> : vector<8x32xf32>
    %47 = tpu.matmul %36, %13, %cst_53 {dimension_numbers = #tpu.dot_dimension_numbers<[1], [0], [0], [1], [0, 0, 1, 1], [], []>} : vector<8x32xf32>, vector<32x32xf32>, vector<8x32xf32> -> vector<8x32xf32>
    %cst_54 = arith.constant dense<0.000000e+00> : vector<8x32xf32>
    %48 = tpu.matmul %32, %21, %cst_54 {dimension_numbers = #tpu.dot_dimension_numbers<[1], [0], [0], [1], [0, 0, 1, 1], [], []>} : vector<8x32xf32>, vector<32x32xf32>, vector<8x32xf32> -> vector<8x32xf32>
    %49 = arith.addf %47, %48 : vector<8x32xf32>
    %50 = vector.broadcast %29 : vector<1x32xf32> to vector<8x32xf32>
    %51 = arith.addf %49, %50 : vector<8x32xf32>
    %cst_55 = arith.constant dense<0.000000e+00> : vector<8x32xf32>
    %52 = tpu.matmul %36, %15, %cst_55 {dimension_numbers = #tpu.dot_dimension_numbers<[1], [0], [0], [1], [0, 0, 1, 1], [], []>} : vector<8x32xf32>, vector<32x32xf32>, vector<8x32xf32> -> vector<8x32xf32>
    %cst_56 = arith.constant dense<0.000000e+00> : vector<8x32xf32>
    %53 = tpu.matmul %32, %23, %cst_56 {dimension_numbers = #tpu.dot_dimension_numbers<[1], [0], [0], [1], [0, 0, 1, 1], [], []>} : vector<8x32xf32>, vector<32x32xf32>, vector<8x32xf32> -> vector<8x32xf32>
    %54 = arith.addf %52, %53 : vector<8x32xf32>
    %55 = vector.broadcast %31 : vector<1x32xf32> to vector<8x32xf32>
    %56 = arith.addf %54, %55 : vector<8x32xf32>
    %57 = arith.negf %41 : vector<8x32xf32>
    %58 = math.exp %57 : vector<8x32xf32>
    %cst_57 = arith.constant 1.000000e+00 : f32
    %59 = vector.broadcast %cst_57 : f32 to vector<8x32xf32>
    %60 = arith.addf %59, %58 : vector<8x32xf32>
    %61 = arith.divf %59, %60 : vector<8x32xf32>
    %62 = arith.negf %46 : vector<8x32xf32>
    %63 = math.exp %62 : vector<8x32xf32>
    %cst_58 = arith.constant 1.000000e+00 : f32
    %64 = vector.broadcast %cst_58 : f32 to vector<8x32xf32>
    %65 = arith.addf %64, %63 : vector<8x32xf32>
    %66 = arith.divf %64, %65 : vector<8x32xf32>
    %67 = math.tanh %51 : vector<8x32xf32>
    %68 = arith.negf %56 : vector<8x32xf32>
    %69 = math.exp %68 : vector<8x32xf32>
    %cst_59 = arith.constant 1.000000e+00 : f32
    %70 = vector.broadcast %cst_59 : f32 to vector<8x32xf32>
    %71 = arith.addf %70, %69 : vector<8x32xf32>
    %72 = arith.divf %70, %71 : vector<8x32xf32>
    %73 = arith.mulf %66, %33 : vector<8x32xf32>
    %74 = arith.mulf %61, %67 : vector<8x32xf32>
    %75 = arith.addf %73, %74 : vector<8x32xf32>
    %76 = math.tanh %75 : vector<8x32xf32>
    %77 = arith.mulf %72, %76 : vector<8x32xf32>
    %c0_i32 = arith.constant 0 : i32
    %78 = arith.cmpi sgt, %7, %c0_i32 : i32
    %cst_60 = arith.constant 0.000000e+00 : f32
    %cst_61 = arith.constant 0xFF800000 : f32
    %79 = arith.select %78, %cst_60, %cst_61 : f32
    %c0_i32_62 = arith.constant 0 : i32
    %80 = vector.broadcast %c0_i32_62 : i32 to vector<8x1xi32>
    %81 = arith.cmpi sgt, %6, %80 : vector<8x1xi32>
    %82 = arith.mulf %5, %77 : vector<8x32xf32>
    %83 = vector.shape_cast %81 : vector<8x1xi1> to vector<8x1xi1>
    %84 = vector.broadcast %83 : vector<8x1xi1> to vector<8x32xi1>
    %85 = vector.broadcast %79 : f32 to vector<8x32xf32>
    %86 = arith.select %84, %82, %85 : vector<8x32xi1>, vector<8x32xf32>
    %87 = arith.maximumf %34, %86 : vector<8x32xf32>
    %c1_63 = arith.constant 1 : index
    %c0_64 = arith.constant 0 : index
    %c0_65 = arith.constant 0 : index
    %88 = vector.load %arg2[%c1_63, %c0_64, %c0_65] : memref<8x8x32xf32, #tpu.memory_space<vmem>>, vector<1x8x32xf32>
    %89 = vector.shape_cast %88 : vector<1x8x32xf32> to vector<8x32xf32>
    %cst_66 = arith.constant dense<0.000000e+00> : vector<8x32xf32>
    %90 = tpu.matmul %89, %9, %cst_66 {dimension_numbers = #tpu.dot_dimension_numbers<[1], [0], [0], [1], [0, 0, 1, 1], [], []>} : vector<8x32xf32>, vector<32x32xf32>, vector<8x32xf32> -> vector<8x32xf32>
    %cst_67 = arith.constant dense<0.000000e+00> : vector<8x32xf32>
    %91 = tpu.matmul %77, %17, %cst_67 {dimension_numbers = #tpu.dot_dimension_numbers<[1], [0], [0], [1], [0, 0, 1, 1], [], []>} : vector<8x32xf32>, vector<32x32xf32>, vector<8x32xf32> -> vector<8x32xf32>
    %92 = arith.addf %90, %91 : vector<8x32xf32>
    %93 = vector.broadcast %25 : vector<1x32xf32> to vector<8x32xf32>
    %94 = arith.addf %92, %93 : vector<8x32xf32>
    %cst_68 = arith.constant dense<0.000000e+00> : vector<8x32xf32>
    %95 = tpu.matmul %89, %11, %cst_68 {dimension_numbers = #tpu.dot_dimension_numbers<[1], [0], [0], [1], [0, 0, 1, 1], [], []>} : vector<8x32xf32>, vector<32x32xf32>, vector<8x32xf32> -> vector<8x32xf32>
    %cst_69 = arith.constant dense<0.000000e+00> : vector<8x32xf32>
    %96 = tpu.matmul %77, %19, %cst_69 {dimension_numbers = #tpu.dot_dimension_numbers<[1], [0], [0], [1], [0, 0, 1, 1], [], []>} : vector<8x32xf32>, vector<32x32xf32>, vector<8x32xf32> -> vector<8x32xf32>
    %97 = arith.addf %95, %96 : vector<8x32xf32>
    %98 = vector.broadcast %27 : vector<1x32xf32> to vector<8x32xf32>
    %99 = arith.addf %97, %98 : vector<8x32xf32>
    %cst_70 = arith.constant dense<0.000000e+00> : vector<8x32xf32>
    %100 = tpu.matmul %89, %13, %cst_70 {dimension_numbers = #tpu.dot_dimension_numbers<[1], [0], [0], [1], [0, 0, 1, 1], [], []>} : vector<8x32xf32>, vector<32x32xf32>, vector<8x32xf32> -> vector<8x32xf32>
    %cst_71 = arith.constant dense<0.000000e+00> : vector<8x32xf32>
    %101 = tpu.matmul %77, %21, %cst_71 {dimension_numbers = #tpu.dot_dimension_numbers<[1], [0], [0], [1], [0, 0, 1, 1], [], []>} : vector<8x32xf32>, vector<32x32xf32>, vector<8x32xf32> -> vector<8x32xf32>
    %102 = arith.addf %100, %101 : vector<8x32xf32>
    %103 = vector.broadcast %29 : vector<1x32xf32> to vector<8x32xf32>
    %104 = arith.addf %102, %103 : vector<8x32xf32>
    %cst_72 = arith.constant dense<0.000000e+00> : vector<8x32xf32>
    %105 = tpu.matmul %89, %15, %cst_72 {dimension_numbers = #tpu.dot_dimension_numbers<[1], [0], [0], [1], [0, 0, 1, 1], [], []>} : vector<8x32xf32>, vector<32x32xf32>, vector<8x32xf32> -> vector<8x32xf32>
    %cst_73 = arith.constant dense<0.000000e+00> : vector<8x32xf32>
    %106 = tpu.matmul %77, %23, %cst_73 {dimension_numbers = #tpu.dot_dimension_numbers<[1], [0], [0], [1], [0, 0, 1, 1], [], []>} : vector<8x32xf32>, vector<32x32xf32>, vector<8x32xf32> -> vector<8x32xf32>
    %107 = arith.addf %105, %106 : vector<8x32xf32>
    %108 = vector.broadcast %31 : vector<1x32xf32> to vector<8x32xf32>
    %109 = arith.addf %107, %108 : vector<8x32xf32>
    %110 = arith.negf %94 : vector<8x32xf32>
    %111 = math.exp %110 : vector<8x32xf32>
    %cst_74 = arith.constant 1.000000e+00 : f32
    %112 = vector.broadcast %cst_74 : f32 to vector<8x32xf32>
    %113 = arith.addf %112, %111 : vector<8x32xf32>
    %114 = arith.divf %112, %113 : vector<8x32xf32>
    %115 = arith.negf %99 : vector<8x32xf32>
    %116 = math.exp %115 : vector<8x32xf32>
    %cst_75 = arith.constant 1.000000e+00 : f32
    %117 = vector.broadcast %cst_75 : f32 to vector<8x32xf32>
    %118 = arith.addf %117, %116 : vector<8x32xf32>
    %119 = arith.divf %117, %118 : vector<8x32xf32>
    %120 = math.tanh %104 : vector<8x32xf32>
    %121 = arith.negf %109 : vector<8x32xf32>
    %122 = math.exp %121 : vector<8x32xf32>
    %cst_76 = arith.constant 1.000000e+00 : f32
    %123 = vector.broadcast %cst_76 : f32 to vector<8x32xf32>
    %124 = arith.addf %123, %122 : vector<8x32xf32>
    %125 = arith.divf %123, %124 : vector<8x32xf32>
    %126 = arith.mulf %119, %75 : vector<8x32xf32>
    %127 = arith.mulf %114, %120 : vector<8x32xf32>
    %128 = arith.addf %126, %127 : vector<8x32xf32>
    %129 = math.tanh %128 : vector<8x32xf32>
    %130 = arith.mulf %125, %129 : vector<8x32xf32>
    %c1_i32 = arith.constant 1 : i32
    %131 = arith.cmpi sgt, %7, %c1_i32 : i32
    %cst_77 = arith.constant 0.000000e+00 : f32
    %cst_78 = arith.constant 0xFF800000 : f32
    %132 = arith.select %131, %cst_77, %cst_78 : f32
    %c1_i32_79 = arith.constant 1 : i32
    %133 = vector.broadcast %c1_i32_79 : i32 to vector<8x1xi32>
    %134 = arith.cmpi sgt, %6, %133 : vector<8x1xi32>
    %135 = arith.mulf %5, %130 : vector<8x32xf32>
    %136 = vector.shape_cast %134 : vector<8x1xi1> to vector<8x1xi1>
    %137 = vector.broadcast %136 : vector<8x1xi1> to vector<8x32xi1>
    %138 = vector.broadcast %132 : f32 to vector<8x32xf32>
    %139 = arith.select %137, %135, %138 : vector<8x32xi1>, vector<8x32xf32>
    %140 = arith.maximumf %87, %139 : vector<8x32xf32>
    %c2_80 = arith.constant 2 : index
    %c0_81 = arith.constant 0 : index
    %c0_82 = arith.constant 0 : index
    %141 = vector.load %arg2[%c2_80, %c0_81, %c0_82] : memref<8x8x32xf32, #tpu.memory_space<vmem>>, vector<1x8x32xf32>
    %142 = vector.shape_cast %141 : vector<1x8x32xf32> to vector<8x32xf32>
    %cst_83 = arith.constant dense<0.000000e+00> : vector<8x32xf32>
    %143 = tpu.matmul %142, %9, %cst_83 {dimension_numbers = #tpu.dot_dimension_numbers<[1], [0], [0], [1], [0, 0, 1, 1], [], []>} : vector<8x32xf32>, vector<32x32xf32>, vector<8x32xf32> -> vector<8x32xf32>
    %cst_84 = arith.constant dense<0.000000e+00> : vector<8x32xf32>
    %144 = tpu.matmul %130, %17, %cst_84 {dimension_numbers = #tpu.dot_dimension_numbers<[1], [0], [0], [1], [0, 0, 1, 1], [], []>} : vector<8x32xf32>, vector<32x32xf32>, vector<8x32xf32> -> vector<8x32xf32>
    %145 = arith.addf %143, %144 : vector<8x32xf32>
    %146 = vector.broadcast %25 : vector<1x32xf32> to vector<8x32xf32>
    %147 = arith.addf %145, %146 : vector<8x32xf32>
    %cst_85 = arith.constant dense<0.000000e+00> : vector<8x32xf32>
    %148 = tpu.matmul %142, %11, %cst_85 {dimension_numbers = #tpu.dot_dimension_numbers<[1], [0], [0], [1], [0, 0, 1, 1], [], []>} : vector<8x32xf32>, vector<32x32xf32>, vector<8x32xf32> -> vector<8x32xf32>
    %cst_86 = arith.constant dense<0.000000e+00> : vector<8x32xf32>
    %149 = tpu.matmul %130, %19, %cst_86 {dimension_numbers = #tpu.dot_dimension_numbers<[1], [0], [0], [1], [0, 0, 1, 1], [], []>} : vector<8x32xf32>, vector<32x32xf32>, vector<8x32xf32> -> vector<8x32xf32>
    %150 = arith.addf %148, %149 : vector<8x32xf32>
    %151 = vector.broadcast %27 : vector<1x32xf32> to vector<8x32xf32>
    %152 = arith.addf %150, %151 : vector<8x32xf32>
    %cst_87 = arith.constant dense<0.000000e+00> : vector<8x32xf32>
    %153 = tpu.matmul %142, %13, %cst_87 {dimension_numbers = #tpu.dot_dimension_numbers<[1], [0], [0], [1], [0, 0, 1, 1], [], []>} : vector<8x32xf32>, vector<32x32xf32>, vector<8x32xf32> -> vector<8x32xf32>
    %cst_88 = arith.constant dense<0.000000e+00> : vector<8x32xf32>
    %154 = tpu.matmul %130, %21, %cst_88 {dimension_numbers = #tpu.dot_dimension_numbers<[1], [0], [0], [1], [0, 0, 1, 1], [], []>} : vector<8x32xf32>, vector<32x32xf32>, vector<8x32xf32> -> vector<8x32xf32>
    %155 = arith.addf %153, %154 : vector<8x32xf32>
    %156 = vector.broadcast %29 : vector<1x32xf32> to vector<8x32xf32>
    %157 = arith.addf %155, %156 : vector<8x32xf32>
    %cst_89 = arith.constant dense<0.000000e+00> : vector<8x32xf32>
    %158 = tpu.matmul %142, %15, %cst_89 {dimension_numbers = #tpu.dot_dimension_numbers<[1], [0], [0], [1], [0, 0, 1, 1], [], []>} : vector<8x32xf32>, vector<32x32xf32>, vector<8x32xf32> -> vector<8x32xf32>
    %cst_90 = arith.constant dense<0.000000e+00> : vector<8x32xf32>
    %159 = tpu.matmul %130, %23, %cst_90 {dimension_numbers = #tpu.dot_dimension_numbers<[1], [0], [0], [1], [0, 0, 1, 1], [], []>} : vector<8x32xf32>, vector<32x32xf32>, vector<8x32xf32> -> vector<8x32xf32>
    %160 = arith.addf %158, %159 : vector<8x32xf32>
    %161 = vector.broadcast %31 : vector<1x32xf32> to vector<8x32xf32>
    %162 = arith.addf %160, %161 : vector<8x32xf32>
    %163 = arith.negf %147 : vector<8x32xf32>
    %164 = math.exp %163 : vector<8x32xf32>
    %cst_91 = arith.constant 1.000000e+00 : f32
    %165 = vector.broadcast %cst_91 : f32 to vector<8x32xf32>
    %166 = arith.addf %165, %164 : vector<8x32xf32>
    %167 = arith.divf %165, %166 : vector<8x32xf32>
    %168 = arith.negf %152 : vector<8x32xf32>
    %169 = math.exp %168 : vector<8x32xf32>
    %cst_92 = arith.constant 1.000000e+00 : f32
    %170 = vector.broadcast %cst_92 : f32 to vector<8x32xf32>
    %171 = arith.addf %170, %169 : vector<8x32xf32>
    %172 = arith.divf %170, %171 : vector<8x32xf32>
    %173 = math.tanh %157 : vector<8x32xf32>
    %174 = arith.negf %162 : vector<8x32xf32>
    %175 = math.exp %174 : vector<8x32xf32>
    %cst_93 = arith.constant 1.000000e+00 : f32
    %176 = vector.broadcast %cst_93 : f32 to vector<8x32xf32>
    %177 = arith.addf %176, %175 : vector<8x32xf32>
    %178 = arith.divf %176, %177 : vector<8x32xf32>
    %179 = arith.mulf %172, %128 : vector<8x32xf32>
    %180 = arith.mulf %167, %173 : vector<8x32xf32>
    %181 = arith.addf %179, %180 : vector<8x32xf32>
    %182 = math.tanh %181 : vector<8x32xf32>
    %183 = arith.mulf %178, %182 : vector<8x32xf32>
    %c2_i32 = arith.constant 2 : i32
    %184 = arith.cmpi sgt, %7, %c2_i32 : i32
    %cst_94 = arith.constant 0.000000e+00 : f32
    %cst_95 = arith.constant 0xFF800000 : f32
    %185 = arith.select %184, %cst_94, %cst_95 : f32
    %c2_i32_96 = arith.constant 2 : i32
    %186 = vector.broadcast %c2_i32_96 : i32 to vector<8x1xi32>
    %187 = arith.cmpi sgt, %6, %186 : vector<8x1xi32>
    %188 = arith.mulf %5, %183 : vector<8x32xf32>
    %189 = vector.shape_cast %187 : vector<8x1xi1> to vector<8x1xi1>
    %190 = vector.broadcast %189 : vector<8x1xi1> to vector<8x32xi1>
    %191 = vector.broadcast %185 : f32 to vector<8x32xf32>
    %192 = arith.select %190, %188, %191 : vector<8x32xi1>, vector<8x32xf32>
    %193 = arith.maximumf %140, %192 : vector<8x32xf32>
    %c3_97 = arith.constant 3 : index
    %c0_98 = arith.constant 0 : index
    %c0_99 = arith.constant 0 : index
    %194 = vector.load %arg2[%c3_97, %c0_98, %c0_99] : memref<8x8x32xf32, #tpu.memory_space<vmem>>, vector<1x8x32xf32>
    %195 = vector.shape_cast %194 : vector<1x8x32xf32> to vector<8x32xf32>
    %cst_100 = arith.constant dense<0.000000e+00> : vector<8x32xf32>
    %196 = tpu.matmul %195, %9, %cst_100 {dimension_numbers = #tpu.dot_dimension_numbers<[1], [0], [0], [1], [0, 0, 1, 1], [], []>} : vector<8x32xf32>, vector<32x32xf32>, vector<8x32xf32> -> vector<8x32xf32>
    %cst_101 = arith.constant dense<0.000000e+00> : vector<8x32xf32>
    %197 = tpu.matmul %183, %17, %cst_101 {dimension_numbers = #tpu.dot_dimension_numbers<[1], [0], [0], [1], [0, 0, 1, 1], [], []>} : vector<8x32xf32>, vector<32x32xf32>, vector<8x32xf32> -> vector<8x32xf32>
    %198 = arith.addf %196, %197 : vector<8x32xf32>
    %199 = vector.broadcast %25 : vector<1x32xf32> to vector<8x32xf32>
    %200 = arith.addf %198, %199 : vector<8x32xf32>
    %cst_102 = arith.constant dense<0.000000e+00> : vector<8x32xf32>
    %201 = tpu.matmul %195, %11, %cst_102 {dimension_numbers = #tpu.dot_dimension_numbers<[1], [0], [0], [1], [0, 0, 1, 1], [], []>} : vector<8x32xf32>, vector<32x32xf32>, vector<8x32xf32> -> vector<8x32xf32>
    %cst_103 = arith.constant dense<0.000000e+00> : vector<8x32xf32>
    %202 = tpu.matmul %183, %19, %cst_103 {dimension_numbers = #tpu.dot_dimension_numbers<[1], [0], [0], [1], [0, 0, 1, 1], [], []>} : vector<8x32xf32>, vector<32x32xf32>, vector<8x32xf32> -> vector<8x32xf32>
    %203 = arith.addf %201, %202 : vector<8x32xf32>
    %204 = vector.broadcast %27 : vector<1x32xf32> to vector<8x32xf32>
    %205 = arith.addf %203, %204 : vector<8x32xf32>
    %cst_104 = arith.constant dense<0.000000e+00> : vector<8x32xf32>
    %206 = tpu.matmul %195, %13, %cst_104 {dimension_numbers = #tpu.dot_dimension_numbers<[1], [0], [0], [1], [0, 0, 1, 1], [], []>} : vector<8x32xf32>, vector<32x32xf32>, vector<8x32xf32> -> vector<8x32xf32>
    %cst_105 = arith.constant dense<0.000000e+00> : vector<8x32xf32>
    %207 = tpu.matmul %183, %21, %cst_105 {dimension_numbers = #tpu.dot_dimension_numbers<[1], [0], [0], [1], [0, 0, 1, 1], [], []>} : vector<8x32xf32>, vector<32x32xf32>, vector<8x32xf32> -> vector<8x32xf32>
    %208 = arith.addf %206, %207 : vector<8x32xf32>
    %209 = vector.broadcast %29 : vector<1x32xf32> to vector<8x32xf32>
    %210 = arith.addf %208, %209 : vector<8x32xf32>
    %cst_106 = arith.constant dense<0.000000e+00> : vector<8x32xf32>
    %211 = tpu.matmul %195, %15, %cst_106 {dimension_numbers = #tpu.dot_dimension_numbers<[1], [0], [0], [1], [0, 0, 1, 1], [], []>} : vector<8x32xf32>, vector<32x32xf32>, vector<8x32xf32> -> vector<8x32xf32>
    %cst_107 = arith.constant dense<0.000000e+00> : vector<8x32xf32>
    %212 = tpu.matmul %183, %23, %cst_107 {dimension_numbers = #tpu.dot_dimension_numbers<[1], [0], [0], [1], [0, 0, 1, 1], [], []>} : vector<8x32xf32>, vector<32x32xf32>, vector<8x32xf32> -> vector<8x32xf32>
    %213 = arith.addf %211, %212 : vector<8x32xf32>
    %214 = vector.broadcast %31 : vector<1x32xf32> to vector<8x32xf32>
    %215 = arith.addf %213, %214 : vector<8x32xf32>
    %216 = arith.negf %200 : vector<8x32xf32>
    %217 = math.exp %216 : vector<8x32xf32>
    %cst_108 = arith.constant 1.000000e+00 : f32
    %218 = vector.broadcast %cst_108 : f32 to vector<8x32xf32>
    %219 = arith.addf %218, %217 : vector<8x32xf32>
    %220 = arith.divf %218, %219 : vector<8x32xf32>
    %221 = arith.negf %205 : vector<8x32xf32>
    %222 = math.exp %221 : vector<8x32xf32>
    %cst_109 = arith.constant 1.000000e+00 : f32
    %223 = vector.broadcast %cst_109 : f32 to vector<8x32xf32>
    %224 = arith.addf %223, %222 : vector<8x32xf32>
    %225 = arith.divf %223, %224 : vector<8x32xf32>
    %226 = math.tanh %210 : vector<8x32xf32>
    %227 = arith.negf %215 : vector<8x32xf32>
    %228 = math.exp %227 : vector<8x32xf32>
    %cst_110 = arith.constant 1.000000e+00 : f32
    %229 = vector.broadcast %cst_110 : f32 to vector<8x32xf32>
    %230 = arith.addf %229, %228 : vector<8x32xf32>
    %231 = arith.divf %229, %230 : vector<8x32xf32>
    %232 = arith.mulf %225, %181 : vector<8x32xf32>
    %233 = arith.mulf %220, %226 : vector<8x32xf32>
    %234 = arith.addf %232, %233 : vector<8x32xf32>
    %235 = math.tanh %234 : vector<8x32xf32>
    %236 = arith.mulf %231, %235 : vector<8x32xf32>
    %c3_i32 = arith.constant 3 : i32
    %237 = arith.cmpi sgt, %7, %c3_i32 : i32
    %cst_111 = arith.constant 0.000000e+00 : f32
    %cst_112 = arith.constant 0xFF800000 : f32
    %238 = arith.select %237, %cst_111, %cst_112 : f32
    %c3_i32_113 = arith.constant 3 : i32
    %239 = vector.broadcast %c3_i32_113 : i32 to vector<8x1xi32>
    %240 = arith.cmpi sgt, %6, %239 : vector<8x1xi32>
    %241 = arith.mulf %5, %236 : vector<8x32xf32>
    %242 = vector.shape_cast %240 : vector<8x1xi1> to vector<8x1xi1>
    %243 = vector.broadcast %242 : vector<8x1xi1> to vector<8x32xi1>
    %244 = vector.broadcast %238 : f32 to vector<8x32xf32>
    %245 = arith.select %243, %241, %244 : vector<8x32xi1>, vector<8x32xf32>
    %246 = arith.maximumf %193, %245 : vector<8x32xf32>
    %c4 = arith.constant 4 : index
    %c0_114 = arith.constant 0 : index
    %c0_115 = arith.constant 0 : index
    %247 = vector.load %arg2[%c4, %c0_114, %c0_115] : memref<8x8x32xf32, #tpu.memory_space<vmem>>, vector<1x8x32xf32>
    %248 = vector.shape_cast %247 : vector<1x8x32xf32> to vector<8x32xf32>
    %cst_116 = arith.constant dense<0.000000e+00> : vector<8x32xf32>
    %249 = tpu.matmul %248, %9, %cst_116 {dimension_numbers = #tpu.dot_dimension_numbers<[1], [0], [0], [1], [0, 0, 1, 1], [], []>} : vector<8x32xf32>, vector<32x32xf32>, vector<8x32xf32> -> vector<8x32xf32>
    %cst_117 = arith.constant dense<0.000000e+00> : vector<8x32xf32>
    %250 = tpu.matmul %236, %17, %cst_117 {dimension_numbers = #tpu.dot_dimension_numbers<[1], [0], [0], [1], [0, 0, 1, 1], [], []>} : vector<8x32xf32>, vector<32x32xf32>, vector<8x32xf32> -> vector<8x32xf32>
    %251 = arith.addf %249, %250 : vector<8x32xf32>
    %252 = vector.broadcast %25 : vector<1x32xf32> to vector<8x32xf32>
    %253 = arith.addf %251, %252 : vector<8x32xf32>
    %cst_118 = arith.constant dense<0.000000e+00> : vector<8x32xf32>
    %254 = tpu.matmul %248, %11, %cst_118 {dimension_numbers = #tpu.dot_dimension_numbers<[1], [0], [0], [1], [0, 0, 1, 1], [], []>} : vector<8x32xf32>, vector<32x32xf32>, vector<8x32xf32> -> vector<8x32xf32>
    %cst_119 = arith.constant dense<0.000000e+00> : vector<8x32xf32>
    %255 = tpu.matmul %236, %19, %cst_119 {dimension_numbers = #tpu.dot_dimension_numbers<[1], [0], [0], [1], [0, 0, 1, 1], [], []>} : vector<8x32xf32>, vector<32x32xf32>, vector<8x32xf32> -> vector<8x32xf32>
    %256 = arith.addf %254, %255 : vector<8x32xf32>
    %257 = vector.broadcast %27 : vector<1x32xf32> to vector<8x32xf32>
    %258 = arith.addf %256, %257 : vector<8x32xf32>
    %cst_120 = arith.constant dense<0.000000e+00> : vector<8x32xf32>
    %259 = tpu.matmul %248, %13, %cst_120 {dimension_numbers = #tpu.dot_dimension_numbers<[1], [0], [0], [1], [0, 0, 1, 1], [], []>} : vector<8x32xf32>, vector<32x32xf32>, vector<8x32xf32> -> vector<8x32xf32>
    %cst_121 = arith.constant dense<0.000000e+00> : vector<8x32xf32>
    %260 = tpu.matmul %236, %21, %cst_121 {dimension_numbers = #tpu.dot_dimension_numbers<[1], [0], [0], [1], [0, 0, 1, 1], [], []>} : vector<8x32xf32>, vector<32x32xf32>, vector<8x32xf32> -> vector<8x32xf32>
    %261 = arith.addf %259, %260 : vector<8x32xf32>
    %262 = vector.broadcast %29 : vector<1x32xf32> to vector<8x32xf32>
    %263 = arith.addf %261, %262 : vector<8x32xf32>
    %cst_122 = arith.constant dense<0.000000e+00> : vector<8x32xf32>
    %264 = tpu.matmul %248, %15, %cst_122 {dimension_numbers = #tpu.dot_dimension_numbers<[1], [0], [0], [1], [0, 0, 1, 1], [], []>} : vector<8x32xf32>, vector<32x32xf32>, vector<8x32xf32> -> vector<8x32xf32>
    %cst_123 = arith.constant dense<0.000000e+00> : vector<8x32xf32>
    %265 = tpu.matmul %236, %23, %cst_123 {dimension_numbers = #tpu.dot_dimension_numbers<[1], [0], [0], [1], [0, 0, 1, 1], [], []>} : vector<8x32xf32>, vector<32x32xf32>, vector<8x32xf32> -> vector<8x32xf32>
    %266 = arith.addf %264, %265 : vector<8x32xf32>
    %267 = vector.broadcast %31 : vector<1x32xf32> to vector<8x32xf32>
    %268 = arith.addf %266, %267 : vector<8x32xf32>
    %269 = arith.negf %253 : vector<8x32xf32>
    %270 = math.exp %269 : vector<8x32xf32>
    %cst_124 = arith.constant 1.000000e+00 : f32
    %271 = vector.broadcast %cst_124 : f32 to vector<8x32xf32>
    %272 = arith.addf %271, %270 : vector<8x32xf32>
    %273 = arith.divf %271, %272 : vector<8x32xf32>
    %274 = arith.negf %258 : vector<8x32xf32>
    %275 = math.exp %274 : vector<8x32xf32>
    %cst_125 = arith.constant 1.000000e+00 : f32
    %276 = vector.broadcast %cst_125 : f32 to vector<8x32xf32>
    %277 = arith.addf %276, %275 : vector<8x32xf32>
    %278 = arith.divf %276, %277 : vector<8x32xf32>
    %279 = math.tanh %263 : vector<8x32xf32>
    %280 = arith.negf %268 : vector<8x32xf32>
    %281 = math.exp %280 : vector<8x32xf32>
    %cst_126 = arith.constant 1.000000e+00 : f32
    %282 = vector.broadcast %cst_126 : f32 to vector<8x32xf32>
    %283 = arith.addf %282, %281 : vector<8x32xf32>
    %284 = arith.divf %282, %283 : vector<8x32xf32>
    %285 = arith.mulf %278, %234 : vector<8x32xf32>
    %286 = arith.mulf %273, %279 : vector<8x32xf32>
    %287 = arith.addf %285, %286 : vector<8x32xf32>
    %288 = math.tanh %287 : vector<8x32xf32>
    %289 = arith.mulf %284, %288 : vector<8x32xf32>
    %c4_i32 = arith.constant 4 : i32
    %290 = arith.cmpi sgt, %7, %c4_i32 : i32
    %cst_127 = arith.constant 0.000000e+00 : f32
    %cst_128 = arith.constant 0xFF800000 : f32
    %291 = arith.select %290, %cst_127, %cst_128 : f32
    %c4_i32_129 = arith.constant 4 : i32
    %292 = vector.broadcast %c4_i32_129 : i32 to vector<8x1xi32>
    %293 = arith.cmpi sgt, %6, %292 : vector<8x1xi32>
    %294 = arith.mulf %5, %289 : vector<8x32xf32>
    %295 = vector.shape_cast %293 : vector<8x1xi1> to vector<8x1xi1>
    %296 = vector.broadcast %295 : vector<8x1xi1> to vector<8x32xi1>
    %297 = vector.broadcast %291 : f32 to vector<8x32xf32>
    %298 = arith.select %296, %294, %297 : vector<8x32xi1>, vector<8x32xf32>
    %299 = arith.maximumf %246, %298 : vector<8x32xf32>
    %c5 = arith.constant 5 : index
    %c0_130 = arith.constant 0 : index
    %c0_131 = arith.constant 0 : index
    %300 = vector.load %arg2[%c5, %c0_130, %c0_131] : memref<8x8x32xf32, #tpu.memory_space<vmem>>, vector<1x8x32xf32>
    %301 = vector.shape_cast %300 : vector<1x8x32xf32> to vector<8x32xf32>
    %cst_132 = arith.constant dense<0.000000e+00> : vector<8x32xf32>
    %302 = tpu.matmul %301, %9, %cst_132 {dimension_numbers = #tpu.dot_dimension_numbers<[1], [0], [0], [1], [0, 0, 1, 1], [], []>} : vector<8x32xf32>, vector<32x32xf32>, vector<8x32xf32> -> vector<8x32xf32>
    %cst_133 = arith.constant dense<0.000000e+00> : vector<8x32xf32>
    %303 = tpu.matmul %289, %17, %cst_133 {dimension_numbers = #tpu.dot_dimension_numbers<[1], [0], [0], [1], [0, 0, 1, 1], [], []>} : vector<8x32xf32>, vector<32x32xf32>, vector<8x32xf32> -> vector<8x32xf32>
    %304 = arith.addf %302, %303 : vector<8x32xf32>
    %305 = vector.broadcast %25 : vector<1x32xf32> to vector<8x32xf32>
    %306 = arith.addf %304, %305 : vector<8x32xf32>
    %cst_134 = arith.constant dense<0.000000e+00> : vector<8x32xf32>
    %307 = tpu.matmul %301, %11, %cst_134 {dimension_numbers = #tpu.dot_dimension_numbers<[1], [0], [0], [1], [0, 0, 1, 1], [], []>} : vector<8x32xf32>, vector<32x32xf32>, vector<8x32xf32> -> vector<8x32xf32>
    %cst_135 = arith.constant dense<0.000000e+00> : vector<8x32xf32>
    %308 = tpu.matmul %289, %19, %cst_135 {dimension_numbers = #tpu.dot_dimension_numbers<[1], [0], [0], [1], [0, 0, 1, 1], [], []>} : vector<8x32xf32>, vector<32x32xf32>, vector<8x32xf32> -> vector<8x32xf32>
    %309 = arith.addf %307, %308 : vector<8x32xf32>
    %310 = vector.broadcast %27 : vector<1x32xf32> to vector<8x32xf32>
    %311 = arith.addf %309, %310 : vector<8x32xf32>
    %cst_136 = arith.constant dense<0.000000e+00> : vector<8x32xf32>
    %312 = tpu.matmul %301, %13, %cst_136 {dimension_numbers = #tpu.dot_dimension_numbers<[1], [0], [0], [1], [0, 0, 1, 1], [], []>} : vector<8x32xf32>, vector<32x32xf32>, vector<8x32xf32> -> vector<8x32xf32>
    %cst_137 = arith.constant dense<0.000000e+00> : vector<8x32xf32>
    %313 = tpu.matmul %289, %21, %cst_137 {dimension_numbers = #tpu.dot_dimension_numbers<[1], [0], [0], [1], [0, 0, 1, 1], [], []>} : vector<8x32xf32>, vector<32x32xf32>, vector<8x32xf32> -> vector<8x32xf32>
    %314 = arith.addf %312, %313 : vector<8x32xf32>
    %315 = vector.broadcast %29 : vector<1x32xf32> to vector<8x32xf32>
    %316 = arith.addf %314, %315 : vector<8x32xf32>
    %cst_138 = arith.constant dense<0.000000e+00> : vector<8x32xf32>
    %317 = tpu.matmul %301, %15, %cst_138 {dimension_numbers = #tpu.dot_dimension_numbers<[1], [0], [0], [1], [0, 0, 1, 1], [], []>} : vector<8x32xf32>, vector<32x32xf32>, vector<8x32xf32> -> vector<8x32xf32>
    %cst_139 = arith.constant dense<0.000000e+00> : vector<8x32xf32>
    %318 = tpu.matmul %289, %23, %cst_139 {dimension_numbers = #tpu.dot_dimension_numbers<[1], [0], [0], [1], [0, 0, 1, 1], [], []>} : vector<8x32xf32>, vector<32x32xf32>, vector<8x32xf32> -> vector<8x32xf32>
    %319 = arith.addf %317, %318 : vector<8x32xf32>
    %320 = vector.broadcast %31 : vector<1x32xf32> to vector<8x32xf32>
    %321 = arith.addf %319, %320 : vector<8x32xf32>
    %322 = arith.negf %306 : vector<8x32xf32>
    %323 = math.exp %322 : vector<8x32xf32>
    %cst_140 = arith.constant 1.000000e+00 : f32
    %324 = vector.broadcast %cst_140 : f32 to vector<8x32xf32>
    %325 = arith.addf %324, %323 : vector<8x32xf32>
    %326 = arith.divf %324, %325 : vector<8x32xf32>
    %327 = arith.negf %311 : vector<8x32xf32>
    %328 = math.exp %327 : vector<8x32xf32>
    %cst_141 = arith.constant 1.000000e+00 : f32
    %329 = vector.broadcast %cst_141 : f32 to vector<8x32xf32>
    %330 = arith.addf %329, %328 : vector<8x32xf32>
    %331 = arith.divf %329, %330 : vector<8x32xf32>
    %332 = math.tanh %316 : vector<8x32xf32>
    %333 = arith.negf %321 : vector<8x32xf32>
    %334 = math.exp %333 : vector<8x32xf32>
    %cst_142 = arith.constant 1.000000e+00 : f32
    %335 = vector.broadcast %cst_142 : f32 to vector<8x32xf32>
    %336 = arith.addf %335, %334 : vector<8x32xf32>
    %337 = arith.divf %335, %336 : vector<8x32xf32>
    %338 = arith.mulf %331, %287 : vector<8x32xf32>
    %339 = arith.mulf %326, %332 : vector<8x32xf32>
    %340 = arith.addf %338, %339 : vector<8x32xf32>
    %341 = math.tanh %340 : vector<8x32xf32>
    %342 = arith.mulf %337, %341 : vector<8x32xf32>
    %c5_i32 = arith.constant 5 : i32
    %343 = arith.cmpi sgt, %7, %c5_i32 : i32
    %cst_143 = arith.constant 0.000000e+00 : f32
    %cst_144 = arith.constant 0xFF800000 : f32
    %344 = arith.select %343, %cst_143, %cst_144 : f32
    %c5_i32_145 = arith.constant 5 : i32
    %345 = vector.broadcast %c5_i32_145 : i32 to vector<8x1xi32>
    %346 = arith.cmpi sgt, %6, %345 : vector<8x1xi32>
    %347 = arith.mulf %5, %342 : vector<8x32xf32>
    %348 = vector.shape_cast %346 : vector<8x1xi1> to vector<8x1xi1>
    %349 = vector.broadcast %348 : vector<8x1xi1> to vector<8x32xi1>
    %350 = vector.broadcast %344 : f32 to vector<8x32xf32>
    %351 = arith.select %349, %347, %350 : vector<8x32xi1>, vector<8x32xf32>
    %352 = arith.maximumf %299, %351 : vector<8x32xf32>
    %c6 = arith.constant 6 : index
    %c0_146 = arith.constant 0 : index
    %c0_147 = arith.constant 0 : index
    %353 = vector.load %arg2[%c6, %c0_146, %c0_147] : memref<8x8x32xf32, #tpu.memory_space<vmem>>, vector<1x8x32xf32>
    %354 = vector.shape_cast %353 : vector<1x8x32xf32> to vector<8x32xf32>
    %cst_148 = arith.constant dense<0.000000e+00> : vector<8x32xf32>
    %355 = tpu.matmul %354, %9, %cst_148 {dimension_numbers = #tpu.dot_dimension_numbers<[1], [0], [0], [1], [0, 0, 1, 1], [], []>} : vector<8x32xf32>, vector<32x32xf32>, vector<8x32xf32> -> vector<8x32xf32>
    %cst_149 = arith.constant dense<0.000000e+00> : vector<8x32xf32>
    %356 = tpu.matmul %342, %17, %cst_149 {dimension_numbers = #tpu.dot_dimension_numbers<[1], [0], [0], [1], [0, 0, 1, 1], [], []>} : vector<8x32xf32>, vector<32x32xf32>, vector<8x32xf32> -> vector<8x32xf32>
    %357 = arith.addf %355, %356 : vector<8x32xf32>
    %358 = vector.broadcast %25 : vector<1x32xf32> to vector<8x32xf32>
    %359 = arith.addf %357, %358 : vector<8x32xf32>
    %cst_150 = arith.constant dense<0.000000e+00> : vector<8x32xf32>
    %360 = tpu.matmul %354, %11, %cst_150 {dimension_numbers = #tpu.dot_dimension_numbers<[1], [0], [0], [1], [0, 0, 1, 1], [], []>} : vector<8x32xf32>, vector<32x32xf32>, vector<8x32xf32> -> vector<8x32xf32>
    %cst_151 = arith.constant dense<0.000000e+00> : vector<8x32xf32>
    %361 = tpu.matmul %342, %19, %cst_151 {dimension_numbers = #tpu.dot_dimension_numbers<[1], [0], [0], [1], [0, 0, 1, 1], [], []>} : vector<8x32xf32>, vector<32x32xf32>, vector<8x32xf32> -> vector<8x32xf32>
    %362 = arith.addf %360, %361 : vector<8x32xf32>
    %363 = vector.broadcast %27 : vector<1x32xf32> to vector<8x32xf32>
    %364 = arith.addf %362, %363 : vector<8x32xf32>
    %cst_152 = arith.constant dense<0.000000e+00> : vector<8x32xf32>
    %365 = tpu.matmul %354, %13, %cst_152 {dimension_numbers = #tpu.dot_dimension_numbers<[1], [0], [0], [1], [0, 0, 1, 1], [], []>} : vector<8x32xf32>, vector<32x32xf32>, vector<8x32xf32> -> vector<8x32xf32>
    %cst_153 = arith.constant dense<0.000000e+00> : vector<8x32xf32>
    %366 = tpu.matmul %342, %21, %cst_153 {dimension_numbers = #tpu.dot_dimension_numbers<[1], [0], [0], [1], [0, 0, 1, 1], [], []>} : vector<8x32xf32>, vector<32x32xf32>, vector<8x32xf32> -> vector<8x32xf32>
    %367 = arith.addf %365, %366 : vector<8x32xf32>
    %368 = vector.broadcast %29 : vector<1x32xf32> to vector<8x32xf32>
    %369 = arith.addf %367, %368 : vector<8x32xf32>
    %cst_154 = arith.constant dense<0.000000e+00> : vector<8x32xf32>
    %370 = tpu.matmul %354, %15, %cst_154 {dimension_numbers = #tpu.dot_dimension_numbers<[1], [0], [0], [1], [0, 0, 1, 1], [], []>} : vector<8x32xf32>, vector<32x32xf32>, vector<8x32xf32> -> vector<8x32xf32>
    %cst_155 = arith.constant dense<0.000000e+00> : vector<8x32xf32>
    %371 = tpu.matmul %342, %23, %cst_155 {dimension_numbers = #tpu.dot_dimension_numbers<[1], [0], [0], [1], [0, 0, 1, 1], [], []>} : vector<8x32xf32>, vector<32x32xf32>, vector<8x32xf32> -> vector<8x32xf32>
    %372 = arith.addf %370, %371 : vector<8x32xf32>
    %373 = vector.broadcast %31 : vector<1x32xf32> to vector<8x32xf32>
    %374 = arith.addf %372, %373 : vector<8x32xf32>
    %375 = arith.negf %359 : vector<8x32xf32>
    %376 = math.exp %375 : vector<8x32xf32>
    %cst_156 = arith.constant 1.000000e+00 : f32
    %377 = vector.broadcast %cst_156 : f32 to vector<8x32xf32>
    %378 = arith.addf %377, %376 : vector<8x32xf32>
    %379 = arith.divf %377, %378 : vector<8x32xf32>
    %380 = arith.negf %364 : vector<8x32xf32>
    %381 = math.exp %380 : vector<8x32xf32>
    %cst_157 = arith.constant 1.000000e+00 : f32
    %382 = vector.broadcast %cst_157 : f32 to vector<8x32xf32>
    %383 = arith.addf %382, %381 : vector<8x32xf32>
    %384 = arith.divf %382, %383 : vector<8x32xf32>
    %385 = math.tanh %369 : vector<8x32xf32>
    %386 = arith.negf %374 : vector<8x32xf32>
    %387 = math.exp %386 : vector<8x32xf32>
    %cst_158 = arith.constant 1.000000e+00 : f32
    %388 = vector.broadcast %cst_158 : f32 to vector<8x32xf32>
    %389 = arith.addf %388, %387 : vector<8x32xf32>
    %390 = arith.divf %388, %389 : vector<8x32xf32>
    %391 = arith.mulf %384, %340 : vector<8x32xf32>
    %392 = arith.mulf %379, %385 : vector<8x32xf32>
    %393 = arith.addf %391, %392 : vector<8x32xf32>
    %394 = math.tanh %393 : vector<8x32xf32>
    %395 = arith.mulf %390, %394 : vector<8x32xf32>
    %c6_i32 = arith.constant 6 : i32
    %396 = arith.cmpi sgt, %7, %c6_i32 : i32
    %cst_159 = arith.constant 0.000000e+00 : f32
    %cst_160 = arith.constant 0xFF800000 : f32
    %397 = arith.select %396, %cst_159, %cst_160 : f32
    %c6_i32_161 = arith.constant 6 : i32
    %398 = vector.broadcast %c6_i32_161 : i32 to vector<8x1xi32>
    %399 = arith.cmpi sgt, %6, %398 : vector<8x1xi32>
    %400 = arith.mulf %5, %395 : vector<8x32xf32>
    %401 = vector.shape_cast %399 : vector<8x1xi1> to vector<8x1xi1>
    %402 = vector.broadcast %401 : vector<8x1xi1> to vector<8x32xi1>
    %403 = vector.broadcast %397 : f32 to vector<8x32xf32>
    %404 = arith.select %402, %400, %403 : vector<8x32xi1>, vector<8x32xf32>
    %405 = arith.maximumf %352, %404 : vector<8x32xf32>
    %c7 = arith.constant 7 : index
    %c0_162 = arith.constant 0 : index
    %c0_163 = arith.constant 0 : index
    %406 = vector.load %arg2[%c7, %c0_162, %c0_163] : memref<8x8x32xf32, #tpu.memory_space<vmem>>, vector<1x8x32xf32>
    %407 = vector.shape_cast %406 : vector<1x8x32xf32> to vector<8x32xf32>
    %cst_164 = arith.constant dense<0.000000e+00> : vector<8x32xf32>
    %408 = tpu.matmul %407, %9, %cst_164 {dimension_numbers = #tpu.dot_dimension_numbers<[1], [0], [0], [1], [0, 0, 1, 1], [], []>} : vector<8x32xf32>, vector<32x32xf32>, vector<8x32xf32> -> vector<8x32xf32>
    %cst_165 = arith.constant dense<0.000000e+00> : vector<8x32xf32>
    %409 = tpu.matmul %395, %17, %cst_165 {dimension_numbers = #tpu.dot_dimension_numbers<[1], [0], [0], [1], [0, 0, 1, 1], [], []>} : vector<8x32xf32>, vector<32x32xf32>, vector<8x32xf32> -> vector<8x32xf32>
    %410 = arith.addf %408, %409 : vector<8x32xf32>
    %411 = vector.broadcast %25 : vector<1x32xf32> to vector<8x32xf32>
    %412 = arith.addf %410, %411 : vector<8x32xf32>
    %cst_166 = arith.constant dense<0.000000e+00> : vector<8x32xf32>
    %413 = tpu.matmul %407, %11, %cst_166 {dimension_numbers = #tpu.dot_dimension_numbers<[1], [0], [0], [1], [0, 0, 1, 1], [], []>} : vector<8x32xf32>, vector<32x32xf32>, vector<8x32xf32> -> vector<8x32xf32>
    %cst_167 = arith.constant dense<0.000000e+00> : vector<8x32xf32>
    %414 = tpu.matmul %395, %19, %cst_167 {dimension_numbers = #tpu.dot_dimension_numbers<[1], [0], [0], [1], [0, 0, 1, 1], [], []>} : vector<8x32xf32>, vector<32x32xf32>, vector<8x32xf32> -> vector<8x32xf32>
    %415 = arith.addf %413, %414 : vector<8x32xf32>
    %416 = vector.broadcast %27 : vector<1x32xf32> to vector<8x32xf32>
    %417 = arith.addf %415, %416 : vector<8x32xf32>
    %cst_168 = arith.constant dense<0.000000e+00> : vector<8x32xf32>
    %418 = tpu.matmul %407, %13, %cst_168 {dimension_numbers = #tpu.dot_dimension_numbers<[1], [0], [0], [1], [0, 0, 1, 1], [], []>} : vector<8x32xf32>, vector<32x32xf32>, vector<8x32xf32> -> vector<8x32xf32>
    %cst_169 = arith.constant dense<0.000000e+00> : vector<8x32xf32>
    %419 = tpu.matmul %395, %21, %cst_169 {dimension_numbers = #tpu.dot_dimension_numbers<[1], [0], [0], [1], [0, 0, 1, 1], [], []>} : vector<8x32xf32>, vector<32x32xf32>, vector<8x32xf32> -> vector<8x32xf32>
    %420 = arith.addf %418, %419 : vector<8x32xf32>
    %421 = vector.broadcast %29 : vector<1x32xf32> to vector<8x32xf32>
    %422 = arith.addf %420, %421 : vector<8x32xf32>
    %cst_170 = arith.constant dense<0.000000e+00> : vector<8x32xf32>
    %423 = tpu.matmul %407, %15, %cst_170 {dimension_numbers = #tpu.dot_dimension_numbers<[1], [0], [0], [1], [0, 0, 1, 1], [], []>} : vector<8x32xf32>, vector<32x32xf32>, vector<8x32xf32> -> vector<8x32xf32>
    %cst_171 = arith.constant dense<0.000000e+00> : vector<8x32xf32>
    %424 = tpu.matmul %395, %23, %cst_171 {dimension_numbers = #tpu.dot_dimension_numbers<[1], [0], [0], [1], [0, 0, 1, 1], [], []>} : vector<8x32xf32>, vector<32x32xf32>, vector<8x32xf32> -> vector<8x32xf32>
    %425 = arith.addf %423, %424 : vector<8x32xf32>
    %426 = vector.broadcast %31 : vector<1x32xf32> to vector<8x32xf32>
    %427 = arith.addf %425, %426 : vector<8x32xf32>
    %428 = arith.negf %412 : vector<8x32xf32>
    %429 = math.exp %428 : vector<8x32xf32>
    %cst_172 = arith.constant 1.000000e+00 : f32
    %430 = vector.broadcast %cst_172 : f32 to vector<8x32xf32>
    %431 = arith.addf %430, %429 : vector<8x32xf32>
    %432 = arith.divf %430, %431 : vector<8x32xf32>
    %433 = arith.negf %417 : vector<8x32xf32>
    %434 = math.exp %433 : vector<8x32xf32>
    %cst_173 = arith.constant 1.000000e+00 : f32
    %435 = vector.broadcast %cst_173 : f32 to vector<8x32xf32>
    %436 = arith.addf %435, %434 : vector<8x32xf32>
    %437 = arith.divf %435, %436 : vector<8x32xf32>
    %438 = math.tanh %422 : vector<8x32xf32>
    %439 = arith.negf %427 : vector<8x32xf32>
    %440 = math.exp %439 : vector<8x32xf32>
    %cst_174 = arith.constant 1.000000e+00 : f32
    %441 = vector.broadcast %cst_174 : f32 to vector<8x32xf32>
    %442 = arith.addf %441, %440 : vector<8x32xf32>
    %443 = arith.divf %441, %442 : vector<8x32xf32>
    %444 = arith.mulf %437, %393 : vector<8x32xf32>
    %445 = arith.mulf %432, %438 : vector<8x32xf32>
    %446 = arith.addf %444, %445 : vector<8x32xf32>
    %447 = math.tanh %446 : vector<8x32xf32>
    %448 = arith.mulf %443, %447 : vector<8x32xf32>
    %c7_i32 = arith.constant 7 : i32
    %449 = arith.cmpi sgt, %7, %c7_i32 : i32
    %cst_175 = arith.constant 0.000000e+00 : f32
    %cst_176 = arith.constant 0xFF800000 : f32
    %450 = arith.select %449, %cst_175, %cst_176 : f32
    %c7_i32_177 = arith.constant 7 : i32
    %451 = vector.broadcast %c7_i32_177 : i32 to vector<8x1xi32>
    %452 = arith.cmpi sgt, %6, %451 : vector<8x1xi32>
    %453 = arith.mulf %5, %448 : vector<8x32xf32>
    %454 = vector.shape_cast %452 : vector<8x1xi1> to vector<8x1xi1>
    %455 = vector.broadcast %454 : vector<8x1xi1> to vector<8x32xi1>
    %456 = vector.broadcast %450 : f32 to vector<8x32xf32>
    %457 = arith.select %455, %453, %456 : vector<8x32xi1>, vector<8x32xf32>
    %458 = arith.maximumf %405, %457 : vector<8x32xf32>
    %c0_178 = arith.constant 0 : index
    %c0_179 = arith.constant 0 : index
    %459 = vector.load %arg6[%c0_178, %c0_179] : memref<8x32xf32, #tpu.memory_space<vmem>>, vector<8x32xf32>
    %c0_180 = arith.constant 0 : index
    %c0_181 = arith.constant 0 : index
    %460 = vector.load %arg7[%c0_180, %c0_181] : memref<8x32xf32, #tpu.memory_space<vmem>>, vector<8x32xf32>
    %c0_182 = arith.constant 0 : index
    %c0_183 = arith.constant 0 : index
    %461 = vector.load %arg12[%c0_182, %c0_183] : memref<32x128xf32, #tpu.memory_space<vmem>>, vector<32x128xf32>
    %cst_184 = arith.constant dense<0.000000e+00> : vector<8x128xf32>
    %462 = tpu.matmul %459, %461, %cst_184 {dimension_numbers = #tpu.dot_dimension_numbers<[1], [0], [0], [1], [0, 0, 1, 1], [], []>} : vector<8x32xf32>, vector<32x128xf32>, vector<8x128xf32> -> vector<8x128xf32>
    %c0_185 = arith.constant 0 : index
    %c0_186 = arith.constant 0 : index
    %463 = vector.load %arg13[%c0_185, %c0_186] : memref<32x128xf32, #tpu.memory_space<vmem>>, vector<32x128xf32>
    %cst_187 = arith.constant dense<0.000000e+00> : vector<8x128xf32>
    %464 = tpu.matmul %458, %463, %cst_187 {dimension_numbers = #tpu.dot_dimension_numbers<[1], [0], [0], [1], [0, 0, 1, 1], [], []>} : vector<8x32xf32>, vector<32x128xf32>, vector<8x128xf32> -> vector<8x128xf32>
    %465 = arith.addf %462, %464 : vector<8x128xf32>
    %466 = tpu.concatenate %460, %460, %460, %460 in 1 : vector<8x32xf32>, vector<8x32xf32>, vector<8x32xf32>, vector<8x32xf32> -> vector<8x128xf32>
    %467 = arith.mulf %465, %466 : vector<8x128xf32>
    %c0_188 = arith.constant 0 : index
    %c0_189 = arith.constant 0 : index
    %468 = vector.load %arg14[%c0_188, %c0_189] : memref<128x4xf32, #tpu.memory_space<vmem>>, vector<128x4xf32>
    %cst_190 = arith.constant dense<0.000000e+00> : vector<8x4xf32>
    %469 = tpu.matmul %467, %468, %cst_190 {dimension_numbers = #tpu.dot_dimension_numbers<[1], [0], [0], [1], [0, 0, 1, 1], [], []>} : vector<8x128xf32>, vector<128x4xf32>, vector<8x4xf32> -> vector<8x4xf32>
    %c0_191 = arith.constant 0 : index
    %c0_192 = arith.constant 0 : index
    %470 = vector.load %arg15[%c0_191, %c0_192] : memref<32x4xf32, #tpu.memory_space<vmem>>, vector<32x4xf32>
    %cst_193 = arith.constant dense<0.000000e+00> : vector<8x4xf32>
    %471 = tpu.matmul %459, %470, %cst_193 {dimension_numbers = #tpu.dot_dimension_numbers<[1], [0], [0], [1], [0, 0, 1, 1], [], []>} : vector<8x32xf32>, vector<32x4xf32>, vector<8x4xf32> -> vector<8x4xf32>
    %c0_194 = arith.constant 0 : index
    %c0_195 = arith.constant 0 : index
    %472 = vector.load %arg16[%c0_194, %c0_195] : memref<32x4xf32, #tpu.memory_space<vmem>>, vector<32x4xf32>
    %cst_196 = arith.constant dense<0.000000e+00> : vector<8x4xf32>
    %473 = tpu.matmul %458, %472, %cst_196 {dimension_numbers = #tpu.dot_dimension_numbers<[1], [0], [0], [1], [0, 0, 1, 1], [], []>} : vector<8x32xf32>, vector<32x4xf32>, vector<8x4xf32> -> vector<8x4xf32>
    %474 = arith.addf %471, %473 : vector<8x4xf32>
    %c0_197 = arith.constant 0 : index
    %c0_198 = arith.constant 0 : index
    %475 = vector.load %arg17[%c0_197, %c0_198] : memref<32x4xf32, #tpu.memory_space<vmem>>, vector<32x4xf32>
    %cst_199 = arith.constant dense<0.000000e+00> : vector<8x4xf32>
    %476 = tpu.matmul %460, %475, %cst_199 {dimension_numbers = #tpu.dot_dimension_numbers<[1], [0], [0], [1], [0, 0, 1, 1], [], []>} : vector<8x32xf32>, vector<32x4xf32>, vector<8x4xf32> -> vector<8x4xf32>
    %477 = arith.addf %474, %476 : vector<8x4xf32>
    %478 = arith.addf %469, %477 : vector<8x4xf32>
    %c0_200 = arith.constant 0 : index
    %c0_201 = arith.constant 0 : index
    %479 = vector.load %arg18[%c0_200, %c0_201] : memref<1x4xf32, #tpu.memory_space<vmem>>, vector<1x4xf32>
    %480 = vector.broadcast %479 : vector<1x4xf32> to vector<8x4xf32>
    %481 = arith.addf %478, %480 : vector<8x4xf32>
    %482 = math.tanh %481 : vector<8x4xf32>
    %c0_202 = arith.constant 0 : index
    %c0_203 = arith.constant 0 : index
    %483 = vector.load %arg19[%c0_202, %c0_203] : memref<4x1xf32, #tpu.memory_space<vmem>>, vector<4x1xf32>
    %cst_204 = arith.constant dense<0.000000e+00> : vector<8x1xf32>
    %484 = tpu.matmul %482, %483, %cst_204 {dimension_numbers = #tpu.dot_dimension_numbers<[1], [0], [0], [1], [0, 0, 1, 1], [], []>} : vector<8x4xf32>, vector<4x1xf32>, vector<8x1xf32> -> vector<8x1xf32>
    %485 = vector.shape_cast %484 : vector<8x1xf32> to vector<8x1xf32>
    %486 = vector.broadcast %485 : vector<8x1xf32> to vector<8x128xf32>
    %c0_205 = arith.constant 0 : index
    %c0_206 = arith.constant 0 : index
    %487 = vector.load %arg20[%c0_205, %c0_206] : memref<8x128xf32, #tpu.memory_space<vmem>>, vector<8x128xf32>
    tpu.vector_store %arg20[%c0_205, %c0_206], %486 {strides = array<i32>} : memref<8x128xf32, #tpu.memory_space<vmem>>, vector<8x128xf32>,
    return
  }
  func.func @transform_0(%arg0: i32, %arg1: memref<1xi32, #tpu.memory_space<smem>>) -> (i32, i32, i32) {
    %c0_i32 = arith.constant 0 : i32
    %c0_i32_0 = arith.constant 0 : i32
    %c0_i32_1 = arith.constant 0 : i32
    return %c0_i32, %arg0, %c0_i32_0 : i32, i32, i32
  }
  func.func @transform_1(%arg0: i32, %arg1: memref<1xi32, #tpu.memory_space<smem>>) -> (i32, i32) {
    %c0_i32 = arith.constant 0 : i32
    %c0_i32_0 = arith.constant 0 : i32
    return %arg0, %c0_i32 : i32, i32
  }
  func.func @transform_2(%arg0: i32, %arg1: memref<1xi32, #tpu.memory_space<smem>>) -> (i32, i32) {
    %c0_i32 = arith.constant 0 : i32
    %c0_i32_0 = arith.constant 0 : i32
    return %arg0, %c0_i32 : i32, i32
  }
  func.func @transform_3(%arg0: i32, %arg1: memref<1xi32, #tpu.memory_space<smem>>) -> (i32, i32) {
    %c0_i32 = arith.constant 0 : i32
    %c0_i32_0 = arith.constant 0 : i32
    return %arg0, %c0_i32 : i32, i32
  }
  func.func @transform_4(%arg0: i32, %arg1: memref<1xi32, #tpu.memory_space<smem>>) -> (i32, i32) {
    %c0_i32 = arith.constant 0 : i32
    %c0_i32_0 = arith.constant 0 : i32
    return %arg0, %c0_i32 : i32, i32
  }
  func.func @transform_5(%arg0: i32, %arg1: memref<1xi32, #tpu.memory_space<smem>>) -> (i32, i32) {
    %c0_i32 = arith.constant 0 : i32
    %c0_i32_0 = arith.constant 0 : i32
    return %arg0, %c0_i32 : i32, i32
  }
  func.func @transform_6(%arg0: i32, %arg1: memref<1xi32, #tpu.memory_space<smem>>) -> (i32, i32) {
    %c0_i32 = arith.constant 0 : i32
    %c0_i32_0 = arith.constant 0 : i32
    %c0_i32_1 = arith.constant 0 : i32
    return %c0_i32, %c0_i32_0 : i32, i32
  }
  func.func @transform_7(%arg0: i32, %arg1: memref<1xi32, #tpu.memory_space<smem>>) -> (i32, i32, i32) {
    %c0_i32 = arith.constant 0 : i32
    %c0_i32_0 = arith.constant 0 : i32
    %c0_i32_1 = arith.constant 0 : i32
    %c0_i32_2 = arith.constant 0 : i32
    return %c0_i32, %c0_i32_0, %c0_i32_1 : i32, i32, i32
  }
  func.func @transform_8(%arg0: i32, %arg1: memref<1xi32, #tpu.memory_space<smem>>) -> (i32, i32, i32) {
    %c0_i32 = arith.constant 0 : i32
    %c0_i32_0 = arith.constant 0 : i32
    %c0_i32_1 = arith.constant 0 : i32
    %c0_i32_2 = arith.constant 0 : i32
    return %c0_i32, %c0_i32_0, %c0_i32_1 : i32, i32, i32
  }
  func.func @transform_9(%arg0: i32, %arg1: memref<1xi32, #tpu.memory_space<smem>>) -> (i32, i32, i32) {
    %c0_i32 = arith.constant 0 : i32
    %c0_i32_0 = arith.constant 0 : i32
    %c0_i32_1 = arith.constant 0 : i32
    %c0_i32_2 = arith.constant 0 : i32
    return %c0_i32, %c0_i32_0, %c0_i32_1 : i32, i32, i32
  }
  func.func @transform_10(%arg0: i32, %arg1: memref<1xi32, #tpu.memory_space<smem>>) -> (i32, i32) {
    %c0_i32 = arith.constant 0 : i32
    %c0_i32_0 = arith.constant 0 : i32
    %c0_i32_1 = arith.constant 0 : i32
    return %c0_i32, %c0_i32_0 : i32, i32
  }
  func.func @transform_11(%arg0: i32, %arg1: memref<1xi32, #tpu.memory_space<smem>>) -> (i32, i32) {
    %c0_i32 = arith.constant 0 : i32
    %c0_i32_0 = arith.constant 0 : i32
    %c0_i32_1 = arith.constant 0 : i32
    return %c0_i32, %c0_i32_0 : i32, i32
  }
  func.func @transform_12(%arg0: i32, %arg1: memref<1xi32, #tpu.memory_space<smem>>) -> (i32, i32) {
    %c0_i32 = arith.constant 0 : i32
    %c0_i32_0 = arith.constant 0 : i32
    %c0_i32_1 = arith.constant 0 : i32
    return %c0_i32, %c0_i32_0 : i32, i32
  }
  func.func @transform_13(%arg0: i32, %arg1: memref<1xi32, #tpu.memory_space<smem>>) -> (i32, i32) {
    %c0_i32 = arith.constant 0 : i32
    %c0_i32_0 = arith.constant 0 : i32
    %c0_i32_1 = arith.constant 0 : i32
    return %c0_i32, %c0_i32_0 : i32, i32
  }
  func.func @transform_14(%arg0: i32, %arg1: memref<1xi32, #tpu.memory_space<smem>>) -> (i32, i32) {
    %c0_i32 = arith.constant 0 : i32
    %c0_i32_0 = arith.constant 0 : i32
    %c0_i32_1 = arith.constant 0 : i32
    return %c0_i32, %c0_i32_0 : i32, i32
  }
  func.func @transform_15(%arg0: i32, %arg1: memref<1xi32, #tpu.memory_space<smem>>) -> (i32, i32) {
    %c0_i32 = arith.constant 0 : i32
    %c0_i32_0 = arith.constant 0 : i32
    %c0_i32_1 = arith.constant 0 : i32
    return %c0_i32, %c0_i32_0 : i32, i32
  }
  func.func @transform_16(%arg0: i32, %arg1: memref<1xi32, #tpu.memory_space<smem>>) -> (i32, i32) {
    %c0_i32 = arith.constant 0 : i32
    %c0_i32_0 = arith.constant 0 : i32
    %c0_i32_1 = arith.constant 0 : i32
    return %c0_i32, %c0_i32_0 : i32, i32
  }
  func.func @transform_17(%arg0: i32, %arg1: memref<1xi32, #tpu.memory_space<smem>>) -> (i32, i32) {
    %c0_i32 = arith.constant 0 : i32
    %c0_i32_0 = arith.constant 0 : i32
    %c0_i32_1 = arith.constant 0 : i32
    return %c0_i32, %c0_i32_0 : i32, i32
  }
  func.func @transform_18(%arg0: i32, %arg1: memref<1xi32, #tpu.memory_space<smem>>) -> (i32, i32) {
    %c0_i32 = arith.constant 0 : i32
    %c0_i32_0 = arith.constant 0 : i32
    return %arg0, %c0_i32 : i32, i32
  }
}

</mosaic_0001>

<llo_original>
// kernel: expan_match_forward.1
$region0: #{expan_match_forward.1}
  #allocation0 [shape = 'u32[]', space=smem, size = 0x4, offset = 0x4, fixed_abs, tag = 'smem constant byte address 0x4 - core index']
  #allocation1 [shape = 'u32[144,128]{1,0:T(1,128)}', space=vmem, size = 0x12000, scoped, tag = 'internal scratch']
  #allocation2 [shape = 's32[1]{0}', space=sflag, size = 0x4, scoped, tag = 'scoped memory for expan_match_forward.1']
  #allocation3 [shape = 's32[1]{0:T(128)S(6)}', space=smem, size = 0x200, scoped, tag = 'prefetched SMEM operand 0']
  %s0 = inlined_call_operand.<no memory space> [shape: s32[1], index: 0, kind: input, shape index: {}]
  %s1 = inlined_call_operand.vmem [shape: f32[8,8,32], index: 1, kind: input, shape index: {}]
  %s2 = inlined_call_operand.vmem [shape: s32[8,1], index: 2, kind: input, shape index: {}]
  %s3 = inlined_call_operand.vmem [shape: f32[8,32], index: 3, kind: input, shape index: {}]
  %s4 = inlined_call_operand.vmem [shape: f32[8,32], index: 4, kind: input, shape index: {}]
  %s5 = inlined_call_operand.vmem [shape: f32[8,32], index: 5, kind: input, shape index: {}]
  %s6 = inlined_call_operand.vmem [shape: f32[8,32], index: 6, kind: input, shape index: {}]
  %s7 = inlined_call_operand.vmem [shape: f32[32,32], index: 7, kind: input, shape index: {}]
  %s8 = inlined_call_operand.vmem [shape: f32[4,32,32], index: 8, kind: input, shape index: {}]
  %s9 = inlined_call_operand.vmem [shape: f32[4,32,32], index: 9, kind: input, shape index: {}]
  %s10 = inlined_call_operand.vmem [shape: f32[4,1,32], index: 10, kind: input, shape index: {}]
  %s11 = inlined_call_operand.vmem [shape: f32[32,128], index: 11, kind: input, shape index: {}]
  %s12 = inlined_call_operand.vmem [shape: f32[32,128], index: 12, kind: input, shape index: {}]
  %s13 = inlined_call_operand.vmem [shape: f32[128,4], index: 13, kind: input, shape index: {}]
  %s14 = inlined_call_operand.vmem [shape: f32[32,4], index: 14, kind: input, shape index: {}]
  %s15 = inlined_call_operand.vmem [shape: f32[32,4], index: 15, kind: input, shape index: {}]
  %s16 = inlined_call_operand.vmem [shape: f32[32,4], index: 16, kind: input, shape index: {}]
  %s17 = inlined_call_operand.vmem [shape: f32[1,4], index: 17, kind: input, shape index: {}]
  %s18 = inlined_call_operand.vmem [shape: f32[4,1], index: 18, kind: input, shape index: {}]
  %s19 = inlined_call_operand.vmem [shape: f32[8,128], index: 19, kind: output, shape index: {}]
  %s20 = sld [smem:[#allocation0]]
  $region82: #{expan_match_forward.1} parent=0
    _
  %s22 = ssub.s32 1, %s20
  %s23 = scalar_select 0, %s22, %s20
  %24 = sst [smem:[#allocation3]] %s0
  // Predicated region
  $region2: #{expan_match_forward.1} parent=0 // pred_check
    _
  $region3: #{expan_match_forward.1} parent=0 // pred_check_branch
    %26 = sbr.rel (0) target = $region5
  $region4: #{expan_match_forward.1} parent=0 // pred_region
    _
  $region5: #{expan_match_forward.1} parent=0 // pred_fallthru
    _
  // Predicated region
  $region6: #{expan_match_forward.1} parent=0 // pred_check
    _
  $region7: #{expan_match_forward.1} parent=0 // pred_check_branch
    %28 = sbr.rel (0) target = $region9
  $region8: #{expan_match_forward.1} parent=0 // pred_region
    _
  $region9: #{expan_match_forward.1} parent=0 // pred_fallthru
    _
  // Predicated region
  $region10: #{expan_match_forward.1} parent=0 // pred_check
    _
  $region11: #{expan_match_forward.1} parent=0 // pred_check_branch
    %30 = sbr.rel (0) target = $region13
  $region12: #{expan_match_forward.1} parent=0 // pred_region
    _
  $region13: #{expan_match_forward.1} parent=0 // pred_fallthru
    _
  // Predicated region
  $region14: #{expan_match_forward.1} parent=0 // pred_check
    _
  $region15: #{expan_match_forward.1} parent=0 // pred_check_branch
    %32 = sbr.rel (0) target = $region17
  $region16: #{expan_match_forward.1} parent=0 // pred_region
    _
  $region17: #{expan_match_forward.1} parent=0 // pred_fallthru
    _
  // Predicated region
  $region18: #{expan_match_forward.1} parent=0 // pred_check
    _
  $region19: #{expan_match_forward.1} parent=0 // pred_check_branch
    %34 = sbr.rel (0) target = $region21
  $region20: #{expan_match_forward.1} parent=0 // pred_region
    _
  $region21: #{expan_match_forward.1} parent=0 // pred_fallthru
    _
  // Predicated region
  $region22: #{expan_match_forward.1} parent=0 // pred_check
    _
  $region23: #{expan_match_forward.1} parent=0 // pred_check_branch
    %36 = sbr.rel (0) target = $region25
  $region24: #{expan_match_forward.1} parent=0 // pred_region
    _
  $region25: #{expan_match_forward.1} parent=0 // pred_fallthru
    _
  // Predicated region
  $region26: #{expan_match_forward.1} parent=0 // pred_check
    _
  $region27: #{expan_match_forward.1} parent=0 // pred_check_branch
    %38 = sbr.rel (0) target = $region29
  $region28: #{expan_match_forward.1} parent=0 // pred_region
    _
  $region29: #{expan_match_forward.1} parent=0 // pred_fallthru
    _
  // Predicated region
  $region30: #{expan_match_forward.1} parent=0 // pred_check
    _
  $region31: #{expan_match_forward.1} parent=0 // pred_check_branch
    %40 = sbr.rel (0) target = $region33
  $region32: #{expan_match_forward.1} parent=0 // pred_region
    _
  $region33: #{expan_match_forward.1} parent=0 // pred_fallthru
    _
  // Predicated region
  $region34: #{expan_match_forward.1} parent=0 // pred_check
    _
  $region35: #{expan_match_forward.1} parent=0 // pred_check_branch
    %42 = sbr.rel (0) target = $region37
  $region36: #{expan_match_forward.1} parent=0 // pred_region
    _
  $region37: #{expan_match_forward.1} parent=0 // pred_fallthru
    _
  // Predicated region
  $region38: #{expan_match_forward.1} parent=0 // pred_check
    _
  $region39: #{expan_match_forward.1} parent=0 // pred_check_branch
    %44 = sbr.rel (0) target = $region41
  $region40: #{expan_match_forward.1} parent=0 // pred_region
    _
  $region41: #{expan_match_forward.1} parent=0 // pred_fallthru
    _
  // Predicated region
  $region42: #{expan_match_forward.1} parent=0 // pred_check
    _
  $region43: #{expan_match_forward.1} parent=0 // pred_check_branch
    %46 = sbr.rel (0) target = $region45
  $region44: #{expan_match_forward.1} parent=0 // pred_region
    _
  $region45: #{expan_match_forward.1} parent=0 // pred_fallthru
    _
  // Predicated region
  $region46: #{expan_match_forward.1} parent=0 // pred_check
    _
  $region47: #{expan_match_forward.1} parent=0 // pred_check_branch
    %48 = sbr.rel (0) target = $region49
  $region48: #{expan_match_forward.1} parent=0 // pred_region
    _
  $region49: #{expan_match_forward.1} parent=0 // pred_fallthru
    _
  // Predicated region
  $region50: #{expan_match_forward.1} parent=0 // pred_check
    _
  $region51: #{expan_match_forward.1} parent=0 // pred_check_branch
    %50 = sbr.rel (0) target = $region53
  $region52: #{expan_match_forward.1} parent=0 // pred_region
    _
  $region53: #{expan_match_forward.1} parent=0 // pred_fallthru
    _
  // Predicated region
  $region54: #{expan_match_forward.1} parent=0 // pred_check
    _
  $region55: #{expan_match_forward.1} parent=0 // pred_check_branch
    %52 = sbr.rel (0) target = $region57
  $region56: #{expan_match_forward.1} parent=0 // pred_region
    _
  $region57: #{expan_match_forward.1} parent=0 // pred_fallthru
    _
  // Predicated region
  $region58: #{expan_match_forward.1} parent=0 // pred_check
    _
  $region59: #{expan_match_forward.1} parent=0 // pred_check_branch
    %54 = sbr.rel (0) target = $region61
  $region60: #{expan_match_forward.1} parent=0 // pred_region
    _
  $region61: #{expan_match_forward.1} parent=0 // pred_fallthru
    _
  // Predicated region
  $region62: #{expan_match_forward.1} parent=0 // pred_check
    _
  $region63: #{expan_match_forward.1} parent=0 // pred_check_branch
    %56 = sbr.rel (0) target = $region65
  $region64: #{expan_match_forward.1} parent=0 // pred_region
    _
  $region65: #{expan_match_forward.1} parent=0 // pred_fallthru
    _
  // Predicated region
  $region66: #{expan_match_forward.1} parent=0 // pred_check
    _
  $region67: #{expan_match_forward.1} parent=0 // pred_check_branch
    %58 = sbr.rel (0) target = $region69
  $region68: #{expan_match_forward.1} parent=0 // pred_region
    _
  $region69: #{expan_match_forward.1} parent=0 // pred_fallthru
    _
  // Predicated region
  $region70: #{expan_match_forward.1} parent=0 // pred_check
    _
  $region71: #{expan_match_forward.1} parent=0 // pred_check_branch
    %60 = sbr.rel (0) target = $region73
  $region72: #{expan_match_forward.1} parent=0 // pred_region
    _
  $region73: #{expan_match_forward.1} parent=0 // pred_fallthru
    _
  %v61 = vld [vmem:[%s1] sm:$0xff]
  %v62 = vld [vmem:[%s7] sm:$0xff]
  %v63 = vld [vmem:[%s7 + $0x8] sm:$0xff]
  %v64 = vld [vmem:[%s7 + $0x10] sm:$0xff]
  %v65 = vld [vmem:[%s7 + $0x18] sm:$0xff]
  %vm66 = vcmask 261120
  %v68 = vsel %vm66, %v61, 0
  %70 = vmatprep.subr.mxu0 0.0
  %71 = vmatpush1.msra.mxu0 %v62
  %72 = vmatprep.subr.mxu0 0.0
  %73 = vmatpush1.msra.mxu0 %v63
  %74 = vmatprep.subr.mxu0 0.0
  %75 = vmatpush1.msra.mxu0 %v64
  %76 = vmatprep.subr.mxu0 0.0
  %77 = vmatpush1.msra.mxu0 %v65
  %78 = vmatprep.subr.mxu0 0.0
  %79 = vmatpush1.msra.mxu0 0.0
  %80 = vmatprep.subr.mxu0 0.0
  %81 = vmatpush1.msra.mxu0 0.0
  %82 = vmatprep.subr.mxu0 0.0
  %83 = vmatpush1.msra.mxu0 0.0
  %84 = vmatprep.subr.mxu0 0.0
  %85 = vmatpush1.msra.mxu0 0.0
  %86 = vmatprep.subr.mxu0 0.0
  %87 = vmatpush1.msra.mxu0 0.0
  %88 = vmatprep.subr.mxu0 0.0
  %89 = vmatpush1.msra.mxu0 0.0
  %90 = vmatprep.subr.mxu0 0.0
  %91 = vmatpush1.msra.mxu0 0.0
  %92 = vmatprep.subr.mxu0 0.0
  %93 = vmatpush1.msra.mxu0 0.0
  %94 = vmatprep.subr.mxu0 0.0
  %95 = vmatpush1.msra.mxu0 0.0
  %96 = vmatprep.subr.mxu0 0.0
  %97 = vmatpush1.msra.mxu0 0.0
  %98 = vmatprep.subr.mxu0 0.0
  %99 = vmatpush1.msra.mxu0 0.0
  %100 = vmatprep.subr.mxu0 0.0
  %101 = vmatpush1.msra.mxu0 0.0
  %102 = vmatprep.subr.mxu0 0.0
  %103 = vmatpush1.msra.mxu0 0.0
  %104 = vmatprep.subr.mxu0 0.0
  %105 = vmatpush1.msra.mxu0 0.0
  %106 = vmatprep.subr.mxu0 0.0
  %107 = vmatpush1.msra.mxu0 0.0
  %108 = vmatprep.subr.mxu0 0.0
  %109 = vmatpush1.msra.mxu0 0.0
  %110 = vmatprep.subr.mxu0 0.0
  %111 = vmatpush1.msra.mxu0 0.0
  %112 = vmatprep.subr.mxu0 0.0
  %113 = vmatpush1.msra.mxu0 0.0
  %114 = vmatprep.subr.mxu0 0.0
  %115 = vmatpush1.msra.mxu0 0.0
  %116 = vmatprep.subr.mxu0 0.0
  %117 = vmatpush1.msra.mxu0 0.0
  %118 = vmatprep.subr.mxu0 0.0
  %119 = vmatpush1.msra.mxu0 0.0
  %120 = vmatprep.subr.mxu0 0.0
  %121 = vmatpush1.msra.mxu0 0.0
  %122 = vmatprep.subr.mxu0 0.0
  %123 = vmatpush1.msra.mxu0 0.0
  %124 = vmatprep.subr.mxu0 0.0
  %125 = vmatpush1.msra.mxu0 0.0
  %126 = vmatprep.subr.mxu0 0.0
  %127 = vmatpush1.msra.mxu0 0.0
  %128 = vmatprep.subr.mxu0 0.0
  %129 = vmatpush1.msra.mxu0 0.0
  %130 = vmatprep.subr.mxu0 0.0
  %131 = vmatpush1.msra.mxu0 0.0
  %132 = vmatprep.subr.mxu0 0.0
  %133 = vmatpush1.msra.mxu0 0.0
  %134 = vmatprep.mubr.f32.mxu0 0.0
  %135 = vmatmul.mubr.f32.gmra.mrb[0].mxu0 %v68
  %v136 = vpop.f32.mrb[0].mxu0
  %v137 = vadd.f32 0.0, %v136
  %v138 = vpop.f32.mrb[0].mxu0
  %139 = vdwg.mxu0
  %v140 = vmax.f32 %v137, 0.0
  %v141 = vld [vmem:[%s2] sm:$0xff]
  %s142 = sld [smem:[#allocation3]]
  %v143 = vld [vmem:[%s8] sm:$0xff]
  %v144 = vld [vmem:[%s8 + $0x8] sm:$0xff]
  %v145 = vld [vmem:[%s8 + $0x10] sm:$0xff]
  %v146 = vld [vmem:[%s8 + $0x18] sm:$0xff]
  %s147 = scalar_lea.vmem %s8, 32
  %v148 = vld [vmem:[%s147] sm:$0xff]
  %v149 = vld [vmem:[%s147 + $0x8] sm:$0xff]
  %v150 = vld [vmem:[%s147 + $0x10] sm:$0xff]
  %v151 = vld [vmem:[%s147 + $0x18] sm:$0xff]
  %s152 = scalar_lea.vmem %s8, 64
  %v153 = vld [vmem:[%s152] sm:$0xff]
  %v154 = vld [vmem:[%s152 + $0x8] sm:$0xff]
  %v155 = vld [vmem:[%s152 + $0x10] sm:$0xff]
  %v156 = vld [vmem:[%s152 + $0x18] sm:$0xff]
  %s157 = scalar_lea.vmem %s8, 96
  %v158 = vld [vmem:[%s157] sm:$0xff]
  %v159 = vld [vmem:[%s157 + $0x8] sm:$0xff]
  %v160 = vld [vmem:[%s157 + $0x10] sm:$0xff]
  %v161 = vld [vmem:[%s157 + $0x18] sm:$0xff]
  %v162 = vld [vmem:[%s9] sm:$0xff]
  %v163 = vld [vmem:[%s9 + $0x8] sm:$0xff]
  %v164 = vld [vmem:[%s9 + $0x10] sm:$0xff]
  %v165 = vld [vmem:[%s9 + $0x18] sm:$0xff]
  %s166 = scalar_lea.vmem %s9, 32
  %v167 = vld [vmem:[%s166] sm:$0xff]
  %v168 = vld [vmem:[%s166 + $0x8] sm:$0xff]
  %v169 = vld [vmem:[%s166 + $0x10] sm:$0xff]
  %v170 = vld [vmem:[%s166 + $0x18] sm:$0xff]
  %s171 = scalar_lea.vmem %s9, 64
  %v172 = vld [vmem:[%s171] sm:$0xff]
  %v173 = vld [vmem:[%s171 + $0x8] sm:$0xff]
  %v174 = vld [vmem:[%s171 + $0x10] sm:$0xff]
  %v175 = vld [vmem:[%s171 + $0x18] sm:$0xff]
  %s176 = scalar_lea.vmem %s9, 96
  %v177 = vld [vmem:[%s176] sm:$0xff]
  %v178 = vld [vmem:[%s176 + $0x8] sm:$0xff]
  %v179 = vld [vmem:[%s176 + $0x10] sm:$0xff]
  %v180 = vld [vmem:[%s176 + $0x18] sm:$0xff]
  %v181 = vld [vmem:[%s10] sm:$0x1]
  %s182 = scalar_lea.vmem %s10, 1
  %v183 = vld [vmem:[%s182] sm:$0x1]
  %s184 = scalar_lea.vmem %s10, 2
  %v185 = vld [vmem:[%s184] sm:$0x1]
  %s186 = scalar_lea.vmem %s10, 3
  %v187 = vld [vmem:[%s186] sm:$0x1]
  %v188 = vld [vmem:[%s3] sm:$0xff]
  %v189 = vld [vmem:[%s4] sm:$0xff]
  %v191 = vsel %vm66, %v188, 0
  %193 = vmatprep.subr.mxu0 0.0
  %194 = vmatpush1.msra.mxu0 %v162
  %195 = vmatprep.subr.mxu0 0.0
  %196 = vmatpush1.msra.mxu0 %v163
  %197 = vmatprep.subr.mxu0 0.0
  %198 = vmatpush1.msra.mxu0 %v164
  %199 = vmatprep.subr.mxu0 0.0
  %200 = vmatpush1.msra.mxu0 %v165
  %201 = vmatprep.subr.mxu0 0.0
  %202 = vmatpush1.msra.mxu0 0.0
  %203 = vmatprep.subr.mxu0 0.0
  %204 = vmatpush1.msra.mxu0 0.0
  %205 = vmatprep.subr.mxu0 0.0
  %206 = vmatpush1.msra.mxu0 0.0
  %207 = vmatprep.subr.mxu0 0.0
  %208 = vmatpush1.msra.mxu0 0.0
  %209 = vmatprep.subr.mxu0 0.0
  %210 = vmatpush1.msra.mxu0 0.0
  %211 = vmatprep.subr.mxu0 0.0
  %212 = vmatpush1.msra.mxu0 0.0
  %213 = vmatprep.subr.mxu0 0.0
  %214 = vmatpush1.msra.mxu0 0.0
  %215 = vmatprep.subr.mxu0 0.0
  %216 = vmatpush1.msra.mxu0 0.0
  %217 = vmatprep.subr.mxu0 0.0
  %218 = vmatpush1.msra.mxu0 0.0
  %219 = vmatprep.subr.mxu0 0.0
  %220 = vmatpush1.msra.mxu0 0.0
  %221 = vmatprep.subr.mxu0 0.0
  %222 = vmatpush1.msra.mxu0 0.0
  %223 = vmatprep.subr.mxu0 0.0
  %224 = vmatpush1.msra.mxu0 0.0
  %225 = vmatprep.subr.mxu0 0.0
  %226 = vmatpush1.msra.mxu0 0.0
  %227 = vmatprep.subr.mxu0 0.0
  %228 = vmatpush1.msra.mxu0 0.0
  %229 = vmatprep.subr.mxu0 0.0
  %230 = vmatpush1.msra.mxu0 0.0
  %231 = vmatprep.subr.mxu0 0.0
  %232 = vmatpush1.msra.mxu0 0.0
  %233 = vmatprep.subr.mxu0 0.0
  %234 = vmatpush1.msra.mxu0 0.0
  %235 = vmatprep.subr.mxu0 0.0
  %236 = vmatpush1.msra.mxu0 0.0
  %237 = vmatprep.subr.mxu0 0.0
  %238 = vmatpush1.msra.mxu0 0.0
  %239 = vmatprep.subr.mxu0 0.0
  %240 = vmatpush1.msra.mxu0 0.0
  %241 = vmatprep.subr.mxu0 0.0
  %242 = vmatpush1.msra.mxu0 0.0
  %243 = vmatprep.subr.mxu0 0.0
  %244 = vmatpush1.msra.mxu0 0.0
  %245 = vmatprep.subr.mxu0 0.0
  %246 = vmatpush1.msra.mxu0 0.0
  %247 = vmatprep.subr.mxu0 0.0
  %248 = vmatpush1.msra.mxu0 0.0
  %249 = vmatprep.subr.mxu0 0.0
  %250 = vmatpush1.msra.mxu0 0.0
  %251 = vmatprep.subr.mxu0 0.0
  %252 = vmatpush1.msra.mxu0 0.0
  %253 = vmatprep.subr.mxu0 0.0
  %254 = vmatpush1.msra.mxu0 0.0
  %255 = vmatprep.subr.mxu0 0.0
  %256 = vmatpush1.msra.mxu0 0.0
  %257 = vmatprep.mubr.f32.mxu0 0.0
  %258 = vmatmul.mubr.f32.gmra.mrb[0].mxu0 %v191
  %v259 = vpop.f32.mrb[0].mxu0
  %v260 = vadd.f32 0.0, %v259
  %v261 = vpop.f32.mrb[0].mxu0
  %262 = vdwg.mxu0
  %263 = vmatprep.subr.mxu0 0.0
  %264 = vmatpush1.msra.mxu0 %v143
  %265 = vmatprep.subr.mxu0 0.0
  %266 = vmatpush1.msra.mxu0 %v144
  %267 = vmatprep.subr.mxu0 0.0
  %268 = vmatpush1.msra.mxu0 %v145
  %269 = vmatprep.subr.mxu0 0.0
  %270 = vmatpush1.msra.mxu0 %v146
  %271 = vmatprep.subr.mxu0 0.0
  %272 = vmatpush1.msra.mxu0 0.0
  %273 = vmatprep.subr.mxu0 0.0
  %274 = vmatpush1.msra.mxu0 0.0
  %275 = vmatprep.subr.mxu0 0.0
  %276 = vmatpush1.msra.mxu0 0.0
  %277 = vmatprep.subr.mxu0 0.0
  %278 = vmatpush1.msra.mxu0 0.0
  %279 = vmatprep.subr.mxu0 0.0
  %280 = vmatpush1.msra.mxu0 0.0
  %281 = vmatprep.subr.mxu0 0.0
  %282 = vmatpush1.msra.mxu0 0.0
  %283 = vmatprep.subr.mxu0 0.0
  %284 = vmatpush1.msra.mxu0 0.0
  %285 = vmatprep.subr.mxu0 0.0
  %286 = vmatpush1.msra.mxu0 0.0
  %287 = vmatprep.subr.mxu0 0.0
  %288 = vmatpush1.msra.mxu0 0.0
  %289 = vmatprep.subr.mxu0 0.0
  %290 = vmatpush1.msra.mxu0 0.0
  %291 = vmatprep.subr.mxu0 0.0
  %292 = vmatpush1.msra.mxu0 0.0
  %293 = vmatprep.subr.mxu0 0.0
  %294 = vmatpush1.msra.mxu0 0.0
  %295 = vmatprep.subr.mxu0 0.0
  %296 = vmatpush1.msra.mxu0 0.0
  %297 = vmatprep.subr.mxu0 0.0
  %298 = vmatpush1.msra.mxu0 0.0
  %299 = vmatprep.subr.mxu0 0.0
  %300 = vmatpush1.msra.mxu0 0.0
  %301 = vmatprep.subr.mxu0 0.0
  %302 = vmatpush1.msra.mxu0 0.0
  %303 = vmatprep.subr.mxu0 0.0
  %304 = vmatpush1.msra.mxu0 0.0
  %305 = vmatprep.subr.mxu0 0.0
  %306 = vmatpush1.msra.mxu0 0.0
  %307 = vmatprep.subr.mxu0 0.0
  %308 = vmatpush1.msra.mxu0 0.0
  %309 = vmatprep.subr.mxu0 0.0
  %310 = vmatpush1.msra.mxu0 0.0
  %311 = vmatprep.subr.mxu0 0.0
  %312 = vmatpush1.msra.mxu0 0.0
  %313 = vmatprep.subr.mxu0 0.0
  %314 = vmatpush1.msra.mxu0 0.0
  %315 = vmatprep.subr.mxu0 0.0
  %316 = vmatpush1.msra.mxu0 0.0
  %317 = vmatprep.subr.mxu0 0.0
  %318 = vmatpush1.msra.mxu0 0.0
  %319 = vmatprep.subr.mxu0 0.0
  %320 = vmatpush1.msra.mxu0 0.0
  %321 = vmatprep.subr.mxu0 0.0
  %322 = vmatpush1.msra.mxu0 0.0
  %323 = vmatprep.subr.mxu0 0.0
  %324 = vmatpush1.msra.mxu0 0.0
  %325 = vmatprep.subr.mxu0 0.0
  %326 = vmatpush1.msra.mxu0 0.0
  %327 = vmatprep.mubr.f32.mxu0 0.0
  %328 = vmatmul.mubr.f32.gmra.mrb[0].mxu0 %v68
  %v329 = vpop.f32.mrb[0].mxu0
  %v330 = vadd.f32 %v260, %v329
  %v331 = vpop.f32.mrb[0].mxu0
  %332 = vdwg.mxu0
  %v334 = vlaneseq
  %v335 = vshrl.u32 %v334, 7
  %v336 = vsub.s32 0, %v335
  %v337 = vrot.slane %v181, %v336
  %v339 = vadd.f32 %v330, %v337
  %340 = vmatprep.subr.mxu0 0.0
  %341 = vmatpush1.msra.mxu0 %v167
  %342 = vmatprep.subr.mxu0 0.0
  %343 = vmatpush1.msra.mxu0 %v168
  %344 = vmatprep.subr.mxu0 0.0
  %345 = vmatpush1.msra.mxu0 %v169
  %346 = vmatprep.subr.mxu0 0.0
  %347 = vmatpush1.msra.mxu0 %v170
  %348 = vmatprep.subr.mxu0 0.0
  %349 = vmatpush1.msra.mxu0 0.0
  %350 = vmatprep.subr.mxu0 0.0
  %351 = vmatpush1.msra.mxu0 0.0
  %352 = vmatprep.subr.mxu0 0.0
  %353 = vmatpush1.msra.mxu0 0.0
  %354 = vmatprep.subr.mxu0 0.0
  %355 = vmatpush1.msra.mxu0 0.0
  %356 = vmatprep.subr.mxu0 0.0
  %357 = vmatpush1.msra.mxu0 0.0
  %358 = vmatprep.subr.mxu0 0.0
  %359 = vmatpush1.msra.mxu0 0.0
  %360 = vmatprep.subr.mxu0 0.0
  %361 = vmatpush1.msra.mxu0 0.0
  %362 = vmatprep.subr.mxu0 0.0
  %363 = vmatpush1.msra.mxu0 0.0
  %364 = vmatprep.subr.mxu0 0.0
  %365 = vmatpush1.msra.mxu0 0.0
  %366 = vmatprep.subr.mxu0 0.0
  %367 = vmatpush1.msra.mxu0 0.0
  %368 = vmatprep.subr.mxu0 0.0
  %369 = vmatpush1.msra.mxu0 0.0
  %370 = vmatprep.subr.mxu0 0.0
  %371 = vmatpush1.msra.mxu0 0.0
  %372 = vmatprep.subr.mxu0 0.0
  %373 = vmatpush1.msra.mxu0 0.0
  %374 = vmatprep.subr.mxu0 0.0
  %375 = vmatpush1.msra.mxu0 0.0
  %376 = vmatprep.subr.mxu0 0.0
  %377 = vmatpush1.msra.mxu0 0.0
  %378 = vmatprep.subr.mxu0 0.0
  %379 = vmatpush1.msra.mxu0 0.0
  %380 = vmatprep.subr.mxu0 0.0
  %381 = vmatpush1.msra.mxu0 0.0
  %382 = vmatprep.subr.mxu0 0.0
  %383 = vmatpush1.msra.mxu0 0.0
  %384 = vmatprep.subr.mxu0 0.0
  %385 = vmatpush1.msra.mxu0 0.0
  %386 = vmatprep.subr.mxu0 0.0
  %387 = vmatpush1.msra.mxu0 0.0
  %388 = vmatprep.subr.mxu0 0.0
  %389 = vmatpush1.msra.mxu0 0.0
  %390 = vmatprep.subr.mxu0 0.0
  %391 = vmatpush1.msra.mxu0 0.0
  %392 = vmatprep.subr.mxu0 0.0
  %393 = vmatpush1.msra.mxu0 0.0
  %394 = vmatprep.subr.mxu0 0.0
  %395 = vmatpush1.msra.mxu0 0.0
  %396 = vmatprep.subr.mxu0 0.0
  %397 = vmatpush1.msra.mxu0 0.0
  %398 = vmatprep.subr.mxu0 0.0
  %399 = vmatpush1.msra.mxu0 0.0
  %400 = vmatprep.subr.mxu0 0.0
  %401 = vmatpush1.msra.mxu0 0.0
  %402 = vmatprep.subr.mxu0 0.0
  %403 = vmatpush1.msra.mxu0 0.0
  %404 = vmatprep.mubr.f32.mxu0 0.0
  %405 = vmatmul.mubr.f32.gmra.mrb[0].mxu0 %v191
  %v406 = vpop.f32.mrb[0].mxu0
  %v407 = vadd.f32 0.0, %v406
  %v408 = vpop.f32.mrb[0].mxu0
  %409 = vdwg.mxu0
  %410 = vmatprep.subr.mxu0 0.0
  %411 = vmatpush1.msra.mxu0 %v148
  %412 = vmatprep.subr.mxu0 0.0
  %413 = vmatpush1.msra.mxu0 %v149
  %414 = vmatprep.subr.mxu0 0.0
  %415 = vmatpush1.msra.mxu0 %v150
  %416 = vmatprep.subr.mxu0 0.0
  %417 = vmatpush1.msra.mxu0 %v151
  %418 = vmatprep.subr.mxu0 0.0
  %419 = vmatpush1.msra.mxu0 0.0
  %420 = vmatprep.subr.mxu0 0.0
  %421 = vmatpush1.msra.mxu0 0.0
  %422 = vmatprep.subr.mxu0 0.0
  %423 = vmatpush1.msra.mxu0 0.0
  %424 = vmatprep.subr.mxu0 0.0
  %425 = vmatpush1.msra.mxu0 0.0
  %426 = vmatprep.subr.mxu0 0.0
  %427 = vmatpush1.msra.mxu0 0.0
  %428 = vmatprep.subr.mxu0 0.0
  %429 = vmatpush1.msra.mxu0 0.0
  %430 = vmatprep.subr.mxu0 0.0
  %431 = vmatpush1.msra.mxu0 0.0
  %432 = vmatprep.subr.mxu0 0.0
  %433 = vmatpush1.msra.mxu0 0.0
  %434 = vmatprep.subr.mxu0 0.0
  %435 = vmatpush1.msra.mxu0 0.0
  %436 = vmatprep.subr.mxu0 0.0
  %437 = vmatpush1.msra.mxu0 0.0
  %438 = vmatprep.subr.mxu0 0.0
  %439 = vmatpush1.msra.mxu0 0.0
  %440 = vmatprep.subr.mxu0 0.0
  %441 = vmatpush1.msra.mxu0 0.0
  %442 = vmatprep.subr.mxu0 0.0
  %443 = vmatpush1.msra.mxu0 0.0
  %444 = vmatprep.subr.mxu0 0.0
  %445 = vmatpush1.msra.mxu0 0.0
  %446 = vmatprep.subr.mxu0 0.0
  %447 = vmatpush1.msra.mxu0 0.0
  %448 = vmatprep.subr.mxu0 0.0
  %449 = vmatpush1.msra.mxu0 0.0
  %450 = vmatprep.subr.mxu0 0.0
  %451 = vmatpush1.msra.mxu0 0.0
  %452 = vmatprep.subr.mxu0 0.0
  %453 = vmatpush1.msra.mxu0 0.0
  %454 = vmatprep.subr.mxu0 0.0
  %455 = vmatpush1.msra.mxu0 0.0
  %456 = vmatprep.subr.mxu0 0.0
  %457 = vmatpush1.msra.mxu0 0.0
  %458 = vmatprep.subr.mxu0 0.0
  %459 = vmatpush1.msra.mxu0 0.0
  %460 = vmatprep.subr.mxu0 0.0
  %461 = vmatpush1.msra.mxu0 0.0
  %462 = vmatprep.subr.mxu0 0.0
  %463 = vmatpush1.msra.mxu0 0.0
  %464 = vmatprep.subr.mxu0 0.0
  %465 = vmatpush1.msra.mxu0 0.0
  %466 = vmatprep.subr.mxu0 0.0
  %467 = vmatpush1.msra.mxu0 0.0
  %468 = vmatprep.subr.mxu0 0.0
  %469 = vmatpush1.msra.mxu0 0.0
  %470 = vmatprep.subr.mxu0 0.0
  %471 = vmatpush1.msra.mxu0 0.0
  %472 = vmatprep.subr.mxu0 0.0
  %473 = vmatpush1.msra.mxu0 0.0
  %474 = vmatprep.mubr.f32.mxu0 0.0
  %475 = vmatmul.mubr.f32.gmra.mrb[0].mxu0 %v68
  %v476 = vpop.f32.mrb[0].mxu0
  %v477 = vadd.f32 %v407, %v476
  %v478 = vpop.f32.mrb[0].mxu0
  %479 = vdwg.mxu0
  %v481 = vlaneseq
  %v482 = vshrl.u32 %v481, 7
  %v483 = vsub.s32 0, %v482
  %v484 = vrot.slane %v183, %v483
  %v486 = vadd.f32 %v477, %v484
  %487 = vmatprep.subr.mxu0 0.0
  %488 = vmatpush1.msra.mxu0 %v172
  %489 = vmatprep.subr.mxu0 0.0
  %490 = vmatpush1.msra.mxu0 %v173
  %491 = vmatprep.subr.mxu0 0.0
  %492 = vmatpush1.msra.mxu0 %v174
  %493 = vmatprep.subr.mxu0 0.0
  %494 = vmatpush1.msra.mxu0 %v175
  %495 = vmatprep.subr.mxu0 0.0
  %496 = vmatpush1.msra.mxu0 0.0
  %497 = vmatprep.subr.mxu0 0.0
  %498 = vmatpush1.msra.mxu0 0.0
  %499 = vmatprep.subr.mxu0 0.0
  %500 = vmatpush1.msra.mxu0 0.0
  %501 = vmatprep.subr.mxu0 0.0
  %502 = vmatpush1.msra.mxu0 0.0
  %503 = vmatprep.subr.mxu0 0.0
  %504 = vmatpush1.msra.mxu0 0.0
  %505 = vmatprep.subr.mxu0 0.0
  %506 = vmatpush1.msra.mxu0 0.0
  %507 = vmatprep.subr.mxu0 0.0
  %508 = vmatpush1.msra.mxu0 0.0
  %509 = vmatprep.subr.mxu0 0.0
  %510 = vmatpush1.msra.mxu0 0.0
  %511 = vmatprep.subr.mxu0 0.0
  %512 = vmatpush1.msra.mxu0 0.0
  %513 = vmatprep.subr.mxu0 0.0
  %514 = vmatpush1.msra.mxu0 0.0
  %515 = vmatprep.subr.mxu0 0.0
  %516 = vmatpush1.msra.mxu0 0.0
  %517 = vmatprep.subr.mxu0 0.0
  %518 = vmatpush1.msra.mxu0 0.0
  %519 = vmatprep.subr.mxu0 0.0
  %520 = vmatpush1.msra.mxu0 0.0
  %521 = vmatprep.subr.mxu0 0.0
  %522 = vmatpush1.msra.mxu0 0.0
  %523 = vmatprep.subr.mxu0 0.0
  %524 = vmatpush1.msra.mxu0 0.0
  %525 = vmatprep.subr.mxu0 0.0
  %526 = vmatpush1.msra.mxu0 0.0
  %527 = vmatprep.subr.mxu0 0.0
  %528 = vmatpush1.msra.mxu0 0.0
  %529 = vmatprep.subr.mxu0 0.0
  %530 = vmatpush1.msra.mxu0 0.0
  %531 = vmatprep.subr.mxu0 0.0
  %532 = vmatpush1.msra.mxu0 0.0
  %533 = vmatprep.subr.mxu0 0.0
  %534 = vmatpush1.msra.mxu0 0.0
  %535 = vmatprep.subr.mxu0 0.0
  %536 = vmatpush1.msra.mxu0 0.0
  %537 = vmatprep.subr.mxu0 0.0
  %538 = vmatpush1.msra.mxu0 0.0
  %539 = vmatprep.subr.mxu0 0.0
  %540 = vmatpush1.msra.mxu0 0.0
  %541 = vmatprep.subr.mxu0 0.0
  %542 = vmatpush1.msra.mxu0 0.0
  %543 = vmatprep.subr.mxu0 0.0
  %544 = vmatpush1.msra.mxu0 0.0
  %545 = vmatprep.subr.mxu0 0.0
  %546 = vmatpush1.msra.mxu0 0.0
  %547 = vmatprep.subr.mxu0 0.0
  %548 = vmatpush1.msra.mxu0 0.0
  %549 = vmatprep.subr.mxu0 0.0
  %550 = vmatpush1.msra.mxu0 0.0
  %551 = vmatprep.mubr.f32.mxu0 0.0
  %552 = vmatmul.mubr.f32.gmra.mrb[0].mxu0 %v191
  %v553 = vpop.f32.mrb[0].mxu0
  %v554 = vadd.f32 0.0, %v553
  %v555 = vpop.f32.mrb[0].mxu0
  %556 = vdwg.mxu0
  %557 = vmatprep.subr.mxu0 0.0
  %558 = vmatpush1.msra.mxu0 %v153
  %559 = vmatprep.subr.mxu0 0.0
  %560 = vmatpush1.msra.mxu0 %v154
  %561 = vmatprep.subr.mxu0 0.0
  %562 = vmatpush1.msra.mxu0 %v155
  %563 = vmatprep.subr.mxu0 0.0
  %564 = vmatpush1.msra.mxu0 %v156
  %565 = vmatprep.subr.mxu0 0.0
  %566 = vmatpush1.msra.mxu0 0.0
  %567 = vmatprep.subr.mxu0 0.0
  %568 = vmatpush1.msra.mxu0 0.0
  %569 = vmatprep.subr.mxu0 0.0
  %570 = vmatpush1.msra.mxu0 0.0
  %571 = vmatprep.subr.mxu0 0.0
  %572 = vmatpush1.msra.mxu0 0.0
  %573 = vmatprep.subr.mxu0 0.0
  %574 = vmatpush1.msra.mxu0 0.0
  %575 = vmatprep.subr.mxu0 0.0
  %576 = vmatpush1.msra.mxu0 0.0
  %577 = vmatprep.subr.mxu0 0.0
  %578 = vmatpush1.msra.mxu0 0.0
  %579 = vmatprep.subr.mxu0 0.0
  %580 = vmatpush1.msra.mxu0 0.0
  %581 = vmatprep.subr.mxu0 0.0
  %582 = vmatpush1.msra.mxu0 0.0
  %583 = vmatprep.subr.mxu0 0.0
  %584 = vmatpush1.msra.mxu0 0.0
  %585 = vmatprep.subr.mxu0 0.0
  %586 = vmatpush1.msra.mxu0 0.0
  %587 = vmatprep.subr.mxu0 0.0
  %588 = vmatpush1.msra.mxu0 0.0
  %589 = vmatprep.subr.mxu0 0.0
  %590 = vmatpush1.msra.mxu0 0.0
  %591 = vmatprep.subr.mxu0 0.0
  %592 = vmatpush1.msra.mxu0 0.0
  %593 = vmatprep.subr.mxu0 0.0
  %594 = vmatpush1.msra.mxu0 0.0
  %595 = vmatprep.subr.mxu0 0.0
  %596 = vmatpush1.msra.mxu0 0.0
  %597 = vmatprep.subr.mxu0 0.0
  %598 = vmatpush1.msra.mxu0 0.0
  %599 = vmatprep.subr.mxu0 0.0
  %600 = vmatpush1.msra.mxu0 0.0
  %601 = vmatprep.subr.mxu0 0.0
  %602 = vmatpush1.msra.mxu0 0.0
  %603 = vmatprep.subr.mxu0 0.0
  %604 = vmatpush1.msra.mxu0 0.0
  %605 = vmatprep.subr.mxu0 0.0
  %606 = vmatpush1.msra.mxu0 0.0
  %607 = vmatprep.subr.mxu0 0.0
  %608 = vmatpush1.msra.mxu0 0.0
  %609 = vmatprep.subr.mxu0 0.0
  %610 = vmatpush1.msra.mxu0 0.0
  %611 = vmatprep.subr.mxu0 0.0
  %612 = vmatpush1.msra.mxu0 0.0
  %613 = vmatprep.subr.mxu0 0.0
  %614 = vmatpush1.msra.mxu0 0.0
  %615 = vmatprep.subr.mxu0 0.0
  %616 = vmatpush1.msra.mxu0 0.0
  %617 = vmatprep.subr.mxu0 0.0
  %618 = vmatpush1.msra.mxu0 0.0
  %619 = vmatprep.subr.mxu0 0.0
  %620 = vmatpush1.msra.mxu0 0.0
  %621 = vmatprep.mubr.f32.mxu0 0.0
  %622 = vmatmul.mubr.f32.gmra.mrb[0].mxu0 %v68
  %v623 = vpop.f32.mrb[0].mxu0
  %v624 = vadd.f32 %v554, %v623
  %v625 = vpop.f32.mrb[0].mxu0
  %626 = vdwg.mxu0
  %v628 = vlaneseq
  %v629 = vshrl.u32 %v628, 7
  %v630 = vsub.s32 0, %v629
  %v631 = vrot.slane %v185, %v630
  %v633 = vadd.f32 %v624, %v631
  %634 = vmatprep.subr.mxu0 0.0
  %635 = vmatpush1.msra.mxu0 %v177
  %636 = vmatprep.subr.mxu0 0.0
  %637 = vmatpush1.msra.mxu0 %v178
  %638 = vmatprep.subr.mxu0 0.0
  %639 = vmatpush1.msra.mxu0 %v179
  %640 = vmatprep.subr.mxu0 0.0
  %641 = vmatpush1.msra.mxu0 %v180
  %642 = vmatprep.subr.mxu0 0.0
  %643 = vmatpush1.msra.mxu0 0.0
  %644 = vmatprep.subr.mxu0 0.0
  %645 = vmatpush1.msra.mxu0 0.0
  %646 = vmatprep.subr.mxu0 0.0
  %647 = vmatpush1.msra.mxu0 0.0
  %648 = vmatprep.subr.mxu0 0.0
  %649 = vmatpush1.msra.mxu0 0.0
  %650 = vmatprep.subr.mxu0 0.0
  %651 = vmatpush1.msra.mxu0 0.0
  %652 = vmatprep.subr.mxu0 0.0
  %653 = vmatpush1.msra.mxu0 0.0
  %654 = vmatprep.subr.mxu0 0.0
  %655 = vmatpush1.msra.mxu0 0.0
  %656 = vmatprep.subr.mxu0 0.0
  %657 = vmatpush1.msra.mxu0 0.0
  %658 = vmatprep.subr.mxu0 0.0
  %659 = vmatpush1.msra.mxu0 0.0
  %660 = vmatprep.subr.mxu0 0.0
  %661 = vmatpush1.msra.mxu0 0.0
  %662 = vmatprep.subr.mxu0 0.0
  %663 = vmatpush1.msra.mxu0 0.0
  %664 = vmatprep.subr.mxu0 0.0
  %665 = vmatpush1.msra.mxu0 0.0
  %666 = vmatprep.subr.mxu0 0.0
  %667 = vmatpush1.msra.mxu0 0.0
  %668 = vmatprep.subr.mxu0 0.0
  %669 = vmatpush1.msra.mxu0 0.0
  %670 = vmatprep.subr.mxu0 0.0
  %671 = vmatpush1.msra.mxu0 0.0
  %672 = vmatprep.subr.mxu0 0.0
  %673 = vmatpush1.msra.mxu0 0.0
  %674 = vmatprep.subr.mxu0 0.0
  %675 = vmatpush1.msra.mxu0 0.0
  %676 = vmatprep.subr.mxu0 0.0
  %677 = vmatpush1.msra.mxu0 0.0
  %678 = vmatprep.subr.mxu0 0.0
  %679 = vmatpush1.msra.mxu0 0.0
  %680 = vmatprep.subr.mxu0 0.0
  %681 = vmatpush1.msra.mxu0 0.0
  %682 = vmatprep.subr.mxu0 0.0
  %683 = vmatpush1.msra.mxu0 0.0
  %684 = vmatprep.subr.mxu0 0.0
  %685 = vmatpush1.msra.mxu0 0.0
  %686 = vmatprep.subr.mxu0 0.0
  %687 = vmatpush1.msra.mxu0 0.0
  %688 = vmatprep.subr.mxu0 0.0
  %689 = vmatpush1.msra.mxu0 0.0
  %690 = vmatprep.subr.mxu0 0.0
  %691 = vmatpush1.msra.mxu0 0.0
  %692 = vmatprep.subr.mxu0 0.0
  %693 = vmatpush1.msra.mxu0 0.0
  %694 = vmatprep.subr.mxu0 0.0
  %695 = vmatpush1.msra.mxu0 0.0
  %696 = vmatprep.subr.mxu0 0.0
  %697 = vmatpush1.msra.mxu0 0.0
  %698 = vmatprep.mubr.f32.mxu0 0.0
  %699 = vmatmul.mubr.f32.gmra.mrb[0].mxu0 %v191
  %v700 = vpop.f32.mrb[0].mxu0
  %v701 = vadd.f32 0.0, %v700
  %v702 = vpop.f32.mrb[0].mxu0
  %703 = vdwg.mxu0
  %704 = vmatprep.subr.mxu0 0.0
  %705 = vmatpush1.msra.mxu0 %v158
  %706 = vmatprep.subr.mxu0 0.0
  %707 = vmatpush1.msra.mxu0 %v159
  %708 = vmatprep.subr.mxu0 0.0
  %709 = vmatpush1.msra.mxu0 %v160
  %710 = vmatprep.subr.mxu0 0.0
  %711 = vmatpush1.msra.mxu0 %v161
  %712 = vmatprep.subr.mxu0 0.0
  %713 = vmatpush1.msra.mxu0 0.0
  %714 = vmatprep.subr.mxu0 0.0
  %715 = vmatpush1.msra.mxu0 0.0
  %716 = vmatprep.subr.mxu0 0.0
  %717 = vmatpush1.msra.mxu0 0.0
  %718 = vmatprep.subr.mxu0 0.0
  %719 = vmatpush1.msra.mxu0 0.0
  %720 = vmatprep.subr.mxu0 0.0
  %721 = vmatpush1.msra.mxu0 0.0
  %722 = vmatprep.subr.mxu0 0.0
  %723 = vmatpush1.msra.mxu0 0.0
  %724 = vmatprep.subr.mxu0 0.0
  %725 = vmatpush1.msra.mxu0 0.0
  %726 = vmatprep.subr.mxu0 0.0
  %727 = vmatpush1.msra.mxu0 0.0
  %728 = vmatprep.subr.mxu0 0.0
  %729 = vmatpush1.msra.mxu0 0.0
  %730 = vmatprep.subr.mxu0 0.0
  %731 = vmatpush1.msra.mxu0 0.0
  %732 = vmatprep.subr.mxu0 0.0
  %733 = vmatpush1.msra.mxu0 0.0
  %734 = vmatprep.subr.mxu0 0.0
  %735 = vmatpush1.msra.mxu0 0.0
  %736 = vmatprep.subr.mxu0 0.0
  %737 = vmatpush1.msra.mxu0 0.0
  %738 = vmatprep.subr.mxu0 0.0
  %739 = vmatpush1.msra.mxu0 0.0
  %740 = vmatprep.subr.mxu0 0.0
  %741 = vmatpush1.msra.mxu0 0.0
  %742 = vmatprep.subr.mxu0 0.0
  %743 = vmatpush1.msra.mxu0 0.0
  %744 = vmatprep.subr.mxu0 0.0
  %745 = vmatpush1.msra.mxu0 0.0
  %746 = vmatprep.subr.mxu0 0.0
  %747 = vmatpush1.msra.mxu0 0.0
  %748 = vmatprep.subr.mxu0 0.0
  %749 = vmatpush1.msra.mxu0 0.0
  %750 = vmatprep.subr.mxu0 0.0
  %751 = vmatpush1.msra.mxu0 0.0
  %752 = vmatprep.subr.mxu0 0.0
  %753 = vmatpush1.msra.mxu0 0.0
  %754 = vmatprep.subr.mxu0 0.0
  %755 = vmatpush1.msra.mxu0 0.0
  %756 = vmatprep.subr.mxu0 0.0
  %757 = vmatpush1.msra.mxu0 0.0
  %758 = vmatprep.subr.mxu0 0.0
  %759 = vmatpush1.msra.mxu0 0.0
  %760 = vmatprep.subr.mxu0 0.0
  %761 = vmatpush1.msra.mxu0 0.0
  %762 = vmatprep.subr.mxu0 0.0
  %763 = vmatpush1.msra.mxu0 0.0
  %764 = vmatprep.subr.mxu0 0.0
  %765 = vmatpush1.msra.mxu0 0.0
  %766 = vmatprep.subr.mxu0 0.0
  %767 = vmatpush1.msra.mxu0 0.0
  %768 = vmatprep.mubr.f32.mxu0 0.0
  %769 = vmatmul.mubr.f32.gmra.mrb[0].mxu0 %v68
  %v770 = vpop.f32.mrb[0].mxu0
  %v771 = vadd.f32 %v701, %v770
  %v772 = vpop.f32.mrb[0].mxu0
  %773 = vdwg.mxu0
  %v775 = vlaneseq
  %v776 = vshrl.u32 %v775, 7
  %v777 = vsub.s32 0, %v776
  %v778 = vrot.slane %v187, %v777
  %v780 = vadd.f32 %v771, %v778
  %v781 = vxor.u32 %v339, 2147483648
  %v782 = vmul.f32 %v781, 1.442695
  %v783 = vpow.pop %v782
  %v784 = vadd.f32 %v783, 1.0
  %v785 = vrcp.pop %v784
  %v786 = vmul.f32 1.0, %v785
  %v787 = vxor.u32 %v486, 2147483648
  %v788 = vmul.f32 %v787, 1.442695
  %v789 = vpow.pop %v788
  %v790 = vadd.f32 %v789, 1.0
  %v791 = vrcp.pop %v790
  %v792 = vmul.f32 1.0, %v791
  %v793 = vtanh.pop %v633
  %v794 = vxor.u32 %v780, 2147483648
  %v795 = vmul.f32 %v794, 1.442695
  %v796 = vpow.pop %v795
  %v797 = vadd.f32 %v796, 1.0
  %v798 = vrcp.pop %v797
  %v799 = vmul.f32 1.0, %v798
  %v800 = vmul.f32 %v792, %v189
  %v801 = vmul.f32 %v786, %v793
  %v802 = vadd.f32 %v800, %v801
  %v803 = vtanh.pop %v802
  %v804 = vmul.f32 %v799, %v803
  %p805 = scmp.gt.s32.totalorder %s142, 0
  %s806 = scalar_select %p805, 0.0, -inf
  %vm807 = vcmp.gt.s32.totalorder %v141, 0
  %v808 = vmul.f32 %v140, %v804
  %v809 = vsel %vm807, 1, 0
  %810 = vset.pattern.permute.xlu0 0
  %811 = vperm.xlu0 %810, %v809
  %v812 = vpop.permute.xlu0 %811
  %vm813 = vcmp.eq.s32.totalorder %v812, 1
  %v814 = vstv %s806
  %v815 = vsel %vm813, %v808, %v814
  %s816 = scalar_lea.vmem %s1, 8
  %v817 = vld [vmem:[%s816] sm:$0xff]
  %v819 = vsel %vm66, %v804, 0
  %821 = vmatprep.subr.mxu0 0.0
  %822 = vmatpush1.msra.mxu0 %v162
  %823 = vmatprep.subr.mxu0 0.0
  %824 = vmatpush1.msra.mxu0 %v163
  %825 = vmatprep.subr.mxu0 0.0
  %826 = vmatpush1.msra.mxu0 %v164
  %827 = vmatprep.subr.mxu0 0.0
  %828 = vmatpush1.msra.mxu0 %v165
  %829 = vmatprep.subr.mxu0 0.0
  %830 = vmatpush1.msra.mxu0 0.0
  %831 = vmatprep.subr.mxu0 0.0
  %832 = vmatpush1.msra.mxu0 0.0
  %833 = vmatprep.subr.mxu0 0.0
  %834 = vmatpush1.msra.mxu0 0.0
  %835 = vmatprep.subr.mxu0 0.0
  %836 = vmatpush1.msra.mxu0 0.0
  %837 = vmatprep.subr.mxu0 0.0
  %838 = vmatpush1.msra.mxu0 0.0
  %839 = vmatprep.subr.mxu0 0.0
  %840 = vmatpush1.msra.mxu0 0.0
  %841 = vmatprep.subr.mxu0 0.0
  %842 = vmatpush1.msra.mxu0 0.0
  %843 = vmatprep.subr.mxu0 0.0
  %844 = vmatpush1.msra.mxu0 0.0
  %845 = vmatprep.subr.mxu0 0.0
  %846 = vmatpush1.msra.mxu0 0.0
  %847 = vmatprep.subr.mxu0 0.0
  %848 = vmatpush1.msra.mxu0 0.0
  %849 = vmatprep.subr.mxu0 0.0
  %850 = vmatpush1.msra.mxu0 0.0
  %851 = vmatprep.subr.mxu0 0.0
  %852 = vmatpush1.msra.mxu0 0.0
  %853 = vmatprep.subr.mxu0 0.0
  %854 = vmatpush1.msra.mxu0 0.0
  %855 = vmatprep.subr.mxu0 0.0
  %856 = vmatpush1.msra.mxu0 0.0
  %857 = vmatprep.subr.mxu0 0.0
  %858 = vmatpush1.msra.mxu0 0.0
  %859 = vmatprep.subr.mxu0 0.0
  %860 = vmatpush1.msra.mxu0 0.0
  %861 = vmatprep.subr.mxu0 0.0
  %862 = vmatpush1.msra.mxu0 0.0
  %863 = vmatprep.subr.mxu0 0.0
  %864 = vmatpush1.msra.mxu0 0.0
  %865 = vmatprep.subr.mxu0 0.0
  %866 = vmatpush1.msra.mxu0 0.0
  %867 = vmatprep.subr.mxu0 0.0
  %868 = vmatpush1.msra.mxu0 0.0
  %869 = vmatprep.subr.mxu0 0.0
  %870 = vmatpush1.msra.mxu0 0.0
  %871 = vmatprep.subr.mxu0 0.0
  %872 = vmatpush1.msra.mxu0 0.0
  %873 = vmatprep.subr.mxu0 0.0
  %874 = vmatpush1.msra.mxu0 0.0
  %875 = vmatprep.subr.mxu0 0.0
  %876 = vmatpush1.msra.mxu0 0.0
  %877 = vmatprep.subr.mxu0 0.0
  %878 = vmatpush1.msra.mxu0 0.0
  %879 = vmatprep.subr.mxu0 0.0
  %880 = vmatpush1.msra.mxu0 0.0
  %881 = vmatprep.subr.mxu0 0.0
  %882 = vmatpush1.msra.mxu0 0.0
  %883 = vmatprep.subr.mxu0 0.0
  %884 = vmatpush1.msra.mxu0 0.0
  %885 = vmatprep.mubr.f32.mxu0 0.0
  %886 = vmatmul.mubr.f32.gmra.mrb[0].mxu0 %v819
  %v887 = vpop.f32.mrb[0].mxu0
  %v888 = vadd.f32 0.0, %v887
  %v889 = vpop.f32.mrb[0].mxu0
  %890 = vdwg.mxu0
  %v892 = vsel %vm66, %v817, 0
  %894 = vmatprep.subr.mxu0 0.0
  %895 = vmatpush1.msra.mxu0 %v143
  %896 = vmatprep.subr.mxu0 0.0
  %897 = vmatpush1.msra.mxu0 %v144
  %898 = vmatprep.subr.mxu0 0.0
  %899 = vmatpush1.msra.mxu0 %v145
  %900 = vmatprep.subr.mxu0 0.0
  %901 = vmatpush1.msra.mxu0 %v146
  %902 = vmatprep.subr.mxu0 0.0
  %903 = vmatpush1.msra.mxu0 0.0
  %904 = vmatprep.subr.mxu0 0.0
  %905 = vmatpush1.msra.mxu0 0.0
  %906 = vmatprep.subr.mxu0 0.0
  %907 = vmatpush1.msra.mxu0 0.0
  %908 = vmatprep.subr.mxu0 0.0
  %909 = vmatpush1.msra.mxu0 0.0
  %910 = vmatprep.subr.mxu0 0.0
  %911 = vmatpush1.msra.mxu0 0.0
  %912 = vmatprep.subr.mxu0 0.0
  %913 = vmatpush1.msra.mxu0 0.0
  %914 = vmatprep.subr.mxu0 0.0
  %915 = vmatpush1.msra.mxu0 0.0
  %916 = vmatprep.subr.mxu0 0.0
  %917 = vmatpush1.msra.mxu0 0.0
  %918 = vmatprep.subr.mxu0 0.0
  %919 = vmatpush1.msra.mxu0 0.0
  %920 = vmatprep.subr.mxu0 0.0
  %921 = vmatpush1.msra.mxu0 0.0
  %922 = vmatprep.subr.mxu0 0.0
  %923 = vmatpush1.msra.mxu0 0.0
  %924 = vmatprep.subr.mxu0 0.0
  %925 = vmatpush1.msra.mxu0 0.0
  %926 = vmatprep.subr.mxu0 0.0
  %927 = vmatpush1.msra.mxu0 0.0
  %928 = vmatprep.subr.mxu0 0.0
  %929 = vmatpush1.msra.mxu0 0.0
  %930 = vmatprep.subr.mxu0 0.0
  %931 = vmatpush1.msra.mxu0 0.0
  %932 = vmatprep.subr.mxu0 0.0
  %933 = vmatpush1.msra.mxu0 0.0
  %934 = vmatprep.subr.mxu0 0.0
  %935 = vmatpush1.msra.mxu0 0.0
  %936 = vmatprep.subr.mxu0 0.0
  %937 = vmatpush1.msra.mxu0 0.0
  %938 = vmatprep.subr.mxu0 0.0
  %939 = vmatpush1.msra.mxu0 0.0
  %940 = vmatprep.subr.mxu0 0.0
  %941 = vmatpush1.msra.mxu0 0.0
  %942 = vmatprep.subr.mxu0 0.0
  %943 = vmatpush1.msra.mxu0 0.0
  %944 = vmatprep.subr.mxu0 0.0
  %945 = vmatpush1.msra.mxu0 0.0
  %946 = vmatprep.subr.mxu0 0.0
  %947 = vmatpush1.msra.mxu0 0.0
  %948 = vmatprep.subr.mxu0 0.0
  %949 = vmatpush1.msra.mxu0 0.0
  %950 = vmatprep.subr.mxu0 0.0
  %951 = vmatpush1.msra.mxu0 0.0
  %952 = vmatprep.subr.mxu0 0.0
  %953 = vmatpush1.msra.mxu0 0.0
  %954 = vmatprep.subr.mxu0 0.0
  %955 = vmatpush1.msra.mxu0 0.0
  %956 = vmatprep.subr.mxu0 0.0
  %957 = vmatpush1.msra.mxu0 0.0
  %958 = vmatprep.mubr.f32.mxu0 0.0
  %959 = vmatmul.mubr.f32.gmra.mrb[0].mxu0 %v892
  %v960 = vpop.f32.mrb[0].mxu0
  %v961 = vadd.f32 %v888, %v960
  %v962 = vpop.f32.mrb[0].mxu0
  %963 = vdwg.mxu0
  %v964 = vadd.f32 %v961, %v337
  %965 = vmatprep.subr.mxu0 0.0
  %966 = vmatpush1.msra.mxu0 %v167
  %967 = vmatprep.subr.mxu0 0.0
  %968 = vmatpush1.msra.mxu0 %v168
  %969 = vmatprep.subr.mxu0 0.0
  %970 = vmatpush1.msra.mxu0 %v169
  %971 = vmatprep.subr.mxu0 0.0
  %972 = vmatpush1.msra.mxu0 %v170
  %973 = vmatprep.subr.mxu0 0.0
  %974 = vmatpush1.msra.mxu0 0.0
  %975 = vmatprep.subr.mxu0 0.0
  %976 = vmatpush1.msra.mxu0 0.0
  %977 = vmatprep.subr.mxu0 0.0
  %978 = vmatpush1.msra.mxu0 0.0
  %979 = vmatprep.subr.mxu0 0.0
  %980 = vmatpush1.msra.mxu0 0.0
  %981 = vmatprep.subr.mxu0 0.0
  %982 = vmatpush1.msra.mxu0 0.0
  %983 = vmatprep.subr.mxu0 0.0
  %984 = vmatpush1.msra.mxu0 0.0
  %985 = vmatprep.subr.mxu0 0.0
  %986 = vmatpush1.msra.mxu0 0.0
  %987 = vmatprep.subr.mxu0 0.0
  %988 = vmatpush1.msra.mxu0 0.0
  %989 = vmatprep.subr.mxu0 0.0
  %990 = vmatpush1.msra.mxu0 0.0
  %991 = vmatprep.subr.mxu0 0.0
  %992 = vmatpush1.msra.mxu0 0.0
  %993 = vmatprep.subr.mxu0 0.0
  %994 = vmatpush1.msra.mxu0 0.0
  %995 = vmatprep.subr.mxu0 0.0
  %996 = vmatpush1.msra.mxu0 0.0
  %997 = vmatprep.subr.mxu0 0.0
  %998 = vmatpush1.msra.mxu0 0.0
  %999 = vmatprep.subr.mxu0 0.0
  %1000 = vmatpush1.msra.mxu0 0.0
  %1001 = vmatprep.subr.mxu0 0.0
  %1002 = vmatpush1.msra.mxu0 0.0
  %1003 = vmatprep.subr.mxu0 0.0
  %1004 = vmatpush1.msra.mxu0 0.0
  %1005 = vmatprep.subr.mxu0 0.0
  %1006 = vmatpush1.msra.mxu0 0.0
  %1007 = vmatprep.subr.mxu0 0.0
  %1008 = vmatpush1.msra.mxu0 0.0
  %1009 = vmatprep.subr.mxu0 0.0
  %1010 = vmatpush1.msra.mxu0 0.0
  %1011 = vmatprep.subr.mxu0 0.0
  %1012 = vmatpush1.msra.mxu0 0.0
  %1013 = vmatprep.subr.mxu0 0.0
  %1014 = vmatpush1.msra.mxu0 0.0
  %1015 = vmatprep.subr.mxu0 0.0
  %1016 = vmatpush1.msra.mxu0 0.0
  %1017 = vmatprep.subr.mxu0 0.0
  %1018 = vmatpush1.msra.mxu0 0.0
  %1019 = vmatprep.subr.mxu0 0.0
  %1020 = vmatpush1.msra.mxu0 0.0
  %1021 = vmatprep.subr.mxu0 0.0
  %1022 = vmatpush1.msra.mxu0 0.0
  %1023 = vmatprep.subr.mxu0 0.0
  %1024 = vmatpush1.msra.mxu0 0.0
  %1025 = vmatprep.subr.mxu0 0.0
  %1026 = vmatpush1.msra.mxu0 0.0
  %1027 = vmatprep.subr.mxu0 0.0
  %1028 = vmatpush1.msra.mxu0 0.0
  %1029 = vmatprep.mubr.f32.mxu0 0.0
  %1030 = vmatmul.mubr.f32.gmra.mrb[0].mxu0 %v819
  %v1031 = vpop.f32.mrb[0].mxu0
  %v1032 = vadd.f32 0.0, %v1031
  %v1033 = vpop.f32.mrb[0].mxu0
  %1034 = vdwg.mxu0
  %1035 = vmatprep.subr.mxu0 0.0
  %1036 = vmatpush1.msra.mxu0 %v148
  %1037 = vmatprep.subr.mxu0 0.0
  %1038 = vmatpush1.msra.mxu0 %v149
  %1039 = vmatprep.subr.mxu0 0.0
  %1040 = vmatpush1.msra.mxu0 %v150
  %1041 = vmatprep.subr.mxu0 0.0
  %1042 = vmatpush1.msra.mxu0 %v151
  %1043 = vmatprep.subr.mxu0 0.0
  %1044 = vmatpush1.msra.mxu0 0.0
  %1045 = vmatprep.subr.mxu0 0.0
  %1046 = vmatpush1.msra.mxu0 0.0
  %1047 = vmatprep.subr.mxu0 0.0
  %1048 = vmatpush1.msra.mxu0 0.0
  %1049 = vmatprep.subr.mxu0 0.0
  %1050 = vmatpush1.msra.mxu0 0.0
  %1051 = vmatprep.subr.mxu0 0.0
  %1052 = vmatpush1.msra.mxu0 0.0
  %1053 = vmatprep.subr.mxu0 0.0
  %1054 = vmatpush1.msra.mxu0 0.0
  %1055 = vmatprep.subr.mxu0 0.0
  %1056 = vmatpush1.msra.mxu0 0.0
  %1057 = vmatprep.subr.mxu0 0.0
  %1058 = vmatpush1.msra.mxu0 0.0
  %1059 = vmatprep.subr.mxu0 0.0
  %1060 = vmatpush1.msra.mxu0 0.0
  %1061 = vmatprep.subr.mxu0 0.0
  %1062 = vmatpush1.msra.mxu0 0.0
  %1063 = vmatprep.subr.mxu0 0.0
  %1064 = vmatpush1.msra.mxu0 0.0
  %1065 = vmatprep.subr.mxu0 0.0
  %1066 = vmatpush1.msra.mxu0 0.0
  %1067 = vmatprep.subr.mxu0 0.0
  %1068 = vmatpush1.msra.mxu0 0.0
  %1069 = vmatprep.subr.mxu0 0.0
  %1070 = vmatpush1.msra.mxu0 0.0
  %1071 = vmatprep.subr.mxu0 0.0
  %1072 = vmatpush1.msra.mxu0 0.0
  %1073 = vmatprep.subr.mxu0 0.0
  %1074 = vmatpush1.msra.mxu0 0.0
  %1075 = vmatprep.subr.mxu0 0.0
  %1076 = vmatpush1.msra.mxu0 0.0
  %1077 = vmatprep.subr.mxu0 0.0
  %1078 = vmatpush1.msra.mxu0 0.0
  %1079 = vmatprep.subr.mxu0 0.0
  %1080 = vmatpush1.msra.mxu0 0.0
  %1081 = vmatprep.subr.mxu0 0.0
  %1082 = vmatpush1.msra.mxu0 0.0
  %1083 = vmatprep.subr.mxu0 0.0
  %1084 = vmatpush1.msra.mxu0 0.0
  %1085 = vmatprep.subr.mxu0 0.0
  %1086 = vmatpush1.msra.mxu0 0.0
  %1087 = vmatprep.subr.mxu0 0.0
  %1088 = vmatpush1.msra.mxu0 0.0
  %1089 = vmatprep.subr.mxu0 0.0
  %1090 = vmatpush1.msra.mxu0 0.0
  %1091 = vmatprep.subr.mxu0 0.0
  %1092 = vmatpush1.msra.mxu0 0.0
  %1093 = vmatprep.subr.mxu0 0.0
  %1094 = vmatpush1.msra.mxu0 0.0
  %1095 = vmatprep.subr.mxu0 0.0
  %1096 = vmatpush1.msra.mxu0 0.0
  %1097 = vmatprep.subr.mxu0 0.0
  %1098 = vmatpush1.msra.mxu0 0.0
  %1099 = vmatprep.mubr.f32.mxu0 0.0
  %1100 = vmatmul.mubr.f32.gmra.mrb[0].mxu0 %v892
  %v1101 = vpop.f32.mrb[0].mxu0
  %v1102 = vadd.f32 %v1032, %v1101
  %v1103 = vpop.f32.mrb[0].mxu0
  %1104 = vdwg.mxu0
  %v1105 = vadd.f32 %v1102, %v484
  %1106 = vmatprep.subr.mxu0 0.0
  %1107 = vmatpush1.msra.mxu0 %v172
  %1108 = vmatprep.subr.mxu0 0.0
  %1109 = vmatpush1.msra.mxu0 %v173
  %1110 = vmatprep.subr.mxu0 0.0
  %1111 = vmatpush1.msra.mxu0 %v174
  %1112 = vmatprep.subr.mxu0 0.0
  %1113 = vmatpush1.msra.mxu0 %v175
  %1114 = vmatprep.subr.mxu0 0.0
  %1115 = vmatpush1.msra.mxu0 0.0
  %1116 = vmatprep.subr.mxu0 0.0
  %1117 = vmatpush1.msra.mxu0 0.0
  %1118 = vmatprep.subr.mxu0 0.0
  %1119 = vmatpush1.msra.mxu0 0.0
  %1120 = vmatprep.subr.mxu0 0.0
  %1121 = vmatpush1.msra.mxu0 0.0
  %1122 = vmatprep.subr.mxu0 0.0
  %1123 = vmatpush1.msra.mxu0 0.0
  %1124 = vmatprep.subr.mxu0 0.0
  %1125 = vmatpush1.msra.mxu0 0.0
  %1126 = vmatprep.subr.mxu0 0.0
  %1127 = vmatpush1.msra.mxu0 0.0
  %1128 = vmatprep.subr.mxu0 0.0
  %1129 = vmatpush1.msra.mxu0 0.0
  %1130 = vmatprep.subr.mxu0 0.0
  %1131 = vmatpush1.msra.mxu0 0.0
  %1132 = vmatprep.subr.mxu0 0.0
  %1133 = vmatpush1.msra.mxu0 0.0
  %1134 = vmatprep.subr.mxu0 0.0
  %1135 = vmatpush1.msra.mxu0 0.0
  %1136 = vmatprep.subr.mxu0 0.0
  %1137 = vmatpush1.msra.mxu0 0.0
  %1138 = vmatprep.subr.mxu0 0.0
  %1139 = vmatpush1.msra.mxu0 0.0
  %1140 = vmatprep.subr.mxu0 0.0
  %1141 = vmatpush1.msra.mxu0 0.0
  %1142 = vmatprep.subr.mxu0 0.0
  %1143 = vmatpush1.msra.mxu0 0.0
  %1144 = vmatprep.subr.mxu0 0.0
  %1145 = vmatpush1.msra.mxu0 0.0
  %1146 = vmatprep.subr.mxu0 0.0
  %1147 = vmatpush1.msra.mxu0 0.0
  %1148 = vmatprep.subr.mxu0 0.0
  %1149 = vmatpush1.msra.mxu0 0.0
  %1150 = vmatprep.subr.mxu0 0.0
  %1151 = vmatpush1.msra.mxu0 0.0
  %1152 = vmatprep.subr.mxu0 0.0
  %1153 = vmatpush1.msra.mxu0 0.0
  %1154 = vmatprep.subr.mxu0 0.0
  %1155 = vmatpush1.msra.mxu0 0.0
  %1156 = vmatprep.subr.mxu0 0.0
  %1157 = vmatpush1.msra.mxu0 0.0
  %1158 = vmatprep.subr.mxu0 0.0
  %1159 = vmatpush1.msra.mxu0 0.0
  %1160 = vmatprep.subr.mxu0 0.0
  %1161 = vmatpush1.msra.mxu0 0.0
  %1162 = vmatprep.subr.mxu0 0.0
  %1163 = vmatpush1.msra.mxu0 0.0
  %1164 = vmatprep.subr.mxu0 0.0
  %1165 = vmatpush1.msra.mxu0 0.0
  %1166 = vmatprep.subr.mxu0 0.0
  %1167 = vmatpush1.msra.mxu0 0.0
  %1168 = vmatprep.subr.mxu0 0.0
  %1169 = vmatpush1.msra.mxu0 0.0
  %1170 = vmatprep.mubr.f32.mxu0 0.0
  %1171 = vmatmul.mubr.f32.gmra.mrb[0].mxu0 %v819
  %v1172 = vpop.f32.mrb[0].mxu0
  %v1173 = vadd.f32 0.0, %v1172
  %v1174 = vpop.f32.mrb[0].mxu0
  %1175 = vdwg.mxu0
  %1176 = vmatprep.subr.mxu0 0.0
  %1177 = vmatpush1.msra.mxu0 %v153
  %1178 = vmatprep.subr.mxu0 0.0
  %1179 = vmatpush1.msra.mxu0 %v154
  %1180 = vmatprep.subr.mxu0 0.0
  %1181 = vmatpush1.msra.mxu0 %v155
  %1182 = vmatprep.subr.mxu0 0.0
  %1183 = vmatpush1.msra.mxu0 %v156
  %1184 = vmatprep.subr.mxu0 0.0
  %1185 = vmatpush1.msra.mxu0 0.0
  %1186 = vmatprep.subr.mxu0 0.0
  %1187 = vmatpush1.msra.mxu0 0.0
  %1188 = vmatprep.subr.mxu0 0.0
  %1189 = vmatpush1.msra.mxu0 0.0
  %1190 = vmatprep.subr.mxu0 0.0
  %1191 = vmatpush1.msra.mxu0 0.0
  %1192 = vmatprep.subr.mxu0 0.0
  %1193 = vmatpush1.msra.mxu0 0.0
  %1194 = vmatprep.subr.mxu0 0.0
  %1195 = vmatpush1.msra.mxu0 0.0
  %1196 = vmatprep.subr.mxu0 0.0
  %1197 = vmatpush1.msra.mxu0 0.0
  %1198 = vmatprep.subr.mxu0 0.0
  %1199 = vmatpush1.msra.mxu0 0.0
  %1200 = vmatprep.subr.mxu0 0.0
  %1201 = vmatpush1.msra.mxu0 0.0
  %1202 = vmatprep.subr.mxu0 0.0
  %1203 = vmatpush1.msra.mxu0 0.0
  %1204 = vmatprep.subr.mxu0 0.0
  %1205 = vmatpush1.msra.mxu0 0.0
  %1206 = vmatprep.subr.mxu0 0.0
  %1207 = vmatpush1.msra.mxu0 0.0
  %1208 = vmatprep.subr.mxu0 0.0
  %1209 = vmatpush1.msra.mxu0 0.0
  %1210 = vmatprep.subr.mxu0 0.0
  %1211 = vmatpush1.msra.mxu0 0.0
  %1212 = vmatprep.subr.mxu0 0.0
  %1213 = vmatpush1.msra.mxu0 0.0
  %1214 = vmatprep.subr.mxu0 0.0
  %1215 = vmatpush1.msra.mxu0 0.0
  %1216 = vmatprep.subr.mxu0 0.0
  %1217 = vmatpush1.msra.mxu0 0.0
  %1218 = vmatprep.subr.mxu0 0.0
  %1219 = vmatpush1.msra.mxu0 0.0
  %1220 = vmatprep.subr.mxu0 0.0
  %1221 = vmatpush1.msra.mxu0 0.0
  %1222 = vmatprep.subr.mxu0 0.0
  %1223 = vmatpush1.msra.mxu0 0.0
  %1224 = vmatprep.subr.mxu0 0.0
  %1225 = vmatpush1.msra.mxu0 0.0
  %1226 = vmatprep.subr.mxu0 0.0
  %1227 = vmatpush1.msra.mxu0 0.0
  %1228 = vmatprep.subr.mxu0 0.0
  %1229 = vmatpush1.msra.mxu0 0.0
  %1230 = vmatprep.subr.mxu0 0.0
  %1231 = vmatpush1.msra.mxu0 0.0
  %1232 = vmatprep.subr.mxu0 0.0
  %1233 = vmatpush1.msra.mxu0 0.0
  %1234 = vmatprep.subr.mxu0 0.0
  %1235 = vmatpush1.msra.mxu0 0.0
  %1236 = vmatprep.subr.mxu0 0.0
  %1237 = vmatpush1.msra.mxu0 0.0
  %1238 = vmatprep.subr.mxu0 0.0
  %1239 = vmatpush1.msra.mxu0 0.0
  %1240 = vmatprep.mubr.f32.mxu0 0.0
  %1241 = vmatmul.mubr.f32.gmra.mrb[0].mxu0 %v892
  %v1242 = vpop.f32.mrb[0].mxu0
  %v1243 = vadd.f32 %v1173, %v1242
  %v1244 = vpop.f32.mrb[0].mxu0
  %1245 = vdwg.mxu0
  %v1246 = vadd.f32 %v1243, %v631
  %1247 = vmatprep.subr.mxu0 0.0
  %1248 = vmatpush1.msra.mxu0 %v177
  %1249 = vmatprep.subr.mxu0 0.0
  %1250 = vmatpush1.msra.mxu0 %v178
  %1251 = vmatprep.subr.mxu0 0.0
  %1252 = vmatpush1.msra.mxu0 %v179
  %1253 = vmatprep.subr.mxu0 0.0
  %1254 = vmatpush1.msra.mxu0 %v180
  %1255 = vmatprep.subr.mxu0 0.0
  %1256 = vmatpush1.msra.mxu0 0.0
  %1257 = vmatprep.subr.mxu0 0.0
  %1258 = vmatpush1.msra.mxu0 0.0
  %1259 = vmatprep.subr.mxu0 0.0
  %1260 = vmatpush1.msra.mxu0 0.0
  %1261 = vmatprep.subr.mxu0 0.0
  %1262 = vmatpush1.msra.mxu0 0.0
  %1263 = vmatprep.subr.mxu0 0.0
  %1264 = vmatpush1.msra.mxu0 0.0
  %1265 = vmatprep.subr.mxu0 0.0
  %1266 = vmatpush1.msra.mxu0 0.0
  %1267 = vmatprep.subr.mxu0 0.0
  %1268 = vmatpush1.msra.mxu0 0.0
  %1269 = vmatprep.subr.mxu0 0.0
  %1270 = vmatpush1.msra.mxu0 0.0
  %1271 = vmatprep.subr.mxu0 0.0
  %1272 = vmatpush1.msra.mxu0 0.0
  %1273 = vmatprep.subr.mxu0 0.0
  %1274 = vmatpush1.msra.mxu0 0.0
  %1275 = vmatprep.subr.mxu0 0.0
  %1276 = vmatpush1.msra.mxu0 0.0
  %1277 = vmatprep.subr.mxu0 0.0
  %1278 = vmatpush1.msra.mxu0 0.0
  %1279 = vmatprep.subr.mxu0 0.0
  %1280 = vmatpush1.msra.mxu0 0.0
  %1281 = vmatprep.subr.mxu0 0.0
  %1282 = vmatpush1.msra.mxu0 0.0
  %1283 = vmatprep.subr.mxu0 0.0
  %1284 = vmatpush1.msra.mxu0 0.0
  %1285 = vmatprep.subr.mxu0 0.0
  %1286 = vmatpush1.msra.mxu0 0.0
  %1287 = vmatprep.subr.mxu0 0.0
  %1288 = vmatpush1.msra.mxu0 0.0
  %1289 = vmatprep.subr.mxu0 0.0
  %1290 = vmatpush1.msra.mxu0 0.0
  %1291 = vmatprep.subr.mxu0 0.0
  %1292 = vmatpush1.msra.mxu0 0.0
  %1293 = vmatprep.subr.mxu0 0.0
  %1294 = vmatpush1.msra.mxu0 0.0
  %1295 = vmatprep.subr.mxu0 0.0
  %1296 = vmatpush1.msra.mxu0 0.0
  %1297 = vmatprep.subr.mxu0 0.0
  %1298 = vmatpush1.msra.mxu0 0.0
  %1299 = vmatprep.subr.mxu0 0.0
  %1300 = vmatpush1.msra.mxu0 0.0
  %1301 = vmatprep.subr.mxu0 0.0
  %1302 = vmatpush1.msra.mxu0 0.0
  %1303 = vmatprep.subr.mxu0 0.0
  %1304 = vmatpush1.msra.mxu0 0.0
  %1305 = vmatprep.subr.mxu0 0.0
  %1306 = vmatpush1.msra.mxu0 0.0
  %1307 = vmatprep.subr.mxu0 0.0
  %1308 = vmatpush1.msra.mxu0 0.0
  %1309 = vmatprep.subr.mxu0 0.0
  %1310 = vmatpush1.msra.mxu0 0.0
  %1311 = vmatprep.mubr.f32.mxu0 0.0
  %1312 = vmatmul.mubr.f32.gmra.mrb[0].mxu0 %v819
  %v1313 = vpop.f32.mrb[0].mxu0
  %v1314 = vadd.f32 0.0, %v1313
  %v1315 = vpop.f32.mrb[0].mxu0
  %1316 = vdwg.mxu0
  %1317 = vmatprep.subr.mxu0 0.0
  %1318 = vmatpush1.msra.mxu0 %v158
  %1319 = vmatprep.subr.mxu0 0.0
  %1320 = vmatpush1.msra.mxu0 %v159
  %1321 = vmatprep.subr.mxu0 0.0
  %1322 = vmatpush1.msra.mxu0 %v160
  %1323 = vmatprep.subr.mxu0 0.0
  %1324 = vmatpush1.msra.mxu0 %v161
  %1325 = vmatprep.subr.mxu0 0.0
  %1326 = vmatpush1.msra.mxu0 0.0
  %1327 = vmatprep.subr.mxu0 0.0
  %1328 = vmatpush1.msra.mxu0 0.0
  %1329 = vmatprep.subr.mxu0 0.0
  %1330 = vmatpush1.msra.mxu0 0.0
  %1331 = vmatprep.subr.mxu0 0.0
  %1332 = vmatpush1.msra.mxu0 0.0
  %1333 = vmatprep.subr.mxu0 0.0
  %1334 = vmatpush1.msra.mxu0 0.0
  %1335 = vmatprep.subr.mxu0 0.0
  %1336 = vmatpush1.msra.mxu0 0.0
  %1337 = vmatprep.subr.mxu0 0.0
  %1338 = vmatpush1.msra.mxu0 0.0
  %1339 = vmatprep.subr.mxu0 0.0
  %1340 = vmatpush1.msra.mxu0 0.0
  %1341 = vmatprep.subr.mxu0 0.0
  %1342 = vmatpush1.msra.mxu0 0.0
  %1343 = vmatprep.subr.mxu0 0.0
  %1344 = vmatpush1.msra.mxu0 0.0
  %1345 = vmatprep.subr.mxu0 0.0
  %1346 = vmatpush1.msra.mxu0 0.0
  %1347 = vmatprep.subr.mxu0 0.0
  %1348 = vmatpush1.msra.mxu0 0.0
  %1349 = vmatprep.subr.mxu0 0.0
  %1350 = vmatpush1.msra.mxu0 0.0
  %1351 = vmatprep.subr.mxu0 0.0
  %1352 = vmatpush1.msra.mxu0 0.0
  %1353 = vmatprep.subr.mxu0 0.0
  %1354 = vmatpush1.msra.mxu0 0.0
  %1355 = vmatprep.subr.mxu0 0.0
  %1356 = vmatpush1.msra.mxu0 0.0
  %1357 = vmatprep.subr.mxu0 0.0
  %1358 = vmatpush1.msra.mxu0 0.0
  %1359 = vmatprep.subr.mxu0 0.0
  %1360 = vmatpush1.msra.mxu0 0.0
  %1361 = vmatprep.subr.mxu0 0.0
  %1362 = vmatpush1.msra.mxu0 0.0
  %1363 = vmatprep.subr.mxu0 0.0
  %1364 = vmatpush1.msra.mxu0 0.0
  %1365 = vmatprep.subr.mxu0 0.0
  %1366 = vmatpush1.msra.mxu0 0.0
  %1367 = vmatprep.subr.mxu0 0.0
  %1368 = vmatpush1.msra.mxu0 0.0
  %1369 = vmatprep.subr.mxu0 0.0
  %1370 = vmatpush1.msra.mxu0 0.0
  %1371 = vmatprep.subr.mxu0 0.0
  %1372 = vmatpush1.msra.mxu0 0.0
  %1373 = vmatprep.subr.mxu0 0.0
  %1374 = vmatpush1.msra.mxu0 0.0
  %1375 = vmatprep.subr.mxu0 0.0
  %1376 = vmatpush1.msra.mxu0 0.0
  %1377 = vmatprep.subr.mxu0 0.0
  %1378 = vmatpush1.msra.mxu0 0.0
  %1379 = vmatprep.subr.mxu0 0.0
  %1380 = vmatpush1.msra.mxu0 0.0
  %1381 = vmatprep.mubr.f32.mxu0 0.0
  %1382 = vmatmul.mubr.f32.gmra.mrb[0].mxu0 %v892
  %v1383 = vpop.f32.mrb[0].mxu0
  %v1384 = vadd.f32 %v1314, %v1383
  %v1385 = vpop.f32.mrb[0].mxu0
  %1386 = vdwg.mxu0
  %v1387 = vadd.f32 %v1384, %v778
  %v1388 = vxor.u32 %v964, 2147483648
  %v1389 = vmul.f32 %v1388, 1.442695
  %v1390 = vpow.pop %v1389
  %v1391 = vadd.f32 %v1390, 1.0
  %v1392 = vrcp.pop %v1391
  %v1393 = vmul.f32 1.0, %v1392
  %v1394 = vxor.u32 %v1105, 2147483648
  %v1395 = vmul.f32 %v1394, 1.442695
  %v1396 = vpow.pop %v1395
  %v1397 = vadd.f32 %v1396, 1.0
  %v1398 = vrcp.pop %v1397
  %v1399 = vmul.f32 1.0, %v1398
  %v1400 = vtanh.pop %v1246
  %v1401 = vxor.u32 %v1387, 2147483648
  %v1402 = vmul.f32 %v1401, 1.442695
  %v1403 = vpow.pop %v1402
  %v1404 = vadd.f32 %v1403, 1.0
  %v1405 = vrcp.pop %v1404
  %v1406 = vmul.f32 1.0, %v1405
  %v1407 = vmul.f32 %v1399, %v802
  %v1408 = vmul.f32 %v1393, %v1400
  %v1409 = vadd.f32 %v1407, %v1408
  %v1410 = vtanh.pop %v1409
  %v1411 = vmul.f32 %v1406, %v1410
  %p1412 = scmp.gt.s32.totalorder %s142, 1
  %s1413 = scalar_select %p1412, 0.0, -inf
  %vm1414 = vcmp.gt.s32.totalorder %v141, 1
  %v1415 = vmul.f32 %v140, %v1411
  %v1416 = vsel %vm1414, 1, 0
  %1417 = vset.pattern.permute.xlu0 0
  %1418 = vperm.xlu0 %1417, %v1416
  %v1419 = vpop.permute.xlu0 %1418
  %vm1420 = vcmp.eq.s32.totalorder %v1419, 1
  %v1421 = vstv %s1413
  %v1422 = vsel %vm1420, %v1415, %v1421
  %v1423 = vmax.f32 %v815, %v1422
  %s1424 = scalar_lea.vmem %s1, 16
  %v1425 = vld [vmem:[%s1424] sm:$0xff]
  %v1427 = vsel %vm66, %v1411, 0
  %1429 = vmatprep.subr.mxu0 0.0
  %1430 = vmatpush1.msra.mxu0 %v162
  %1431 = vmatprep.subr.mxu0 0.0
  %1432 = vmatpush1.msra.mxu0 %v163
  %1433 = vmatprep.subr.mxu0 0.0
  %1434 = vmatpush1.msra.mxu0 %v164
  %1435 = vmatprep.subr.mxu0 0.0
  %1436 = vmatpush1.msra.mxu0 %v165
  %1437 = vmatprep.subr.mxu0 0.0
  %1438 = vmatpush1.msra.mxu0 0.0
  %1439 = vmatprep.subr.mxu0 0.0
  %1440 = vmatpush1.msra.mxu0 0.0
  %1441 = vmatprep.subr.mxu0 0.0
  %1442 = vmatpush1.msra.mxu0 0.0
  %1443 = vmatprep.subr.mxu0 0.0
  %1444 = vmatpush1.msra.mxu0 0.0
  %1445 = vmatprep.subr.mxu0 0.0
  %1446 = vmatpush1.msra.mxu0 0.0
  %1447 = vmatprep.subr.mxu0 0.0
  %1448 = vmatpush1.msra.mxu0 0.0
  %1449 = vmatprep.subr.mxu0 0.0
  %1450 = vmatpush1.msra.mxu0 0.0
  %1451 = vmatprep.subr.mxu0 0.0
  %1452 = vmatpush1.msra.mxu0 0.0
  %1453 = vmatprep.subr.mxu0 0.0
  %1454 = vmatpush1.msra.mxu0 0.0
  %1455 = vmatprep.subr.mxu0 0.0
  %1456 = vmatpush1.msra.mxu0 0.0
  %1457 = vmatprep.subr.mxu0 0.0
  %1458 = vmatpush1.msra.mxu0 0.0
  %1459 = vmatprep.subr.mxu0 0.0
  %1460 = vmatpush1.msra.mxu0 0.0
  %1461 = vmatprep.subr.mxu0 0.0
  %1462 = vmatpush1.msra.mxu0 0.0
  %1463 = vmatprep.subr.mxu0 0.0
  %1464 = vmatpush1.msra.mxu0 0.0
  %1465 = vmatprep.subr.mxu0 0.0
  %1466 = vmatpush1.msra.mxu0 0.0
  %1467 = vmatprep.subr.mxu0 0.0
  %1468 = vmatpush1.msra.mxu0 0.0
  %1469 = vmatprep.subr.mxu0 0.0
  %1470 = vmatpush1.msra.mxu0 0.0
  %1471 = vmatprep.subr.mxu0 0.0
  %1472 = vmatpush1.msra.mxu0 0.0
  %1473 = vmatprep.subr.mxu0 0.0
  %1474 = vmatpush1.msra.mxu0 0.0
  %1475 = vmatprep.subr.mxu0 0.0
  %1476 = vmatpush1.msra.mxu0 0.0
  %1477 = vmatprep.subr.mxu0 0.0
  %1478 = vmatpush1.msra.mxu0 0.0
  %1479 = vmatprep.subr.mxu0 0.0
  %1480 = vmatpush1.msra.mxu0 0.0
  %1481 = vmatprep.subr.mxu0 0.0
  %1482 = vmatpush1.msra.mxu0 0.0
  %1483 = vmatprep.subr.mxu0 0.0
  %1484 = vmatpush1.msra.mxu0 0.0
  %1485 = vmatprep.subr.mxu0 0.0
  %1486 = vmatpush1.msra.mxu0 0.0
  %1487 = vmatprep.subr.mxu0 0.0
  %1488 = vmatpush1.msra.mxu0 0.0
  %1489 = vmatprep.subr.mxu0 0.0
  %1490 = vmatpush1.msra.mxu0 0.0
  %1491 = vmatprep.subr.mxu0 0.0
  %1492 = vmatpush1.msra.mxu0 0.0
  %1493 = vmatprep.mubr.f32.mxu0 0.0
  %1494 = vmatmul.mubr.f32.gmra.mrb[0].mxu0 %v1427
  %v1495 = vpop.f32.mrb[0].mxu0
  %v1496 = vadd.f32 0.0, %v1495
  %v1497 = vpop.f32.mrb[0].mxu0
  %1498 = vdwg.mxu0
  %v1500 = vsel %vm66, %v1425, 0
  %1502 = vmatprep.subr.mxu0 0.0
  %1503 = vmatpush1.msra.mxu0 %v143
  %1504 = vmatprep.subr.mxu0 0.0
  %1505 = vmatpush1.msra.mxu0 %v144
  %1506 = vmatprep.subr.mxu0 0.0
  %1507 = vmatpush1.msra.mxu0 %v145
  %1508 = vmatprep.subr.mxu0 0.0
  %1509 = vmatpush1.msra.mxu0 %v146
  %1510 = vmatprep.subr.mxu0 0.0
  %1511 = vmatpush1.msra.mxu0 0.0
  %1512 = vmatprep.subr.mxu0 0.0
  %1513 = vmatpush1.msra.mxu0 0.0
  %1514 = vmatprep.subr.mxu0 0.0
  %1515 = vmatpush1.msra.mxu0 0.0
  %1516 = vmatprep.subr.mxu0 0.0
  %1517 = vmatpush1.msra.mxu0 0.0
  %1518 = vmatprep.subr.mxu0 0.0
  %1519 = vmatpush1.msra.mxu0 0.0
  %1520 = vmatprep.subr.mxu0 0.0
  %1521 = vmatpush1.msra.mxu0 0.0
  %1522 = vmatprep.subr.mxu0 0.0
  %1523 = vmatpush1.msra.mxu0 0.0
  %1524 = vmatprep.subr.mxu0 0.0
  %1525 = vmatpush1.msra.mxu0 0.0
  %1526 = vmatprep.subr.mxu0 0.0
  %1527 = vmatpush1.msra.mxu0 0.0
  %1528 = vmatprep.subr.mxu0 0.0
  %1529 = vmatpush1.msra.mxu0 0.0
  %1530 = vmatprep.subr.mxu0 0.0
  %1531 = vmatpush1.msra.mxu0 0.0
  %1532 = vmatprep.subr.mxu0 0.0
  %1533 = vmatpush1.msra.mxu0 0.0
  %1534 = vmatprep.subr.mxu0 0.0
  %1535 = vmatpush1.msra.mxu0 0.0
  %1536 = vmatprep.subr.mxu0 0.0
  %1537 = vmatpush1.msra.mxu0 0.0
  %1538 = vmatprep.subr.mxu0 0.0
  %1539 = vmatpush1.msra.mxu0 0.0
  %1540 = vmatprep.subr.mxu0 0.0
  %1541 = vmatpush1.msra.mxu0 0.0
  %1542 = vmatprep.subr.mxu0 0.0
  %1543 = vmatpush1.msra.mxu0 0.0
  %1544 = vmatprep.subr.mxu0 0.0
  %1545 = vmatpush1.msra.mxu0 0.0
  %1546 = vmatprep.subr.mxu0 0.0
  %1547 = vmatpush1.msra.mxu0 0.0
  %1548 = vmatprep.subr.mxu0 0.0
  %1549 = vmatpush1.msra.mxu0 0.0
  %1550 = vmatprep.subr.mxu0 0.0
  %1551 = vmatpush1.msra.mxu0 0.0
  %1552 = vmatprep.subr.mxu0 0.0
  %1553 = vmatpush1.msra.mxu0 0.0
  %1554 = vmatprep.subr.mxu0 0.0
  %1555 = vmatpush1.msra.mxu0 0.0
  %1556 = vmatprep.subr.mxu0 0.0
  %1557 = vmatpush1.msra.mxu0 0.0
  %1558 = vmatprep.subr.mxu0 0.0
  %1559 = vmatpush1.msra.mxu0 0.0
  %1560 = vmatprep.subr.mxu0 0.0
  %1561 = vmatpush1.msra.mxu0 0.0
  %1562 = vmatprep.subr.mxu0 0.0
  %1563 = vmatpush1.msra.mxu0 0.0
  %1564 = vmatprep.subr.mxu0 0.0
  %1565 = vmatpush1.msra.mxu0 0.0
  %1566 = vmatprep.mubr.f32.mxu0 0.0
  %1567 = vmatmul.mubr.f32.gmra.mrb[0].mxu0 %v1500
  %v1568 = vpop.f32.mrb[0].mxu0
  %v1569 = vadd.f32 %v1496, %v1568
  %v1570 = vpop.f32.mrb[0].mxu0
  %1571 = vdwg.mxu0
  %v1572 = vadd.f32 %v1569, %v337
  %1573 = vmatprep.subr.mxu0 0.0
  %1574 = vmatpush1.msra.mxu0 %v167
  %1575 = vmatprep.subr.mxu0 0.0
  %1576 = vmatpush1.msra.mxu0 %v168
  %1577 = vmatprep.subr.mxu0 0.0
  %1578 = vmatpush1.msra.mxu0 %v169
  %1579 = vmatprep.subr.mxu0 0.0
  %1580 = vmatpush1.msra.mxu0 %v170
  %1581 = vmatprep.subr.mxu0 0.0
  %1582 = vmatpush1.msra.mxu0 0.0
  %1583 = vmatprep.subr.mxu0 0.0
  %1584 = vmatpush1.msra.mxu0 0.0
  %1585 = vmatprep.subr.mxu0 0.0
  %1586 = vmatpush1.msra.mxu0 0.0
  %1587 = vmatprep.subr.mxu0 0.0
  %1588 = vmatpush1.msra.mxu0 0.0
  %1589 = vmatprep.subr.mxu0 0.0
  %1590 = vmatpush1.msra.mxu0 0.0
  %1591 = vmatprep.subr.mxu0 0.0
  %1592 = vmatpush1.msra.mxu0 0.0
  %1593 = vmatprep.subr.mxu0 0.0
  %1594 = vmatpush1.msra.mxu0 0.0
  %1595 = vmatprep.subr.mxu0 0.0
  %1596 = vmatpush1.msra.mxu0 0.0
  %1597 = vmatprep.subr.mxu0 0.0
  %1598 = vmatpush1.msra.mxu0 0.0
  %1599 = vmatprep.subr.mxu0 0.0
  %1600 = vmatpush1.msra.mxu0 0.0
  %1601 = vmatprep.subr.mxu0 0.0
  %1602 = vmatpush1.msra.mxu0 0.0
  %1603 = vmatprep.subr.mxu0 0.0
  %1604 = vmatpush1.msra.mxu0 0.0
  %1605 = vmatprep.subr.mxu0 0.0
  %1606 = vmatpush1.msra.mxu0 0.0
  %1607 = vmatprep.subr.mxu0 0.0
  %1608 = vmatpush1.msra.mxu0 0.0
  %1609 = vmatprep.subr.mxu0 0.0
  %1610 = vmatpush1.msra.mxu0 0.0
  %1611 = vmatprep.subr.mxu0 0.0
  %1612 = vmatpush1.msra.mxu0 0.0
  %1613 = vmatprep.subr.mxu0 0.0
  %1614 = vmatpush1.msra.mxu0 0.0
  %1615 = vmatprep.subr.mxu0 0.0
  %1616 = vmatpush1.msra.mxu0 0.0
  %1617 = vmatprep.subr.mxu0 0.0
  %1618 = vmatpush1.msra.mxu0 0.0
  %1619 = vmatprep.subr.mxu0 0.0
  %1620 = vmatpush1.msra.mxu0 0.0
  %1621 = vmatprep.subr.mxu0 0.0
  %1622 = vmatpush1.msra.mxu0 0.0
  %1623 = vmatprep.subr.mxu0 0.0
  %1624 = vmatpush1.msra.mxu0 0.0
  %1625 = vmatprep.subr.mxu0 0.0
  %1626 = vmatpush1.msra.mxu0 0.0
  %1627 = vmatprep.subr.mxu0 0.0
  %1628 = vmatpush1.msra.mxu0 0.0
  %1629 = vmatprep.subr.mxu0 0.0
  %1630 = vmatpush1.msra.mxu0 0.0
  %1631 = vmatprep.subr.mxu0 0.0
  %1632 = vmatpush1.msra.mxu0 0.0
  %1633 = vmatprep.subr.mxu0 0.0
  %1634 = vmatpush1.msra.mxu0 0.0
  %1635 = vmatprep.subr.mxu0 0.0
  %1636 = vmatpush1.msra.mxu0 0.0
  %1637 = vmatprep.mubr.f32.mxu0 0.0
  %1638 = vmatmul.mubr.f32.gmra.mrb[0].mxu0 %v1427
  %v1639 = vpop.f32.mrb[0].mxu0
  %v1640 = vadd.f32 0.0, %v1639
  %v1641 = vpop.f32.mrb[0].mxu0
  %1642 = vdwg.mxu0
  %1643 = vmatprep.subr.mxu0 0.0
  %1644 = vmatpush1.msra.mxu0 %v148
  %1645 = vmatprep.subr.mxu0 0.0
  %1646 = vmatpush1.msra.mxu0 %v149
  %1647 = vmatprep.subr.mxu0 0.0
  %1648 = vmatpush1.msra.mxu0 %v150
  %1649 = vmatprep.subr.mxu0 0.0
  %1650 = vmatpush1.msra.mxu0 %v151
  %1651 = vmatprep.subr.mxu0 0.0
  %1652 = vmatpush1.msra.mxu0 0.0
  %1653 = vmatprep.subr.mxu0 0.0
  %1654 = vmatpush1.msra.mxu0 0.0
  %1655 = vmatprep.subr.mxu0 0.0
  %1656 = vmatpush1.msra.mxu0 0.0
  %1657 = vmatprep.subr.mxu0 0.0
  %1658 = vmatpush1.msra.mxu0 0.0
  %1659 = vmatprep.subr.mxu0 0.0
  %1660 = vmatpush1.msra.mxu0 0.0
  %1661 = vmatprep.subr.mxu0 0.0
  %1662 = vmatpush1.msra.mxu0 0.0
  %1663 = vmatprep.subr.mxu0 0.0
  %1664 = vmatpush1.msra.mxu0 0.0
  %1665 = vmatprep.subr.mxu0 0.0
  %1666 = vmatpush1.msra.mxu0 0.0
  %1667 = vmatprep.subr.mxu0 0.0
  %1668 = vmatpush1.msra.mxu0 0.0
  %1669 = vmatprep.subr.mxu0 0.0
  %1670 = vmatpush1.msra.mxu0 0.0
  %1671 = vmatprep.subr.mxu0 0.0
  %1672 = vmatpush1.msra.mxu0 0.0
  %1673 = vmatprep.subr.mxu0 0.0
  %1674 = vmatpush1.msra.mxu0 0.0
  %1675 = vmatprep.subr.mxu0 0.0
  %1676 = vmatpush1.msra.mxu0 0.0
  %1677 = vmatprep.subr.mxu0 0.0
  %1678 = vmatpush1.msra.mxu0 0.0
  %1679 = vmatprep.subr.mxu0 0.0
  %1680 = vmatpush1.msra.mxu0 0.0
  %1681 = vmatprep.subr.mxu0 0.0
  %1682 = vmatpush1.msra.mxu0 0.0
  %1683 = vmatprep.subr.mxu0 0.0
  %1684 = vmatpush1.msra.mxu0 0.0
  %1685 = vmatprep.subr.mxu0 0.0
  %1686 = vmatpush1.msra.mxu0 0.0
  %1687 = vmatprep.subr.mxu0 0.0
  %1688 = vmatpush1.msra.mxu0 0.0
  %1689 = vmatprep.subr.mxu0 0.0
  %1690 = vmatpush1.msra.mxu0 0.0
  %1691 = vmatprep.subr.mxu0 0.0
  %1692 = vmatpush1.msra.mxu0 0.0
  %1693 = vmatprep.subr.mxu0 0.0
  %1694 = vmatpush1.msra.mxu0 0.0
  %1695 = vmatprep.subr.mxu0 0.0
  %1696 = vmatpush1.msra.mxu0 0.0
  %1697 = vmatprep.subr.mxu0 0.0
  %1698 = vmatpush1.msra.mxu0 0.0
  %1699 = vmatprep.subr.mxu0 0.0
  %1700 = vmatpush1.msra.mxu0 0.0
  %1701 = vmatprep.subr.mxu0 0.0
  %1702 = vmatpush1.msra.mxu0 0.0
  %1703 = vmatprep.subr.mxu0 0.0
  %1704 = vmatpush1.msra.mxu0 0.0
  %1705 = vmatprep.subr.mxu0 0.0
  %1706 = vmatpush1.msra.mxu0 0.0
  %1707 = vmatprep.mubr.f32.mxu0 0.0
  %1708 = vmatmul.mubr.f32.gmra.mrb[0].mxu0 %v1500
  %v1709 = vpop.f32.mrb[0].mxu0
  %v1710 = vadd.f32 %v1640, %v1709
  %v1711 = vpop.f32.mrb[0].mxu0
  %1712 = vdwg.mxu0
  %v1713 = vadd.f32 %v1710, %v484
  %1714 = vmatprep.subr.mxu0 0.0
  %1715 = vmatpush1.msra.mxu0 %v172
  %1716 = vmatprep.subr.mxu0 0.0
  %1717 = vmatpush1.msra.mxu0 %v173
  %1718 = vmatprep.subr.mxu0 0.0
  %1719 = vmatpush1.msra.mxu0 %v174
  %1720 = vmatprep.subr.mxu0 0.0
  %1721 = vmatpush1.msra.mxu0 %v175
  %1722 = vmatprep.subr.mxu0 0.0
  %1723 = vmatpush1.msra.mxu0 0.0
  %1724 = vmatprep.subr.mxu0 0.0
  %1725 = vmatpush1.msra.mxu0 0.0
  %1726 = vmatprep.subr.mxu0 0.0
  %1727 = vmatpush1.msra.mxu0 0.0
  %1728 = vmatprep.subr.mxu0 0.0
  %1729 = vmatpush1.msra.mxu0 0.0
  %1730 = vmatprep.subr.mxu0 0.0
  %1731 = vmatpush1.msra.mxu0 0.0
  %1732 = vmatprep.subr.mxu0 0.0
  %1733 = vmatpush1.msra.mxu0 0.0
  %1734 = vmatprep.subr.mxu0 0.0
  %1735 = vmatpush1.msra.mxu0 0.0
  %1736 = vmatprep.subr.mxu0 0.0
  %1737 = vmatpush1.msra.mxu0 0.0
  %1738 = vmatprep.subr.mxu0 0.0
  %1739 = vmatpush1.msra.mxu0 0.0
  %1740 = vmatprep.subr.mxu0 0.0
  %1741 = vmatpush1.msra.mxu0 0.0
  %1742 = vmatprep.subr.mxu0 0.0
  %1743 = vmatpush1.msra.mxu0 0.0
  %1744 = vmatprep.subr.mxu0 0.0
  %1745 = vmatpush1.msra.mxu0 0.0
  %1746 = vmatprep.subr.mxu0 0.0
  %1747 = vmatpush1.msra.mxu0 0.0
  %1748 = vmatprep.subr.mxu0 0.0
  %1749 = vmatpush1.msra.mxu0 0.0
  %1750 = vmatprep.subr.mxu0 0.0
  %1751 = vmatpush1.msra.mxu0 0.0
  %1752 = vmatprep.subr.mxu0 0.0
  %1753 = vmatpush1.msra.mxu0 0.0
  %1754 = vmatprep.subr.mxu0 0.0
  %1755 = vmatpush1.msra.mxu0 0.0
  %1756 = vmatprep.subr.mxu0 0.0
  %1757 = vmatpush1.msra.mxu0 0.0
  %1758 = vmatprep.subr.mxu0 0.0
  %1759 = vmatpush1.msra.mxu0 0.0
  %1760 = vmatprep.subr.mxu0 0.0
  %1761 = vmatpush1.msra.mxu0 0.0
  %1762 = vmatprep.subr.mxu0 0.0
  %1763 = vmatpush1.msra.mxu0 0.0
  %1764 = vmatprep.subr.mxu0 0.0
  %1765 = vmatpush1.msra.mxu0 0.0
  %1766 = vmatprep.subr.mxu0 0.0
  %1767 = vmatpush1.msra.mxu0 0.0
  %1768 = vmatprep.subr.mxu0 0.0
  %1769 = vmatpush1.msra.mxu0 0.0
  %1770 = vmatprep.subr.mxu0 0.0
  %1771 = vmatpush1.msra.mxu0 0.0
  %1772 = vmatprep.subr.mxu0 0.0
  %1773 = vmatpush1.msra.mxu0 0.0
  %1774 = vmatprep.subr.mxu0 0.0
  %1775 = vmatpush1.msra.mxu0 0.0
  %1776 = vmatprep.subr.mxu0 0.0
  %1777 = vmatpush1.msra.mxu0 0.0
  %1778 = vmatprep.mubr.f32.mxu0 0.0
  %1779 = vmatmul.mubr.f32.gmra.mrb[0].mxu0 %v1427
  %v1780 = vpop.f32.mrb[0].mxu0
  %v1781 = vadd.f32 0.0, %v1780
  %v1782 = vpop.f32.mrb[0].mxu0
  %1783 = vdwg.mxu0
  %1784 = vmatprep.subr.mxu0 0.0
  %1785 = vmatpush1.msra.mxu0 %v153
  %1786 = vmatprep.subr.mxu0 0.0
  %1787 = vmatpush1.msra.mxu0 %v154
  %1788 = vmatprep.subr.mxu0 0.0
  %1789 = vmatpush1.msra.mxu0 %v155
  %1790 = vmatprep.subr.mxu0 0.0
  %1791 = vmatpush1.msra.mxu0 %v156
  %1792 = vmatprep.subr.mxu0 0.0
  %1793 = vmatpush1.msra.mxu0 0.0
  %1794 = vmatprep.subr.mxu0 0.0
  %1795 = vmatpush1.msra.mxu0 0.0
  %1796 = vmatprep.subr.mxu0 0.0
  %1797 = vmatpush1.msra.mxu0 0.0
  %1798 = vmatprep.subr.mxu0 0.0
  %1799 = vmatpush1.msra.mxu0 0.0
  %1800 = vmatprep.subr.mxu0 0.0
  %1801 = vmatpush1.msra.mxu0 0.0
  %1802 = vmatprep.subr.mxu0 0.0
  %1803 = vmatpush1.msra.mxu0 0.0
  %1804 = vmatprep.subr.mxu0 0.0
  %1805 = vmatpush1.msra.mxu0 0.0
  %1806 = vmatprep.subr.mxu0 0.0
  %1807 = vmatpush1.msra.mxu0 0.0
  %1808 = vmatprep.subr.mxu0 0.0
  %1809 = vmatpush1.msra.mxu0 0.0
  %1810 = vmatprep.subr.mxu0 0.0
  %1811 = vmatpush1.msra.mxu0 0.0
  %1812 = vmatprep.subr.mxu0 0.0
  %1813 = vmatpush1.msra.mxu0 0.0
  %1814 = vmatprep.subr.mxu0 0.0
  %1815 = vmatpush1.msra.mxu0 0.0
  %1816 = vmatprep.subr.mxu0 0.0
  %1817 = vmatpush1.msra.mxu0 0.0
  %1818 = vmatprep.subr.mxu0 0.0
  %1819 = vmatpush1.msra.mxu0 0.0
  %1820 = vmatprep.subr.mxu0 0.0
  %1821 = vmatpush1.msra.mxu0 0.0
  %1822 = vmatprep.subr.mxu0 0.0
  %1823 = vmatpush1.msra.mxu0 0.0
  %1824 = vmatprep.subr.mxu0 0.0
  %1825 = vmatpush1.msra.mxu0 0.0
  %1826 = vmatprep.subr.mxu0 0.0
  %1827 = vmatpush1.msra.mxu0 0.0
  %1828 = vmatprep.subr.mxu0 0.0
  %1829 = vmatpush1.msra.mxu0 0.0
  %1830 = vmatprep.subr.mxu0 0.0
  %1831 = vmatpush1.msra.mxu0 0.0
  %1832 = vmatprep.subr.mxu0 0.0
  %1833 = vmatpush1.msra.mxu0 0.0
  %1834 = vmatprep.subr.mxu0 0.0
  %1835 = vmatpush1.msra.mxu0 0.0
  %1836 = vmatprep.subr.mxu0 0.0
  %1837 = vmatpush1.msra.mxu0 0.0
  %1838 = vmatprep.subr.mxu0 0.0
  %1839 = vmatpush1.msra.mxu0 0.0
  %1840 = vmatprep.subr.mxu0 0.0
  %1841 = vmatpush1.msra.mxu0 0.0
  %1842 = vmatprep.subr.mxu0 0.0
  %1843 = vmatpush1.msra.mxu0 0.0
  %1844 = vmatprep.subr.mxu0 0.0
  %1845 = vmatpush1.msra.mxu0 0.0
  %1846 = vmatprep.subr.mxu0 0.0
  %1847 = vmatpush1.msra.mxu0 0.0
  %1848 = vmatprep.mubr.f32.mxu0 0.0
  %1849 = vmatmul.mubr.f32.gmra.mrb[0].mxu0 %v1500
  %v1850 = vpop.f32.mrb[0].mxu0
  %v1851 = vadd.f32 %v1781, %v1850
  %v1852 = vpop.f32.mrb[0].mxu0
  %1853 = vdwg.mxu0
  %v1854 = vadd.f32 %v1851, %v631
  %1855 = vmatprep.subr.mxu0 0.0
  %1856 = vmatpush1.msra.mxu0 %v177
  %1857 = vmatprep.subr.mxu0 0.0
  %1858 = vmatpush1.msra.mxu0 %v178
  %1859 = vmatprep.subr.mxu0 0.0
  %1860 = vmatpush1.msra.mxu0 %v179
  %1861 = vmatprep.subr.mxu0 0.0
  %1862 = vmatpush1.msra.mxu0 %v180
  %1863 = vmatprep.subr.mxu0 0.0
  %1864 = vmatpush1.msra.mxu0 0.0
  %1865 = vmatprep.subr.mxu0 0.0
  %1866 = vmatpush1.msra.mxu0 0.0
  %1867 = vmatprep.subr.mxu0 0.0
  %1868 = vmatpush1.msra.mxu0 0.0
  %1869 = vmatprep.subr.mxu0 0.0
  %1870 = vmatpush1.msra.mxu0 0.0
  %1871 = vmatprep.subr.mxu0 0.0
  %1872 = vmatpush1.msra.mxu0 0.0
  %1873 = vmatprep.subr.mxu0 0.0
  %1874 = vmatpush1.msra.mxu0 0.0
  %1875 = vmatprep.subr.mxu0 0.0
  %1876 = vmatpush1.msra.mxu0 0.0
  %1877 = vmatprep.subr.mxu0 0.0
  %1878 = vmatpush1.msra.mxu0 0.0
  %1879 = vmatprep.subr.mxu0 0.0
  %1880 = vmatpush1.msra.mxu0 0.0
  %1881 = vmatprep.subr.mxu0 0.0
  %1882 = vmatpush1.msra.mxu0 0.0
  %1883 = vmatprep.subr.mxu0 0.0
  %1884 = vmatpush1.msra.mxu0 0.0
  %1885 = vmatprep.subr.mxu0 0.0
  %1886 = vmatpush1.msra.mxu0 0.0
  %1887 = vmatprep.subr.mxu0 0.0
  %1888 = vmatpush1.msra.mxu0 0.0
  %1889 = vmatprep.subr.mxu0 0.0
  %1890 = vmatpush1.msra.mxu0 0.0
  %1891 = vmatprep.subr.mxu0 0.0
  %1892 = vmatpush1.msra.mxu0 0.0
  %1893 = vmatprep.subr.mxu0 0.0
  %1894 = vmatpush1.msra.mxu0 0.0
  %1895 = vmatprep.subr.mxu0 0.0
  %1896 = vmatpush1.msra.mxu0 0.0
  %1897 = vmatprep.subr.mxu0 0.0
  %1898 = vmatpush1.msra.mxu0 0.0
  %1899 = vmatprep.subr.mxu0 0.0
  %1900 = vmatpush1.msra.mxu0 0.0
  %1901 = vmatprep.subr.mxu0 0.0
  %1902 = vmatpush1.msra.mxu0 0.0
  %1903 = vmatprep.subr.mxu0 0.0
  %1904 = vmatpush1.msra.mxu0 0.0
  %1905 = vmatprep.subr.mxu0 0.0
  %1906 = vmatpush1.msra.mxu0 0.0
  %1907 = vmatprep.subr.mxu0 0.0
  %1908 = vmatpush1.msra.mxu0 0.0
  %1909 = vmatprep.subr.mxu0 0.0
  %1910 = vmatpush1.msra.mxu0 0.0
  %1911 = vmatprep.subr.mxu0 0.0
  %1912 = vmatpush1.msra.mxu0 0.0
  %1913 = vmatprep.subr.mxu0 0.0
  %1914 = vmatpush1.msra.mxu0 0.0
  %1915 = vmatprep.subr.mxu0 0.0
  %1916 = vmatpush1.msra.mxu0 0.0
  %1917 = vmatprep.subr.mxu0 0.0
  %1918 = vmatpush1.msra.mxu0 0.0
  %1919 = vmatprep.mubr.f32.mxu0 0.0
  %1920 = vmatmul.mubr.f32.gmra.mrb[0].mxu0 %v1427
  %v1921 = vpop.f32.mrb[0].mxu0
  %v1922 = vadd.f32 0.0, %v1921
  %v1923 = vpop.f32.mrb[0].mxu0
  %1924 = vdwg.mxu0
  %1925 = vmatprep.subr.mxu0 0.0
  %1926 = vmatpush1.msra.mxu0 %v158
  %1927 = vmatprep.subr.mxu0 0.0
  %1928 = vmatpush1.msra.mxu0 %v159
  %1929 = vmatprep.subr.mxu0 0.0
  %1930 = vmatpush1.msra.mxu0 %v160
  %1931 = vmatprep.subr.mxu0 0.0
  %1932 = vmatpush1.msra.mxu0 %v161
  %1933 = vmatprep.subr.mxu0 0.0
  %1934 = vmatpush1.msra.mxu0 0.0
  %1935 = vmatprep.subr.mxu0 0.0
  %1936 = vmatpush1.msra.mxu0 0.0
  %1937 = vmatprep.subr.mxu0 0.0
  %1938 = vmatpush1.msra.mxu0 0.0
  %1939 = vmatprep.subr.mxu0 0.0
  %1940 = vmatpush1.msra.mxu0 0.0
  %1941 = vmatprep.subr.mxu0 0.0
  %1942 = vmatpush1.msra.mxu0 0.0
  %1943 = vmatprep.subr.mxu0 0.0
  %1944 = vmatpush1.msra.mxu0 0.0
  %1945 = vmatprep.subr.mxu0 0.0
  %1946 = vmatpush1.msra.mxu0 0.0
  %1947 = vmatprep.subr.mxu0 0.0
  %1948 = vmatpush1.msra.mxu0 0.0
  %1949 = vmatprep.subr.mxu0 0.0
  %1950 = vmatpush1.msra.mxu0 0.0
  %1951 = vmatprep.subr.mxu0 0.0
  %1952 = vmatpush1.msra.mxu0 0.0
  %1953 = vmatprep.subr.mxu0 0.0
  %1954 = vmatpush1.msra.mxu0 0.0
  %1955 = vmatprep.subr.mxu0 0.0
  %1956 = vmatpush1.msra.mxu0 0.0
  %1957 = vmatprep.subr.mxu0 0.0
  %1958 = vmatpush1.msra.mxu0 0.0
  %1959 = vmatprep.subr.mxu0 0.0
  %1960 = vmatpush1.msra.mxu0 0.0
  %1961 = vmatprep.subr.mxu0 0.0
  %1962 = vmatpush1.msra.mxu0 0.0
  %1963 = vmatprep.subr.mxu0 0.0
  %1964 = vmatpush1.msra.mxu0 0.0
  %1965 = vmatprep.subr.mxu0 0.0
  %1966 = vmatpush1.msra.mxu0 0.0
  %1967 = vmatprep.subr.mxu0 0.0
  %1968 = vmatpush1.msra.mxu0 0.0
  %1969 = vmatprep.subr.mxu0 0.0
  %1970 = vmatpush1.msra.mxu0 0.0
  %1971 = vmatprep.subr.mxu0 0.0
  %1972 = vmatpush1.msra.mxu0 0.0
  %1973 = vmatprep.subr.mxu0 0.0
  %1974 = vmatpush1.msra.mxu0 0.0
  %1975 = vmatprep.subr.mxu0 0.0
  %1976 = vmatpush1.msra.mxu0 0.0
  %1977 = vmatprep.subr.mxu0 0.0
  %1978 = vmatpush1.msra.mxu0 0.0
  %1979 = vmatprep.subr.mxu0 0.0
  %1980 = vmatpush1.msra.mxu0 0.0
  %1981 = vmatprep.subr.mxu0 0.0
  %1982 = vmatpush1.msra.mxu0 0.0
  %1983 = vmatprep.subr.mxu0 0.0
  %1984 = vmatpush1.msra.mxu0 0.0
  %1985 = vmatprep.subr.mxu0 0.0
  %1986 = vmatpush1.msra.mxu0 0.0
  %1987 = vmatprep.subr.mxu0 0.0
  %1988 = vmatpush1.msra.mxu0 0.0
  %1989 = vmatprep.mubr.f32.mxu0 0.0
  %1990 = vmatmul.mubr.f32.gmra.mrb[0].mxu0 %v1500
  %v1991 = vpop.f32.mrb[0].mxu0
  %v1992 = vadd.f32 %v1922, %v1991
  %v1993 = vpop.f32.mrb[0].mxu0
  %1994 = vdwg.mxu0
  %v1995 = vadd.f32 %v1992, %v778
  %v1996 = vxor.u32 %v1572, 2147483648
  %v1997 = vmul.f32 %v1996, 1.442695
  %v1998 = vpow.pop %v1997
  %v1999 = vadd.f32 %v1998, 1.0
  %v2000 = vrcp.pop %v1999
  %v2001 = vmul.f32 1.0, %v2000
  %v2002 = vxor.u32 %v1713, 2147483648
  %v2003 = vmul.f32 %v2002, 1.442695
  %v2004 = vpow.pop %v2003
  %v2005 = vadd.f32 %v2004, 1.0
  %v2006 = vrcp.pop %v2005
  %v2007 = vmul.f32 1.0, %v2006
  %v2008 = vtanh.pop %v1854
  %v2009 = vxor.u32 %v1995, 2147483648
  %v2010 = vmul.f32 %v2009, 1.442695
  %v2011 = vpow.pop %v2010
  %v2012 = vadd.f32 %v2011, 1.0
  %v2013 = vrcp.pop %v2012
  %v2014 = vmul.f32 1.0, %v2013
  %v2015 = vmul.f32 %v2007, %v1409
  %v2016 = vmul.f32 %v2001, %v2008
  %v2017 = vadd.f32 %v2015, %v2016
  %v2018 = vtanh.pop %v2017
  %v2019 = vmul.f32 %v2014, %v2018
  %p2020 = scmp.gt.s32.totalorder %s142, 2
  %s2021 = scalar_select %p2020, 0.0, -inf
  %vm2022 = vcmp.gt.s32.totalorder %v141, 2
  %v2023 = vmul.f32 %v140, %v2019
  %v2024 = vsel %vm2022, 1, 0
  %2025 = vset.pattern.permute.xlu0 0
  %2026 = vperm.xlu0 %2025, %v2024
  %v2027 = vpop.permute.xlu0 %2026
  %vm2028 = vcmp.eq.s32.totalorder %v2027, 1
  %v2029 = vstv %s2021
  %v2030 = vsel %vm2028, %v2023, %v2029
  %v2031 = vmax.f32 %v1423, %v2030
  %s2032 = scalar_lea.vmem %s1, 24
  %v2033 = vld [vmem:[%s2032] sm:$0xff]
  %v2035 = vsel %vm66, %v2019, 0
  %2037 = vmatprep.subr.mxu0 0.0
  %2038 = vmatpush1.msra.mxu0 %v162
  %2039 = vmatprep.subr.mxu0 0.0
  %2040 = vmatpush1.msra.mxu0 %v163
  %2041 = vmatprep.subr.mxu0 0.0
  %2042 = vmatpush1.msra.mxu0 %v164
  %2043 = vmatprep.subr.mxu0 0.0
  %2044 = vmatpush1.msra.mxu0 %v165
  %2045 = vmatprep.subr.mxu0 0.0
  %2046 = vmatpush1.msra.mxu0 0.0
  %2047 = vmatprep.subr.mxu0 0.0
  %2048 = vmatpush1.msra.mxu0 0.0
  %2049 = vmatprep.subr.mxu0 0.0
  %2050 = vmatpush1.msra.mxu0 0.0
  %2051 = vmatprep.subr.mxu0 0.0
  %2052 = vmatpush1.msra.mxu0 0.0
  %2053 = vmatprep.subr.mxu0 0.0
  %2054 = vmatpush1.msra.mxu0 0.0
  %2055 = vmatprep.subr.mxu0 0.0
  %2056 = vmatpush1.msra.mxu0 0.0
  %2057 = vmatprep.subr.mxu0 0.0
  %2058 = vmatpush1.msra.mxu0 0.0
  %2059 = vmatprep.subr.mxu0 0.0
  %2060 = vmatpush1.msra.mxu0 0.0
  %2061 = vmatprep.subr.mxu0 0.0
  %2062 = vmatpush1.msra.mxu0 0.0
  %2063 = vmatprep.subr.mxu0 0.0
  %2064 = vmatpush1.msra.mxu0 0.0
  %2065 = vmatprep.subr.mxu0 0.0
  %2066 = vmatpush1.msra.mxu0 0.0
  %2067 = vmatprep.subr.mxu0 0.0
  %2068 = vmatpush1.msra.mxu0 0.0
  %2069 = vmatprep.subr.mxu0 0.0
  %2070 = vmatpush1.msra.mxu0 0.0
  %2071 = vmatprep.subr.mxu0 0.0
  %2072 = vmatpush1.msra.mxu0 0.0
  %2073 = vmatprep.subr.mxu0 0.0
  %2074 = vmatpush1.msra.mxu0 0.0
  %2075 = vmatprep.subr.mxu0 0.0
  %2076 = vmatpush1.msra.mxu0 0.0
  %2077 = vmatprep.subr.mxu0 0.0
  %2078 = vmatpush1.msra.mxu0 0.0
  %2079 = vmatprep.subr.mxu0 0.0
  %2080 = vmatpush1.msra.mxu0 0.0
  %2081 = vmatprep.subr.mxu0 0.0
  %2082 = vmatpush1.msra.mxu0 0.0
  %2083 = vmatprep.subr.mxu0 0.0
  %2084 = vmatpush1.msra.mxu0 0.0
  %2085 = vmatprep.subr.mxu0 0.0
  %2086 = vmatpush1.msra.mxu0 0.0
  %2087 = vmatprep.subr.mxu0 0.0
  %2088 = vmatpush1.msra.mxu0 0.0
  %2089 = vmatprep.subr.mxu0 0.0
  %2090 = vmatpush1.msra.mxu0 0.0
  %2091 = vmatprep.subr.mxu0 0.0
  %2092 = vmatpush1.msra.mxu0 0.0
  %2093 = vmatprep.subr.mxu0 0.0
  %2094 = vmatpush1.msra.mxu0 0.0
  %2095 = vmatprep.subr.mxu0 0.0
  %2096 = vmatpush1.msra.mxu0 0.0
  %2097 = vmatprep.subr.mxu0 0.0
  %2098 = vmatpush1.msra.mxu0 0.0
  %2099 = vmatprep.subr.mxu0 0.0
  %2100 = vmatpush1.msra.mxu0 0.0
  %2101 = vmatprep.mubr.f32.mxu0 0.0
  %2102 = vmatmul.mubr.f32.gmra.mrb[0].mxu0 %v2035
  %v2103 = vpop.f32.mrb[0].mxu0
  %v2104 = vadd.f32 0.0, %v2103
  %v2105 = vpop.f32.mrb[0].mxu0
  %2106 = vdwg.mxu0
  %v2108 = vsel %vm66, %v2033, 0
  %2110 = vmatprep.subr.mxu0 0.0
  %2111 = vmatpush1.msra.mxu0 %v143
  %2112 = vmatprep.subr.mxu0 0.0
  %2113 = vmatpush1.msra.mxu0 %v144
  %2114 = vmatprep.subr.mxu0 0.0
  %2115 = vmatpush1.msra.mxu0 %v145
  %2116 = vmatprep.subr.mxu0 0.0
  %2117 = vmatpush1.msra.mxu0 %v146
  %2118 = vmatprep.subr.mxu0 0.0
  %2119 = vmatpush1.msra.mxu0 0.0
  %2120 = vmatprep.subr.mxu0 0.0
  %2121 = vmatpush1.msra.mxu0 0.0
  %2122 = vmatprep.subr.mxu0 0.0
  %2123 = vmatpush1.msra.mxu0 0.0
  %2124 = vmatprep.subr.mxu0 0.0
  %2125 = vmatpush1.msra.mxu0 0.0
  %2126 = vmatprep.subr.mxu0 0.0
  %2127 = vmatpush1.msra.mxu0 0.0
  %2128 = vmatprep.subr.mxu0 0.0
  %2129 = vmatpush1.msra.mxu0 0.0
  %2130 = vmatprep.subr.mxu0 0.0
  %2131 = vmatpush1.msra.mxu0 0.0
  %2132 = vmatprep.subr.mxu0 0.0
  %2133 = vmatpush1.msra.mxu0 0.0
  %2134 = vmatprep.subr.mxu0 0.0
  %2135 = vmatpush1.msra.mxu0 0.0
  %2136 = vmatprep.subr.mxu0 0.0
  %2137 = vmatpush1.msra.mxu0 0.0
  %2138 = vmatprep.subr.mxu0 0.0
  %2139 = vmatpush1.msra.mxu0 0.0
  %2140 = vmatprep.subr.mxu0 0.0
  %2141 = vmatpush1.msra.mxu0 0.0
  %2142 = vmatprep.subr.mxu0 0.0
  %2143 = vmatpush1.msra.mxu0 0.0
  %2144 = vmatprep.subr.mxu0 0.0
  %2145 = vmatpush1.msra.mxu0 0.0
  %2146 = vmatprep.subr.mxu0 0.0
  %2147 = vmatpush1.msra.mxu0 0.0
  %2148 = vmatprep.subr.mxu0 0.0
  %2149 = vmatpush1.msra.mxu0 0.0
  %2150 = vmatprep.subr.mxu0 0.0
  %2151 = vmatpush1.msra.mxu0 0.0
  %2152 = vmatprep.subr.mxu0 0.0
  %2153 = vmatpush1.msra.mxu0 0.0
  %2154 = vmatprep.subr.mxu0 0.0
  %2155 = vmatpush1.msra.mxu0 0.0
  %2156 = vmatprep.subr.mxu0 0.0
  %2157 = vmatpush1.msra.mxu0 0.0
  %2158 = vmatprep.subr.mxu0 0.0
  %2159 = vmatpush1.msra.mxu0 0.0
  %2160 = vmatprep.subr.mxu0 0.0
  %2161 = vmatpush1.msra.mxu0 0.0
  %2162 = vmatprep.subr.mxu0 0.0
  %2163 = vmatpush1.msra.mxu0 0.0
  %2164 = vmatprep.subr.mxu0 0.0
  %2165 = vmatpush1.msra.mxu0 0.0
  %2166 = vmatprep.subr.mxu0 0.0
  %2167 = vmatpush1.msra.mxu0 0.0
  %2168 = vmatprep.subr.mxu0 0.0
  %2169 = vmatpush1.msra.mxu0 0.0
  %2170 = vmatprep.subr.mxu0 0.0
  %2171 = vmatpush1.msra.mxu0 0.0
  %2172 = vmatprep.subr.mxu0 0.0
  %2173 = vmatpush1.msra.mxu0 0.0
  %2174 = vmatprep.mubr.f32.mxu0 0.0
  %2175 = vmatmul.mubr.f32.gmra.mrb[0].mxu0 %v2108
  %v2176 = vpop.f32.mrb[0].mxu0
  %v2177 = vadd.f32 %v2104, %v2176
  %v2178 = vpop.f32.mrb[0].mxu0
  %2179 = vdwg.mxu0
  %v2180 = vadd.f32 %v2177, %v337
  %2181 = vmatprep.subr.mxu0 0.0
  %2182 = vmatpush1.msra.mxu0 %v167
  %2183 = vmatprep.subr.mxu0 0.0
  %2184 = vmatpush1.msra.mxu0 %v168
  %2185 = vmatprep.subr.mxu0 0.0
  %2186 = vmatpush1.msra.mxu0 %v169
  %2187 = vmatprep.subr.mxu0 0.0
  %2188 = vmatpush1.msra.mxu0 %v170
  %2189 = vmatprep.subr.mxu0 0.0
  %2190 = vmatpush1.msra.mxu0 0.0
  %2191 = vmatprep.subr.mxu0 0.0
  %2192 = vmatpush1.msra.mxu0 0.0
  %2193 = vmatprep.subr.mxu0 0.0
  %2194 = vmatpush1.msra.mxu0 0.0
  %2195 = vmatprep.subr.mxu0 0.0
  %2196 = vmatpush1.msra.mxu0 0.0
  %2197 = vmatprep.subr.mxu0 0.0
  %2198 = vmatpush1.msra.mxu0 0.0
  %2199 = vmatprep.subr.mxu0 0.0
  %2200 = vmatpush1.msra.mxu0 0.0
  %2201 = vmatprep.subr.mxu0 0.0
  %2202 = vmatpush1.msra.mxu0 0.0
  %2203 = vmatprep.subr.mxu0 0.0
  %2204 = vmatpush1.msra.mxu0 0.0
  %2205 = vmatprep.subr.mxu0 0.0
  %2206 = vmatpush1.msra.mxu0 0.0
  %2207 = vmatprep.subr.mxu0 0.0
  %2208 = vmatpush1.msra.mxu0 0.0
  %2209 = vmatprep.subr.mxu0 0.0
  %2210 = vmatpush1.msra.mxu0 0.0
  %2211 = vmatprep.subr.mxu0 0.0
  %2212 = vmatpush1.msra.mxu0 0.0
  %2213 = vmatprep.subr.mxu0 0.0
  %2214 = vmatpush1.msra.mxu0 0.0
  %2215 = vmatprep.subr.mxu0 0.0
  %2216 = vmatpush1.msra.mxu0 0.0
  %2217 = vmatprep.subr.mxu0 0.0
  %2218 = vmatpush1.msra.mxu0 0.0
  %2219 = vmatprep.subr.mxu0 0.0
  %2220 = vmatpush1.msra.mxu0 0.0
  %2221 = vmatprep.subr.mxu0 0.0
  %2222 = vmatpush1.msra.mxu0 0.0
  %2223 = vmatprep.subr.mxu0 0.0
  %2224 = vmatpush1.msra.mxu0 0.0
  %2225 = vmatprep.subr.mxu0 0.0
  %2226 = vmatpush1.msra.mxu0 0.0
  %2227 = vmatprep.subr.mxu0 0.0
  %2228 = vmatpush1.msra.mxu0 0.0
  %2229 = vmatprep.subr.mxu0 0.0
  %2230 = vmatpush1.msra.mxu0 0.0
  %2231 = vmatprep.subr.mxu0 0.0
  %2232 = vmatpush1.msra.mxu0 0.0
  %2233 = vmatprep.subr.mxu0 0.0
  %2234 = vmatpush1.msra.mxu0 0.0
  %2235 = vmatprep.subr.mxu0 0.0
  %2236 = vmatpush1.msra.mxu0 0.0
  %2237 = vmatprep.subr.mxu0 0.0
  %2238 = vmatpush1.msra.mxu0 0.0
  %2239 = vmatprep.subr.mxu0 0.0
  %2240 = vmatpush1.msra.mxu0 0.0
  %2241 = vmatprep.subr.mxu0 0.0
  %2242 = vmatpush1.msra.mxu0 0.0
  %2243 = vmatprep.subr.mxu0 0.0
  %2244 = vmatpush1.msra.mxu0 0.0
  %2245 = vmatprep.mubr.f32.mxu0 0.0
  %2246 = vmatmul.mubr.f32.gmra.mrb[0].mxu0 %v2035
  %v2247 = vpop.f32.mrb[0].mxu0
  %v2248 = vadd.f32 0.0, %v2247
  %v2249 = vpop.f32.mrb[0].mxu0
  %2250 = vdwg.mxu0
  %2251 = vmatprep.subr.mxu0 0.0
  %2252 = vmatpush1.msra.mxu0 %v148
  %2253 = vmatprep.subr.mxu0 0.0
  %2254 = vmatpush1.msra.mxu0 %v149
  %2255 = vmatprep.subr.mxu0 0.0
  %2256 = vmatpush1.msra.mxu0 %v150
  %2257 = vmatprep.subr.mxu0 0.0
  %2258 = vmatpush1.msra.mxu0 %v151
  %2259 = vmatprep.subr.mxu0 0.0
  %2260 = vmatpush1.msra.mxu0 0.0
  %2261 = vmatprep.subr.mxu0 0.0
  %2262 = vmatpush1.msra.mxu0 0.0
  %2263 = vmatprep.subr.mxu0 0.0
  %2264 = vmatpush1.msra.mxu0 0.0
  %2265 = vmatprep.subr.mxu0 0.0
  %2266 = vmatpush1.msra.mxu0 0.0
  %2267 = vmatprep.subr.mxu0 0.0
  %2268 = vmatpush1.msra.mxu0 0.0
  %2269 = vmatprep.subr.mxu0 0.0
  %2270 = vmatpush1.msra.mxu0 0.0
  %2271 = vmatprep.subr.mxu0 0.0
  %2272 = vmatpush1.msra.mxu0 0.0
  %2273 = vmatprep.subr.mxu0 0.0
  %2274 = vmatpush1.msra.mxu0 0.0
  %2275 = vmatprep.subr.mxu0 0.0
  %2276 = vmatpush1.msra.mxu0 0.0
  %2277 = vmatprep.subr.mxu0 0.0
  %2278 = vmatpush1.msra.mxu0 0.0
  %2279 = vmatprep.subr.mxu0 0.0
  %2280 = vmatpush1.msra.mxu0 0.0
  %2281 = vmatprep.subr.mxu0 0.0
  %2282 = vmatpush1.msra.mxu0 0.0
  %2283 = vmatprep.subr.mxu0 0.0
  %2284 = vmatpush1.msra.mxu0 0.0
  %2285 = vmatprep.subr.mxu0 0.0
  %2286 = vmatpush1.msra.mxu0 0.0
  %2287 = vmatprep.subr.mxu0 0.0
  %2288 = vmatpush1.msra.mxu0 0.0
  %2289 = vmatprep.subr.mxu0 0.0
  %2290 = vmatpush1.msra.mxu0 0.0
  %2291 = vmatprep.subr.mxu0 0.0
  %2292 = vmatpush1.msra.mxu0 0.0
  %2293 = vmatprep.subr.mxu0 0.0
  %2294 = vmatpush1.msra.mxu0 0.0
  %2295 = vmatprep.subr.mxu0 0.0
  %2296 = vmatpush1.msra.mxu0 0.0
  %2297 = vmatprep.subr.mxu0 0.0
  %2298 = vmatpush1.msra.mxu0 0.0
  %2299 = vmatprep.subr.mxu0 0.0
  %2300 = vmatpush1.msra.mxu0 0.0
  %2301 = vmatprep.subr.mxu0 0.0
  %2302 = vmatpush1.msra.mxu0 0.0
  %2303 = vmatprep.subr.mxu0 0.0
  %2304 = vmatpush1.msra.mxu0 0.0
  %2305 = vmatprep.subr.mxu0 0.0
  %2306 = vmatpush1.msra.mxu0 0.0
  %2307 = vmatprep.subr.mxu0 0.0
  %2308 = vmatpush1.msra.mxu0 0.0
  %2309 = vmatprep.subr.mxu0 0.0
  %2310 = vmatpush1.msra.mxu0 0.0
  %2311 = vmatprep.subr.mxu0 0.0
  %2312 = vmatpush1.msra.mxu0 0.0
  %2313 = vmatprep.subr.mxu0 0.0
  %2314 = vmatpush1.msra.mxu0 0.0
  %2315 = vmatprep.mubr.f32.mxu0 0.0
  %2316 = vmatmul.mubr.f32.gmra.mrb[0].mxu0 %v2108
  %v2317 = vpop.f32.mrb[0].mxu0
  %v2318 = vadd.f32 %v2248, %v2317
  %v2319 = vpop.f32.mrb[0].mxu0
  %2320 = vdwg.mxu0
  %v2321 = vadd.f32 %v2318, %v484
  %2322 = vmatprep.subr.mxu0 0.0
  %2323 = vmatpush1.msra.mxu0 %v172
  %2324 = vmatprep.subr.mxu0 0.0
  %2325 = vmatpush1.msra.mxu0 %v173
  %2326 = vmatprep.subr.mxu0 0.0
  %2327 = vmatpush1.msra.mxu0 %v174
  %2328 = vmatprep.subr.mxu0 0.0
  %2329 = vmatpush1.msra.mxu0 %v175
  %2330 = vmatprep.subr.mxu0 0.0
  %2331 = vmatpush1.msra.mxu0 0.0
  %2332 = vmatprep.subr.mxu0 0.0
  %2333 = vmatpush1.msra.mxu0 0.0
  %2334 = vmatprep.subr.mxu0 0.0
  %2335 = vmatpush1.msra.mxu0 0.0
  %2336 = vmatprep.subr.mxu0 0.0
  %2337 = vmatpush1.msra.mxu0 0.0
  %2338 = vmatprep.subr.mxu0 0.0
  %2339 = vmatpush1.msra.mxu0 0.0
  %2340 = vmatprep.subr.mxu0 0.0
  %2341 = vmatpush1.msra.mxu0 0.0
  %2342 = vmatprep.subr.mxu0 0.0
  %2343 = vmatpush1.msra.mxu0 0.0
  %2344 = vmatprep.subr.mxu0 0.0
  %2345 = vmatpush1.msra.mxu0 0.0
  %2346 = vmatprep.subr.mxu0 0.0
  %2347 = vmatpush1.msra.mxu0 0.0
  %2348 = vmatprep.subr.mxu0 0.0
  %2349 = vmatpush1.msra.mxu0 0.0
  %2350 = vmatprep.subr.mxu0 0.0
  %2351 = vmatpush1.msra.mxu0 0.0
  %2352 = vmatprep.subr.mxu0 0.0
  %2353 = vmatpush1.msra.mxu0 0.0
  %2354 = vmatprep.subr.mxu0 0.0
  %2355 = vmatpush1.msra.mxu0 0.0
  %2356 = vmatprep.subr.mxu0 0.0
  %2357 = vmatpush1.msra.mxu0 0.0
  %2358 = vmatprep.subr.mxu0 0.0
  %2359 = vmatpush1.msra.mxu0 0.0
  %2360 = vmatprep.subr.mxu0 0.0
  %2361 = vmatpush1.msra.mxu0 0.0
  %2362 = vmatprep.subr.mxu0 0.0
  %2363 = vmatpush1.msra.mxu0 0.0
  %2364 = vmatprep.subr.mxu0 0.0
  %2365 = vmatpush1.msra.mxu0 0.0
  %2366 = vmatprep.subr.mxu0 0.0
  %2367 = vmatpush1.msra.mxu0 0.0
  %2368 = vmatprep.subr.mxu0 0.0
  %2369 = vmatpush1.msra.mxu0 0.0
  %2370 = vmatprep.subr.mxu0 0.0
  %2371 = vmatpush1.msra.mxu0 0.0
  %2372 = vmatprep.subr.mxu0 0.0
  %2373 = vmatpush1.msra.mxu0 0.0
  %2374 = vmatprep.subr.mxu0 0.0
  %2375 = vmatpush1.msra.mxu0 0.0
  %2376 = vmatprep.subr.mxu0 0.0
  %2377 = vmatpush1.msra.mxu0 0.0
  %2378 = vmatprep.subr.mxu0 0.0
  %2379 = vmatpush1.msra.mxu0 0.0
  %2380 = vmatprep.subr.mxu0 0.0
  %2381 = vmatpush1.msra.mxu0 0.0
  %2382 = vmatprep.subr.mxu0 0.0
  %2383 = vmatpush1.msra.mxu0 0.0
  %2384 = vmatprep.subr.mxu0 0.0
  %2385 = vmatpush1.msra.mxu0 0.0
  %2386 = vmatprep.mubr.f32.mxu0 0.0
  %2387 = vmatmul.mubr.f32.gmra.mrb[0].mxu0 %v2035
  %v2388 = vpop.f32.mrb[0].mxu0
  %v2389 = vadd.f32 0.0, %v2388
  %v2390 = vpop.f32.mrb[0].mxu0
  %2391 = vdwg.mxu0
  %2392 = vmatprep.subr.mxu0 0.0
  %2393 = vmatpush1.msra.mxu0 %v153
  %2394 = vmatprep.subr.mxu0 0.0
  %2395 = vmatpush1.msra.mxu0 %v154
  %2396 = vmatprep.subr.mxu0 0.0
  %2397 = vmatpush1.msra.mxu0 %v155
  %2398 = vmatprep.subr.mxu0 0.0
  %2399 = vmatpush1.msra.mxu0 %v156
  %2400 = vmatprep.subr.mxu0 0.0
  %2401 = vmatpush1.msra.mxu0 0.0
  %2402 = vmatprep.subr.mxu0 0.0
  %2403 = vmatpush1.msra.mxu0 0.0
  %2404 = vmatprep.subr.mxu0 0.0
  %2405 = vmatpush1.msra.mxu0 0.0
  %2406 = vmatprep.subr.mxu0 0.0
  %2407 = vmatpush1.msra.mxu0 0.0
  %2408 = vmatprep.subr.mxu0 0.0
  %2409 = vmatpush1.msra.mxu0 0.0
  %2410 = vmatprep.subr.mxu0 0.0
  %2411 = vmatpush1.msra.mxu0 0.0
  %2412 = vmatprep.subr.mxu0 0.0
  %2413 = vmatpush1.msra.mxu0 0.0
  %2414 = vmatprep.subr.mxu0 0.0
  %2415 = vmatpush1.msra.mxu0 0.0
  %2416 = vmatprep.subr.mxu0 0.0
  %2417 = vmatpush1.msra.mxu0 0.0
  %2418 = vmatprep.subr.mxu0 0.0
  %2419 = vmatpush1.msra.mxu0 0.0
  %2420 = vmatprep.subr.mxu0 0.0
  %2421 = vmatpush1.msra.mxu0 0.0
  %2422 = vmatprep.subr.mxu0 0.0
  %2423 = vmatpush1.msra.mxu0 0.0
  %2424 = vmatprep.subr.mxu0 0.0
  %2425 = vmatpush1.msra.mxu0 0.0
  %2426 = vmatprep.subr.mxu0 0.0
  %2427 = vmatpush1.msra.mxu0 0.0
  %2428 = vmatprep.subr.mxu0 0.0
  %2429 = vmatpush1.msra.mxu0 0.0
  %2430 = vmatprep.subr.mxu0 0.0
  %2431 = vmatpush1.msra.mxu0 0.0
  %2432 = vmatprep.subr.mxu0 0.0
  %2433 = vmatpush1.msra.mxu0 0.0
  %2434 = vmatprep.subr.mxu0 0.0
  %2435 = vmatpush1.msra.mxu0 0.0
  %2436 = vmatprep.subr.mxu0 0.0
  %2437 = vmatpush1.msra.mxu0 0.0
  %2438 = vmatprep.subr.mxu0 0.0
  %2439 = vmatpush1.msra.mxu0 0.0
  %2440 = vmatprep.subr.mxu0 0.0
  %2441 = vmatpush1.msra.mxu0 0.0
  %2442 = vmatprep.subr.mxu0 0.0
  %2443 = vmatpush1.msra.mxu0 0.0
  %2444 = vmatprep.subr.mxu0 0.0
  %2445 = vmatpush1.msra.mxu0 0.0
  %2446 = vmatprep.subr.mxu0 0.0
  %2447 = vmatpush1.msra.mxu0 0.0
  %2448 = vmatprep.subr.mxu0 0.0
  %2449 = vmatpush1.msra.mxu0 0.0
  %2450 = vmatprep.subr.mxu0 0.0
  %2451 = vmatpush1.msra.mxu0 0.0
  %2452 = vmatprep.subr.mxu0 0.0
  %2453 = vmatpush1.msra.mxu0 0.0
  %2454 = vmatprep.subr.mxu0 0.0
  %2455 = vmatpush1.msra.mxu0 0.0
  %2456 = vmatprep.mubr.f32.mxu0 0.0
  %2457 = vmatmul.mubr.f32.gmra.mrb[0].mxu0 %v2108
  %v2458 = vpop.f32.mrb[0].mxu0
  %v2459 = vadd.f32 %v2389, %v2458
  %v2460 = vpop.f32.mrb[0].mxu0
  %2461 = vdwg.mxu0
  %v2462 = vadd.f32 %v2459, %v631
  %2463 = vmatprep.subr.mxu0 0.0
  %2464 = vmatpush1.msra.mxu0 %v177
  %2465 = vmatprep.subr.mxu0 0.0
  %2466 = vmatpush1.msra.mxu0 %v178
  %2467 = vmatprep.subr.mxu0 0.0
  %2468 = vmatpush1.msra.mxu0 %v179
  %2469 = vmatprep.subr.mxu0 0.0
  %2470 = vmatpush1.msra.mxu0 %v180
  %2471 = vmatprep.subr.mxu0 0.0
  %2472 = vmatpush1.msra.mxu0 0.0
  %2473 = vmatprep.subr.mxu0 0.0
  %2474 = vmatpush1.msra.mxu0 0.0
  %2475 = vmatprep.subr.mxu0 0.0
  %2476 = vmatpush1.msra.mxu0 0.0
  %2477 = vmatprep.subr.mxu0 0.0
  %2478 = vmatpush1.msra.mxu0 0.0
  %2479 = vmatprep.subr.mxu0 0.0
  %2480 = vmatpush1.msra.mxu0 0.0
  %2481 = vmatprep.subr.mxu0 0.0
  %2482 = vmatpush1.msra.mxu0 0.0
  %2483 = vmatprep.subr.mxu0 0.0
  %2484 = vmatpush1.msra.mxu0 0.0
  %2485 = vmatprep.subr.mxu0 0.0
  %2486 = vmatpush1.msra.mxu0 0.0
  %2487 = vmatprep.subr.mxu0 0.0
  %2488 = vmatpush1.msra.mxu0 0.0
  %2489 = vmatprep.subr.mxu0 0.0
  %2490 = vmatpush1.msra.mxu0 0.0
  %2491 = vmatprep.subr.mxu0 0.0
  %2492 = vmatpush1.msra.mxu0 0.0
  %2493 = vmatprep.subr.mxu0 0.0
  %2494 = vmatpush1.msra.mxu0 0.0
  %2495 = vmatprep.subr.mxu0 0.0
  %2496 = vmatpush1.msra.mxu0 0.0
  %2497 = vmatprep.subr.mxu0 0.0
  %2498 = vmatpush1.msra.mxu0 0.0
  %2499 = vmatprep.subr.mxu0 0.0
  %2500 = vmatpush1.msra.mxu0 0.0
  %2501 = vmatprep.subr.mxu0 0.0
  %2502 = vmatpush1.msra.mxu0 0.0
  %2503 = vmatprep.subr.mxu0 0.0
  %2504 = vmatpush1.msra.mxu0 0.0
  %2505 = vmatprep.subr.mxu0 0.0
  %2506 = vmatpush1.msra.mxu0 0.0
  %2507 = vmatprep.subr.mxu0 0.0
  %2508 = vmatpush1.msra.mxu0 0.0
  %2509 = vmatprep.subr.mxu0 0.0
  %2510 = vmatpush1.msra.mxu0 0.0
  %2511 = vmatprep.subr.mxu0 0.0
  %2512 = vmatpush1.msra.mxu0 0.0
  %2513 = vmatprep.subr.mxu0 0.0
  %2514 = vmatpush1.msra.mxu0 0.0
  %2515 = vmatprep.subr.mxu0 0.0
  %2516 = vmatpush1.msra.mxu0 0.0
  %2517 = vmatprep.subr.mxu0 0.0
  %2518 = vmatpush1.msra.mxu0 0.0
  %2519 = vmatprep.subr.mxu0 0.0
  %2520 = vmatpush1.msra.mxu0 0.0
  %2521 = vmatprep.subr.mxu0 0.0
  %2522 = vmatpush1.msra.mxu0 0.0
  %2523 = vmatprep.subr.mxu0 0.0
  %2524 = vmatpush1.msra.mxu0 0.0
  %2525 = vmatprep.subr.mxu0 0.0
  %2526 = vmatpush1.msra.mxu0 0.0
  %2527 = vmatprep.mubr.f32.mxu0 0.0
  %2528 = vmatmul.mubr.f32.gmra.mrb[0].mxu0 %v2035
  %v2529 = vpop.f32.mrb[0].mxu0
  %v2530 = vadd.f32 0.0, %v2529
  %v2531 = vpop.f32.mrb[0].mxu0
  %2532 = vdwg.mxu0
  %2533 = vmatprep.subr.mxu0 0.0
  %2534 = vmatpush1.msra.mxu0 %v158
  %2535 = vmatprep.subr.mxu0 0.0
  %2536 = vmatpush1.msra.mxu0 %v159
  %2537 = vmatprep.subr.mxu0 0.0
  %2538 = vmatpush1.msra.mxu0 %v160
  %2539 = vmatprep.subr.mxu0 0.0
  %2540 = vmatpush1.msra.mxu0 %v161
  %2541 = vmatprep.subr.mxu0 0.0
  %2542 = vmatpush1.msra.mxu0 0.0
  %2543 = vmatprep.subr.mxu0 0.0
  %2544 = vmatpush1.msra.mxu0 0.0
  %2545 = vmatprep.subr.mxu0 0.0
  %2546 = vmatpush1.msra.mxu0 0.0
  %2547 = vmatprep.subr.mxu0 0.0
  %2548 = vmatpush1.msra.mxu0 0.0
  %2549 = vmatprep.subr.mxu0 0.0
  %2550 = vmatpush1.msra.mxu0 0.0
  %2551 = vmatprep.subr.mxu0 0.0
  %2552 = vmatpush1.msra.mxu0 0.0
  %2553 = vmatprep.subr.mxu0 0.0
  %2554 = vmatpush1.msra.mxu0 0.0
  %2555 = vmatprep.subr.mxu0 0.0
  %2556 = vmatpush1.msra.mxu0 0.0
  %2557 = vmatprep.subr.mxu0 0.0
  %2558 = vmatpush1.msra.mxu0 0.0
  %2559 = vmatprep.subr.mxu0 0.0
  %2560 = vmatpush1.msra.mxu0 0.0
  %2561 = vmatprep.subr.mxu0 0.0
  %2562 = vmatpush1.msra.mxu0 0.0
  %2563 = vmatprep.subr.mxu0 0.0
  %2564 = vmatpush1.msra.mxu0 0.0
  %2565 = vmatprep.subr.mxu0 0.0
  %2566 = vmatpush1.msra.mxu0 0.0
  %2567 = vmatprep.subr.mxu0 0.0
  %2568 = vmatpush1.msra.mxu0 0.0
  %2569 = vmatprep.subr.mxu0 0.0
  %2570 = vmatpush1.msra.mxu0 0.0
  %2571 = vmatprep.subr.mxu0 0.0
  %2572 = vmatpush1.msra.mxu0 0.0
  %2573 = vmatprep.subr.mxu0 0.0
  %2574 = vmatpush1.msra.mxu0 0.0
  %2575 = vmatprep.subr.mxu0 0.0
  %2576 = vmatpush1.msra.mxu0 0.0
  %2577 = vmatprep.subr.mxu0 0.0
  %2578 = vmatpush1.msra.mxu0 0.0
  %2579 = vmatprep.subr.mxu0 0.0
  %2580 = vmatpush1.msra.mxu0 0.0
  %2581 = vmatprep.subr.mxu0 0.0
  %2582 = vmatpush1.msra.mxu0 0.0
  %2583 = vmatprep.subr.mxu0 0.0
  %2584 = vmatpush1.msra.mxu0 0.0
  %2585 = vmatprep.subr.mxu0 0.0
  %2586 = vmatpush1.msra.mxu0 0.0
  %2587 = vmatprep.subr.mxu0 0.0
  %2588 = vmatpush1.msra.mxu0 0.0
  %2589 = vmatprep.subr.mxu0 0.0
  %2590 = vmatpush1.msra.mxu0 0.0
  %2591 = vmatprep.subr.mxu0 0.0
  %2592 = vmatpush1.msra.mxu0 0.0
  %2593 = vmatprep.subr.mxu0 0.0
  %2594 = vmatpush1.msra.mxu0 0.0
  %2595 = vmatprep.subr.mxu0 0.0
  %2596 = vmatpush1.msra.mxu0 0.0
  %2597 = vmatprep.mubr.f32.mxu0 0.0
  %2598 = vmatmul.mubr.f32.gmra.mrb[0].mxu0 %v2108
  %v2599 = vpop.f32.mrb[0].mxu0
  %v2600 = vadd.f32 %v2530, %v2599
  %v2601 = vpop.f32.mrb[0].mxu0
  %2602 = vdwg.mxu0
  %v2603 = vadd.f32 %v2600, %v778
  %v2604 = vxor.u32 %v2180, 2147483648
  %v2605 = vmul.f32 %v2604, 1.442695
  %v2606 = vpow.pop %v2605
  %v2607 = vadd.f32 %v2606, 1.0
  %v2608 = vrcp.pop %v2607
  %v2609 = vmul.f32 1.0, %v2608
  %v2610 = vxor.u32 %v2321, 2147483648
  %v2611 = vmul.f32 %v2610, 1.442695
  %v2612 = vpow.pop %v2611
  %v2613 = vadd.f32 %v2612, 1.0
  %v2614 = vrcp.pop %v2613
  %v2615 = vmul.f32 1.0, %v2614
  %v2616 = vtanh.pop %v2462
  %v2617 = vxor.u32 %v2603, 2147483648
  %v2618 = vmul.f32 %v2617, 1.442695
  %v2619 = vpow.pop %v2618
  %v2620 = vadd.f32 %v2619, 1.0
  %v2621 = vrcp.pop %v2620
  %v2622 = vmul.f32 1.0, %v2621
  %v2623 = vmul.f32 %v2615, %v2017
  %v2624 = vmul.f32 %v2609, %v2616
  %v2625 = vadd.f32 %v2623, %v2624
  %v2626 = vtanh.pop %v2625
  %v2627 = vmul.f32 %v2622, %v2626
  %p2628 = scmp.gt.s32.totalorder %s142, 3
  %s2629 = scalar_select %p2628, 0.0, -inf
  %vm2630 = vcmp.gt.s32.totalorder %v141, 3
  %v2631 = vmul.f32 %v140, %v2627
  %v2632 = vsel %vm2630, 1, 0
  %2633 = vset.pattern.permute.xlu0 0
  %2634 = vperm.xlu0 %2633, %v2632
  %v2635 = vpop.permute.xlu0 %2634
  %vm2636 = vcmp.eq.s32.totalorder %v2635, 1
  %v2637 = vstv %s2629
  %v2638 = vsel %vm2636, %v2631, %v2637
  %v2639 = vmax.f32 %v2031, %v2638
  %s2640 = scalar_lea.vmem %s1, 32
  %v2641 = vld [vmem:[%s2640] sm:$0xff]
  %v2643 = vsel %vm66, %v2627, 0
  %2645 = vmatprep.subr.mxu0 0.0
  %2646 = vmatpush1.msra.mxu0 %v162
  %2647 = vmatprep.subr.mxu0 0.0
  %2648 = vmatpush1.msra.mxu0 %v163
  %2649 = vmatprep.subr.mxu0 0.0
  %2650 = vmatpush1.msra.mxu0 %v164
  %2651 = vmatprep.subr.mxu0 0.0
  %2652 = vmatpush1.msra.mxu0 %v165
  %2653 = vmatprep.subr.mxu0 0.0
  %2654 = vmatpush1.msra.mxu0 0.0
  %2655 = vmatprep.subr.mxu0 0.0
  %2656 = vmatpush1.msra.mxu0 0.0
  %2657 = vmatprep.subr.mxu0 0.0
  %2658 = vmatpush1.msra.mxu0 0.0
  %2659 = vmatprep.subr.mxu0 0.0
  %2660 = vmatpush1.msra.mxu0 0.0
  %2661 = vmatprep.subr.mxu0 0.0
  %2662 = vmatpush1.msra.mxu0 0.0
  %2663 = vmatprep.subr.mxu0 0.0
  %2664 = vmatpush1.msra.mxu0 0.0
  %2665 = vmatprep.subr.mxu0 0.0
  %2666 = vmatpush1.msra.mxu0 0.0
  %2667 = vmatprep.subr.mxu0 0.0
  %2668 = vmatpush1.msra.mxu0 0.0
  %2669 = vmatprep.subr.mxu0 0.0
  %2670 = vmatpush1.msra.mxu0 0.0
  %2671 = vmatprep.subr.mxu0 0.0
  %2672 = vmatpush1.msra.mxu0 0.0
  %2673 = vmatprep.subr.mxu0 0.0
  %2674 = vmatpush1.msra.mxu0 0.0
  %2675 = vmatprep.subr.mxu0 0.0
  %2676 = vmatpush1.msra.mxu0 0.0
  %2677 = vmatprep.subr.mxu0 0.0
  %2678 = vmatpush1.msra.mxu0 0.0
  %2679 = vmatprep.subr.mxu0 0.0
  %2680 = vmatpush1.msra.mxu0 0.0
  %2681 = vmatprep.subr.mxu0 0.0
  %2682 = vmatpush1.msra.mxu0 0.0
  %2683 = vmatprep.subr.mxu0 0.0
  %2684 = vmatpush1.msra.mxu0 0.0
  %2685 = vmatprep.subr.mxu0 0.0
  %2686 = vmatpush1.msra.mxu0 0.0
  %2687 = vmatprep.subr.mxu0 0.0
  %2688 = vmatpush1.msra.mxu0 0.0
  %2689 = vmatprep.subr.mxu0 0.0
  %2690 = vmatpush1.msra.mxu0 0.0
  %2691 = vmatprep.subr.mxu0 0.0
  %2692 = vmatpush1.msra.mxu0 0.0
  %2693 = vmatprep.subr.mxu0 0.0
  %2694 = vmatpush1.msra.mxu0 0.0
  %2695 = vmatprep.subr.mxu0 0.0
  %2696 = vmatpush1.msra.mxu0 0.0
  %2697 = vmatprep.subr.mxu0 0.0
  %2698 = vmatpush1.msra.mxu0 0.0
  %2699 = vmatprep.subr.mxu0 0.0
  %2700 = vmatpush1.msra.mxu0 0.0
  %2701 = vmatprep.subr.mxu0 0.0
  %2702 = vmatpush1.msra.mxu0 0.0
  %2703 = vmatprep.subr.mxu0 0.0
  %2704 = vmatpush1.msra.mxu0 0.0
  %2705 = vmatprep.subr.mxu0 0.0
  %2706 = vmatpush1.msra.mxu0 0.0
  %2707 = vmatprep.subr.mxu0 0.0
  %2708 = vmatpush1.msra.mxu0 0.0
  %2709 = vmatprep.mubr.f32.mxu0 0.0
  %2710 = vmatmul.mubr.f32.gmra.mrb[0].mxu0 %v2643
  %v2711 = vpop.f32.mrb[0].mxu0
  %v2712 = vadd.f32 0.0, %v2711
  %v2713 = vpop.f32.mrb[0].mxu0
  %2714 = vdwg.mxu0
  %v2716 = vsel %vm66, %v2641, 0
  %2718 = vmatprep.subr.mxu0 0.0
  %2719 = vmatpush1.msra.mxu0 %v143
  %2720 = vmatprep.subr.mxu0 0.0
  %2721 = vmatpush1.msra.mxu0 %v144
  %2722 = vmatprep.subr.mxu0 0.0
  %2723 = vmatpush1.msra.mxu0 %v145
  %2724 = vmatprep.subr.mxu0 0.0
  %2725 = vmatpush1.msra.mxu0 %v146
  %2726 = vmatprep.subr.mxu0 0.0
  %2727 = vmatpush1.msra.mxu0 0.0
  %2728 = vmatprep.subr.mxu0 0.0
  %2729 = vmatpush1.msra.mxu0 0.0
  %2730 = vmatprep.subr.mxu0 0.0
  %2731 = vmatpush1.msra.mxu0 0.0
  %2732 = vmatprep.subr.mxu0 0.0
  %2733 = vmatpush1.msra.mxu0 0.0
  %2734 = vmatprep.subr.mxu0 0.0
  %2735 = vmatpush1.msra.mxu0 0.0
  %2736 = vmatprep.subr.mxu0 0.0
  %2737 = vmatpush1.msra.mxu0 0.0
  %2738 = vmatprep.subr.mxu0 0.0
  %2739 = vmatpush1.msra.mxu0 0.0
  %2740 = vmatprep.subr.mxu0 0.0
  %2741 = vmatpush1.msra.mxu0 0.0
  %2742 = vmatprep.subr.mxu0 0.0
  %2743 = vmatpush1.msra.mxu0 0.0
  %2744 = vmatprep.subr.mxu0 0.0
  %2745 = vmatpush1.msra.mxu0 0.0
  %2746 = vmatprep.subr.mxu0 0.0
  %2747 = vmatpush1.msra.mxu0 0.0
  %2748 = vmatprep.subr.mxu0 0.0
  %2749 = vmatpush1.msra.mxu0 0.0
  %2750 = vmatprep.subr.mxu0 0.0
  %2751 = vmatpush1.msra.mxu0 0.0
  %2752 = vmatprep.subr.mxu0 0.0
  %2753 = vmatpush1.msra.mxu0 0.0
  %2754 = vmatprep.subr.mxu0 0.0
  %2755 = vmatpush1.msra.mxu0 0.0
  %2756 = vmatprep.subr.mxu0 0.0
  %2757 = vmatpush1.msra.mxu0 0.0
  %2758 = vmatprep.subr.mxu0 0.0
  %2759 = vmatpush1.msra.mxu0 0.0
  %2760 = vmatprep.subr.mxu0 0.0
  %2761 = vmatpush1.msra.mxu0 0.0
  %2762 = vmatprep.subr.mxu0 0.0
  %2763 = vmatpush1.msra.mxu0 0.0
  %2764 = vmatprep.subr.mxu0 0.0
  %2765 = vmatpush1.msra.mxu0 0.0
  %2766 = vmatprep.subr.mxu0 0.0
  %2767 = vmatpush1.msra.mxu0 0.0
  %2768 = vmatprep.subr.mxu0 0.0
  %2769 = vmatpush1.msra.mxu0 0.0
  %2770 = vmatprep.subr.mxu0 0.0
  %2771 = vmatpush1.msra.mxu0 0.0
  %2772 = vmatprep.subr.mxu0 0.0
  %2773 = vmatpush1.msra.mxu0 0.0
  %2774 = vmatprep.subr.mxu0 0.0
  %2775 = vmatpush1.msra.mxu0 0.0
  %2776 = vmatprep.subr.mxu0 0.0
  %2777 = vmatpush1.msra.mxu0 0.0
  %2778 = vmatprep.subr.mxu0 0.0
  %2779 = vmatpush1.msra.mxu0 0.0
  %2780 = vmatprep.subr.mxu0 0.0
  %2781 = vmatpush1.msra.mxu0 0.0
  %2782 = vmatprep.mubr.f32.mxu0 0.0
  %2783 = vmatmul.mubr.f32.gmra.mrb[0].mxu0 %v2716
  %v2784 = vpop.f32.mrb[0].mxu0
  %v2785 = vadd.f32 %v2712, %v2784
  %v2786 = vpop.f32.mrb[0].mxu0
  %2787 = vdwg.mxu0
  %v2788 = vadd.f32 %v2785, %v337
  %2789 = vmatprep.subr.mxu0 0.0
  %2790 = vmatpush1.msra.mxu0 %v167
  %2791 = vmatprep.subr.mxu0 0.0
  %2792 = vmatpush1.msra.mxu0 %v168
  %2793 = vmatprep.subr.mxu0 0.0
  %2794 = vmatpush1.msra.mxu0 %v169
  %2795 = vmatprep.subr.mxu0 0.0
  %2796 = vmatpush1.msra.mxu0 %v170
  %2797 = vmatprep.subr.mxu0 0.0
  %2798 = vmatpush1.msra.mxu0 0.0
  %2799 = vmatprep.subr.mxu0 0.0
  %2800 = vmatpush1.msra.mxu0 0.0
  %2801 = vmatprep.subr.mxu0 0.0
  %2802 = vmatpush1.msra.mxu0 0.0
  %2803 = vmatprep.subr.mxu0 0.0
  %2804 = vmatpush1.msra.mxu0 0.0
  %2805 = vmatprep.subr.mxu0 0.0
  %2806 = vmatpush1.msra.mxu0 0.0
  %2807 = vmatprep.subr.mxu0 0.0
  %2808 = vmatpush1.msra.mxu0 0.0
  %2809 = vmatprep.subr.mxu0 0.0
  %2810 = vmatpush1.msra.mxu0 0.0
  %2811 = vmatprep.subr.mxu0 0.0
  %2812 = vmatpush1.msra.mxu0 0.0
  %2813 = vmatprep.subr.mxu0 0.0
  %2814 = vmatpush1.msra.mxu0 0.0
  %2815 = vmatprep.subr.mxu0 0.0
  %2816 = vmatpush1.msra.mxu0 0.0
  %2817 = vmatprep.subr.mxu0 0.0
  %2818 = vmatpush1.msra.mxu0 0.0
  %2819 = vmatprep.subr.mxu0 0.0
  %2820 = vmatpush1.msra.mxu0 0.0
  %2821 = vmatprep.subr.mxu0 0.0
  %2822 = vmatpush1.msra.mxu0 0.0
  %2823 = vmatprep.subr.mxu0 0.0
  %2824 = vmatpush1.msra.mxu0 0.0
  %2825 = vmatprep.subr.mxu0 0.0
  %2826 = vmatpush1.msra.mxu0 0.0
  %2827 = vmatprep.subr.mxu0 0.0
  %2828 = vmatpush1.msra.mxu0 0.0
  %2829 = vmatprep.subr.mxu0 0.0
  %2830 = vmatpush1.msra.mxu0 0.0
  %2831 = vmatprep.subr.mxu0 0.0
  %2832 = vmatpush1.msra.mxu0 0.0
  %2833 = vmatprep.subr.mxu0 0.0
  %2834 = vmatpush1.msra.mxu0 0.0
  %2835 = vmatprep.subr.mxu0 0.0
  %2836 = vmatpush1.msra.mxu0 0.0
  %2837 = vmatprep.subr.mxu0 0.0
  %2838 = vmatpush1.msra.mxu0 0.0
  %2839 = vmatprep.subr.mxu0 0.0
  %2840 = vmatpush1.msra.mxu0 0.0
  %2841 = vmatprep.subr.mxu0 0.0
  %2842 = vmatpush1.msra.mxu0 0.0
  %2843 = vmatprep.subr.mxu0 0.0
  %2844 = vmatpush1.msra.mxu0 0.0
  %2845 = vmatprep.subr.mxu0 0.0
  %2846 = vmatpush1.msra.mxu0 0.0
  %2847 = vmatprep.subr.mxu0 0.0
  %2848 = vmatpush1.msra.mxu0 0.0
  %2849 = vmatprep.subr.mxu0 0.0
  %2850 = vmatpush1.msra.mxu0 0.0
  %2851 = vmatprep.subr.mxu0 0.0
  %2852 = vmatpush1.msra.mxu0 0.0
  %2853 = vmatprep.mubr.f32.mxu0 0.0
  %2854 = vmatmul.mubr.f32.gmra.mrb[0].mxu0 %v2643
  %v2855 = vpop.f32.mrb[0].mxu0
  %v2856 = vadd.f32 0.0, %v2855
  %v2857 = vpop.f32.mrb[0].mxu0
  %2858 = vdwg.mxu0
  %2859 = vmatprep.subr.mxu0 0.0
  %2860 = vmatpush1.msra.mxu0 %v148
  %2861 = vmatprep.subr.mxu0 0.0
  %2862 = vmatpush1.msra.mxu0 %v149
  %2863 = vmatprep.subr.mxu0 0.0
  %2864 = vmatpush1.msra.mxu0 %v150
  %2865 = vmatprep.subr.mxu0 0.0
  %2866 = vmatpush1.msra.mxu0 %v151
  %2867 = vmatprep.subr.mxu0 0.0
  %2868 = vmatpush1.msra.mxu0 0.0
  %2869 = vmatprep.subr.mxu0 0.0
  %2870 = vmatpush1.msra.mxu0 0.0
  %2871 = vmatprep.subr.mxu0 0.0
  %2872 = vmatpush1.msra.mxu0 0.0
  %2873 = vmatprep.subr.mxu0 0.0
  %2874 = vmatpush1.msra.mxu0 0.0
  %2875 = vmatprep.subr.mxu0 0.0
  %2876 = vmatpush1.msra.mxu0 0.0
  %2877 = vmatprep.subr.mxu0 0.0
  %2878 = vmatpush1.msra.mxu0 0.0
  %2879 = vmatprep.subr.mxu0 0.0
  %2880 = vmatpush1.msra.mxu0 0.0
  %2881 = vmatprep.subr.mxu0 0.0
  %2882 = vmatpush1.msra.mxu0 0.0
  %2883 = vmatprep.subr.mxu0 0.0
  %2884 = vmatpush1.msra.mxu0 0.0
  %2885 = vmatprep.subr.mxu0 0.0
  %2886 = vmatpush1.msra.mxu0 0.0
  %2887 = vmatprep.subr.mxu0 0.0
  %2888 = vmatpush1.msra.mxu0 0.0
  %2889 = vmatprep.subr.mxu0 0.0
  %2890 = vmatpush1.msra.mxu0 0.0
  %2891 = vmatprep.subr.mxu0 0.0
  %2892 = vmatpush1.msra.mxu0 0.0
  %2893 = vmatprep.subr.mxu0 0.0
  %2894 = vmatpush1.msra.mxu0 0.0
  %2895 = vmatprep.subr.mxu0 0.0
  %2896 = vmatpush1.msra.mxu0 0.0
  %2897 = vmatprep.subr.mxu0 0.0
  %2898 = vmatpush1.msra.mxu0 0.0
  %2899 = vmatprep.subr.mxu0 0.0
  %2900 = vmatpush1.msra.mxu0 0.0
  %2901 = vmatprep.subr.mxu0 0.0
  %2902 = vmatpush1.msra.mxu0 0.0
  %2903 = vmatprep.subr.mxu0 0.0
  %2904 = vmatpush1.msra.mxu0 0.0
  %2905 = vmatprep.subr.mxu0 0.0
  %2906 = vmatpush1.msra.mxu0 0.0
  %2907 = vmatprep.subr.mxu0 0.0
  %2908 = vmatpush1.msra.mxu0 0.0
  %2909 = vmatprep.subr.mxu0 0.0
  %2910 = vmatpush1.msra.mxu0 0.0
  %2911 = vmatprep.subr.mxu0 0.0
  %2912 = vmatpush1.msra.mxu0 0.0
  %2913 = vmatprep.subr.mxu0 0.0
  %2914 = vmatpush1.msra.mxu0 0.0
  %2915 = vmatprep.subr.mxu0 0.0
  %2916 = vmatpush1.msra.mxu0 0.0
  %2917 = vmatprep.subr.mxu0 0.0
  %2918 = vmatpush1.msra.mxu0 0.0
  %2919 = vmatprep.subr.mxu0 0.0
  %2920 = vmatpush1.msra.mxu0 0.0
  %2921 = vmatprep.subr.mxu0 0.0
  %2922 = vmatpush1.msra.mxu0 0.0
  %2923 = vmatprep.mubr.f32.mxu0 0.0
  %2924 = vmatmul.mubr.f32.gmra.mrb[0].mxu0 %v2716
  %v2925 = vpop.f32.mrb[0].mxu0
  %v2926 = vadd.f32 %v2856, %v2925
  %v2927 = vpop.f32.mrb[0].mxu0
  %2928 = vdwg.mxu0
  %v2929 = vadd.f32 %v2926, %v484
  %2930 = vmatprep.subr.mxu0 0.0
  %2931 = vmatpush1.msra.mxu0 %v172
  %2932 = vmatprep.subr.mxu0 0.0
  %2933 = vmatpush1.msra.mxu0 %v173
  %2934 = vmatprep.subr.mxu0 0.0
  %2935 = vmatpush1.msra.mxu0 %v174
  %2936 = vmatprep.subr.mxu0 0.0
  %2937 = vmatpush1.msra.mxu0 %v175
  %2938 = vmatprep.subr.mxu0 0.0
  %2939 = vmatpush1.msra.mxu0 0.0
  %2940 = vmatprep.subr.mxu0 0.0
  %2941 = vmatpush1.msra.mxu0 0.0
  %2942 = vmatprep.subr.mxu0 0.0
  %2943 = vmatpush1.msra.mxu0 0.0
  %2944 = vmatprep.subr.mxu0 0.0
  %2945 = vmatpush1.msra.mxu0 0.0
  %2946 = vmatprep.subr.mxu0 0.0
  %2947 = vmatpush1.msra.mxu0 0.0
  %2948 = vmatprep.subr.mxu0 0.0
  %2949 = vmatpush1.msra.mxu0 0.0
  %2950 = vmatprep.subr.mxu0 0.0
  %2951 = vmatpush1.msra.mxu0 0.0
  %2952 = vmatprep.subr.mxu0 0.0
  %2953 = vmatpush1.msra.mxu0 0.0
  %2954 = vmatprep.subr.mxu0 0.0
  %2955 = vmatpush1.msra.mxu0 0.0
  %2956 = vmatprep.subr.mxu0 0.0
  %2957 = vmatpush1.msra.mxu0 0.0
  %2958 = vmatprep.subr.mxu0 0.0
  %2959 = vmatpush1.msra.mxu0 0.0
  %2960 = vmatprep.subr.mxu0 0.0
  %2961 = vmatpush1.msra.mxu0 0.0
  %2962 = vmatprep.subr.mxu0 0.0
  %2963 = vmatpush1.msra.mxu0 0.0
  %2964 = vmatprep.subr.mxu0 0.0
  %2965 = vmatpush1.msra.mxu0 0.0
  %2966 = vmatprep.subr.mxu0 0.0
  %2967 = vmatpush1.msra.mxu0 0.0
  %2968 = vmatprep.subr.mxu0 0.0
  %2969 = vmatpush1.msra.mxu0 0.0
  %2970 = vmatprep.subr.mxu0 0.0
  %2971 = vmatpush1.msra.mxu0 0.0
  %2972 = vmatprep.subr.mxu0 0.0
  %2973 = vmatpush1.msra.mxu0 0.0
  %2974 = vmatprep.subr.mxu0 0.0
  %2975 = vmatpush1.msra.mxu0 0.0
  %2976 = vmatprep.subr.mxu0 0.0
  %2977 = vmatpush1.msra.mxu0 0.0
  %2978 = vmatprep.subr.mxu0 0.0
  %2979 = vmatpush1.msra.mxu0 0.0
  %2980 = vmatprep.subr.mxu0 0.0
  %2981 = vmatpush1.msra.mxu0 0.0
  %2982 = vmatprep.subr.mxu0 0.0
  %2983 = vmatpush1.msra.mxu0 0.0
  %2984 = vmatprep.subr.mxu0 0.0
  %2985 = vmatpush1.msra.mxu0 0.0
  %2986 = vmatprep.subr.mxu0 0.0
  %2987 = vmatpush1.msra.mxu0 0.0
  %2988 = vmatprep.subr.mxu0 0.0
  %2989 = vmatpush1.msra.mxu0 0.0
  %2990 = vmatprep.subr.mxu0 0.0
  %2991 = vmatpush1.msra.mxu0 0.0
  %2992 = vmatprep.subr.mxu0 0.0
  %2993 = vmatpush1.msra.mxu0 0.0
  %2994 = vmatprep.mubr.f32.mxu0 0.0
  %2995 = vmatmul.mubr.f32.gmra.mrb[0].mxu0 %v2643
  %v2996 = vpop.f32.mrb[0].mxu0
  %v2997 = vadd.f32 0.0, %v2996
  %v2998 = vpop.f32.mrb[0].mxu0
  %2999 = vdwg.mxu0
  %3000 = vmatprep.subr.mxu0 0.0
  %3001 = vmatpush1.msra.mxu0 %v153
  %3002 = vmatprep.subr.mxu0 0.0
  %3003 = vmatpush1.msra.mxu0 %v154
  %3004 = vmatprep.subr.mxu0 0.0
  %3005 = vmatpush1.msra.mxu0 %v155
  %3006 = vmatprep.subr.mxu0 0.0
  %3007 = vmatpush1.msra.mxu0 %v156
  %3008 = vmatprep.subr.mxu0 0.0
  %3009 = vmatpush1.msra.mxu0 0.0
  %3010 = vmatprep.subr.mxu0 0.0
  %3011 = vmatpush1.msra.mxu0 0.0
  %3012 = vmatprep.subr.mxu0 0.0
  %3013 = vmatpush1.msra.mxu0 0.0
  %3014 = vmatprep.subr.mxu0 0.0
  %3015 = vmatpush1.msra.mxu0 0.0
  %3016 = vmatprep.subr.mxu0 0.0
  %3017 = vmatpush1.msra.mxu0 0.0
  %3018 = vmatprep.subr.mxu0 0.0
  %3019 = vmatpush1.msra.mxu0 0.0
  %3020 = vmatprep.subr.mxu0 0.0
  %3021 = vmatpush1.msra.mxu0 0.0
  %3022 = vmatprep.subr.mxu0 0.0
  %3023 = vmatpush1.msra.mxu0 0.0
  %3024 = vmatprep.subr.mxu0 0.0
  %3025 = vmatpush1.msra.mxu0 0.0
  %3026 = vmatprep.subr.mxu0 0.0
  %3027 = vmatpush1.msra.mxu0 0.0
  %3028 = vmatprep.subr.mxu0 0.0
  %3029 = vmatpush1.msra.mxu0 0.0
  %3030 = vmatprep.subr.mxu0 0.0
  %3031 = vmatpush1.msra.mxu0 0.0
  %3032 = vmatprep.subr.mxu0 0.0
  %3033 = vmatpush1.msra.mxu0 0.0
  %3034 = vmatprep.subr.mxu0 0.0
  %3035 = vmatpush1.msra.mxu0 0.0
  %3036 = vmatprep.subr.mxu0 0.0
  %3037 = vmatpush1.msra.mxu0 0.0
  %3038 = vmatprep.subr.mxu0 0.0
  %3039 = vmatpush1.msra.mxu0 0.0
  %3040 = vmatprep.subr.mxu0 0.0
  %3041 = vmatpush1.msra.mxu0 0.0
  %3042 = vmatprep.subr.mxu0 0.0
  %3043 = vmatpush1.msra.mxu0 0.0
  %3044 = vmatprep.subr.mxu0 0.0
  %3045 = vmatpush1.msra.mxu0 0.0
  %3046 = vmatprep.subr.mxu0 0.0
  %3047 = vmatpush1.msra.mxu0 0.0
  %3048 = vmatprep.subr.mxu0 0.0
  %3049 = vmatpush1.msra.mxu0 0.0
  %3050 = vmatprep.subr.mxu0 0.0
  %3051 = vmatpush1.msra.mxu0 0.0
  %3052 = vmatprep.subr.mxu0 0.0
  %3053 = vmatpush1.msra.mxu0 0.0
  %3054 = vmatprep.subr.mxu0 0.0
  %3055 = vmatpush1.msra.mxu0 0.0
  %3056 = vmatprep.subr.mxu0 0.0
  %3057 = vmatpush1.msra.mxu0 0.0
  %3058 = vmatprep.subr.mxu0 0.0
  %3059 = vmatpush1.msra.mxu0 0.0
  %3060 = vmatprep.subr.mxu0 0.0
  %3061 = vmatpush1.msra.mxu0 0.0
  %3062 = vmatprep.subr.mxu0 0.0
  %3063 = vmatpush1.msra.mxu0 0.0
  %3064 = vmatprep.mubr.f32.mxu0 0.0
  %3065 = vmatmul.mubr.f32.gmra.mrb[0].mxu0 %v2716
  %v3066 = vpop.f32.mrb[0].mxu0
  %v3067 = vadd.f32 %v2997, %v3066
  %v3068 = vpop.f32.mrb[0].mxu0
  %3069 = vdwg.mxu0
  %v3070 = vadd.f32 %v3067, %v631
  %3071 = vmatprep.subr.mxu0 0.0
  %3072 = vmatpush1.msra.mxu0 %v177
  %3073 = vmatprep.subr.mxu0 0.0
  %3074 = vmatpush1.msra.mxu0 %v178
  %3075 = vmatprep.subr.mxu0 0.0
  %3076 = vmatpush1.msra.mxu0 %v179
  %3077 = vmatprep.subr.mxu0 0.0
  %3078 = vmatpush1.msra.mxu0 %v180
  %3079 = vmatprep.subr.mxu0 0.0
  %3080 = vmatpush1.msra.mxu0 0.0
  %3081 = vmatprep.subr.mxu0 0.0
  %3082 = vmatpush1.msra.mxu0 0.0
  %3083 = vmatprep.subr.mxu0 0.0
  %3084 = vmatpush1.msra.mxu0 0.0
  %3085 = vmatprep.subr.mxu0 0.0
  %3086 = vmatpush1.msra.mxu0 0.0
  %3087 = vmatprep.subr.mxu0 0.0
  %3088 = vmatpush1.msra.mxu0 0.0
  %3089 = vmatprep.subr.mxu0 0.0
  %3090 = vmatpush1.msra.mxu0 0.0
  %3091 = vmatprep.subr.mxu0 0.0
  %3092 = vmatpush1.msra.mxu0 0.0
  %3093 = vmatprep.subr.mxu0 0.0
  %3094 = vmatpush1.msra.mxu0 0.0
  %3095 = vmatprep.subr.mxu0 0.0
  %3096 = vmatpush1.msra.mxu0 0.0
  %3097 = vmatprep.subr.mxu0 0.0
  %3098 = vmatpush1.msra.mxu0 0.0
  %3099 = vmatprep.subr.mxu0 0.0
  %3100 = vmatpush1.msra.mxu0 0.0
  %3101 = vmatprep.subr.mxu0 0.0
  %3102 = vmatpush1.msra.mxu0 0.0
  %3103 = vmatprep.subr.mxu0 0.0
  %3104 = vmatpush1.msra.mxu0 0.0
  %3105 = vmatprep.subr.mxu0 0.0
  %3106 = vmatpush1.msra.mxu0 0.0
  %3107 = vmatprep.subr.mxu0 0.0
  %3108 = vmatpush1.msra.mxu0 0.0
  %3109 = vmatprep.subr.mxu0 0.0
  %3110 = vmatpush1.msra.mxu0 0.0
  %3111 = vmatprep.subr.mxu0 0.0
  %3112 = vmatpush1.msra.mxu0 0.0
  %3113 = vmatprep.subr.mxu0 0.0
  %3114 = vmatpush1.msra.mxu0 0.0
  %3115 = vmatprep.subr.mxu0 0.0
  %3116 = vmatpush1.msra.mxu0 0.0
  %3117 = vmatprep.subr.mxu0 0.0
  %3118 = vmatpush1.msra.mxu0 0.0
  %3119 = vmatprep.subr.mxu0 0.0
  %3120 = vmatpush1.msra.mxu0 0.0
  %3121 = vmatprep.subr.mxu0 0.0
  %3122 = vmatpush1.msra.mxu0 0.0
  %3123 = vmatprep.subr.mxu0 0.0
  %3124 = vmatpush1.msra.mxu0 0.0
  %3125 = vmatprep.subr.mxu0 0.0
  %3126 = vmatpush1.msra.mxu0 0.0
  %3127 = vmatprep.subr.mxu0 0.0
  %3128 = vmatpush1.msra.mxu0 0.0
  %3129 = vmatprep.subr.mxu0 0.0
  %3130 = vmatpush1.msra.mxu0 0.0
  %3131 = vmatprep.subr.mxu0 0.0
  %3132 = vmatpush1.msra.mxu0 0.0
  %3133 = vmatprep.subr.mxu0 0.0
  %3134 = vmatpush1.msra.mxu0 0.0
  %3135 = vmatprep.mubr.f32.mxu0 0.0
  %3136 = vmatmul.mubr.f32.gmra.mrb[0].mxu0 %v2643
  %v3137 = vpop.f32.mrb[0].mxu0
  %v3138 = vadd.f32 0.0, %v3137
  %v3139 = vpop.f32.mrb[0].mxu0
  %3140 = vdwg.mxu0
  %3141 = vmatprep.subr.mxu0 0.0
  %3142 = vmatpush1.msra.mxu0 %v158
  %3143 = vmatprep.subr.mxu0 0.0
  %3144 = vmatpush1.msra.mxu0 %v159
  %3145 = vmatprep.subr.mxu0 0.0
  %3146 = vmatpush1.msra.mxu0 %v160
  %3147 = vmatprep.subr.mxu0 0.0
  %3148 = vmatpush1.msra.mxu0 %v161
  %3149 = vmatprep.subr.mxu0 0.0
  %3150 = vmatpush1.msra.mxu0 0.0
  %3151 = vmatprep.subr.mxu0 0.0
  %3152 = vmatpush1.msra.mxu0 0.0
  %3153 = vmatprep.subr.mxu0 0.0
  %3154 = vmatpush1.msra.mxu0 0.0
  %3155 = vmatprep.subr.mxu0 0.0
  %3156 = vmatpush1.msra.mxu0 0.0
  %3157 = vmatprep.subr.mxu0 0.0
  %3158 = vmatpush1.msra.mxu0 0.0
  %3159 = vmatprep.subr.mxu0 0.0
  %3160 = vmatpush1.msra.mxu0 0.0
  %3161 = vmatprep.subr.mxu0 0.0
  %3162 = vmatpush1.msra.mxu0 0.0
  %3163 = vmatprep.subr.mxu0 0.0
  %3164 = vmatpush1.msra.mxu0 0.0
  %3165 = vmatprep.subr.mxu0 0.0
  %3166 = vmatpush1.msra.mxu0 0.0
  %3167 = vmatprep.subr.mxu0 0.0
  %3168 = vmatpush1.msra.mxu0 0.0
  %3169 = vmatprep.subr.mxu0 0.0
  %3170 = vmatpush1.msra.mxu0 0.0
  %3171 = vmatprep.subr.mxu0 0.0
  %3172 = vmatpush1.msra.mxu0 0.0
  %3173 = vmatprep.subr.mxu0 0.0
  %3174 = vmatpush1.msra.mxu0 0.0
  %3175 = vmatprep.subr.mxu0 0.0
  %3176 = vmatpush1.msra.mxu0 0.0
  %3177 = vmatprep.subr.mxu0 0.0
  %3178 = vmatpush1.msra.mxu0 0.0
  %3179 = vmatprep.subr.mxu0 0.0
  %3180 = vmatpush1.msra.mxu0 0.0
  %3181 = vmatprep.subr.mxu0 0.0
  %3182 = vmatpush1.msra.mxu0 0.0
  %3183 = vmatprep.subr.mxu0 0.0
  %3184 = vmatpush1.msra.mxu0 0.0
  %3185 = vmatprep.subr.mxu0 0.0
  %3186 = vmatpush1.msra.mxu0 0.0
  %3187 = vmatprep.subr.mxu0 0.0
  %3188 = vmatpush1.msra.mxu0 0.0
  %3189 = vmatprep.subr.mxu0 0.0
  %3190 = vmatpush1.msra.mxu0 0.0
  %3191 = vmatprep.subr.mxu0 0.0
  %3192 = vmatpush1.msra.mxu0 0.0
  %3193 = vmatprep.subr.mxu0 0.0
  %3194 = vmatpush1.msra.mxu0 0.0
  %3195 = vmatprep.subr.mxu0 0.0
  %3196 = vmatpush1.msra.mxu0 0.0
  %3197 = vmatprep.subr.mxu0 0.0
  %3198 = vmatpush1.msra.mxu0 0.0
  %3199 = vmatprep.subr.mxu0 0.0
  %3200 = vmatpush1.msra.mxu0 0.0
  %3201 = vmatprep.subr.mxu0 0.0
  %3202 = vmatpush1.msra.mxu0 0.0
  %3203 = vmatprep.subr.mxu0 0.0
  %3204 = vmatpush1.msra.mxu0 0.0
  %3205 = vmatprep.mubr.f32.mxu0 0.0
  %3206 = vmatmul.mubr.f32.gmra.mrb[0].mxu0 %v2716
  %v3207 = vpop.f32.mrb[0].mxu0
  %v3208 = vadd.f32 %v3138, %v3207
  %v3209 = vpop.f32.mrb[0].mxu0
  %3210 = vdwg.mxu0
  %v3211 = vadd.f32 %v3208, %v778
  %v3212 = vxor.u32 %v2788, 2147483648
  %v3213 = vmul.f32 %v3212, 1.442695
  %v3214 = vpow.pop %v3213
  %v3215 = vadd.f32 %v3214, 1.0
  %v3216 = vrcp.pop %v3215
  %v3217 = vmul.f32 1.0, %v3216
  %v3218 = vxor.u32 %v2929, 2147483648
  %v3219 = vmul.f32 %v3218, 1.442695
  %v3220 = vpow.pop %v3219
  %v3221 = vadd.f32 %v3220, 1.0
  %v3222 = vrcp.pop %v3221
  %v3223 = vmul.f32 1.0, %v3222
  %v3224 = vtanh.pop %v3070
  %v3225 = vxor.u32 %v3211, 2147483648
  %v3226 = vmul.f32 %v3225, 1.442695
  %v3227 = vpow.pop %v3226
  %v3228 = vadd.f32 %v3227, 1.0
  %v3229 = vrcp.pop %v3228
  %v3230 = vmul.f32 1.0, %v3229
  %v3231 = vmul.f32 %v3223, %v2625
  %v3232 = vmul.f32 %v3217, %v3224
  %v3233 = vadd.f32 %v3231, %v3232
  %v3234 = vtanh.pop %v3233
  %v3235 = vmul.f32 %v3230, %v3234
  %p3236 = scmp.gt.s32.totalorder %s142, 4
  %s3237 = scalar_select %p3236, 0.0, -inf
  %vm3238 = vcmp.gt.s32.totalorder %v141, 4
  %v3239 = vmul.f32 %v140, %v3235
  %v3240 = vsel %vm3238, 1, 0
  %3241 = vset.pattern.permute.xlu0 0
  %3242 = vperm.xlu0 %3241, %v3240
  %v3243 = vpop.permute.xlu0 %3242
  %vm3244 = vcmp.eq.s32.totalorder %v3243, 1
  %v3245 = vstv %s3237
  %v3246 = vsel %vm3244, %v3239, %v3245
  %v3247 = vmax.f32 %v2639, %v3246
  %s3248 = scalar_lea.vmem %s1, 40
  %v3249 = vld [vmem:[%s3248] sm:$0xff]
  %v3251 = vsel %vm66, %v3235, 0
  %3253 = vmatprep.subr.mxu0 0.0
  %3254 = vmatpush1.msra.mxu0 %v162
  %3255 = vmatprep.subr.mxu0 0.0
  %3256 = vmatpush1.msra.mxu0 %v163
  %3257 = vmatprep.subr.mxu0 0.0
  %3258 = vmatpush1.msra.mxu0 %v164
  %3259 = vmatprep.subr.mxu0 0.0
  %3260 = vmatpush1.msra.mxu0 %v165
  %3261 = vmatprep.subr.mxu0 0.0
  %3262 = vmatpush1.msra.mxu0 0.0
  %3263 = vmatprep.subr.mxu0 0.0
  %3264 = vmatpush1.msra.mxu0 0.0
  %3265 = vmatprep.subr.mxu0 0.0
  %3266 = vmatpush1.msra.mxu0 0.0
  %3267 = vmatprep.subr.mxu0 0.0
  %3268 = vmatpush1.msra.mxu0 0.0
  %3269 = vmatprep.subr.mxu0 0.0
  %3270 = vmatpush1.msra.mxu0 0.0
  %3271 = vmatprep.subr.mxu0 0.0
  %3272 = vmatpush1.msra.mxu0 0.0
  %3273 = vmatprep.subr.mxu0 0.0
  %3274 = vmatpush1.msra.mxu0 0.0
  %3275 = vmatprep.subr.mxu0 0.0
  %3276 = vmatpush1.msra.mxu0 0.0
  %3277 = vmatprep.subr.mxu0 0.0
  %3278 = vmatpush1.msra.mxu0 0.0
  %3279 = vmatprep.subr.mxu0 0.0
  %3280 = vmatpush1.msra.mxu0 0.0
  %3281 = vmatprep.subr.mxu0 0.0
  %3282 = vmatpush1.msra.mxu0 0.0
  %3283 = vmatprep.subr.mxu0 0.0
  %3284 = vmatpush1.msra.mxu0 0.0
  %3285 = vmatprep.subr.mxu0 0.0
  %3286 = vmatpush1.msra.mxu0 0.0
  %3287 = vmatprep.subr.mxu0 0.0
  %3288 = vmatpush1.msra.mxu0 0.0
  %3289 = vmatprep.subr.mxu0 0.0
  %3290 = vmatpush1.msra.mxu0 0.0
  %3291 = vmatprep.subr.mxu0 0.0
  %3292 = vmatpush1.msra.mxu0 0.0
  %3293 = vmatprep.subr.mxu0 0.0
  %3294 = vmatpush1.msra.mxu0 0.0
  %3295 = vmatprep.subr.mxu0 0.0
  %3296 = vmatpush1.msra.mxu0 0.0
  %3297 = vmatprep.subr.mxu0 0.0
  %3298 = vmatpush1.msra.mxu0 0.0
  %3299 = vmatprep.subr.mxu0 0.0
  %3300 = vmatpush1.msra.mxu0 0.0
  %3301 = vmatprep.subr.mxu0 0.0
  %3302 = vmatpush1.msra.mxu0 0.0
  %3303 = vmatprep.subr.mxu0 0.0
  %3304 = vmatpush1.msra.mxu0 0.0
  %3305 = vmatprep.subr.mxu0 0.0
  %3306 = vmatpush1.msra.mxu0 0.0
  %3307 = vmatprep.subr.mxu0 0.0
  %3308 = vmatpush1.msra.mxu0 0.0
  %3309 = vmatprep.subr.mxu0 0.0
  %3310 = vmatpush1.msra.mxu0 0.0
  %3311 = vmatprep.subr.mxu0 0.0
  %3312 = vmatpush1.msra.mxu0 0.0
  %3313 = vmatprep.subr.mxu0 0.0
  %3314 = vmatpush1.msra.mxu0 0.0
  %3315 = vmatprep.subr.mxu0 0.0
  %3316 = vmatpush1.msra.mxu0 0.0
  %3317 = vmatprep.mubr.f32.mxu0 0.0
  %3318 = vmatmul.mubr.f32.gmra.mrb[0].mxu0 %v3251
  %v3319 = vpop.f32.mrb[0].mxu0
  %v3320 = vadd.f32 0.0, %v3319
  %v3321 = vpop.f32.mrb[0].mxu0
  %3322 = vdwg.mxu0
  %v3324 = vsel %vm66, %v3249, 0
  %3326 = vmatprep.subr.mxu0 0.0
  %3327 = vmatpush1.msra.mxu0 %v143
  %3328 = vmatprep.subr.mxu0 0.0
  %3329 = vmatpush1.msra.mxu0 %v144
  %3330 = vmatprep.subr.mxu0 0.0
  %3331 = vmatpush1.msra.mxu0 %v145
  %3332 = vmatprep.subr.mxu0 0.0
  %3333 = vmatpush1.msra.mxu0 %v146
  %3334 = vmatprep.subr.mxu0 0.0
  %3335 = vmatpush1.msra.mxu0 0.0
  %3336 = vmatprep.subr.mxu0 0.0
  %3337 = vmatpush1.msra.mxu0 0.0
  %3338 = vmatprep.subr.mxu0 0.0
  %3339 = vmatpush1.msra.mxu0 0.0
  %3340 = vmatprep.subr.mxu0 0.0
  %3341 = vmatpush1.msra.mxu0 0.0
  %3342 = vmatprep.subr.mxu0 0.0
  %3343 = vmatpush1.msra.mxu0 0.0
  %3344 = vmatprep.subr.mxu0 0.0
  %3345 = vmatpush1.msra.mxu0 0.0
  %3346 = vmatprep.subr.mxu0 0.0
  %3347 = vmatpush1.msra.mxu0 0.0
  %3348 = vmatprep.subr.mxu0 0.0
  %3349 = vmatpush1.msra.mxu0 0.0
  %3350 = vmatprep.subr.mxu0 0.0
  %3351 = vmatpush1.msra.mxu0 0.0
  %3352 = vmatprep.subr.mxu0 0.0
  %3353 = vmatpush1.msra.mxu0 0.0
  %3354 = vmatprep.subr.mxu0 0.0
  %3355 = vmatpush1.msra.mxu0 0.0
  %3356 = vmatprep.subr.mxu0 0.0
  %3357 = vmatpush1.msra.mxu0 0.0
  %3358 = vmatprep.subr.mxu0 0.0
  %3359 = vmatpush1.msra.mxu0 0.0
  %3360 = vmatprep.subr.mxu0 0.0
  %3361 = vmatpush1.msra.mxu0 0.0
  %3362 = vmatprep.subr.mxu0 0.0
  %3363 = vmatpush1.msra.mxu0 0.0
  %3364 = vmatprep.subr.mxu0 0.0
  %3365 = vmatpush1.msra.mxu0 0.0
  %3366 = vmatprep.subr.mxu0 0.0
  %3367 = vmatpush1.msra.mxu0 0.0
  %3368 = vmatprep.subr.mxu0 0.0
  %3369 = vmatpush1.msra.mxu0 0.0
  %3370 = vmatprep.subr.mxu0 0.0
  %3371 = vmatpush1.msra.mxu0 0.0
  %3372 = vmatprep.subr.mxu0 0.0
  %3373 = vmatpush1.msra.mxu0 0.0
  %3374 = vmatprep.subr.mxu0 0.0
  %3375 = vmatpush1.msra.mxu0 0.0
  %3376 = vmatprep.subr.mxu0 0.0
  %3377 = vmatpush1.msra.mxu0 0.0
  %3378 = vmatprep.subr.mxu0 0.0
  %3379 = vmatpush1.msra.mxu0 0.0
  %3380 = vmatprep.subr.mxu0 0.0
  %3381 = vmatpush1.msra.mxu0 0.0
  %3382 = vmatprep.subr.mxu0 0.0
  %3383 = vmatpush1.msra.mxu0 0.0
  %3384 = vmatprep.subr.mxu0 0.0
  %3385 = vmatpush1.msra.mxu0 0.0
  %3386 = vmatprep.subr.mxu0 0.0
  %3387 = vmatpush1.msra.mxu0 0.0
  %3388 = vmatprep.subr.mxu0 0.0
  %3389 = vmatpush1.msra.mxu0 0.0
  %3390 = vmatprep.mubr.f32.mxu0 0.0
  %3391 = vmatmul.mubr.f32.gmra.mrb[0].mxu0 %v3324
  %v3392 = vpop.f32.mrb[0].mxu0
  %v3393 = vadd.f32 %v3320, %v3392
  %v3394 = vpop.f32.mrb[0].mxu0
  %3395 = vdwg.mxu0
  %v3396 = vadd.f32 %v3393, %v337
  %3397 = vmatprep.subr.mxu0 0.0
  %3398 = vmatpush1.msra.mxu0 %v167
  %3399 = vmatprep.subr.mxu0 0.0
  %3400 = vmatpush1.msra.mxu0 %v168
  %3401 = vmatprep.subr.mxu0 0.0
  %3402 = vmatpush1.msra.mxu0 %v169
  %3403 = vmatprep.subr.mxu0 0.0
  %3404 = vmatpush1.msra.mxu0 %v170
  %3405 = vmatprep.subr.mxu0 0.0
  %3406 = vmatpush1.msra.mxu0 0.0
  %3407 = vmatprep.subr.mxu0 0.0
  %3408 = vmatpush1.msra.mxu0 0.0
  %3409 = vmatprep.subr.mxu0 0.0
  %3410 = vmatpush1.msra.mxu0 0.0
  %3411 = vmatprep.subr.mxu0 0.0
  %3412 = vmatpush1.msra.mxu0 0.0
  %3413 = vmatprep.subr.mxu0 0.0
  %3414 = vmatpush1.msra.mxu0 0.0
  %3415 = vmatprep.subr.mxu0 0.0
  %3416 = vmatpush1.msra.mxu0 0.0
  %3417 = vmatprep.subr.mxu0 0.0
  %3418 = vmatpush1.msra.mxu0 0.0
  %3419 = vmatprep.subr.mxu0 0.0
  %3420 = vmatpush1.msra.mxu0 0.0
  %3421 = vmatprep.subr.mxu0 0.0
  %3422 = vmatpush1.msra.mxu0 0.0
  %3423 = vmatprep.subr.mxu0 0.0
  %3424 = vmatpush1.msra.mxu0 0.0
  %3425 = vmatprep.subr.mxu0 0.0
  %3426 = vmatpush1.msra.mxu0 0.0
  %3427 = vmatprep.subr.mxu0 0.0
  %3428 = vmatpush1.msra.mxu0 0.0
  %3429 = vmatprep.subr.mxu0 0.0
  %3430 = vmatpush1.msra.mxu0 0.0
  %3431 = vmatprep.subr.mxu0 0.0
  %3432 = vmatpush1.msra.mxu0 0.0
  %3433 = vmatprep.subr.mxu0 0.0
  %3434 = vmatpush1.msra.mxu0 0.0
  %3435 = vmatprep.subr.mxu0 0.0
  %3436 = vmatpush1.msra.mxu0 0.0
  %3437 = vmatprep.subr.mxu0 0.0
  %3438 = vmatpush1.msra.mxu0 0.0
  %3439 = vmatprep.subr.mxu0 0.0
  %3440 = vmatpush1.msra.mxu0 0.0
  %3441 = vmatprep.subr.mxu0 0.0
  %3442 = vmatpush1.msra.mxu0 0.0
  %3443 = vmatprep.subr.mxu0 0.0
  %3444 = vmatpush1.msra.mxu0 0.0
  %3445 = vmatprep.subr.mxu0 0.0
  %3446 = vmatpush1.msra.mxu0 0.0
  %3447 = vmatprep.subr.mxu0 0.0
  %3448 = vmatpush1.msra.mxu0 0.0
  %3449 = vmatprep.subr.mxu0 0.0
  %3450 = vmatpush1.msra.mxu0 0.0
  %3451 = vmatprep.subr.mxu0 0.0
  %3452 = vmatpush1.msra.mxu0 0.0
  %3453 = vmatprep.subr.mxu0 0.0
  %3454 = vmatpush1.msra.mxu0 0.0
  %3455 = vmatprep.subr.mxu0 0.0
  %3456 = vmatpush1.msra.mxu0 0.0
  %3457 = vmatprep.subr.mxu0 0.0
  %3458 = vmatpush1.msra.mxu0 0.0
  %3459 = vmatprep.subr.mxu0 0.0
  %3460 = vmatpush1.msra.mxu0 0.0
  %3461 = vmatprep.mubr.f32.mxu0 0.0
  %3462 = vmatmul.mubr.f32.gmra.mrb[0].mxu0 %v3251
  %v3463 = vpop.f32.mrb[0].mxu0
  %v3464 = vadd.f32 0.0, %v3463
  %v3465 = vpop.f32.mrb[0].mxu0
  %3466 = vdwg.mxu0
  %3467 = vmatprep.subr.mxu0 0.0
  %3468 = vmatpush1.msra.mxu0 %v148
  %3469 = vmatprep.subr.mxu0 0.0
  %3470 = vmatpush1.msra.mxu0 %v149
  %3471 = vmatprep.subr.mxu0 0.0
  %3472 = vmatpush1.msra.mxu0 %v150
  %3473 = vmatprep.subr.mxu0 0.0
  %3474 = vmatpush1.msra.mxu0 %v151
  %3475 = vmatprep.subr.mxu0 0.0
  %3476 = vmatpush1.msra.mxu0 0.0
  %3477 = vmatprep.subr.mxu0 0.0
  %3478 = vmatpush1.msra.mxu0 0.0
  %3479 = vmatprep.subr.mxu0 0.0
  %3480 = vmatpush1.msra.mxu0 0.0
  %3481 = vmatprep.subr.mxu0 0.0
  %3482 = vmatpush1.msra.mxu0 0.0
  %3483 = vmatprep.subr.mxu0 0.0
  %3484 = vmatpush1.msra.mxu0 0.0
  %3485 = vmatprep.subr.mxu0 0.0
  %3486 = vmatpush1.msra.mxu0 0.0
  %3487 = vmatprep.subr.mxu0 0.0
  %3488 = vmatpush1.msra.mxu0 0.0
  %3489 = vmatprep.subr.mxu0 0.0
  %3490 = vmatpush1.msra.mxu0 0.0
  %3491 = vmatprep.subr.mxu0 0.0
  %3492 = vmatpush1.msra.mxu0 0.0
  %3493 = vmatprep.subr.mxu0 0.0
  %3494 = vmatpush1.msra.mxu0 0.0
  %3495 = vmatprep.subr.mxu0 0.0
  %3496 = vmatpush1.msra.mxu0 0.0
  %3497 = vmatprep.subr.mxu0 0.0
  %3498 = vmatpush1.msra.mxu0 0.0
  %3499 = vmatprep.subr.mxu0 0.0
  %3500 = vmatpush1.msra.mxu0 0.0
  %3501 = vmatprep.subr.mxu0 0.0
  %3502 = vmatpush1.msra.mxu0 0.0
  %3503 = vmatprep.subr.mxu0 0.0
  %3504 = vmatpush1.msra.mxu0 0.0
  %3505 = vmatprep.subr.mxu0 0.0
  %3506 = vmatpush1.msra.mxu0 0.0
  %3507 = vmatprep.subr.mxu0 0.0
  %3508 = vmatpush1.msra.mxu0 0.0
  %3509 = vmatprep.subr.mxu0 0.0
  %3510 = vmatpush1.msra.mxu0 0.0
  %3511 = vmatprep.subr.mxu0 0.0
  %3512 = vmatpush1.msra.mxu0 0.0
  %3513 = vmatprep.subr.mxu0 0.0
  %3514 = vmatpush1.msra.mxu0 0.0
  %3515 = vmatprep.subr.mxu0 0.0
  %3516 = vmatpush1.msra.mxu0 0.0
  %3517 = vmatprep.subr.mxu0 0.0
  %3518 = vmatpush1.msra.mxu0 0.0
  %3519 = vmatprep.subr.mxu0 0.0
  %3520 = vmatpush1.msra.mxu0 0.0
  %3521 = vmatprep.subr.mxu0 0.0
  %3522 = vmatpush1.msra.mxu0 0.0
  %3523 = vmatprep.subr.mxu0 0.0
  %3524 = vmatpush1.msra.mxu0 0.0
  %3525 = vmatprep.subr.mxu0 0.0
  %3526 = vmatpush1.msra.mxu0 0.0
  %3527 = vmatprep.subr.mxu0 0.0
  %3528 = vmatpush1.msra.mxu0 0.0
  %3529 = vmatprep.subr.mxu0 0.0
  %3530 = vmatpush1.msra.mxu0 0.0
  %3531 = vmatprep.mubr.f32.mxu0 0.0
  %3532 = vmatmul.mubr.f32.gmra.mrb[0].mxu0 %v3324
  %v3533 = vpop.f32.mrb[0].mxu0
  %v3534 = vadd.f32 %v3464, %v3533
  %v3535 = vpop.f32.mrb[0].mxu0
  %3536 = vdwg.mxu0
  %v3537 = vadd.f32 %v3534, %v484
  %3538 = vmatprep.subr.mxu0 0.0
  %3539 = vmatpush1.msra.mxu0 %v172
  %3540 = vmatprep.subr.mxu0 0.0
  %3541 = vmatpush1.msra.mxu0 %v173
  %3542 = vmatprep.subr.mxu0 0.0
  %3543 = vmatpush1.msra.mxu0 %v174
  %3544 = vmatprep.subr.mxu0 0.0
  %3545 = vmatpush1.msra.mxu0 %v175
  %3546 = vmatprep.subr.mxu0 0.0
  %3547 = vmatpush1.msra.mxu0 0.0
  %3548 = vmatprep.subr.mxu0 0.0
  %3549 = vmatpush1.msra.mxu0 0.0
  %3550 = vmatprep.subr.mxu0 0.0
  %3551 = vmatpush1.msra.mxu0 0.0
  %3552 = vmatprep.subr.mxu0 0.0
  %3553 = vmatpush1.msra.mxu0 0.0
  %3554 = vmatprep.subr.mxu0 0.0
  %3555 = vmatpush1.msra.mxu0 0.0
  %3556 = vmatprep.subr.mxu0 0.0
  %3557 = vmatpush1.msra.mxu0 0.0
  %3558 = vmatprep.subr.mxu0 0.0
  %3559 = vmatpush1.msra.mxu0 0.0
  %3560 = vmatprep.subr.mxu0 0.0
  %3561 = vmatpush1.msra.mxu0 0.0
  %3562 = vmatprep.subr.mxu0 0.0
  %3563 = vmatpush1.msra.mxu0 0.0
  %3564 = vmatprep.subr.mxu0 0.0
  %3565 = vmatpush1.msra.mxu0 0.0
  %3566 = vmatprep.subr.mxu0 0.0
  %3567 = vmatpush1.msra.mxu0 0.0
  %3568 = vmatprep.subr.mxu0 0.0
  %3569 = vmatpush1.msra.mxu0 0.0
  %3570 = vmatprep.subr.mxu0 0.0
  %3571 = vmatpush1.msra.mxu0 0.0
  %3572 = vmatprep.subr.mxu0 0.0
  %3573 = vmatpush1.msra.mxu0 0.0
  %3574 = vmatprep.subr.mxu0 0.0
  %3575 = vmatpush1.msra.mxu0 0.0
  %3576 = vmatprep.subr.mxu0 0.0
  %3577 = vmatpush1.msra.mxu0 0.0
  %3578 = vmatprep.subr.mxu0 0.0
  %3579 = vmatpush1.msra.mxu0 0.0
  %3580 = vmatprep.subr.mxu0 0.0
  %3581 = vmatpush1.msra.mxu0 0.0
  %3582 = vmatprep.subr.mxu0 0.0
  %3583 = vmatpush1.msra.mxu0 0.0
  %3584 = vmatprep.subr.mxu0 0.0
  %3585 = vmatpush1.msra.mxu0 0.0
  %3586 = vmatprep.subr.mxu0 0.0
  %3587 = vmatpush1.msra.mxu0 0.0
  %3588 = vmatprep.subr.mxu0 0.0
  %3589 = vmatpush1.msra.mxu0 0.0
  %3590 = vmatprep.subr.mxu0 0.0
  %3591 = vmatpush1.msra.mxu0 0.0
  %3592 = vmatprep.subr.mxu0 0.0
  %3593 = vmatpush1.msra.mxu0 0.0
  %3594 = vmatprep.subr.mxu0 0.0
  %3595 = vmatpush1.msra.mxu0 0.0
  %3596 = vmatprep.subr.mxu0 0.0
  %3597 = vmatpush1.msra.mxu0 0.0
  %3598 = vmatprep.subr.mxu0 0.0
  %3599 = vmatpush1.msra.mxu0 0.0
  %3600 = vmatprep.subr.mxu0 0.0
  %3601 = vmatpush1.msra.mxu0 0.0
  %3602 = vmatprep.mubr.f32.mxu0 0.0
  %3603 = vmatmul.mubr.f32.gmra.mrb[0].mxu0 %v3251
  %v3604 = vpop.f32.mrb[0].mxu0
  %v3605 = vadd.f32 0.0, %v3604
  %v3606 = vpop.f32.mrb[0].mxu0
  %3607 = vdwg.mxu0
  %3608 = vmatprep.subr.mxu0 0.0
  %3609 = vmatpush1.msra.mxu0 %v153
  %3610 = vmatprep.subr.mxu0 0.0
  %3611 = vmatpush1.msra.mxu0 %v154
  %3612 = vmatprep.subr.mxu0 0.0
  %3613 = vmatpush1.msra.mxu0 %v155
  %3614 = vmatprep.subr.mxu0 0.0
  %3615 = vmatpush1.msra.mxu0 %v156
  %3616 = vmatprep.subr.mxu0 0.0
  %3617 = vmatpush1.msra.mxu0 0.0
  %3618 = vmatprep.subr.mxu0 0.0
  %3619 = vmatpush1.msra.mxu0 0.0
  %3620 = vmatprep.subr.mxu0 0.0
  %3621 = vmatpush1.msra.mxu0 0.0
  %3622 = vmatprep.subr.mxu0 0.0
  %3623 = vmatpush1.msra.mxu0 0.0
  %3624 = vmatprep.subr.mxu0 0.0
  %3625 = vmatpush1.msra.mxu0 0.0
  %3626 = vmatprep.subr.mxu0 0.0
  %3627 = vmatpush1.msra.mxu0 0.0
  %3628 = vmatprep.subr.mxu0 0.0
  %3629 = vmatpush1.msra.mxu0 0.0
  %3630 = vmatprep.subr.mxu0 0.0
  %3631 = vmatpush1.msra.mxu0 0.0
  %3632 = vmatprep.subr.mxu0 0.0
  %3633 = vmatpush1.msra.mxu0 0.0
  %3634 = vmatprep.subr.mxu0 0.0
  %3635 = vmatpush1.msra.mxu0 0.0
  %3636 = vmatprep.subr.mxu0 0.0
  %3637 = vmatpush1.msra.mxu0 0.0
  %3638 = vmatprep.subr.mxu0 0.0
  %3639 = vmatpush1.msra.mxu0 0.0
  %3640 = vmatprep.subr.mxu0 0.0
  %3641 = vmatpush1.msra.mxu0 0.0
  %3642 = vmatprep.subr.mxu0 0.0
  %3643 = vmatpush1.msra.mxu0 0.0
  %3644 = vmatprep.subr.mxu0 0.0
  %3645 = vmatpush1.msra.mxu0 0.0
  %3646 = vmatprep.subr.mxu0 0.0
  %3647 = vmatpush1.msra.mxu0 0.0
  %3648 = vmatprep.subr.mxu0 0.0
  %3649 = vmatpush1.msra.mxu0 0.0
  %3650 = vmatprep.subr.mxu0 0.0
  %3651 = vmatpush1.msra.mxu0 0.0
  %3652 = vmatprep.subr.mxu0 0.0
  %3653 = vmatpush1.msra.mxu0 0.0
  %3654 = vmatprep.subr.mxu0 0.0
  %3655 = vmatpush1.msra.mxu0 0.0
  %3656 = vmatprep.subr.mxu0 0.0
  %3657 = vmatpush1.msra.mxu0 0.0
  %3658 = vmatprep.subr.mxu0 0.0
  %3659 = vmatpush1.msra.mxu0 0.0
  %3660 = vmatprep.subr.mxu0 0.0
  %3661 = vmatpush1.msra.mxu0 0.0
  %3662 = vmatprep.subr.mxu0 0.0
  %3663 = vmatpush1.msra.mxu0 0.0
  %3664 = vmatprep.subr.mxu0 0.0
  %3665 = vmatpush1.msra.mxu0 0.0
  %3666 = vmatprep.subr.mxu0 0.0
  %3667 = vmatpush1.msra.mxu0 0.0
  %3668 = vmatprep.subr.mxu0 0.0
  %3669 = vmatpush1.msra.mxu0 0.0
  %3670 = vmatprep.subr.mxu0 0.0
  %3671 = vmatpush1.msra.mxu0 0.0
  %3672 = vmatprep.mubr.f32.mxu0 0.0
  %3673 = vmatmul.mubr.f32.gmra.mrb[0].mxu0 %v3324
  %v3674 = vpop.f32.mrb[0].mxu0
  %v3675 = vadd.f32 %v3605, %v3674
  %v3676 = vpop.f32.mrb[0].mxu0
  %3677 = vdwg.mxu0
  %v3678 = vadd.f32 %v3675, %v631
  %3679 = vmatprep.subr.mxu0 0.0
  %3680 = vmatpush1.msra.mxu0 %v177
  %3681 = vmatprep.subr.mxu0 0.0
  %3682 = vmatpush1.msra.mxu0 %v178
  %3683 = vmatprep.subr.mxu0 0.0
  %3684 = vmatpush1.msra.mxu0 %v179
  %3685 = vmatprep.subr.mxu0 0.0
  %3686 = vmatpush1.msra.mxu0 %v180
  %3687 = vmatprep.subr.mxu0 0.0
  %3688 = vmatpush1.msra.mxu0 0.0
  %3689 = vmatprep.subr.mxu0 0.0
  %3690 = vmatpush1.msra.mxu0 0.0
  %3691 = vmatprep.subr.mxu0 0.0
  %3692 = vmatpush1.msra.mxu0 0.0
  %3693 = vmatprep.subr.mxu0 0.0
  %3694 = vmatpush1.msra.mxu0 0.0
  %3695 = vmatprep.subr.mxu0 0.0
  %3696 = vmatpush1.msra.mxu0 0.0
  %3697 = vmatprep.subr.mxu0 0.0
  %3698 = vmatpush1.msra.mxu0 0.0
  %3699 = vmatprep.subr.mxu0 0.0
  %3700 = vmatpush1.msra.mxu0 0.0
  %3701 = vmatprep.subr.mxu0 0.0
  %3702 = vmatpush1.msra.mxu0 0.0
  %3703 = vmatprep.subr.mxu0 0.0
  %3704 = vmatpush1.msra.mxu0 0.0
  %3705 = vmatprep.subr.mxu0 0.0
  %3706 = vmatpush1.msra.mxu0 0.0
  %3707 = vmatprep.subr.mxu0 0.0
  %3708 = vmatpush1.msra.mxu0 0.0
  %3709 = vmatprep.subr.mxu0 0.0
  %3710 = vmatpush1.msra.mxu0 0.0
  %3711 = vmatprep.subr.mxu0 0.0
  %3712 = vmatpush1.msra.mxu0 0.0
  %3713 = vmatprep.subr.mxu0 0.0
  %3714 = vmatpush1.msra.mxu0 0.0
  %3715 = vmatprep.subr.mxu0 0.0
  %3716 = vmatpush1.msra.mxu0 0.0
  %3717 = vmatprep.subr.mxu0 0.0
  %3718 = vmatpush1.msra.mxu0 0.0
  %3719 = vmatprep.subr.mxu0 0.0
  %3720 = vmatpush1.msra.mxu0 0.0
  %3721 = vmatprep.subr.mxu0 0.0
  %3722 = vmatpush1.msra.mxu0 0.0
  %3723 = vmatprep.subr.mxu0 0.0
  %3724 = vmatpush1.msra.mxu0 0.0
  %3725 = vmatprep.subr.mxu0 0.0
  %3726 = vmatpush1.msra.mxu0 0.0
  %3727 = vmatprep.subr.mxu0 0.0
  %3728 = vmatpush1.msra.mxu0 0.0
  %3729 = vmatprep.subr.mxu0 0.0
  %3730 = vmatpush1.msra.mxu0 0.0
  %3731 = vmatprep.subr.mxu0 0.0
  %3732 = vmatpush1.msra.mxu0 0.0
  %3733 = vmatprep.subr.mxu0 0.0
  %3734 = vmatpush1.msra.mxu0 0.0
  %3735 = vmatprep.subr.mxu0 0.0
  %3736 = vmatpush1.msra.mxu0 0.0
  %3737 = vmatprep.subr.mxu0 0.0
  %3738 = vmatpush1.msra.mxu0 0.0
  %3739 = vmatprep.subr.mxu0 0.0
  %3740 = vmatpush1.msra.mxu0 0.0
  %3741 = vmatprep.subr.mxu0 0.0
  %3742 = vmatpush1.msra.mxu0 0.0
  %3743 = vmatprep.mubr.f32.mxu0 0.0
  %3744 = vmatmul.mubr.f32.gmra.mrb[0].mxu0 %v3251
  %v3745 = vpop.f32.mrb[0].mxu0
  %v3746 = vadd.f32 0.0, %v3745
  %v3747 = vpop.f32.mrb[0].mxu0
  %3748 = vdwg.mxu0
  %3749 = vmatprep.subr.mxu0 0.0
  %3750 = vmatpush1.msra.mxu0 %v158
  %3751 = vmatprep.subr.mxu0 0.0
  %3752 = vmatpush1.msra.mxu0 %v159
  %3753 = vmatprep.subr.mxu0 0.0
  %3754 = vmatpush1.msra.mxu0 %v160
  %3755 = vmatprep.subr.mxu0 0.0
  %3756 = vmatpush1.msra.mxu0 %v161
  %3757 = vmatprep.subr.mxu0 0.0
  %3758 = vmatpush1.msra.mxu0 0.0
  %3759 = vmatprep.subr.mxu0 0.0
  %3760 = vmatpush1.msra.mxu0 0.0
  %3761 = vmatprep.subr.mxu0 0.0
  %3762 = vmatpush1.msra.mxu0 0.0
  %3763 = vmatprep.subr.mxu0 0.0
  %3764 = vmatpush1.msra.mxu0 0.0
  %3765 = vmatprep.subr.mxu0 0.0
  %3766 = vmatpush1.msra.mxu0 0.0
  %3767 = vmatprep.subr.mxu0 0.0
  %3768 = vmatpush1.msra.mxu0 0.0
  %3769 = vmatprep.subr.mxu0 0.0
  %3770 = vmatpush1.msra.mxu0 0.0
  %3771 = vmatprep.subr.mxu0 0.0
  %3772 = vmatpush1.msra.mxu0 0.0
  %3773 = vmatprep.subr.mxu0 0.0
  %3774 = vmatpush1.msra.mxu0 0.0
  %3775 = vmatprep.subr.mxu0 0.0
  %3776 = vmatpush1.msra.mxu0 0.0
  %3777 = vmatprep.subr.mxu0 0.0
  %3778 = vmatpush1.msra.mxu0 0.0
  %3779 = vmatprep.subr.mxu0 0.0
  %3780 = vmatpush1.msra.mxu0 0.0
  %3781 = vmatprep.subr.mxu0 0.0
  %3782 = vmatpush1.msra.mxu0 0.0
  %3783 = vmatprep.subr.mxu0 0.0
  %3784 = vmatpush1.msra.mxu0 0.0
  %3785 = vmatprep.subr.mxu0 0.0
  %3786 = vmatpush1.msra.mxu0 0.0
  %3787 = vmatprep.subr.mxu0 0.0
  %3788 = vmatpush1.msra.mxu0 0.0
  %3789 = vmatprep.subr.mxu0 0.0
  %3790 = vmatpush1.msra.mxu0 0.0
  %3791 = vmatprep.subr.mxu0 0.0
  %3792 = vmatpush1.msra.mxu0 0.0
  %3793 = vmatprep.subr.mxu0 0.0
  %3794 = vmatpush1.msra.mxu0 0.0
  %3795 = vmatprep.subr.mxu0 0.0
  %3796 = vmatpush1.msra.mxu0 0.0
  %3797 = vmatprep.subr.mxu0 0.0
  %3798 = vmatpush1.msra.mxu0 0.0
  %3799 = vmatprep.subr.mxu0 0.0
  %3800 = vmatpush1.msra.mxu0 0.0
  %3801 = vmatprep.subr.mxu0 0.0
  %3802 = vmatpush1.msra.mxu0 0.0
  %3803 = vmatprep.subr.mxu0 0.0
  %3804 = vmatpush1.msra.mxu0 0.0
  %3805 = vmatprep.subr.mxu0 0.0
  %3806 = vmatpush1.msra.mxu0 0.0
  %3807 = vmatprep.subr.mxu0 0.0
  %3808 = vmatpush1.msra.mxu0 0.0
  %3809 = vmatprep.subr.mxu0 0.0
  %3810 = vmatpush1.msra.mxu0 0.0
  %3811 = vmatprep.subr.mxu0 0.0
  %3812 = vmatpush1.msra.mxu0 0.0
  %3813 = vmatprep.mubr.f32.mxu0 0.0
  %3814 = vmatmul.mubr.f32.gmra.mrb[0].mxu0 %v3324
  %v3815 = vpop.f32.mrb[0].mxu0
  %v3816 = vadd.f32 %v3746, %v3815
  %v3817 = vpop.f32.mrb[0].mxu0
  %3818 = vdwg.mxu0
  %v3819 = vadd.f32 %v3816, %v778
  %v3820 = vxor.u32 %v3396, 2147483648
  %v3821 = vmul.f32 %v3820, 1.442695
  %v3822 = vpow.pop %v3821
  %v3823 = vadd.f32 %v3822, 1.0
  %v3824 = vrcp.pop %v3823
  %v3825 = vmul.f32 1.0, %v3824
  %v3826 = vxor.u32 %v3537, 2147483648
  %v3827 = vmul.f32 %v3826, 1.442695
  %v3828 = vpow.pop %v3827
  %v3829 = vadd.f32 %v3828, 1.0
  %v3830 = vrcp.pop %v3829
  %v3831 = vmul.f32 1.0, %v3830
  %v3832 = vtanh.pop %v3678
  %v3833 = vxor.u32 %v3819, 2147483648
  %v3834 = vmul.f32 %v3833, 1.442695
  %v3835 = vpow.pop %v3834
  %v3836 = vadd.f32 %v3835, 1.0
  %v3837 = vrcp.pop %v3836
  %v3838 = vmul.f32 1.0, %v3837
  %v3839 = vmul.f32 %v3831, %v3233
  %v3840 = vmul.f32 %v3825, %v3832
  %v3841 = vadd.f32 %v3839, %v3840
  %v3842 = vtanh.pop %v3841
  %v3843 = vmul.f32 %v3838, %v3842
  %p3844 = scmp.gt.s32.totalorder %s142, 5
  %s3845 = scalar_select %p3844, 0.0, -inf
  %vm3846 = vcmp.gt.s32.totalorder %v141, 5
  %v3847 = vmul.f32 %v140, %v3843
  %v3848 = vsel %vm3846, 1, 0
  %3849 = vset.pattern.permute.xlu0 0
  %3850 = vperm.xlu0 %3849, %v3848
  %v3851 = vpop.permute.xlu0 %3850
  %vm3852 = vcmp.eq.s32.totalorder %v3851, 1
  %v3853 = vstv %s3845
  %v3854 = vsel %vm3852, %v3847, %v3853
  %v3855 = vmax.f32 %v3247, %v3854
  %s3856 = scalar_lea.vmem %s1, 48
  %v3857 = vld [vmem:[%s3856] sm:$0xff]
  %v3859 = vsel %vm66, %v3843, 0
  %3861 = vmatprep.subr.mxu0 0.0
  %3862 = vmatpush1.msra.mxu0 %v162
  %3863 = vmatprep.subr.mxu0 0.0
  %3864 = vmatpush1.msra.mxu0 %v163
  %3865 = vmatprep.subr.mxu0 0.0
  %3866 = vmatpush1.msra.mxu0 %v164
  %3867 = vmatprep.subr.mxu0 0.0
  %3868 = vmatpush1.msra.mxu0 %v165
  %3869 = vmatprep.subr.mxu0 0.0
  %3870 = vmatpush1.msra.mxu0 0.0
  %3871 = vmatprep.subr.mxu0 0.0
  %3872 = vmatpush1.msra.mxu0 0.0
  %3873 = vmatprep.subr.mxu0 0.0
  %3874 = vmatpush1.msra.mxu0 0.0
  %3875 = vmatprep.subr.mxu0 0.0
  %3876 = vmatpush1.msra.mxu0 0.0
  %3877 = vmatprep.subr.mxu0 0.0
  %3878 = vmatpush1.msra.mxu0 0.0
  %3879 = vmatprep.subr.mxu0 0.0
  %3880 = vmatpush1.msra.mxu0 0.0
  %3881 = vmatprep.subr.mxu0 0.0
  %3882 = vmatpush1.msra.mxu0 0.0
  %3883 = vmatprep.subr.mxu0 0.0
  %3884 = vmatpush1.msra.mxu0 0.0
  %3885 = vmatprep.subr.mxu0 0.0
  %3886 = vmatpush1.msra.mxu0 0.0
  %3887 = vmatprep.subr.mxu0 0.0
  %3888 = vmatpush1.msra.mxu0 0.0
  %3889 = vmatprep.subr.mxu0 0.0
  %3890 = vmatpush1.msra.mxu0 0.0
  %3891 = vmatprep.subr.mxu0 0.0
  %3892 = vmatpush1.msra.mxu0 0.0
  %3893 = vmatprep.subr.mxu0 0.0
  %3894 = vmatpush1.msra.mxu0 0.0
  %3895 = vmatprep.subr.mxu0 0.0
  %3896 = vmatpush1.msra.mxu0 0.0
  %3897 = vmatprep.subr.mxu0 0.0
  %3898 = vmatpush1.msra.mxu0 0.0
  %3899 = vmatprep.subr.mxu0 0.0
  %3900 = vmatpush1.msra.mxu0 0.0
  %3901 = vmatprep.subr.mxu0 0.0
  %3902 = vmatpush1.msra.mxu0 0.0
  %3903 = vmatprep.subr.mxu0 0.0
  %3904 = vmatpush1.msra.mxu0 0.0
  %3905 = vmatprep.subr.mxu0 0.0
  %3906 = vmatpush1.msra.mxu0 0.0
  %3907 = vmatprep.subr.mxu0 0.0
  %3908 = vmatpush1.msra.mxu0 0.0
  %3909 = vmatprep.subr.mxu0 0.0
  %3910 = vmatpush1.msra.mxu0 0.0
  %3911 = vmatprep.subr.mxu0 0.0
  %3912 = vmatpush1.msra.mxu0 0.0
  %3913 = vmatprep.subr.mxu0 0.0
  %3914 = vmatpush1.msra.mxu0 0.0
  %3915 = vmatprep.subr.mxu0 0.0
  %3916 = vmatpush1.msra.mxu0 0.0
  %3917 = vmatprep.subr.mxu0 0.0
  %3918 = vmatpush1.msra.mxu0 0.0
  %3919 = vmatprep.subr.mxu0 0.0
  %3920 = vmatpush1.msra.mxu0 0.0
  %3921 = vmatprep.subr.mxu0 0.0
  %3922 = vmatpush1.msra.mxu0 0.0
  %3923 = vmatprep.subr.mxu0 0.0
  %3924 = vmatpush1.msra.mxu0 0.0
  %3925 = vmatprep.mubr.f32.mxu0 0.0
  %3926 = vmatmul.mubr.f32.gmra.mrb[0].mxu0 %v3859
  %v3927 = vpop.f32.mrb[0].mxu0
  %v3928 = vadd.f32 0.0, %v3927
  %v3929 = vpop.f32.mrb[0].mxu0
  %3930 = vdwg.mxu0
  %v3932 = vsel %vm66, %v3857, 0
  %3934 = vmatprep.subr.mxu0 0.0
  %3935 = vmatpush1.msra.mxu0 %v143
  %3936 = vmatprep.subr.mxu0 0.0
  %3937 = vmatpush1.msra.mxu0 %v144
  %3938 = vmatprep.subr.mxu0 0.0
  %3939 = vmatpush1.msra.mxu0 %v145
  %3940 = vmatprep.subr.mxu0 0.0
  %3941 = vmatpush1.msra.mxu0 %v146
  %3942 = vmatprep.subr.mxu0 0.0
  %3943 = vmatpush1.msra.mxu0 0.0
  %3944 = vmatprep.subr.mxu0 0.0
  %3945 = vmatpush1.msra.mxu0 0.0
  %3946 = vmatprep.subr.mxu0 0.0
  %3947 = vmatpush1.msra.mxu0 0.0
  %3948 = vmatprep.subr.mxu0 0.0
  %3949 = vmatpush1.msra.mxu0 0.0
  %3950 = vmatprep.subr.mxu0 0.0
  %3951 = vmatpush1.msra.mxu0 0.0
  %3952 = vmatprep.subr.mxu0 0.0
  %3953 = vmatpush1.msra.mxu0 0.0
  %3954 = vmatprep.subr.mxu0 0.0
  %3955 = vmatpush1.msra.mxu0 0.0
  %3956 = vmatprep.subr.mxu0 0.0
  %3957 = vmatpush1.msra.mxu0 0.0
  %3958 = vmatprep.subr.mxu0 0.0
  %3959 = vmatpush1.msra.mxu0 0.0
  %3960 = vmatprep.subr.mxu0 0.0
  %3961 = vmatpush1.msra.mxu0 0.0
  %3962 = vmatprep.subr.mxu0 0.0
  %3963 = vmatpush1.msra.mxu0 0.0
  %3964 = vmatprep.subr.mxu0 0.0
  %3965 = vmatpush1.msra.mxu0 0.0
  %3966 = vmatprep.subr.mxu0 0.0
  %3967 = vmatpush1.msra.mxu0 0.0
  %3968 = vmatprep.subr.mxu0 0.0
  %3969 = vmatpush1.msra.mxu0 0.0
  %3970 = vmatprep.subr.mxu0 0.0
  %3971 = vmatpush1.msra.mxu0 0.0
  %3972 = vmatprep.subr.mxu0 0.0
  %3973 = vmatpush1.msra.mxu0 0.0
  %3974 = vmatprep.subr.mxu0 0.0
  %3975 = vmatpush1.msra.mxu0 0.0
  %3976 = vmatprep.subr.mxu0 0.0
  %3977 = vmatpush1.msra.mxu0 0.0
  %3978 = vmatprep.subr.mxu0 0.0
  %3979 = vmatpush1.msra.mxu0 0.0
  %3980 = vmatprep.subr.mxu0 0.0
  %3981 = vmatpush1.msra.mxu0 0.0
  %3982 = vmatprep.subr.mxu0 0.0
  %3983 = vmatpush1.msra.mxu0 0.0
  %3984 = vmatprep.subr.mxu0 0.0
  %3985 = vmatpush1.msra.mxu0 0.0
  %3986 = vmatprep.subr.mxu0 0.0
  %3987 = vmatpush1.msra.mxu0 0.0
  %3988 = vmatprep.subr.mxu0 0.0
  %3989 = vmatpush1.msra.mxu0 0.0
  %3990 = vmatprep.subr.mxu0 0.0
  %3991 = vmatpush1.msra.mxu0 0.0
  %3992 = vmatprep.subr.mxu0 0.0
  %3993 = vmatpush1.msra.mxu0 0.0
  %3994 = vmatprep.subr.mxu0 0.0
  %3995 = vmatpush1.msra.mxu0 0.0
  %3996 = vmatprep.subr.mxu0 0.0
  %3997 = vmatpush1.msra.mxu0 0.0
  %3998 = vmatprep.mubr.f32.mxu0 0.0
  %3999 = vmatmul.mubr.f32.gmra.mrb[0].mxu0 %v3932
  %v4000 = vpop.f32.mrb[0].mxu0
  %v4001 = vadd.f32 %v3928, %v4000
  %v4002 = vpop.f32.mrb[0].mxu0
  %4003 = vdwg.mxu0
  %v4004 = vadd.f32 %v4001, %v337
  %4005 = vmatprep.subr.mxu0 0.0
  %4006 = vmatpush1.msra.mxu0 %v167
  %4007 = vmatprep.subr.mxu0 0.0
  %4008 = vmatpush1.msra.mxu0 %v168
  %4009 = vmatprep.subr.mxu0 0.0
  %4010 = vmatpush1.msra.mxu0 %v169
  %4011 = vmatprep.subr.mxu0 0.0
  %4012 = vmatpush1.msra.mxu0 %v170
  %4013 = vmatprep.subr.mxu0 0.0
  %4014 = vmatpush1.msra.mxu0 0.0
  %4015 = vmatprep.subr.mxu0 0.0
  %4016 = vmatpush1.msra.mxu0 0.0
  %4017 = vmatprep.subr.mxu0 0.0
  %4018 = vmatpush1.msra.mxu0 0.0
  %4019 = vmatprep.subr.mxu0 0.0
  %4020 = vmatpush1.msra.mxu0 0.0
  %4021 = vmatprep.subr.mxu0 0.0
  %4022 = vmatpush1.msra.mxu0 0.0
  %4023 = vmatprep.subr.mxu0 0.0
  %4024 = vmatpush1.msra.mxu0 0.0
  %4025 = vmatprep.subr.mxu0 0.0
  %4026 = vmatpush1.msra.mxu0 0.0
  %4027 = vmatprep.subr.mxu0 0.0
  %4028 = vmatpush1.msra.mxu0 0.0
  %4029 = vmatprep.subr.mxu0 0.0
  %4030 = vmatpush1.msra.mxu0 0.0
  %4031 = vmatprep.subr.mxu0 0.0
  %4032 = vmatpush1.msra.mxu0 0.0
  %4033 = vmatprep.subr.mxu0 0.0
  %4034 = vmatpush1.msra.mxu0 0.0
  %4035 = vmatprep.subr.mxu0 0.0
  %4036 = vmatpush1.msra.mxu0 0.0
  %4037 = vmatprep.subr.mxu0 0.0
  %4038 = vmatpush1.msra.mxu0 0.0
  %4039 = vmatprep.subr.mxu0 0.0
  %4040 = vmatpush1.msra.mxu0 0.0
  %4041 = vmatprep.subr.mxu0 0.0
  %4042 = vmatpush1.msra.mxu0 0.0
  %4043 = vmatprep.subr.mxu0 0.0
  %4044 = vmatpush1.msra.mxu0 0.0
  %4045 = vmatprep.subr.mxu0 0.0
  %4046 = vmatpush1.msra.mxu0 0.0
  %4047 = vmatprep.subr.mxu0 0.0
  %4048 = vmatpush1.msra.mxu0 0.0
  %4049 = vmatprep.subr.mxu0 0.0
  %4050 = vmatpush1.msra.mxu0 0.0
  %4051 = vmatprep.subr.mxu0 0.0
  %4052 = vmatpush1.msra.mxu0 0.0
  %4053 = vmatprep.subr.mxu0 0.0
  %4054 = vmatpush1.msra.mxu0 0.0
  %4055 = vmatprep.subr.mxu0 0.0
  %4056 = vmatpush1.msra.mxu0 0.0
  %4057 = vmatprep.subr.mxu0 0.0
  %4058 = vmatpush1.msra.mxu0 0.0
  %4059 = vmatprep.subr.mxu0 0.0
  %4060 = vmatpush1.msra.mxu0 0.0
  %4061 = vmatprep.subr.mxu0 0.0
  %4062 = vmatpush1.msra.mxu0 0.0
  %4063 = vmatprep.subr.mxu0 0.0
  %4064 = vmatpush1.msra.mxu0 0.0
  %4065 = vmatprep.subr.mxu0 0.0
  %4066 = vmatpush1.msra.mxu0 0.0
  %4067 = vmatprep.subr.mxu0 0.0
  %4068 = vmatpush1.msra.mxu0 0.0
  %4069 = vmatprep.mubr.f32.mxu0 0.0
  %4070 = vmatmul.mubr.f32.gmra.mrb[0].mxu0 %v3859
  %v4071 = vpop.f32.mrb[0].mxu0
  %v4072 = vadd.f32 0.0, %v4071
  %v4073 = vpop.f32.mrb[0].mxu0
  %4074 = vdwg.mxu0
  %4075 = vmatprep.subr.mxu0 0.0
  %4076 = vmatpush1.msra.mxu0 %v148
  %4077 = vmatprep.subr.mxu0 0.0
  %4078 = vmatpush1.msra.mxu0 %v149
  %4079 = vmatprep.subr.mxu0 0.0
  %4080 = vmatpush1.msra.mxu0 %v150
  %4081 = vmatprep.subr.mxu0 0.0
  %4082 = vmatpush1.msra.mxu0 %v151
  %4083 = vmatprep.subr.mxu0 0.0
  %4084 = vmatpush1.msra.mxu0 0.0
  %4085 = vmatprep.subr.mxu0 0.0
  %4086 = vmatpush1.msra.mxu0 0.0
  %4087 = vmatprep.subr.mxu0 0.0
  %4088 = vmatpush1.msra.mxu0 0.0
  %4089 = vmatprep.subr.mxu0 0.0
  %4090 = vmatpush1.msra.mxu0 0.0
  %4091 = vmatprep.subr.mxu0 0.0
  %4092 = vmatpush1.msra.mxu0 0.0
  %4093 = vmatprep.subr.mxu0 0.0
  %4094 = vmatpush1.msra.mxu0 0.0
  %4095 = vmatprep.subr.mxu0 0.0
  %4096 = vmatpush1.msra.mxu0 0.0
  %4097 = vmatprep.subr.mxu0 0.0
  %4098 = vmatpush1.msra.mxu0 0.0
  %4099 = vmatprep.subr.mxu0 0.0
  %4100 = vmatpush1.msra.mxu0 0.0
  %4101 = vmatprep.subr.mxu0 0.0
  %4102 = vmatpush1.msra.mxu0 0.0
  %4103 = vmatprep.subr.mxu0 0.0
  %4104 = vmatpush1.msra.mxu0 0.0
  %4105 = vmatprep.subr.mxu0 0.0
  %4106 = vmatpush1.msra.mxu0 0.0
  %4107 = vmatprep.subr.mxu0 0.0
  %4108 = vmatpush1.msra.mxu0 0.0
  %4109 = vmatprep.subr.mxu0 0.0
  %4110 = vmatpush1.msra.mxu0 0.0
  %4111 = vmatprep.subr.mxu0 0.0
  %4112 = vmatpush1.msra.mxu0 0.0
  %4113 = vmatprep.subr.mxu0 0.0
  %4114 = vmatpush1.msra.mxu0 0.0
  %4115 = vmatprep.subr.mxu0 0.0
  %4116 = vmatpush1.msra.mxu0 0.0
  %4117 = vmatprep.subr.mxu0 0.0
  %4118 = vmatpush1.msra.mxu0 0.0
  %4119 = vmatprep.subr.mxu0 0.0
  %4120 = vmatpush1.msra.mxu0 0.0
  %4121 = vmatprep.subr.mxu0 0.0
  %4122 = vmatpush1.msra.mxu0 0.0
  %4123 = vmatprep.subr.mxu0 0.0
  %4124 = vmatpush1.msra.mxu0 0.0
  %4125 = vmatprep.subr.mxu0 0.0
  %4126 = vmatpush1.msra.mxu0 0.0
  %4127 = vmatprep.subr.mxu0 0.0
  %4128 = vmatpush1.msra.mxu0 0.0
  %4129 = vmatprep.subr.mxu0 0.0
  %4130 = vmatpush1.msra.mxu0 0.0
  %4131 = vmatprep.subr.mxu0 0.0
  %4132 = vmatpush1.msra.mxu0 0.0
  %4133 = vmatprep.subr.mxu0 0.0
  %4134 = vmatpush1.msra.mxu0 0.0
  %4135 = vmatprep.subr.mxu0 0.0
  %4136 = vmatpush1.msra.mxu0 0.0
  %4137 = vmatprep.subr.mxu0 0.0
  %4138 = vmatpush1.msra.mxu0 0.0
  %4139 = vmatprep.mubr.f32.mxu0 0.0
  %4140 = vmatmul.mubr.f32.gmra.mrb[0].mxu0 %v3932
  %v4141 = vpop.f32.mrb[0].mxu0
  %v4142 = vadd.f32 %v4072, %v4141
  %v4143 = vpop.f32.mrb[0].mxu0
  %4144 = vdwg.mxu0
  %v4145 = vadd.f32 %v4142, %v484
  %4146 = vmatprep.subr.mxu0 0.0
  %4147 = vmatpush1.msra.mxu0 %v172
  %4148 = vmatprep.subr.mxu0 0.0
  %4149 = vmatpush1.msra.mxu0 %v173
  %4150 = vmatprep.subr.mxu0 0.0
  %4151 = vmatpush1.msra.mxu0 %v174
  %4152 = vmatprep.subr.mxu0 0.0
  %4153 = vmatpush1.msra.mxu0 %v175
  %4154 = vmatprep.subr.mxu0 0.0
  %4155 = vmatpush1.msra.mxu0 0.0
  %4156 = vmatprep.subr.mxu0 0.0
  %4157 = vmatpush1.msra.mxu0 0.0
  %4158 = vmatprep.subr.mxu0 0.0
  %4159 = vmatpush1.msra.mxu0 0.0
  %4160 = vmatprep.subr.mxu0 0.0
  %4161 = vmatpush1.msra.mxu0 0.0
  %4162 = vmatprep.subr.mxu0 0.0
  %4163 = vmatpush1.msra.mxu0 0.0
  %4164 = vmatprep.subr.mxu0 0.0
  %4165 = vmatpush1.msra.mxu0 0.0
  %4166 = vmatprep.subr.mxu0 0.0
  %4167 = vmatpush1.msra.mxu0 0.0
  %4168 = vmatprep.subr.mxu0 0.0
  %4169 = vmatpush1.msra.mxu0 0.0
  %4170 = vmatprep.subr.mxu0 0.0
  %4171 = vmatpush1.msra.mxu0 0.0
  %4172 = vmatprep.subr.mxu0 0.0
  %4173 = vmatpush1.msra.mxu0 0.0
  %4174 = vmatprep.subr.mxu0 0.0
  %4175 = vmatpush1.msra.mxu0 0.0
  %4176 = vmatprep.subr.mxu0 0.0
  %4177 = vmatpush1.msra.mxu0 0.0
  %4178 = vmatprep.subr.mxu0 0.0
  %4179 = vmatpush1.msra.mxu0 0.0
  %4180 = vmatprep.subr.mxu0 0.0
  %4181 = vmatpush1.msra.mxu0 0.0
  %4182 = vmatprep.subr.mxu0 0.0
  %4183 = vmatpush1.msra.mxu0 0.0
  %4184 = vmatprep.subr.mxu0 0.0
  %4185 = vmatpush1.msra.mxu0 0.0
  %4186 = vmatprep.subr.mxu0 0.0
  %4187 = vmatpush1.msra.mxu0 0.0
  %4188 = vmatprep.subr.mxu0 0.0
  %4189 = vmatpush1.msra.mxu0 0.0
  %4190 = vmatprep.subr.mxu0 0.0
  %4191 = vmatpush1.msra.mxu0 0.0
  %4192 = vmatprep.subr.mxu0 0.0
  %4193 = vmatpush1.msra.mxu0 0.0
  %4194 = vmatprep.subr.mxu0 0.0
  %4195 = vmatpush1.msra.mxu0 0.0
  %4196 = vmatprep.subr.mxu0 0.0
  %4197 = vmatpush1.msra.mxu0 0.0
  %4198 = vmatprep.subr.mxu0 0.0
  %4199 = vmatpush1.msra.mxu0 0.0
  %4200 = vmatprep.subr.mxu0 0.0
  %4201 = vmatpush1.msra.mxu0 0.0
  %4202 = vmatprep.subr.mxu0 0.0
  %4203 = vmatpush1.msra.mxu0 0.0
  %4204 = vmatprep.subr.mxu0 0.0
  %4205 = vmatpush1.msra.mxu0 0.0
  %4206 = vmatprep.subr.mxu0 0.0
  %4207 = vmatpush1.msra.mxu0 0.0
  %4208 = vmatprep.subr.mxu0 0.0
  %4209 = vmatpush1.msra.mxu0 0.0
  %4210 = vmatprep.mubr.f32.mxu0 0.0
  %4211 = vmatmul.mubr.f32.gmra.mrb[0].mxu0 %v3859
  %v4212 = vpop.f32.mrb[0].mxu0
  %v4213 = vadd.f32 0.0, %v4212
  %v4214 = vpop.f32.mrb[0].mxu0
  %4215 = vdwg.mxu0
  %4216 = vmatprep.subr.mxu0 0.0
  %4217 = vmatpush1.msra.mxu0 %v153
  %4218 = vmatprep.subr.mxu0 0.0
  %4219 = vmatpush1.msra.mxu0 %v154
  %4220 = vmatprep.subr.mxu0 0.0
  %4221 = vmatpush1.msra.mxu0 %v155
  %4222 = vmatprep.subr.mxu0 0.0
  %4223 = vmatpush1.msra.mxu0 %v156
  %4224 = vmatprep.subr.mxu0 0.0
  %4225 = vmatpush1.msra.mxu0 0.0
  %4226 = vmatprep.subr.mxu0 0.0
  %4227 = vmatpush1.msra.mxu0 0.0
  %4228 = vmatprep.subr.mxu0 0.0
  %4229 = vmatpush1.msra.mxu0 0.0
  %4230 = vmatprep.subr.mxu0 0.0
  %4231 = vmatpush1.msra.mxu0 0.0
  %4232 = vmatprep.subr.mxu0 0.0
  %4233 = vmatpush1.msra.mxu0 0.0
  %4234 = vmatprep.subr.mxu0 0.0
  %4235 = vmatpush1.msra.mxu0 0.0
  %4236 = vmatprep.subr.mxu0 0.0
  %4237 = vmatpush1.msra.mxu0 0.0
  %4238 = vmatprep.subr.mxu0 0.0
  %4239 = vmatpush1.msra.mxu0 0.0
  %4240 = vmatprep.subr.mxu0 0.0
  %4241 = vmatpush1.msra.mxu0 0.0
  %4242 = vmatprep.subr.mxu0 0.0
  %4243 = vmatpush1.msra.mxu0 0.0
  %4244 = vmatprep.subr.mxu0 0.0
  %4245 = vmatpush1.msra.mxu0 0.0
  %4246 = vmatprep.subr.mxu0 0.0
  %4247 = vmatpush1.msra.mxu0 0.0
  %4248 = vmatprep.subr.mxu0 0.0
  %4249 = vmatpush1.msra.mxu0 0.0
  %4250 = vmatprep.subr.mxu0 0.0
  %4251 = vmatpush1.msra.mxu0 0.0
  %4252 = vmatprep.subr.mxu0 0.0
  %4253 = vmatpush1.msra.mxu0 0.0
  %4254 = vmatprep.subr.mxu0 0.0
  %4255 = vmatpush1.msra.mxu0 0.0
  %4256 = vmatprep.subr.mxu0 0.0
  %4257 = vmatpush1.msra.mxu0 0.0
  %4258 = vmatprep.subr.mxu0 0.0
  %4259 = vmatpush1.msra.mxu0 0.0
  %4260 = vmatprep.subr.mxu0 0.0
  %4261 = vmatpush1.msra.mxu0 0.0
  %4262 = vmatprep.subr.mxu0 0.0
  %4263 = vmatpush1.msra.mxu0 0.0
  %4264 = vmatprep.subr.mxu0 0.0
  %4265 = vmatpush1.msra.mxu0 0.0
  %4266 = vmatprep.subr.mxu0 0.0
  %4267 = vmatpush1.msra.mxu0 0.0
  %4268 = vmatprep.subr.mxu0 0.0
  %4269 = vmatpush1.msra.mxu0 0.0
  %4270 = vmatprep.subr.mxu0 0.0
  %4271 = vmatpush1.msra.mxu0 0.0
  %4272 = vmatprep.subr.mxu0 0.0
  %4273 = vmatpush1.msra.mxu0 0.0
  %4274 = vmatprep.subr.mxu0 0.0
  %4275 = vmatpush1.msra.mxu0 0.0
  %4276 = vmatprep.subr.mxu0 0.0
  %4277 = vmatpush1.msra.mxu0 0.0
  %4278 = vmatprep.subr.mxu0 0.0
  %4279 = vmatpush1.msra.mxu0 0.0
  %4280 = vmatprep.mubr.f32.mxu0 0.0
  %4281 = vmatmul.mubr.f32.gmra.mrb[0].mxu0 %v3932
  %v4282 = vpop.f32.mrb[0].mxu0
  %v4283 = vadd.f32 %v4213, %v4282
  %v4284 = vpop.f32.mrb[0].mxu0
  %4285 = vdwg.mxu0
  %v4286 = vadd.f32 %v4283, %v631
  %4287 = vmatprep.subr.mxu0 0.0
  %4288 = vmatpush1.msra.mxu0 %v177
  %4289 = vmatprep.subr.mxu0 0.0
  %4290 = vmatpush1.msra.mxu0 %v178
  %4291 = vmatprep.subr.mxu0 0.0
  %4292 = vmatpush1.msra.mxu0 %v179
  %4293 = vmatprep.subr.mxu0 0.0
  %4294 = vmatpush1.msra.mxu0 %v180
  %4295 = vmatprep.subr.mxu0 0.0
  %4296 = vmatpush1.msra.mxu0 0.0
  %4297 = vmatprep.subr.mxu0 0.0
  %4298 = vmatpush1.msra.mxu0 0.0
  %4299 = vmatprep.subr.mxu0 0.0
  %4300 = vmatpush1.msra.mxu0 0.0
  %4301 = vmatprep.subr.mxu0 0.0
  %4302 = vmatpush1.msra.mxu0 0.0
  %4303 = vmatprep.subr.mxu0 0.0
  %4304 = vmatpush1.msra.mxu0 0.0
  %4305 = vmatprep.subr.mxu0 0.0
  %4306 = vmatpush1.msra.mxu0 0.0
  %4307 = vmatprep.subr.mxu0 0.0
  %4308 = vmatpush1.msra.mxu0 0.0
  %4309 = vmatprep.subr.mxu0 0.0
  %4310 = vmatpush1.msra.mxu0 0.0
  %4311 = vmatprep.subr.mxu0 0.0
  %4312 = vmatpush1.msra.mxu0 0.0
  %4313 = vmatprep.subr.mxu0 0.0
  %4314 = vmatpush1.msra.mxu0 0.0
  %4315 = vmatprep.subr.mxu0 0.0
  %4316 = vmatpush1.msra.mxu0 0.0
  %4317 = vmatprep.subr.mxu0 0.0
  %4318 = vmatpush1.msra.mxu0 0.0
  %4319 = vmatprep.subr.mxu0 0.0
  %4320 = vmatpush1.msra.mxu0 0.0
  %4321 = vmatprep.subr.mxu0 0.0
  %4322 = vmatpush1.msra.mxu0 0.0
  %4323 = vmatprep.subr.mxu0 0.0
  %4324 = vmatpush1.msra.mxu0 0.0
  %4325 = vmatprep.subr.mxu0 0.0
  %4326 = vmatpush1.msra.mxu0 0.0
  %4327 = vmatprep.subr.mxu0 0.0
  %4328 = vmatpush1.msra.mxu0 0.0
  %4329 = vmatprep.subr.mxu0 0.0
  %4330 = vmatpush1.msra.mxu0 0.0
  %4331 = vmatprep.subr.mxu0 0.0
  %4332 = vmatpush1.msra.mxu0 0.0
  %4333 = vmatprep.subr.mxu0 0.0
  %4334 = vmatpush1.msra.mxu0 0.0
  %4335 = vmatprep.subr.mxu0 0.0
  %4336 = vmatpush1.msra.mxu0 0.0
  %4337 = vmatprep.subr.mxu0 0.0
  %4338 = vmatpush1.msra.mxu0 0.0
  %4339 = vmatprep.subr.mxu0 0.0
  %4340 = vmatpush1.msra.mxu0 0.0
  %4341 = vmatprep.subr.mxu0 0.0
  %4342 = vmatpush1.msra.mxu0 0.0
  %4343 = vmatprep.subr.mxu0 0.0
  %4344 = vmatpush1.msra.mxu0 0.0
  %4345 = vmatprep.subr.mxu0 0.0
  %4346 = vmatpush1.msra.mxu0 0.0
  %4347 = vmatprep.subr.mxu0 0.0
  %4348 = vmatpush1.msra.mxu0 0.0
  %4349 = vmatprep.subr.mxu0 0.0
  %4350 = vmatpush1.msra.mxu0 0.0
  %4351 = vmatprep.mubr.f32.mxu0 0.0
  %4352 = vmatmul.mubr.f32.gmra.mrb[0].mxu0 %v3859
  %v4353 = vpop.f32.mrb[0].mxu0
  %v4354 = vadd.f32 0.0, %v4353
  %v4355 = vpop.f32.mrb[0].mxu0
  %4356 = vdwg.mxu0
  %4357 = vmatprep.subr.mxu0 0.0
  %4358 = vmatpush1.msra.mxu0 %v158
  %4359 = vmatprep.subr.mxu0 0.0
  %4360 = vmatpush1.msra.mxu0 %v159
  %4361 = vmatprep.subr.mxu0 0.0
  %4362 = vmatpush1.msra.mxu0 %v160
  %4363 = vmatprep.subr.mxu0 0.0
  %4364 = vmatpush1.msra.mxu0 %v161
  %4365 = vmatprep.subr.mxu0 0.0
  %4366 = vmatpush1.msra.mxu0 0.0
  %4367 = vmatprep.subr.mxu0 0.0
  %4368 = vmatpush1.msra.mxu0 0.0
  %4369 = vmatprep.subr.mxu0 0.0
  %4370 = vmatpush1.msra.mxu0 0.0
  %4371 = vmatprep.subr.mxu0 0.0
  %4372 = vmatpush1.msra.mxu0 0.0
  %4373 = vmatprep.subr.mxu0 0.0
  %4374 = vmatpush1.msra.mxu0 0.0
  %4375 = vmatprep.subr.mxu0 0.0
  %4376 = vmatpush1.msra.mxu0 0.0
  %4377 = vmatprep.subr.mxu0 0.0
  %4378 = vmatpush1.msra.mxu0 0.0
  %4379 = vmatprep.subr.mxu0 0.0
  %4380 = vmatpush1.msra.mxu0 0.0
  %4381 = vmatprep.subr.mxu0 0.0
  %4382 = vmatpush1.msra.mxu0 0.0
  %4383 = vmatprep.subr.mxu0 0.0
  %4384 = vmatpush1.msra.mxu0 0.0
  %4385 = vmatprep.subr.mxu0 0.0
  %4386 = vmatpush1.msra.mxu0 0.0
  %4387 = vmatprep.subr.mxu0 0.0
  %4388 = vmatpush1.msra.mxu0 0.0
  %4389 = vmatprep.subr.mxu0 0.0
  %4390 = vmatpush1.msra.mxu0 0.0
  %4391 = vmatprep.subr.mxu0 0.0
  %4392 = vmatpush1.msra.mxu0 0.0
  %4393 = vmatprep.subr.mxu0 0.0
  %4394 = vmatpush1.msra.mxu0 0.0
  %4395 = vmatprep.subr.mxu0 0.0
  %4396 = vmatpush1.msra.mxu0 0.0
  %4397 = vmatprep.subr.mxu0 0.0
  %4398 = vmatpush1.msra.mxu0 0.0
  %4399 = vmatprep.subr.mxu0 0.0
  %4400 = vmatpush1.msra.mxu0 0.0
  %4401 = vmatprep.subr.mxu0 0.0
  %4402 = vmatpush1.msra.mxu0 0.0
  %4403 = vmatprep.subr.mxu0 0.0
  %4404 = vmatpush1.msra.mxu0 0.0
  %4405 = vmatprep.subr.mxu0 0.0
  %4406 = vmatpush1.msra.mxu0 0.0
  %4407 = vmatprep.subr.mxu0 0.0
  %4408 = vmatpush1.msra.mxu0 0.0
  %4409 = vmatprep.subr.mxu0 0.0
  %4410 = vmatpush1.msra.mxu0 0.0
  %4411 = vmatprep.subr.mxu0 0.0
  %4412 = vmatpush1.msra.mxu0 0.0
  %4413 = vmatprep.subr.mxu0 0.0
  %4414 = vmatpush1.msra.mxu0 0.0
  %4415 = vmatprep.subr.mxu0 0.0
  %4416 = vmatpush1.msra.mxu0 0.0
  %4417 = vmatprep.subr.mxu0 0.0
  %4418 = vmatpush1.msra.mxu0 0.0
  %4419 = vmatprep.subr.mxu0 0.0
  %4420 = vmatpush1.msra.mxu0 0.0
  %4421 = vmatprep.mubr.f32.mxu0 0.0
  %4422 = vmatmul.mubr.f32.gmra.mrb[0].mxu0 %v3932
  %v4423 = vpop.f32.mrb[0].mxu0
  %v4424 = vadd.f32 %v4354, %v4423
  %v4425 = vpop.f32.mrb[0].mxu0
  %4426 = vdwg.mxu0
  %v4427 = vadd.f32 %v4424, %v778
  %v4428 = vxor.u32 %v4004, 2147483648
  %v4429 = vmul.f32 %v4428, 1.442695
  %v4430 = vpow.pop %v4429
  %v4431 = vadd.f32 %v4430, 1.0
  %v4432 = vrcp.pop %v4431
  %v4433 = vmul.f32 1.0, %v4432
  %v4434 = vxor.u32 %v4145, 2147483648
  %v4435 = vmul.f32 %v4434, 1.442695
  %v4436 = vpow.pop %v4435
  %v4437 = vadd.f32 %v4436, 1.0
  %v4438 = vrcp.pop %v4437
  %v4439 = vmul.f32 1.0, %v4438
  %v4440 = vtanh.pop %v4286
  %v4441 = vxor.u32 %v4427, 2147483648
  %v4442 = vmul.f32 %v4441, 1.442695
  %v4443 = vpow.pop %v4442
  %v4444 = vadd.f32 %v4443, 1.0
  %v4445 = vrcp.pop %v4444
  %v4446 = vmul.f32 1.0, %v4445
  %v4447 = vmul.f32 %v4439, %v3841
  %v4448 = vmul.f32 %v4433, %v4440
  %v4449 = vadd.f32 %v4447, %v4448
  %v4450 = vtanh.pop %v4449
  %v4451 = vmul.f32 %v4446, %v4450
  %p4452 = scmp.gt.s32.totalorder %s142, 6
  %s4453 = scalar_select %p4452, 0.0, -inf
  %vm4454 = vcmp.gt.s32.totalorder %v141, 6
  %v4455 = vmul.f32 %v140, %v4451
  %v4456 = vsel %vm4454, 1, 0
  %4457 = vset.pattern.permute.xlu0 0
  %4458 = vperm.xlu0 %4457, %v4456
  %v4459 = vpop.permute.xlu0 %4458
  %vm4460 = vcmp.eq.s32.totalorder %v4459, 1
  %v4461 = vstv %s4453
  %v4462 = vsel %vm4460, %v4455, %v4461
  %v4463 = vmax.f32 %v3855, %v4462
  %s4464 = scalar_lea.vmem %s1, 56
  %v4465 = vld [vmem:[%s4464] sm:$0xff]
  %v4467 = vsel %vm66, %v4451, 0
  %4469 = vmatprep.subr.mxu0 0.0
  %4470 = vmatpush1.msra.mxu0 %v162
  %4471 = vmatprep.subr.mxu0 0.0
  %4472 = vmatpush1.msra.mxu0 %v163
  %4473 = vmatprep.subr.mxu0 0.0
  %4474 = vmatpush1.msra.mxu0 %v164
  %4475 = vmatprep.subr.mxu0 0.0
  %4476 = vmatpush1.msra.mxu0 %v165
  %4477 = vmatprep.subr.mxu0 0.0
  %4478 = vmatpush1.msra.mxu0 0.0
  %4479 = vmatprep.subr.mxu0 0.0
  %4480 = vmatpush1.msra.mxu0 0.0
  %4481 = vmatprep.subr.mxu0 0.0
  %4482 = vmatpush1.msra.mxu0 0.0
  %4483 = vmatprep.subr.mxu0 0.0
  %4484 = vmatpush1.msra.mxu0 0.0
  %4485 = vmatprep.subr.mxu0 0.0
  %4486 = vmatpush1.msra.mxu0 0.0
  %4487 = vmatprep.subr.mxu0 0.0
  %4488 = vmatpush1.msra.mxu0 0.0
  %4489 = vmatprep.subr.mxu0 0.0
  %4490 = vmatpush1.msra.mxu0 0.0
  %4491 = vmatprep.subr.mxu0 0.0
  %4492 = vmatpush1.msra.mxu0 0.0
  %4493 = vmatprep.subr.mxu0 0.0
  %4494 = vmatpush1.msra.mxu0 0.0
  %4495 = vmatprep.subr.mxu0 0.0
  %4496 = vmatpush1.msra.mxu0 0.0
  %4497 = vmatprep.subr.mxu0 0.0
  %4498 = vmatpush1.msra.mxu0 0.0
  %4499 = vmatprep.subr.mxu0 0.0
  %4500 = vmatpush1.msra.mxu0 0.0
  %4501 = vmatprep.subr.mxu0 0.0
  %4502 = vmatpush1.msra.mxu0 0.0
  %4503 = vmatprep.subr.mxu0 0.0
  %4504 = vmatpush1.msra.mxu0 0.0
  %4505 = vmatprep.subr.mxu0 0.0
  %4506 = vmatpush1.msra.mxu0 0.0
  %4507 = vmatprep.subr.mxu0 0.0
  %4508 = vmatpush1.msra.mxu0 0.0
  %4509 = vmatprep.subr.mxu0 0.0
  %4510 = vmatpush1.msra.mxu0 0.0
  %4511 = vmatprep.subr.mxu0 0.0
  %4512 = vmatpush1.msra.mxu0 0.0
  %4513 = vmatprep.subr.mxu0 0.0
  %4514 = vmatpush1.msra.mxu0 0.0
  %4515 = vmatprep.subr.mxu0 0.0
  %4516 = vmatpush1.msra.mxu0 0.0
  %4517 = vmatprep.subr.mxu0 0.0
  %4518 = vmatpush1.msra.mxu0 0.0
  %4519 = vmatprep.subr.mxu0 0.0
  %4520 = vmatpush1.msra.mxu0 0.0
  %4521 = vmatprep.subr.mxu0 0.0
  %4522 = vmatpush1.msra.mxu0 0.0
  %4523 = vmatprep.subr.mxu0 0.0
  %4524 = vmatpush1.msra.mxu0 0.0
  %4525 = vmatprep.subr.mxu0 0.0
  %4526 = vmatpush1.msra.mxu0 0.0
  %4527 = vmatprep.subr.mxu0 0.0
  %4528 = vmatpush1.msra.mxu0 0.0
  %4529 = vmatprep.subr.mxu0 0.0
  %4530 = vmatpush1.msra.mxu0 0.0
  %4531 = vmatprep.subr.mxu0 0.0
  %4532 = vmatpush1.msra.mxu0 0.0
  %4533 = vmatprep.mubr.f32.mxu0 0.0
  %4534 = vmatmul.mubr.f32.gmra.mrb[0].mxu0 %v4467
  %v4535 = vpop.f32.mrb[0].mxu0
  %v4536 = vadd.f32 0.0, %v4535
  %v4537 = vpop.f32.mrb[0].mxu0
  %4538 = vdwg.mxu0
  %v4540 = vsel %vm66, %v4465, 0
  %4542 = vmatprep.subr.mxu0 0.0
  %4543 = vmatpush1.msra.mxu0 %v143
  %4544 = vmatprep.subr.mxu0 0.0
  %4545 = vmatpush1.msra.mxu0 %v144
  %4546 = vmatprep.subr.mxu0 0.0
  %4547 = vmatpush1.msra.mxu0 %v145
  %4548 = vmatprep.subr.mxu0 0.0
  %4549 = vmatpush1.msra.mxu0 %v146
  %4550 = vmatprep.subr.mxu0 0.0
  %4551 = vmatpush1.msra.mxu0 0.0
  %4552 = vmatprep.subr.mxu0 0.0
  %4553 = vmatpush1.msra.mxu0 0.0
  %4554 = vmatprep.subr.mxu0 0.0
  %4555 = vmatpush1.msra.mxu0 0.0
  %4556 = vmatprep.subr.mxu0 0.0
  %4557 = vmatpush1.msra.mxu0 0.0
  %4558 = vmatprep.subr.mxu0 0.0
  %4559 = vmatpush1.msra.mxu0 0.0
  %4560 = vmatprep.subr.mxu0 0.0
  %4561 = vmatpush1.msra.mxu0 0.0
  %4562 = vmatprep.subr.mxu0 0.0
  %4563 = vmatpush1.msra.mxu0 0.0
  %4564 = vmatprep.subr.mxu0 0.0
  %4565 = vmatpush1.msra.mxu0 0.0
  %4566 = vmatprep.subr.mxu0 0.0
  %4567 = vmatpush1.msra.mxu0 0.0
  %4568 = vmatprep.subr.mxu0 0.0
  %4569 = vmatpush1.msra.mxu0 0.0
  %4570 = vmatprep.subr.mxu0 0.0
  %4571 = vmatpush1.msra.mxu0 0.0
  %4572 = vmatprep.subr.mxu0 0.0
  %4573 = vmatpush1.msra.mxu0 0.0
  %4574 = vmatprep.subr.mxu0 0.0
  %4575 = vmatpush1.msra.mxu0 0.0
  %4576 = vmatprep.subr.mxu0 0.0
  %4577 = vmatpush1.msra.mxu0 0.0
  %4578 = vmatprep.subr.mxu0 0.0
  %4579 = vmatpush1.msra.mxu0 0.0
  %4580 = vmatprep.subr.mxu0 0.0
  %4581 = vmatpush1.msra.mxu0 0.0
  %4582 = vmatprep.subr.mxu0 0.0
  %4583 = vmatpush1.msra.mxu0 0.0
  %4584 = vmatprep.subr.mxu0 0.0
  %4585 = vmatpush1.msra.mxu0 0.0
  %4586 = vmatprep.subr.mxu0 0.0
  %4587 = vmatpush1.msra.mxu0 0.0
  %4588 = vmatprep.subr.mxu0 0.0
  %4589 = vmatpush1.msra.mxu0 0.0
  %4590 = vmatprep.subr.mxu0 0.0
  %4591 = vmatpush1.msra.mxu0 0.0
  %4592 = vmatprep.subr.mxu0 0.0
  %4593 = vmatpush1.msra.mxu0 0.0
  %4594 = vmatprep.subr.mxu0 0.0
  %4595 = vmatpush1.msra.mxu0 0.0
  %4596 = vmatprep.subr.mxu0 0.0
  %4597 = vmatpush1.msra.mxu0 0.0
  %4598 = vmatprep.subr.mxu0 0.0
  %4599 = vmatpush1.msra.mxu0 0.0
  %4600 = vmatprep.subr.mxu0 0.0
  %4601 = vmatpush1.msra.mxu0 0.0
  %4602 = vmatprep.subr.mxu0 0.0
  %4603 = vmatpush1.msra.mxu0 0.0
  %4604 = vmatprep.subr.mxu0 0.0
  %4605 = vmatpush1.msra.mxu0 0.0
  %4606 = vmatprep.mubr.f32.mxu0 0.0
  %4607 = vmatmul.mubr.f32.gmra.mrb[0].mxu0 %v4540
  %v4608 = vpop.f32.mrb[0].mxu0
  %v4609 = vadd.f32 %v4536, %v4608
  %v4610 = vpop.f32.mrb[0].mxu0
  %4611 = vdwg.mxu0
  %v4612 = vadd.f32 %v4609, %v337
  %4613 = vmatprep.subr.mxu0 0.0
  %4614 = vmatpush1.msra.mxu0 %v167
  %4615 = vmatprep.subr.mxu0 0.0
  %4616 = vmatpush1.msra.mxu0 %v168
  %4617 = vmatprep.subr.mxu0 0.0
  %4618 = vmatpush1.msra.mxu0 %v169
  %4619 = vmatprep.subr.mxu0 0.0
  %4620 = vmatpush1.msra.mxu0 %v170
  %4621 = vmatprep.subr.mxu0 0.0
  %4622 = vmatpush1.msra.mxu0 0.0
  %4623 = vmatprep.subr.mxu0 0.0
  %4624 = vmatpush1.msra.mxu0 0.0
  %4625 = vmatprep.subr.mxu0 0.0
  %4626 = vmatpush1.msra.mxu0 0.0
  %4627 = vmatprep.subr.mxu0 0.0
  %4628 = vmatpush1.msra.mxu0 0.0
  %4629 = vmatprep.subr.mxu0 0.0
  %4630 = vmatpush1.msra.mxu0 0.0
  %4631 = vmatprep.subr.mxu0 0.0
  %4632 = vmatpush1.msra.mxu0 0.0
  %4633 = vmatprep.subr.mxu0 0.0
  %4634 = vmatpush1.msra.mxu0 0.0
  %4635 = vmatprep.subr.mxu0 0.0
  %4636 = vmatpush1.msra.mxu0 0.0
  %4637 = vmatprep.subr.mxu0 0.0
  %4638 = vmatpush1.msra.mxu0 0.0
  %4639 = vmatprep.subr.mxu0 0.0
  %4640 = vmatpush1.msra.mxu0 0.0
  %4641 = vmatprep.subr.mxu0 0.0
  %4642 = vmatpush1.msra.mxu0 0.0
  %4643 = vmatprep.subr.mxu0 0.0
  %4644 = vmatpush1.msra.mxu0 0.0
  %4645 = vmatprep.subr.mxu0 0.0
  %4646 = vmatpush1.msra.mxu0 0.0
  %4647 = vmatprep.subr.mxu0 0.0
  %4648 = vmatpush1.msra.mxu0 0.0
  %4649 = vmatprep.subr.mxu0 0.0
  %4650 = vmatpush1.msra.mxu0 0.0
  %4651 = vmatprep.subr.mxu0 0.0
  %4652 = vmatpush1.msra.mxu0 0.0
  %4653 = vmatprep.subr.mxu0 0.0
  %4654 = vmatpush1.msra.mxu0 0.0
  %4655 = vmatprep.subr.mxu0 0.0
  %4656 = vmatpush1.msra.mxu0 0.0
  %4657 = vmatprep.subr.mxu0 0.0
  %4658 = vmatpush1.msra.mxu0 0.0
  %4659 = vmatprep.subr.mxu0 0.0
  %4660 = vmatpush1.msra.mxu0 0.0
  %4661 = vmatprep.subr.mxu0 0.0
  %4662 = vmatpush1.msra.mxu0 0.0
  %4663 = vmatprep.subr.mxu0 0.0
  %4664 = vmatpush1.msra.mxu0 0.0
  %4665 = vmatprep.subr.mxu0 0.0
  %4666 = vmatpush1.msra.mxu0 0.0
  %4667 = vmatprep.subr.mxu0 0.0
  %4668 = vmatpush1.msra.mxu0 0.0
  %4669 = vmatprep.subr.mxu0 0.0
  %4670 = vmatpush1.msra.mxu0 0.0
  %4671 = vmatprep.subr.mxu0 0.0
  %4672 = vmatpush1.msra.mxu0 0.0
  %4673 = vmatprep.subr.mxu0 0.0
  %4674 = vmatpush1.msra.mxu0 0.0
  %4675 = vmatprep.subr.mxu0 0.0
  %4676 = vmatpush1.msra.mxu0 0.0
  %4677 = vmatprep.mubr.f32.mxu0 0.0
  %4678 = vmatmul.mubr.f32.gmra.mrb[0].mxu0 %v4467
  %v4679 = vpop.f32.mrb[0].mxu0
  %v4680 = vadd.f32 0.0, %v4679
  %v4681 = vpop.f32.mrb[0].mxu0
  %4682 = vdwg.mxu0
  %4683 = vmatprep.subr.mxu0 0.0
  %4684 = vmatpush1.msra.mxu0 %v148
  %4685 = vmatprep.subr.mxu0 0.0
  %4686 = vmatpush1.msra.mxu0 %v149
  %4687 = vmatprep.subr.mxu0 0.0
  %4688 = vmatpush1.msra.mxu0 %v150
  %4689 = vmatprep.subr.mxu0 0.0
  %4690 = vmatpush1.msra.mxu0 %v151
  %4691 = vmatprep.subr.mxu0 0.0
  %4692 = vmatpush1.msra.mxu0 0.0
  %4693 = vmatprep.subr.mxu0 0.0
  %4694 = vmatpush1.msra.mxu0 0.0
  %4695 = vmatprep.subr.mxu0 0.0
  %4696 = vmatpush1.msra.mxu0 0.0
  %4697 = vmatprep.subr.mxu0 0.0
  %4698 = vmatpush1.msra.mxu0 0.0
  %4699 = vmatprep.subr.mxu0 0.0
  %4700 = vmatpush1.msra.mxu0 0.0
  %4701 = vmatprep.subr.mxu0 0.0
  %4702 = vmatpush1.msra.mxu0 0.0
  %4703 = vmatprep.subr.mxu0 0.0
  %4704 = vmatpush1.msra.mxu0 0.0
  %4705 = vmatprep.subr.mxu0 0.0
  %4706 = vmatpush1.msra.mxu0 0.0
  %4707 = vmatprep.subr.mxu0 0.0
  %4708 = vmatpush1.msra.mxu0 0.0
  %4709 = vmatprep.subr.mxu0 0.0
  %4710 = vmatpush1.msra.mxu0 0.0
  %4711 = vmatprep.subr.mxu0 0.0
  %4712 = vmatpush1.msra.mxu0 0.0
  %4713 = vmatprep.subr.mxu0 0.0
  %4714 = vmatpush1.msra.mxu0 0.0
  %4715 = vmatprep.subr.mxu0 0.0
  %4716 = vmatpush1.msra.mxu0 0.0
  %4717 = vmatprep.subr.mxu0 0.0
  %4718 = vmatpush1.msra.mxu0 0.0
  %4719 = vmatprep.subr.mxu0 0.0
  %4720 = vmatpush1.msra.mxu0 0.0
  %4721 = vmatprep.subr.mxu0 0.0
  %4722 = vmatpush1.msra.mxu0 0.0
  %4723 = vmatprep.subr.mxu0 0.0
  %4724 = vmatpush1.msra.mxu0 0.0
  %4725 = vmatprep.subr.mxu0 0.0
  %4726 = vmatpush1.msra.mxu0 0.0
  %4727 = vmatprep.subr.mxu0 0.0
  %4728 = vmatpush1.msra.mxu0 0.0
  %4729 = vmatprep.subr.mxu0 0.0
  %4730 = vmatpush1.msra.mxu0 0.0
  %4731 = vmatprep.subr.mxu0 0.0
  %4732 = vmatpush1.msra.mxu0 0.0
  %4733 = vmatprep.subr.mxu0 0.0
  %4734 = vmatpush1.msra.mxu0 0.0
  %4735 = vmatprep.subr.mxu0 0.0
  %4736 = vmatpush1.msra.mxu0 0.0
  %4737 = vmatprep.subr.mxu0 0.0
  %4738 = vmatpush1.msra.mxu0 0.0
  %4739 = vmatprep.subr.mxu0 0.0
  %4740 = vmatpush1.msra.mxu0 0.0
  %4741 = vmatprep.subr.mxu0 0.0
  %4742 = vmatpush1.msra.mxu0 0.0
  %4743 = vmatprep.subr.mxu0 0.0
  %4744 = vmatpush1.msra.mxu0 0.0
  %4745 = vmatprep.subr.mxu0 0.0
  %4746 = vmatpush1.msra.mxu0 0.0
  %4747 = vmatprep.mubr.f32.mxu0 0.0
  %4748 = vmatmul.mubr.f32.gmra.mrb[0].mxu0 %v4540
  %v4749 = vpop.f32.mrb[0].mxu0
  %v4750 = vadd.f32 %v4680, %v4749
  %v4751 = vpop.f32.mrb[0].mxu0
  %4752 = vdwg.mxu0
  %v4753 = vadd.f32 %v4750, %v484
  %4754 = vmatprep.subr.mxu0 0.0
  %4755 = vmatpush1.msra.mxu0 %v172
  %4756 = vmatprep.subr.mxu0 0.0
  %4757 = vmatpush1.msra.mxu0 %v173
  %4758 = vmatprep.subr.mxu0 0.0
  %4759 = vmatpush1.msra.mxu0 %v174
  %4760 = vmatprep.subr.mxu0 0.0
  %4761 = vmatpush1.msra.mxu0 %v175
  %4762 = vmatprep.subr.mxu0 0.0
  %4763 = vmatpush1.msra.mxu0 0.0
  %4764 = vmatprep.subr.mxu0 0.0
  %4765 = vmatpush1.msra.mxu0 0.0
  %4766 = vmatprep.subr.mxu0 0.0
  %4767 = vmatpush1.msra.mxu0 0.0
  %4768 = vmatprep.subr.mxu0 0.0
  %4769 = vmatpush1.msra.mxu0 0.0
  %4770 = vmatprep.subr.mxu0 0.0
  %4771 = vmatpush1.msra.mxu0 0.0
  %4772 = vmatprep.subr.mxu0 0.0
  %4773 = vmatpush1.msra.mxu0 0.0
  %4774 = vmatprep.subr.mxu0 0.0
  %4775 = vmatpush1.msra.mxu0 0.0
  %4776 = vmatprep.subr.mxu0 0.0
  %4777 = vmatpush1.msra.mxu0 0.0
  %4778 = vmatprep.subr.mxu0 0.0
  %4779 = vmatpush1.msra.mxu0 0.0
  %4780 = vmatprep.subr.mxu0 0.0
  %4781 = vmatpush1.msra.mxu0 0.0
  %4782 = vmatprep.subr.mxu0 0.0
  %4783 = vmatpush1.msra.mxu0 0.0
  %4784 = vmatprep.subr.mxu0 0.0
  %4785 = vmatpush1.msra.mxu0 0.0
  %4786 = vmatprep.subr.mxu0 0.0
  %4787 = vmatpush1.msra.mxu0 0.0
  %4788 = vmatprep.subr.mxu0 0.0
  %4789 = vmatpush1.msra.mxu0 0.0
  %4790 = vmatprep.subr.mxu0 0.0
  %4791 = vmatpush1.msra.mxu0 0.0
  %4792 = vmatprep.subr.mxu0 0.0
  %4793 = vmatpush1.msra.mxu0 0.0
  %4794 = vmatprep.subr.mxu0 0.0
  %4795 = vmatpush1.msra.mxu0 0.0
  %4796 = vmatprep.subr.mxu0 0.0
  %4797 = vmatpush1.msra.mxu0 0.0
  %4798 = vmatprep.subr.mxu0 0.0
  %4799 = vmatpush1.msra.mxu0 0.0
  %4800 = vmatprep.subr.mxu0 0.0
  %4801 = vmatpush1.msra.mxu0 0.0
  %4802 = vmatprep.subr.mxu0 0.0
  %4803 = vmatpush1.msra.mxu0 0.0
  %4804 = vmatprep.subr.mxu0 0.0
  %4805 = vmatpush1.msra.mxu0 0.0
  %4806 = vmatprep.subr.mxu0 0.0
  %4807 = vmatpush1.msra.mxu0 0.0
  %4808 = vmatprep.subr.mxu0 0.0
  %4809 = vmatpush1.msra.mxu0 0.0
  %4810 = vmatprep.subr.mxu0 0.0
  %4811 = vmatpush1.msra.mxu0 0.0
  %4812 = vmatprep.subr.mxu0 0.0
  %4813 = vmatpush1.msra.mxu0 0.0
  %4814 = vmatprep.subr.mxu0 0.0
  %4815 = vmatpush1.msra.mxu0 0.0
  %4816 = vmatprep.subr.mxu0 0.0
  %4817 = vmatpush1.msra.mxu0 0.0
  %4818 = vmatprep.mubr.f32.mxu0 0.0
  %4819 = vmatmul.mubr.f32.gmra.mrb[0].mxu0 %v4467
  %v4820 = vpop.f32.mrb[0].mxu0
  %v4821 = vadd.f32 0.0, %v4820
  %v4822 = vpop.f32.mrb[0].mxu0
  %4823 = vdwg.mxu0
  %4824 = vmatprep.subr.mxu0 0.0
  %4825 = vmatpush1.msra.mxu0 %v153
  %4826 = vmatprep.subr.mxu0 0.0
  %4827 = vmatpush1.msra.mxu0 %v154
  %4828 = vmatprep.subr.mxu0 0.0
  %4829 = vmatpush1.msra.mxu0 %v155
  %4830 = vmatprep.subr.mxu0 0.0
  %4831 = vmatpush1.msra.mxu0 %v156
  %4832 = vmatprep.subr.mxu0 0.0
  %4833 = vmatpush1.msra.mxu0 0.0
  %4834 = vmatprep.subr.mxu0 0.0
  %4835 = vmatpush1.msra.mxu0 0.0
  %4836 = vmatprep.subr.mxu0 0.0
  %4837 = vmatpush1.msra.mxu0 0.0
  %4838 = vmatprep.subr.mxu0 0.0
  %4839 = vmatpush1.msra.mxu0 0.0
  %4840 = vmatprep.subr.mxu0 0.0
  %4841 = vmatpush1.msra.mxu0 0.0
  %4842 = vmatprep.subr.mxu0 0.0
  %4843 = vmatpush1.msra.mxu0 0.0
  %4844 = vmatprep.subr.mxu0 0.0
  %4845 = vmatpush1.msra.mxu0 0.0
  %4846 = vmatprep.subr.mxu0 0.0
  %4847 = vmatpush1.msra.mxu0 0.0
  %4848 = vmatprep.subr.mxu0 0.0
  %4849 = vmatpush1.msra.mxu0 0.0
  %4850 = vmatprep.subr.mxu0 0.0
  %4851 = vmatpush1.msra.mxu0 0.0
  %4852 = vmatprep.subr.mxu0 0.0
  %4853 = vmatpush1.msra.mxu0 0.0
  %4854 = vmatprep.subr.mxu0 0.0
  %4855 = vmatpush1.msra.mxu0 0.0
  %4856 = vmatprep.subr.mxu0 0.0
  %4857 = vmatpush1.msra.mxu0 0.0
  %4858 = vmatprep.subr.mxu0 0.0
  %4859 = vmatpush1.msra.mxu0 0.0
  %4860 = vmatprep.subr.mxu0 0.0
  %4861 = vmatpush1.msra.mxu0 0.0
  %4862 = vmatprep.subr.mxu0 0.0
  %4863 = vmatpush1.msra.mxu0 0.0
  %4864 = vmatprep.subr.mxu0 0.0
  %4865 = vmatpush1.msra.mxu0 0.0
  %4866 = vmatprep.subr.mxu0 0.0
  %4867 = vmatpush1.msra.mxu0 0.0
  %4868 = vmatprep.subr.mxu0 0.0
  %4869 = vmatpush1.msra.mxu0 0.0
  %4870 = vmatprep.subr.mxu0 0.0
  %4871 = vmatpush1.msra.mxu0 0.0
  %4872 = vmatprep.subr.mxu0 0.0
  %4873 = vmatpush1.msra.mxu0 0.0
  %4874 = vmatprep.subr.mxu0 0.0
  %4875 = vmatpush1.msra.mxu0 0.0
  %4876 = vmatprep.subr.mxu0 0.0
  %4877 = vmatpush1.msra.mxu0 0.0
  %4878 = vmatprep.subr.mxu0 0.0
  %4879 = vmatpush1.msra.mxu0 0.0
  %4880 = vmatprep.subr.mxu0 0.0
  %4881 = vmatpush1.msra.mxu0 0.0
  %4882 = vmatprep.subr.mxu0 0.0
  %4883 = vmatpush1.msra.mxu0 0.0
  %4884 = vmatprep.subr.mxu0 0.0
  %4885 = vmatpush1.msra.mxu0 0.0
  %4886 = vmatprep.subr.mxu0 0.0
  %4887 = vmatpush1.msra.mxu0 0.0
  %4888 = vmatprep.mubr.f32.mxu0 0.0
  %4889 = vmatmul.mubr.f32.gmra.mrb[0].mxu0 %v4540
  %v4890 = vpop.f32.mrb[0].mxu0
  %v4891 = vadd.f32 %v4821, %v4890
  %v4892 = vpop.f32.mrb[0].mxu0
  %4893 = vdwg.mxu0
  %v4894 = vadd.f32 %v4891, %v631
  %4895 = vmatprep.subr.mxu0 0.0
  %4896 = vmatpush1.msra.mxu0 %v177
  %4897 = vmatprep.subr.mxu0 0.0
  %4898 = vmatpush1.msra.mxu0 %v178
  %4899 = vmatprep.subr.mxu0 0.0
  %4900 = vmatpush1.msra.mxu0 %v179
  %4901 = vmatprep.subr.mxu0 0.0
  %4902 = vmatpush1.msra.mxu0 %v180
  %4903 = vmatprep.subr.mxu0 0.0
  %4904 = vmatpush1.msra.mxu0 0.0
  %4905 = vmatprep.subr.mxu0 0.0
  %4906 = vmatpush1.msra.mxu0 0.0
  %4907 = vmatprep.subr.mxu0 0.0
  %4908 = vmatpush1.msra.mxu0 0.0
  %4909 = vmatprep.subr.mxu0 0.0
  %4910 = vmatpush1.msra.mxu0 0.0
  %4911 = vmatprep.subr.mxu0 0.0
  %4912 = vmatpush1.msra.mxu0 0.0
  %4913 = vmatprep.subr.mxu0 0.0
  %4914 = vmatpush1.msra.mxu0 0.0
  %4915 = vmatprep.subr.mxu0 0.0
  %4916 = vmatpush1.msra.mxu0 0.0
  %4917 = vmatprep.subr.mxu0 0.0
  %4918 = vmatpush1.msra.mxu0 0.0
  %4919 = vmatprep.subr.mxu0 0.0
  %4920 = vmatpush1.msra.mxu0 0.0
  %4921 = vmatprep.subr.mxu0 0.0
  %4922 = vmatpush1.msra.mxu0 0.0
  %4923 = vmatprep.subr.mxu0 0.0
  %4924 = vmatpush1.msra.mxu0 0.0
  %4925 = vmatprep.subr.mxu0 0.0
  %4926 = vmatpush1.msra.mxu0 0.0
  %4927 = vmatprep.subr.mxu0 0.0
  %4928 = vmatpush1.msra.mxu0 0.0
  %4929 = vmatprep.subr.mxu0 0.0
  %4930 = vmatpush1.msra.mxu0 0.0
  %4931 = vmatprep.subr.mxu0 0.0
  %4932 = vmatpush1.msra.mxu0 0.0
  %4933 = vmatprep.subr.mxu0 0.0
  %4934 = vmatpush1.msra.mxu0 0.0
  %4935 = vmatprep.subr.mxu0 0.0
  %4936 = vmatpush1.msra.mxu0 0.0
  %4937 = vmatprep.subr.mxu0 0.0
  %4938 = vmatpush1.msra.mxu0 0.0
  %4939 = vmatprep.subr.mxu0 0.0
  %4940 = vmatpush1.msra.mxu0 0.0
  %4941 = vmatprep.subr.mxu0 0.0
  %4942 = vmatpush1.msra.mxu0 0.0
  %4943 = vmatprep.subr.mxu0 0.0
  %4944 = vmatpush1.msra.mxu0 0.0
  %4945 = vmatprep.subr.mxu0 0.0
  %4946 = vmatpush1.msra.mxu0 0.0
  %4947 = vmatprep.subr.mxu0 0.0
  %4948 = vmatpush1.msra.mxu0 0.0
  %4949 = vmatprep.subr.mxu0 0.0
  %4950 = vmatpush1.msra.mxu0 0.0
  %4951 = vmatprep.subr.mxu0 0.0
  %4952 = vmatpush1.msra.mxu0 0.0
  %4953 = vmatprep.subr.mxu0 0.0
  %4954 = vmatpush1.msra.mxu0 0.0
  %4955 = vmatprep.subr.mxu0 0.0
  %4956 = vmatpush1.msra.mxu0 0.0
  %4957 = vmatprep.subr.mxu0 0.0
  %4958 = vmatpush1.msra.mxu0 0.0
  %4959 = vmatprep.mubr.f32.mxu0 0.0
  %4960 = vmatmul.mubr.f32.gmra.mrb[0].mxu0 %v4467
  %v4961 = vpop.f32.mrb[0].mxu0
  %v4962 = vadd.f32 0.0, %v4961
  %v4963 = vpop.f32.mrb[0].mxu0
  %4964 = vdwg.mxu0
  %4965 = vmatprep.subr.mxu0 0.0
  %4966 = vmatpush1.msra.mxu0 %v158
  %4967 = vmatprep.subr.mxu0 0.0
  %4968 = vmatpush1.msra.mxu0 %v159
  %4969 = vmatprep.subr.mxu0 0.0
  %4970 = vmatpush1.msra.mxu0 %v160
  %4971 = vmatprep.subr.mxu0 0.0
  %4972 = vmatpush1.msra.mxu0 %v161
  %4973 = vmatprep.subr.mxu0 0.0
  %4974 = vmatpush1.msra.mxu0 0.0
  %4975 = vmatprep.subr.mxu0 0.0
  %4976 = vmatpush1.msra.mxu0 0.0
  %4977 = vmatprep.subr.mxu0 0.0
  %4978 = vmatpush1.msra.mxu0 0.0
  %4979 = vmatprep.subr.mxu0 0.0
  %4980 = vmatpush1.msra.mxu0 0.0
  %4981 = vmatprep.subr.mxu0 0.0
  %4982 = vmatpush1.msra.mxu0 0.0
  %4983 = vmatprep.subr.mxu0 0.0
  %4984 = vmatpush1.msra.mxu0 0.0
  %4985 = vmatprep.subr.mxu0 0.0
  %4986 = vmatpush1.msra.mxu0 0.0
  %4987 = vmatprep.subr.mxu0 0.0
  %4988 = vmatpush1.msra.mxu0 0.0
  %4989 = vmatprep.subr.mxu0 0.0
  %4990 = vmatpush1.msra.mxu0 0.0
  %4991 = vmatprep.subr.mxu0 0.0
  %4992 = vmatpush1.msra.mxu0 0.0
  %4993 = vmatprep.subr.mxu0 0.0
  %4994 = vmatpush1.msra.mxu0 0.0
  %4995 = vmatprep.subr.mxu0 0.0
  %4996 = vmatpush1.msra.mxu0 0.0
  %4997 = vmatprep.subr.mxu0 0.0
  %4998 = vmatpush1.msra.mxu0 0.0
  %4999 = vmatprep.subr.mxu0 0.0
  %5000 = vmatpush1.msra.mxu0 0.0
  %5001 = vmatprep.subr.mxu0 0.0
  %5002 = vmatpush1.msra.mxu0 0.0
  %5003 = vmatprep.subr.mxu0 0.0
  %5004 = vmatpush1.msra.mxu0 0.0
  %5005 = vmatprep.subr.mxu0 0.0
  %5006 = vmatpush1.msra.mxu0 0.0
  %5007 = vmatprep.subr.mxu0 0.0
  %5008 = vmatpush1.msra.mxu0 0.0
  %5009 = vmatprep.subr.mxu0 0.0
  %5010 = vmatpush1.msra.mxu0 0.0
  %5011 = vmatprep.subr.mxu0 0.0
  %5012 = vmatpush1.msra.mxu0 0.0
  %5013 = vmatprep.subr.mxu0 0.0
  %5014 = vmatpush1.msra.mxu0 0.0
  %5015 = vmatprep.subr.mxu0 0.0
  %5016 = vmatpush1.msra.mxu0 0.0
  %5017 = vmatprep.subr.mxu0 0.0
  %5018 = vmatpush1.msra.mxu0 0.0
  %5019 = vmatprep.subr.mxu0 0.0
  %5020 = vmatpush1.msra.mxu0 0.0
  %5021 = vmatprep.subr.mxu0 0.0
  %5022 = vmatpush1.msra.mxu0 0.0
  %5023 = vmatprep.subr.mxu0 0.0
  %5024 = vmatpush1.msra.mxu0 0.0
  %5025 = vmatprep.subr.mxu0 0.0
  %5026 = vmatpush1.msra.mxu0 0.0
  %5027 = vmatprep.subr.mxu0 0.0
  %5028 = vmatpush1.msra.mxu0 0.0
  %5029 = vmatprep.mubr.f32.mxu0 0.0
  %5030 = vmatmul.mubr.f32.gmra.mrb[0].mxu0 %v4540
  %v5031 = vpop.f32.mrb[0].mxu0
  %v5032 = vadd.f32 %v4962, %v5031
  %v5033 = vpop.f32.mrb[0].mxu0
  %5034 = vdwg.mxu0
  %v5035 = vadd.f32 %v5032, %v778
  %v5036 = vxor.u32 %v4612, 2147483648
  %v5037 = vmul.f32 %v5036, 1.442695
  %v5038 = vpow.pop %v5037
  %v5039 = vadd.f32 %v5038, 1.0
  %v5040 = vrcp.pop %v5039
  %v5041 = vmul.f32 1.0, %v5040
  %v5042 = vxor.u32 %v4753, 2147483648
  %v5043 = vmul.f32 %v5042, 1.442695
  %v5044 = vpow.pop %v5043
  %v5045 = vadd.f32 %v5044, 1.0
  %v5046 = vrcp.pop %v5045
  %v5047 = vmul.f32 1.0, %v5046
  %v5048 = vtanh.pop %v4894
  %v5049 = vxor.u32 %v5035, 2147483648
  %v5050 = vmul.f32 %v5049, 1.442695
  %v5051 = vpow.pop %v5050
  %v5052 = vadd.f32 %v5051, 1.0
  %v5053 = vrcp.pop %v5052
  %v5054 = vmul.f32 1.0, %v5053
  %v5055 = vmul.f32 %v5047, %v4449
  %v5056 = vmul.f32 %v5041, %v5048
  %v5057 = vadd.f32 %v5055, %v5056
  %v5058 = vtanh.pop %v5057
  %v5059 = vmul.f32 %v5054, %v5058
  %p5060 = scmp.gt.s32.totalorder %s142, 7
  %s5061 = scalar_select %p5060, 0.0, -inf
  %vm5062 = vcmp.gt.s32.totalorder %v141, 7
  %v5063 = vmul.f32 %v140, %v5059
  %v5064 = vsel %vm5062, 1, 0
  %5065 = vset.pattern.permute.xlu0 0
  %5066 = vperm.xlu0 %5065, %v5064
  %v5067 = vpop.permute.xlu0 %5066
  %vm5068 = vcmp.eq.s32.totalorder %v5067, 1
  %v5069 = vstv %s5061
  %v5070 = vsel %vm5068, %v5063, %v5069
  %v5071 = vmax.f32 %v4463, %v5070
  %v5072 = vld [vmem:[%s5] sm:$0xff]
  %v5073 = vld [vmem:[%s6] sm:$0xff]
  %v5074 = vld [vmem:[%s11] sm:$0xff]
  %v5075 = vld [vmem:[%s11 + $0x8] sm:$0xff]
  %v5076 = vld [vmem:[%s11 + $0x10] sm:$0xff]
  %v5077 = vld [vmem:[%s11 + $0x18] sm:$0xff]
  %v5078 = vld [vmem:[%s12] sm:$0xff]
  %v5079 = vld [vmem:[%s12 + $0x8] sm:$0xff]
  %v5080 = vld [vmem:[%s12 + $0x10] sm:$0xff]
  %v5081 = vld [vmem:[%s12 + $0x18] sm:$0xff]
  %v5083 = vsel %vm66, %v5071, 0
  %5085 = vmatprep.subr.mxu0 0.0
  %5086 = vmatpush1.msra.mxu0 %v5078
  %5087 = vmatprep.subr.mxu0 0.0
  %5088 = vmatpush1.msra.mxu0 %v5079
  %5089 = vmatprep.subr.mxu0 0.0
  %5090 = vmatpush1.msra.mxu0 %v5080
  %5091 = vmatprep.subr.mxu0 0.0
  %5092 = vmatpush1.msra.mxu0 %v5081
  %5093 = vmatprep.subr.mxu0 0.0
  %5094 = vmatpush1.msra.mxu0 0.0
  %5095 = vmatprep.subr.mxu0 0.0
  %5096 = vmatpush1.msra.mxu0 0.0
  %5097 = vmatprep.subr.mxu0 0.0
  %5098 = vmatpush1.msra.mxu0 0.0
  %5099 = vmatprep.subr.mxu0 0.0
  %5100 = vmatpush1.msra.mxu0 0.0
  %5101 = vmatprep.subr.mxu0 0.0
  %5102 = vmatpush1.msra.mxu0 0.0
  %5103 = vmatprep.subr.mxu0 0.0
  %5104 = vmatpush1.msra.mxu0 0.0
  %5105 = vmatprep.subr.mxu0 0.0
  %5106 = vmatpush1.msra.mxu0 0.0
  %5107 = vmatprep.subr.mxu0 0.0
  %5108 = vmatpush1.msra.mxu0 0.0
  %5109 = vmatprep.subr.mxu0 0.0
  %5110 = vmatpush1.msra.mxu0 0.0
  %5111 = vmatprep.subr.mxu0 0.0
  %5112 = vmatpush1.msra.mxu0 0.0
  %5113 = vmatprep.subr.mxu0 0.0
  %5114 = vmatpush1.msra.mxu0 0.0
  %5115 = vmatprep.subr.mxu0 0.0
  %5116 = vmatpush1.msra.mxu0 0.0
  %5117 = vmatprep.subr.mxu0 0.0
  %5118 = vmatpush1.msra.mxu0 0.0
  %5119 = vmatprep.subr.mxu0 0.0
  %5120 = vmatpush1.msra.mxu0 0.0
  %5121 = vmatprep.subr.mxu0 0.0
  %5122 = vmatpush1.msra.mxu0 0.0
  %5123 = vmatprep.subr.mxu0 0.0
  %5124 = vmatpush1.msra.mxu0 0.0
  %5125 = vmatprep.subr.mxu0 0.0
  %5126 = vmatpush1.msra.mxu0 0.0
  %5127 = vmatprep.subr.mxu0 0.0
  %5128 = vmatpush1.msra.mxu0 0.0
  %5129 = vmatprep.subr.mxu0 0.0
  %5130 = vmatpush1.msra.mxu0 0.0
  %5131 = vmatprep.subr.mxu0 0.0
  %5132 = vmatpush1.msra.mxu0 0.0
  %5133 = vmatprep.subr.mxu0 0.0
  %5134 = vmatpush1.msra.mxu0 0.0
  %5135 = vmatprep.subr.mxu0 0.0
  %5136 = vmatpush1.msra.mxu0 0.0
  %5137 = vmatprep.subr.mxu0 0.0
  %5138 = vmatpush1.msra.mxu0 0.0
  %5139 = vmatprep.subr.mxu0 0.0
  %5140 = vmatpush1.msra.mxu0 0.0
  %5141 = vmatprep.subr.mxu0 0.0
  %5142 = vmatpush1.msra.mxu0 0.0
  %5143 = vmatprep.subr.mxu0 0.0
  %5144 = vmatpush1.msra.mxu0 0.0
  %5145 = vmatprep.subr.mxu0 0.0
  %5146 = vmatpush1.msra.mxu0 0.0
  %5147 = vmatprep.subr.mxu0 0.0
  %5148 = vmatpush1.msra.mxu0 0.0
  %5149 = vmatprep.mubr.f32.mxu0 0.0
  %5150 = vmatmul.mubr.f32.gmra.mrb[0].mxu0 %v5083
  %v5151 = vpop.f32.mrb[0].mxu0
  %v5152 = vadd.f32 0.0, %v5151
  %v5153 = vpop.f32.mrb[0].mxu0
  %5154 = vdwg.mxu0
  %v5156 = vsel %vm66, %v5072, 0
  %5158 = vmatprep.subr.mxu0 0.0
  %5159 = vmatpush1.msra.mxu0 %v5074
  %5160 = vmatprep.subr.mxu0 0.0
  %5161 = vmatpush1.msra.mxu0 %v5075
  %5162 = vmatprep.subr.mxu0 0.0
  %5163 = vmatpush1.msra.mxu0 %v5076
  %5164 = vmatprep.subr.mxu0 0.0
  %5165 = vmatpush1.msra.mxu0 %v5077
  %5166 = vmatprep.subr.mxu0 0.0
  %5167 = vmatpush1.msra.mxu0 0.0
  %5168 = vmatprep.subr.mxu0 0.0
  %5169 = vmatpush1.msra.mxu0 0.0
  %5170 = vmatprep.subr.mxu0 0.0
  %5171 = vmatpush1.msra.mxu0 0.0
  %5172 = vmatprep.subr.mxu0 0.0
  %5173 = vmatpush1.msra.mxu0 0.0
  %5174 = vmatprep.subr.mxu0 0.0
  %5175 = vmatpush1.msra.mxu0 0.0
  %5176 = vmatprep.subr.mxu0 0.0
  %5177 = vmatpush1.msra.mxu0 0.0
  %5178 = vmatprep.subr.mxu0 0.0
  %5179 = vmatpush1.msra.mxu0 0.0
  %5180 = vmatprep.subr.mxu0 0.0
  %5181 = vmatpush1.msra.mxu0 0.0
  %5182 = vmatprep.subr.mxu0 0.0
  %5183 = vmatpush1.msra.mxu0 0.0
  %5184 = vmatprep.subr.mxu0 0.0
  %5185 = vmatpush1.msra.mxu0 0.0
  %5186 = vmatprep.subr.mxu0 0.0
  %5187 = vmatpush1.msra.mxu0 0.0
  %5188 = vmatprep.subr.mxu0 0.0
  %5189 = vmatpush1.msra.mxu0 0.0
  %5190 = vmatprep.subr.mxu0 0.0
  %5191 = vmatpush1.msra.mxu0 0.0
  %5192 = vmatprep.subr.mxu0 0.0
  %5193 = vmatpush1.msra.mxu0 0.0
  %5194 = vmatprep.subr.mxu0 0.0
  %5195 = vmatpush1.msra.mxu0 0.0
  %5196 = vmatprep.subr.mxu0 0.0
  %5197 = vmatpush1.msra.mxu0 0.0
  %5198 = vmatprep.subr.mxu0 0.0
  %5199 = vmatpush1.msra.mxu0 0.0
  %5200 = vmatprep.subr.mxu0 0.0
  %5201 = vmatpush1.msra.mxu0 0.0
  %5202 = vmatprep.subr.mxu0 0.0
  %5203 = vmatpush1.msra.mxu0 0.0
  %5204 = vmatprep.subr.mxu0 0.0
  %5205 = vmatpush1.msra.mxu0 0.0
  %5206 = vmatprep.subr.mxu0 0.0
  %5207 = vmatpush1.msra.mxu0 0.0
  %5208 = vmatprep.subr.mxu0 0.0
  %5209 = vmatpush1.msra.mxu0 0.0
  %5210 = vmatprep.subr.mxu0 0.0
  %5211 = vmatpush1.msra.mxu0 0.0
  %5212 = vmatprep.subr.mxu0 0.0
  %5213 = vmatpush1.msra.mxu0 0.0
  %5214 = vmatprep.subr.mxu0 0.0
  %5215 = vmatpush1.msra.mxu0 0.0
  %5216 = vmatprep.subr.mxu0 0.0
  %5217 = vmatpush1.msra.mxu0 0.0
  %5218 = vmatprep.subr.mxu0 0.0
  %5219 = vmatpush1.msra.mxu0 0.0
  %5220 = vmatprep.subr.mxu0 0.0
  %5221 = vmatpush1.msra.mxu0 0.0
  %5222 = vmatprep.mubr.f32.mxu0 0.0
  %5223 = vmatmul.mubr.f32.gmra.mrb[0].mxu0 %v5156
  %v5224 = vpop.f32.mrb[0].mxu0
  %v5225 = vadd.f32 %v5152, %v5224
  %v5226 = vpop.f32.mrb[0].mxu0
  %5227 = vdwg.mxu0
  %5229 = vrot.lane.b32.xlu0 %v5073, 32
  %v5230 = vpop.permute.xlu0 %5229
  %5232 = vrot.lane.b32.xlu0 %v5073, 64
  %v5233 = vpop.permute.xlu0 %5232
  %5235 = vrot.lane.b32.xlu0 %v5073, 96
  %v5236 = vpop.permute.xlu0 %5235
  %v5238 = vsel %vm66, %v5073, %v5230
  %vm5239 = vcmask 523264
  %v5240 = vsel %vm5239, %v5238, %v5233
  %vm5241 = vcmask 785408
  %v5242 = vsel %vm5241, %v5240, %v5236
  %v5243 = vmul.f32 %v5225, %v5242
  %v5244 = vld [vmem:[%s13] sm:$0xff]
  %v5245 = vld [vmem:[%s13 + $0x8] sm:$0xff]
  %v5246 = vld [vmem:[%s13 + $0x10] sm:$0xff]
  %v5247 = vld [vmem:[%s13 + $0x18] sm:$0xff]
  %v5248 = vld [vmem:[%s13 + $0x20] sm:$0xff]
  %v5249 = vld [vmem:[%s13 + $0x28] sm:$0xff]
  %v5250 = vld [vmem:[%s13 + $0x30] sm:$0xff]
  %v5251 = vld [vmem:[%s13 + $0x38] sm:$0xff]
  %v5252 = vld [vmem:[%s13 + $0x40] sm:$0xff]
  %v5253 = vld [vmem:[%s13 + $0x48] sm:$0xff]
  %v5254 = vld [vmem:[%s13 + $0x50] sm:$0xff]
  %v5255 = vld [vmem:[%s13 + $0x58] sm:$0xff]
  %v5256 = vld [vmem:[%s13 + $0x60] sm:$0xff]
  %v5257 = vld [vmem:[%s13 + $0x68] sm:$0xff]
  %v5258 = vld [vmem:[%s13 + $0x70] sm:$0xff]
  %v5259 = vld [vmem:[%s13 + $0x78] sm:$0xff]
  %v5260 = vld [vmem:[%s14] sm:$0xff]
  %v5261 = vld [vmem:[%s14 + $0x8] sm:$0xff]
  %v5262 = vld [vmem:[%s14 + $0x10] sm:$0xff]
  %v5263 = vld [vmem:[%s14 + $0x18] sm:$0xff]
  %v5264 = vld [vmem:[%s15] sm:$0xff]
  %v5265 = vld [vmem:[%s15 + $0x8] sm:$0xff]
  %v5266 = vld [vmem:[%s15 + $0x10] sm:$0xff]
  %v5267 = vld [vmem:[%s15 + $0x18] sm:$0xff]
  %5268 = vmatprep.subr.mxu0 0.0
  %5269 = vmatpush1.msra.mxu0 %v5264
  %5270 = vmatprep.subr.mxu0 0.0
  %5271 = vmatpush1.msra.mxu0 %v5265
  %5272 = vmatprep.subr.mxu0 0.0
  %5273 = vmatpush1.msra.mxu0 %v5266
  %5274 = vmatprep.subr.mxu0 0.0
  %5275 = vmatpush1.msra.mxu0 %v5267
  %5276 = vmatprep.subr.mxu0 0.0
  %5277 = vmatpush1.msra.mxu0 0.0
  %5278 = vmatprep.subr.mxu0 0.0
  %5279 = vmatpush1.msra.mxu0 0.0
  %5280 = vmatprep.subr.mxu0 0.0
  %5281 = vmatpush1.msra.mxu0 0.0
  %5282 = vmatprep.subr.mxu0 0.0
  %5283 = vmatpush1.msra.mxu0 0.0
  %5284 = vmatprep.subr.mxu0 0.0
  %5285 = vmatpush1.msra.mxu0 0.0
  %5286 = vmatprep.subr.mxu0 0.0
  %5287 = vmatpush1.msra.mxu0 0.0
  %5288 = vmatprep.subr.mxu0 0.0
  %5289 = vmatpush1.msra.mxu0 0.0
  %5290 = vmatprep.subr.mxu0 0.0
  %5291 = vmatpush1.msra.mxu0 0.0
  %5292 = vmatprep.subr.mxu0 0.0
  %5293 = vmatpush1.msra.mxu0 0.0
  %5294 = vmatprep.subr.mxu0 0.0
  %5295 = vmatpush1.msra.mxu0 0.0
  %5296 = vmatprep.subr.mxu0 0.0
  %5297 = vmatpush1.msra.mxu0 0.0
  %5298 = vmatprep.subr.mxu0 0.0
  %5299 = vmatpush1.msra.mxu0 0.0
  %5300 = vmatprep.subr.mxu0 0.0
  %5301 = vmatpush1.msra.mxu0 0.0
  %5302 = vmatprep.subr.mxu0 0.0
  %5303 = vmatpush1.msra.mxu0 0.0
  %5304 = vmatprep.subr.mxu0 0.0
  %5305 = vmatpush1.msra.mxu0 0.0
  %5306 = vmatprep.subr.mxu0 0.0
  %5307 = vmatpush1.msra.mxu0 0.0
  %5308 = vmatprep.subr.mxu0 0.0
  %5309 = vmatpush1.msra.mxu0 0.0
  %5310 = vmatprep.subr.mxu0 0.0
  %5311 = vmatpush1.msra.mxu0 0.0
  %5312 = vmatprep.subr.mxu0 0.0
  %5313 = vmatpush1.msra.mxu0 0.0
  %5314 = vmatprep.subr.mxu0 0.0
  %5315 = vmatpush1.msra.mxu0 0.0
  %5316 = vmatprep.subr.mxu0 0.0
  %5317 = vmatpush1.msra.mxu0 0.0
  %5318 = vmatprep.subr.mxu0 0.0
  %5319 = vmatpush1.msra.mxu0 0.0
  %5320 = vmatprep.subr.mxu0 0.0
  %5321 = vmatpush1.msra.mxu0 0.0
  %5322 = vmatprep.subr.mxu0 0.0
  %5323 = vmatpush1.msra.mxu0 0.0
  %5324 = vmatprep.subr.mxu0 0.0
  %5325 = vmatpush1.msra.mxu0 0.0
  %5326 = vmatprep.subr.mxu0 0.0
  %5327 = vmatpush1.msra.mxu0 0.0
  %5328 = vmatprep.subr.mxu0 0.0
  %5329 = vmatpush1.msra.mxu0 0.0
  %5330 = vmatprep.subr.mxu0 0.0
  %5331 = vmatpush1.msra.mxu0 0.0
  %5332 = vmatprep.mubr.f32.mxu0 0.0
  %5333 = vmatmul.mubr.f32.gmra.mrb[0].mxu0 %v5083
  %v5334 = vpop.f32.mrb[0].mxu0
  %v5335 = vadd.f32 0.0, %v5334
  %v5336 = vpop.f32.mrb[0].mxu0
  %5337 = vdwg.mxu0
  %5338 = vmatprep.subr.mxu0 0.0
  %5339 = vmatpush1.msra.mxu0 %v5260
  %5340 = vmatprep.subr.mxu0 0.0
  %5341 = vmatpush1.msra.mxu0 %v5261
  %5342 = vmatprep.subr.mxu0 0.0
  %5343 = vmatpush1.msra.mxu0 %v5262
  %5344 = vmatprep.subr.mxu0 0.0
  %5345 = vmatpush1.msra.mxu0 %v5263
  %5346 = vmatprep.subr.mxu0 0.0
  %5347 = vmatpush1.msra.mxu0 0.0
  %5348 = vmatprep.subr.mxu0 0.0
  %5349 = vmatpush1.msra.mxu0 0.0
  %5350 = vmatprep.subr.mxu0 0.0
  %5351 = vmatpush1.msra.mxu0 0.0
  %5352 = vmatprep.subr.mxu0 0.0
  %5353 = vmatpush1.msra.mxu0 0.0
  %5354 = vmatprep.subr.mxu0 0.0
  %5355 = vmatpush1.msra.mxu0 0.0
  %5356 = vmatprep.subr.mxu0 0.0
  %5357 = vmatpush1.msra.mxu0 0.0
  %5358 = vmatprep.subr.mxu0 0.0
  %5359 = vmatpush1.msra.mxu0 0.0
  %5360 = vmatprep.subr.mxu0 0.0
  %5361 = vmatpush1.msra.mxu0 0.0
  %5362 = vmatprep.subr.mxu0 0.0
  %5363 = vmatpush1.msra.mxu0 0.0
  %5364 = vmatprep.subr.mxu0 0.0
  %5365 = vmatpush1.msra.mxu0 0.0
  %5366 = vmatprep.subr.mxu0 0.0
  %5367 = vmatpush1.msra.mxu0 0.0
  %5368 = vmatprep.subr.mxu0 0.0
  %5369 = vmatpush1.msra.mxu0 0.0
  %5370 = vmatprep.subr.mxu0 0.0
  %5371 = vmatpush1.msra.mxu0 0.0
  %5372 = vmatprep.subr.mxu0 0.0
  %5373 = vmatpush1.msra.mxu0 0.0
  %5374 = vmatprep.subr.mxu0 0.0
  %5375 = vmatpush1.msra.mxu0 0.0
  %5376 = vmatprep.subr.mxu0 0.0
  %5377 = vmatpush1.msra.mxu0 0.0
  %5378 = vmatprep.subr.mxu0 0.0
  %5379 = vmatpush1.msra.mxu0 0.0
  %5380 = vmatprep.subr.mxu0 0.0
  %5381 = vmatpush1.msra.mxu0 0.0
  %5382 = vmatprep.subr.mxu0 0.0
  %5383 = vmatpush1.msra.mxu0 0.0
  %5384 = vmatprep.subr.mxu0 0.0
  %5385 = vmatpush1.msra.mxu0 0.0
  %5386 = vmatprep.subr.mxu0 0.0
  %5387 = vmatpush1.msra.mxu0 0.0
  %5388 = vmatprep.subr.mxu0 0.0
  %5389 = vmatpush1.msra.mxu0 0.0
  %5390 = vmatprep.subr.mxu0 0.0
  %5391 = vmatpush1.msra.mxu0 0.0
  %5392 = vmatprep.subr.mxu0 0.0
  %5393 = vmatpush1.msra.mxu0 0.0
  %5394 = vmatprep.subr.mxu0 0.0
  %5395 = vmatpush1.msra.mxu0 0.0
  %5396 = vmatprep.subr.mxu0 0.0
  %5397 = vmatpush1.msra.mxu0 0.0
  %5398 = vmatprep.subr.mxu0 0.0
  %5399 = vmatpush1.msra.mxu0 0.0
  %5400 = vmatprep.subr.mxu0 0.0
  %5401 = vmatpush1.msra.mxu0 0.0
  %5402 = vmatprep.mubr.f32.mxu0 0.0
  %5403 = vmatmul.mubr.f32.gmra.mrb[0].mxu0 %v5156
  %v5404 = vpop.f32.mrb[0].mxu0
  %v5405 = vadd.f32 %v5335, %v5404
  %v5406 = vpop.f32.mrb[0].mxu0
  %5407 = vdwg.mxu0
  %v5408 = vld [vmem:[%s16] sm:$0xff]
  %v5409 = vld [vmem:[%s16 + $0x8] sm:$0xff]
  %v5410 = vld [vmem:[%s16 + $0x10] sm:$0xff]
  %v5411 = vld [vmem:[%s16 + $0x18] sm:$0xff]
  %v5412 = vsel %vm66, %v5073, 0
  %5414 = vmatprep.subr.mxu0 0.0
  %5415 = vmatpush1.msra.mxu0 %v5408
  %5416 = vmatprep.subr.mxu0 0.0
  %5417 = vmatpush1.msra.mxu0 %v5409
  %5418 = vmatprep.subr.mxu0 0.0
  %5419 = vmatpush1.msra.mxu0 %v5410
  %5420 = vmatprep.subr.mxu0 0.0
  %5421 = vmatpush1.msra.mxu0 %v5411
  %5422 = vmatprep.subr.mxu0 0.0
  %5423 = vmatpush1.msra.mxu0 0.0
  %5424 = vmatprep.subr.mxu0 0.0
  %5425 = vmatpush1.msra.mxu0 0.0
  %5426 = vmatprep.subr.mxu0 0.0
  %5427 = vmatpush1.msra.mxu0 0.0
  %5428 = vmatprep.subr.mxu0 0.0
  %5429 = vmatpush1.msra.mxu0 0.0
  %5430 = vmatprep.subr.mxu0 0.0
  %5431 = vmatpush1.msra.mxu0 0.0
  %5432 = vmatprep.subr.mxu0 0.0
  %5433 = vmatpush1.msra.mxu0 0.0
  %5434 = vmatprep.subr.mxu0 0.0
  %5435 = vmatpush1.msra.mxu0 0.0
  %5436 = vmatprep.subr.mxu0 0.0
  %5437 = vmatpush1.msra.mxu0 0.0
  %5438 = vmatprep.subr.mxu0 0.0
  %5439 = vmatpush1.msra.mxu0 0.0
  %5440 = vmatprep.subr.mxu0 0.0
  %5441 = vmatpush1.msra.mxu0 0.0
  %5442 = vmatprep.subr.mxu0 0.0
  %5443 = vmatpush1.msra.mxu0 0.0
  %5444 = vmatprep.subr.mxu0 0.0
  %5445 = vmatpush1.msra.mxu0 0.0
  %5446 = vmatprep.subr.mxu0 0.0
  %5447 = vmatpush1.msra.mxu0 0.0
  %5448 = vmatprep.subr.mxu0 0.0
  %5449 = vmatpush1.msra.mxu0 0.0
  %5450 = vmatprep.subr.mxu0 0.0
  %5451 = vmatpush1.msra.mxu0 0.0
  %5452 = vmatprep.subr.mxu0 0.0
  %5453 = vmatpush1.msra.mxu0 0.0
  %5454 = vmatprep.subr.mxu0 0.0
  %5455 = vmatpush1.msra.mxu0 0.0
  %5456 = vmatprep.subr.mxu0 0.0
  %5457 = vmatpush1.msra.mxu0 0.0
  %5458 = vmatprep.subr.mxu0 0.0
  %5459 = vmatpush1.msra.mxu0 0.0
  %5460 = vmatprep.subr.mxu0 0.0
  %5461 = vmatpush1.msra.mxu0 0.0
  %5462 = vmatprep.subr.mxu0 0.0
  %5463 = vmatpush1.msra.mxu0 0.0
  %5464 = vmatprep.subr.mxu0 0.0
  %5465 = vmatpush1.msra.mxu0 0.0
  %5466 = vmatprep.subr.mxu0 0.0
  %5467 = vmatpush1.msra.mxu0 0.0
  %5468 = vmatprep.subr.mxu0 0.0
  %5469 = vmatpush1.msra.mxu0 0.0
  %5470 = vmatprep.subr.mxu0 0.0
  %5471 = vmatpush1.msra.mxu0 0.0
  %5472 = vmatprep.subr.mxu0 0.0
  %5473 = vmatpush1.msra.mxu0 0.0
  %5474 = vmatprep.subr.mxu0 0.0
  %5475 = vmatpush1.msra.mxu0 0.0
  %5476 = vmatprep.subr.mxu0 0.0
  %5477 = vmatpush1.msra.mxu0 0.0
  %5478 = vmatprep.mubr.f32.mxu0 0.0
  %5479 = vmatmul.mubr.f32.gmra.mrb[0].mxu0 %v5412
  %v5480 = vpop.f32.mrb[0].mxu0
  %v5481 = vadd.f32 0.0, %v5480
  %v5482 = vpop.f32.mrb[0].mxu0
  %5483 = vdwg.mxu0
  %v5484 = vadd.f32 %v5405, %v5481
  %5485 = vmatprep.subr.mxu0 0.0
  %5486 = vmatpush1.msra.mxu0 %v5244
  %5487 = vmatprep.subr.mxu0 0.0
  %5488 = vmatpush1.msra.mxu0 %v5245
  %5489 = vmatprep.subr.mxu0 0.0
  %5490 = vmatpush1.msra.mxu0 %v5246
  %5491 = vmatprep.subr.mxu0 0.0
  %5492 = vmatpush1.msra.mxu0 %v5247
  %5493 = vmatprep.subr.mxu0 0.0
  %5494 = vmatpush1.msra.mxu0 %v5248
  %5495 = vmatprep.subr.mxu0 0.0
  %5496 = vmatpush1.msra.mxu0 %v5249
  %5497 = vmatprep.subr.mxu0 0.0
  %5498 = vmatpush1.msra.mxu0 %v5250
  %5499 = vmatprep.subr.mxu0 0.0
  %5500 = vmatpush1.msra.mxu0 %v5251
  %5501 = vmatprep.subr.mxu0 0.0
  %5502 = vmatpush1.msra.mxu0 %v5252
  %5503 = vmatprep.subr.mxu0 0.0
  %5504 = vmatpush1.msra.mxu0 %v5253
  %5505 = vmatprep.subr.mxu0 0.0
  %5506 = vmatpush1.msra.mxu0 %v5254
  %5507 = vmatprep.subr.mxu0 0.0
  %5508 = vmatpush1.msra.mxu0 %v5255
  %5509 = vmatprep.subr.mxu0 0.0
  %5510 = vmatpush1.msra.mxu0 %v5256
  %5511 = vmatprep.subr.mxu0 0.0
  %5512 = vmatpush1.msra.mxu0 %v5257
  %5513 = vmatprep.subr.mxu0 0.0
  %5514 = vmatpush1.msra.mxu0 %v5258
  %5515 = vmatprep.subr.mxu0 0.0
  %5516 = vmatpush1.msra.mxu0 %v5259
  %5517 = vmatprep.subr.mxu0 0.0
  %5518 = vmatpush1.msra.mxu0 0.0
  %5519 = vmatprep.subr.mxu0 0.0
  %5520 = vmatpush1.msra.mxu0 0.0
  %5521 = vmatprep.subr.mxu0 0.0
  %5522 = vmatpush1.msra.mxu0 0.0
  %5523 = vmatprep.subr.mxu0 0.0
  %5524 = vmatpush1.msra.mxu0 0.0
  %5525 = vmatprep.subr.mxu0 0.0
  %5526 = vmatpush1.msra.mxu0 0.0
  %5527 = vmatprep.subr.mxu0 0.0
  %5528 = vmatpush1.msra.mxu0 0.0
  %5529 = vmatprep.subr.mxu0 0.0
  %5530 = vmatpush1.msra.mxu0 0.0
  %5531 = vmatprep.subr.mxu0 0.0
  %5532 = vmatpush1.msra.mxu0 0.0
  %5533 = vmatprep.subr.mxu0 0.0
  %5534 = vmatpush1.msra.mxu0 0.0
  %5535 = vmatprep.subr.mxu0 0.0
  %5536 = vmatpush1.msra.mxu0 0.0
  %5537 = vmatprep.subr.mxu0 0.0
  %5538 = vmatpush1.msra.mxu0 0.0
  %5539 = vmatprep.subr.mxu0 0.0
  %5540 = vmatpush1.msra.mxu0 0.0
  %5541 = vmatprep.subr.mxu0 0.0
  %5542 = vmatpush1.msra.mxu0 0.0
  %5543 = vmatprep.subr.mxu0 0.0
  %5544 = vmatpush1.msra.mxu0 0.0
  %5545 = vmatprep.subr.mxu0 0.0
  %5546 = vmatpush1.msra.mxu0 0.0
  %5547 = vmatprep.subr.mxu0 0.0
  %5548 = vmatpush1.msra.mxu0 0.0
  %5549 = vmatprep.mubr.f32.mxu0 0.0
  %5550 = vmatmul.mubr.f32.gmra.mrb[0].mxu0 %v5243
  %v5551 = vpop.f32.mrb[0].mxu0
  %v5552 = vadd.f32 %v5484, %v5551
  %v5553 = vpop.f32.mrb[0].mxu0
  %5554 = vdwg.mxu0
  %v5555 = vld [vmem:[%s17] sm:$0x1]
  %v5557 = vlaneseq
  %v5558 = vshrl.u32 %v5557, 7
  %v5559 = vsub.s32 0, %v5558
  %v5560 = vrot.slane %v5555, %v5559
  %v5562 = vadd.f32 %v5552, %v5560
  %v5563 = vtanh.pop %v5562
  %v5564 = vld [vmem:[%s18] sm:$0xf]
  %vm5565 = vcmask 31744
  %v5567 = vsel %vm5565, %v5563, 0
  %vm5569 = vcmask 1043456
  %v5571 = vsel %vm5569, %v5564, 0
  %5573 = vmatprep.subr.mxu0 0.0
  %5574 = vmatpush1.msra.mxu0 %v5571
  %5575 = vmatprep.subr.mxu0 0.0
  %5576 = vmatpush1.msra.mxu0 0.0
  %5577 = vmatprep.subr.mxu0 0.0
  %5578 = vmatpush1.msra.mxu0 0.0
  %5579 = vmatprep.subr.mxu0 0.0
  %5580 = vmatpush1.msra.mxu0 0.0
  %5581 = vmatprep.subr.mxu0 0.0
  %5582 = vmatpush1.msra.mxu0 0.0
  %5583 = vmatprep.subr.mxu0 0.0
  %5584 = vmatpush1.msra.mxu0 0.0
  %5585 = vmatprep.subr.mxu0 0.0
  %5586 = vmatpush1.msra.mxu0 0.0
  %5587 = vmatprep.subr.mxu0 0.0
  %5588 = vmatpush1.msra.mxu0 0.0
  %5589 = vmatprep.subr.mxu0 0.0
  %5590 = vmatpush1.msra.mxu0 0.0
  %5591 = vmatprep.subr.mxu0 0.0
  %5592 = vmatpush1.msra.mxu0 0.0
  %5593 = vmatprep.subr.mxu0 0.0
  %5594 = vmatpush1.msra.mxu0 0.0
  %5595 = vmatprep.subr.mxu0 0.0
  %5596 = vmatpush1.msra.mxu0 0.0
  %5597 = vmatprep.subr.mxu0 0.0
  %5598 = vmatpush1.msra.mxu0 0.0
  %5599 = vmatprep.subr.mxu0 0.0
  %5600 = vmatpush1.msra.mxu0 0.0
  %5601 = vmatprep.subr.mxu0 0.0
  %5602 = vmatpush1.msra.mxu0 0.0
  %5603 = vmatprep.subr.mxu0 0.0
  %5604 = vmatpush1.msra.mxu0 0.0
  %5605 = vmatprep.subr.mxu0 0.0
  %5606 = vmatpush1.msra.mxu0 0.0
  %5607 = vmatprep.subr.mxu0 0.0
  %5608 = vmatpush1.msra.mxu0 0.0
  %5609 = vmatprep.subr.mxu0 0.0
  %5610 = vmatpush1.msra.mxu0 0.0
  %5611 = vmatprep.subr.mxu0 0.0
  %5612 = vmatpush1.msra.mxu0 0.0
  %5613 = vmatprep.subr.mxu0 0.0
  %5614 = vmatpush1.msra.mxu0 0.0
  %5615 = vmatprep.subr.mxu0 0.0
  %5616 = vmatpush1.msra.mxu0 0.0
  %5617 = vmatprep.subr.mxu0 0.0
  %5618 = vmatpush1.msra.mxu0 0.0
  %5619 = vmatprep.subr.mxu0 0.0
  %5620 = vmatpush1.msra.mxu0 0.0
  %5621 = vmatprep.subr.mxu0 0.0
  %5622 = vmatpush1.msra.mxu0 0.0
  %5623 = vmatprep.subr.mxu0 0.0
  %5624 = vmatpush1.msra.mxu0 0.0
  %5625 = vmatprep.subr.mxu0 0.0
  %5626 = vmatpush1.msra.mxu0 0.0
  %5627 = vmatprep.subr.mxu0 0.0
  %5628 = vmatpush1.msra.mxu0 0.0
  %5629 = vmatprep.subr.mxu0 0.0
  %5630 = vmatpush1.msra.mxu0 0.0
  %5631 = vmatprep.subr.mxu0 0.0
  %5632 = vmatpush1.msra.mxu0 0.0
  %5633 = vmatprep.subr.mxu0 0.0
  %5634 = vmatpush1.msra.mxu0 0.0
  %5635 = vmatprep.subr.mxu0 0.0
  %5636 = vmatpush1.msra.mxu0 0.0
  %5637 = vmatprep.mubr.f32.mxu0 0.0
  %5638 = vmatmul.mubr.f32.gmra.mrb[0].mxu0 %v5567
  %v5639 = vpop.f32.mrb[0].mxu0
  %v5640 = vadd.f32 0.0, %v5639
  %v5641 = vpop.f32.mrb[0].mxu0
  %5642 = vdwg.mxu0
  %5644 = vset.pattern.permute.xlu0 0
  %5645 = vperm.xlu0 %5644, %v5640
  %v5646 = vpop.permute.xlu0 %5645
  %5648 = vst [vmem:[%s19] sm:$0xff] %v5646
  // Predicated region
  $region74: #{expan_match_forward.1} parent=0 // pred_check
    _
  $region75: #{expan_match_forward.1} parent=0 // pred_check_branch
    %5650 = sbr.rel (0) target = $region77
  $region76: #{expan_match_forward.1} parent=0 // pred_region
    _
  $region77: #{expan_match_forward.1} parent=0 // pred_fallthru
    _
  // Predicated region
  $region78: #{expan_match_forward.1} parent=0 // pred_check
    _
  $region79: #{expan_match_forward.1} parent=0 // pred_check_branch
    %5652 = sbr.rel (0) target = $region81
  $region80: #{expan_match_forward.1} parent=0 // pred_region
    _
  $region81: #{expan_match_forward.1} parent=0 // pred_fallthru
    _

</llo_original>
